<compile_context>
chip_gen: v5e
topology: v5e:2x2
jax: 0.10.0
libtpu: 0.0.40
codegen_flags: <defaults>
</compile_context>

<pallas_src>
import jax
import jax.numpy as jnp
from jax import lax
from jax.experimental import pallas as pl
from jax.experimental.pallas import tpu as pltpu

EPS = 1e-5
C_PAD = 128                    # lane-dense padded channel width for all kernel outputs
CONV_MAX_TILE = 2048           # max patch rows per conv1 grid step
FC_MAX_BATCH = 64              # max samples per fused conv2+FC grid step
VMEM_LIMIT = 32 * 1024 * 1024  # explicit scoped-VMEM limit (v5e default is only 16 MiB)


def _round_up(x, m):
    return (x + m - 1) // m * m


def _pick_tile(rows, max_tile, *, align=8, min_parts=1):
    """Padding-minimizing tile choice: tile is align-multiple, padded = tile * parts."""
    r = _round_up(max(rows, 1), align)
    parts = max(-(-r // max_tile), min_parts)
    tile = _round_up(-(-r // parts), align)
    return tile, tile * parts


# ----------------------------------------------------------------------------
# Pallas kernels
# ----------------------------------------------------------------------------
def _conv_bn_relu_pool_kernel(q_ref, w_ref, shift_ref, o_ref):
    """Fused conv(as one matmul) + folded-BN affine + ReLU + 2x2 max-pool.

    q_ref:     (1, 4*T, K) bf16  im2col rows, the 4 pooling quadrants stacked along rows
    w_ref:     (K, 128)    bf16  conv weight matrix with BN scale folded in
    shift_ref: (1, 128)    f32   folded conv-bias / BN shift
    o_ref:     (T, 128)    bf16  pooled, activated output (lane-dense)
    """
    t = o_ref.shape[0]
    y = jnp.dot(q_ref[0], w_ref[...], preferred_element_type=jnp.float32)  # (4*T, 128) f32
    y4 = y.reshape(4, t, C_PAD)
    # shift is shared by all 4 quadrants and ReLU is monotone, so
    # maxpool(relu(y_q + shift)) == relu(max_q(y_q) + shift).
    y = jnp.maximum(jnp.maximum(y4[0], y4[1]), jnp.maximum(y4[2], y4[3])) + shift_ref[...]
    o_ref[...] = jnp.maximum(y, 0.0).astype(o_ref.dtype)


def _conv2_fc_fused_kernel(q_ref, w2_ref, s2_ref, wf1_ref, bf1_ref,
                           wf2_ref, bf2_ref, wf3_ref, bf3_ref, o_ref):
    """conv2+BN+ReLU+pool -> fc1+ReLU -> fc2+ReLU -> fc3+ReLU, all intermediates in VMEM.

    q_ref:  (1, 4*25*B, 150) bf16   rows ordered (quadrant, spatial, sample-in-tile)
    w2_ref: (150, 128) bf16;  s2_ref: (1, 128) f32
    wf1_ref:(25, 128, 128) bf16 (fc1 weight, spatial-major, channel x out, padded)
    wf2/wf3:(128, 128) bf16;  bf1/bf2/bf3: (1, 128) f32
    o_ref:  (B, 128) f32 logits (only first 10 lanes are real)
    """
    bt = o_ref.shape[0]
    y = jnp.dot(q_ref[0], w2_ref[...], preferred_element_type=jnp.float32)  # (100*B, 128)
    y4 = y.reshape(4, 25 * bt, C_PAD)
    y = jnp.maximum(jnp.maximum(y4[0], y4[1]), jnp.maximum(y4[2], y4[3])) + s2_ref[...]
    a = jnp.maximum(y, 0.0)                                  # (25*B, 128) conv2 activations
    a3 = a.reshape(25, bt, C_PAD).astype(jnp.bfloat16)       # spatial-major, batch-minor
    # fc1 as a spatially-batched matmul followed by a reduction over the 25 positions.
    t = jnp.einsum('sbc,sco->sbo', a3, wf1_ref[...],
                   preferred_element_type=jnp.float32)        # (25, B, 128)
    h = jnp.maximum(jnp.sum(t, axis=0) + bf1_ref[...], 0.0)   # (B, 128)
    h = jnp.dot(h.astype(jnp.bfloat16), wf2_ref[...], preferred_element_type=jnp.float32)
    h = jnp.maximum(h + bf2_ref[...], 0.0)
    h = jnp.dot(h.astype(jnp.bfloat16), wf3_ref[...], preferred_element_type=jnp.float32)
    o_ref[...] = jnp.maximum(h + bf3_ref[...], 0.0).astype(o_ref.dtype)


# ----------------------------------------------------------------------------
# Kernel wrappers
# ----------------------------------------------------------------------------
def pallas_conv_bn_relu_pool(q_blocks, w_mat, shift, tile_p):
    """q_blocks: (nb, 4*tile_p, K) bf16. Returns (nb*tile_p, 128) bf16."""
    nb, rows, k = q_blocks.shape
    return pl.pallas_call(
        _conv_bn_relu_pool_kernel,
        out_shape=jax.ShapeDtypeStruct((nb * tile_p, C_PAD), jnp.bfloat16),
        grid=(nb,),
        in_specs=[
            pl.BlockSpec((1, rows, k), lambda i: (i, 0, 0)),
            pl.BlockSpec((k, C_PAD), lambda i: (0, 0)),
            pl.BlockSpec((1, C_PAD), lambda i: (0, 0)),
        ],
        out_specs=pl.BlockSpec((tile_p, C_PAD), lambda i: (i, 0)),
        compiler_params=pltpu.CompilerParams(
            dimension_semantics=("parallel",),
            vmem_limit_bytes=VMEM_LIMIT),
    )(q_blocks, w_mat, shift)


def pallas_conv2_fc_fused(q_blocks, prep, tile_b):
    """q_blocks: (nb, 4*25*tile_b, 150) bf16. Returns (nb*tile_b, 128) f32 logits."""
    nb, rows, k2 = q_blocks.shape
    return pl.pallas_call(
        _conv2_fc_fused_kernel,
        out_shape=jax.ShapeDtypeStruct((nb * tile_b, C_PAD), jnp.float32),
        grid=(nb,),
        in_specs=[
            pl.BlockSpec((1, rows, k2), lambda i: (i, 0, 0)),
            pl.BlockSpec((k2, C_PAD), lambda i: (0, 0)),
            pl.BlockSpec((1, C_PAD), lambda i: (0, 0)),
            pl.BlockSpec((25, C_PAD, C_PAD), lambda i: (0, 0, 0)),
            pl.BlockSpec((1, C_PAD), lambda i: (0, 0)),
            pl.BlockSpec((C_PAD, C_PAD), lambda i: (0, 0)),
            pl.BlockSpec((1, C_PAD), lambda i: (0, 0)),
            pl.BlockSpec((C_PAD, C_PAD), lambda i: (0, 0)),
            pl.BlockSpec((1, C_PAD), lambda i: (0, 0)),
        ],
        out_specs=pl.BlockSpec((tile_b, C_PAD), lambda i: (i, 0)),
        compiler_params=pltpu.CompilerParams(
            dimension_semantics=("parallel",),
            vmem_limit_bytes=VMEM_LIMIT),
    )(q_blocks, prep["w2"], prep["s2"], prep["wf1"], prep["bf1"],
      prep["wf2"], prep["bf2"], prep["wf3"], prep["bf3"])


# ----------------------------------------------------------------------------
# Glue: quadrant-grouped im2col (XLA) + block-ordering for lane/sublane-dense kernels
# ----------------------------------------------------------------------------
def _im2col_quadrants(x_nhwc, k):
    """im2col with rows grouped by 2x2 pooling quadrant.

    Returns quads (4, N*Hp*Wp, k*k*C): quads[q, p] is the patch feeding conv-output position
    (2*hp + q//2, 2*wp + q%2) of pooled cell p (p ordered (n, hp, wp)), plus (N, Hp, Wp).
    """
    n, h, w, c = x_nhwc.shape
    ho, wo = h - k + 1, w - k + 1
    hp, wp = ho // 2, wo // 2
    cols = [x_nhwc[:, di:di + ho, dj:dj + wo, :]
            for di in range(k) for dj in range(k)]
    patches = jnp.concatenate(cols, axis=-1)                        # (N, Ho, Wo, k*k*C)
    quads = jnp.stack([patches[:, qi::2, qj::2, :]
                       for qi in range(2) for qj in range(2)], axis=0)
    return quads.reshape(4, n * hp * wp, k * k * c), (n, hp, wp)


def _blockify_rows(quads, tile):
    """(4, P, K) -> (nb, 4*tile, K) with per-block row order (quadrant, row-in-tile)."""
    _, p, k = quads.shape
    p_pad = _round_up(p, tile)
    if p_pad != p:
        quads = jnp.pad(quads, ((0, 0), (0, p_pad - p), (0, 0)))
    nb = p_pad // tile
    quads = jnp.transpose(quads.reshape(4, nb, tile, k), (1, 0, 2, 3))
    return quads.reshape(nb, 4 * tile, k)


def _im2col_conv2_blocks(y_nhwc, k, tile_b):
    """Conv2 quads, batch-tiled, per-block row order (quadrant, spatial, sample-in-tile).

    y_nhwc: (N_pad, 14, 14, C) with N_pad % tile_b == 0. Returns (nb, 4*25*tile_b, k*k*C).
    """
    n, h, w, c = y_nhwc.shape
    ho, wo = h - k + 1, w - k + 1
    hp, wp = ho // 2, wo // 2
    cols = [y_nhwc[:, di:di + ho, dj:dj + wo, :]
            for di in range(k) for dj in range(k)]
    patches = jnp.concatenate(cols, axis=-1)                        # (N, 10, 10, K)
    quads = jnp.stack([patches[:, qi::2, qj::2, :]
                       for qi in range(2) for qj in range(2)], axis=0)   # (4, N, 5, 5, K)
    kk = k * k * c
    nb = n // tile_b
    quads = quads.reshape(4, nb, tile_b, hp * wp, kk)
    quads = jnp.transpose(quads, (1, 0, 3, 2, 4))                   # (nb, 4, 25, tile_b, K)
    return quads.reshape(nb, 4 * hp * wp * tile_b, kk)


def prepare_params(p):
    """One-time layout/folding work hoisted out of the jitted forward."""
    def conv_prep(w_oihw, bias, gamma, beta, mean, var):
        o = w_oihw.shape[0]
        scale = gamma / jnp.sqrt(var + EPS)
        shift = beta + (bias - mean) * scale
        wm = jnp.transpose(w_oihw, (2, 3, 1, 0)).reshape(-1, o)     # (k*k*I, O)
        wm = wm * scale[None, :]                                    # fold BN scale
        wm = jnp.pad(wm, ((0, 0), (0, C_PAD - o)))                  # lane-dense N
        shift = jnp.pad(shift, (0, C_PAD - o))[None, :]
        return wm.astype(jnp.bfloat16), shift.astype(jnp.float32)

    prep = {}
    prep["w1"], prep["s1"] = conv_prep(p["w_conv1"], p["b_conv1"], p["bn1_gamma"],
                                       p["bn1_beta"], p["bn1_mean"], p["bn1_var"])
    prep["w2"], prep["s2"] = conv_prep(p["w_conv2"], p["b_conv2"], p["bn2_gamma"],
                                       p["bn2_beta"], p["bn2_mean"], p["bn2_var"])

    # fc1: PyTorch NCHW-flatten index (c*25 + s) remapped to (spatial s, padded channel c).
    w1 = p["w_fc1"].reshape(120, 16, 5, 5)            # (out, c, h, w)
    w1 = jnp.transpose(w1, (2, 3, 1, 0))              # (h, w, c, out)
    w1 = jnp.pad(w1, ((0, 0), (0, 0), (0, C_PAD - 16), (0, C_PAD - 120)))
    prep["wf1"] = w1.reshape(25, C_PAD, C_PAD).astype(jnp.bfloat16)
    prep["bf1"] = jnp.pad(p["b_fc1"], (0, C_PAD - 120))[None, :].astype(jnp.float32)

    prep["wf2"] = jnp.pad(p["w_fc2"].T, ((0, C_PAD - 120), (0, C_PAD - 84))).astype(jnp.bfloat16)
    prep["bf2"] = jnp.pad(p["b_fc2"], (0, C_PAD - 84))[None, :].astype(jnp.float32)

    prep["wf3"] = jnp.pad(p["w_fc3"].T, ((0, C_PAD - 84), (0, C_PAD - 10))).astype(jnp.bfloat16)
    prep["bf3"] = jnp.pad(p["b_fc3"], (0, C_PAD - 10))[None, :].astype(jnp.float32)
    return prep


def init_params(key):
    ks = jax.random.split(key, 10)
    p = {}
    p["w_conv1"] = 0.1 * jax.random.normal(ks[0], (6, 3, 5, 5), jnp.float32)
    p["b_conv1"] = 0.1 * jax.random.normal(ks[1], (6,), jnp.float32)
    p["bn1_gamma"] = jax.random.uniform(ks[2], (6,), jnp.float32, 0.5, 1.5)
    p["bn1_beta"] = 0.1 * jax.random.normal(ks[2], (6,), jnp.float32)
    p["bn1_mean"] = 0.1 * jax.random.normal(ks[3], (6,), jnp.float32)
    p["bn1_var"] = jax.random.uniform(ks[3], (6,), jnp.float32, 0.5, 1.5)

    p["w_conv2"] = 0.1 * jax.random.normal(ks[4], (16, 6, 5, 5), jnp.float32)
    p["b_conv2"] = 0.1 * jax.random.normal(ks[5], (16,), jnp.float32)
    p["bn2_gamma"] = jax.random.uniform(ks[6], (16,), jnp.float32, 0.5, 1.5)
    p["bn2_beta"] = 0.1 * jax.random.normal(ks[6], (16,), jnp.float32)
    p["bn2_mean"] = 0.1 * jax.random.normal(ks[7], (16,), jnp.float32)
    p["bn2_var"] = jax.random.uniform(ks[7], (16,), jnp.float32, 0.5, 1.5)

    p["w_fc1"] = 0.05 * jax.random.normal(ks[8], (120, 400), jnp.float32)
    p["b_fc1"] = 0.05 * jax.random.normal(ks[8], (120,), jnp.float32)
    p["w_fc2"] = 0.05 * jax.random.normal(ks[9], (84, 120), jnp.float32)
    p["b_fc2"] = 0.05 * jax.random.normal(ks[9], (84,), jnp.float32)
    kk = jax.random.split(ks[9], 2)
    p["w_fc3"] = 0.05 * jax.random.normal(kk[0], (10, 84), jnp.float32)
    p["b_fc3"] = 0.05 * jax.random.normal(kk[1], (10,), jnp.float32)
    return p


# ----------------------------------------------------------------------------
# Forward pass (Pallas)
# ----------------------------------------------------------------------------
@jax.jit
def cifarnet_forward(x_nchw, prep):
    x = jnp.transpose(x_nchw, (0, 2, 3, 1)).astype(jnp.bfloat16)        # NHWC, bf16 operands
    n = x.shape[0]

    # conv_layer1: Conv2d(3,6,5)+BN+ReLU+MaxPool(2,2) fused in one kernel.
    quads, (_, hp1, wp1) = _im2col_quadrants(x, 5)                      # (4, N*196, 75) bf16
    p_rows = quads.shape[1]
    tile_p, _ = _pick_tile(p_rows, CONV_MAX_TILE, align=16,
                           min_parts=2 if p_rows >= 256 else 1)
    q1 = _blockify_rows(quads, tile_p)                                  # (nb1, 4*tile_p, 75)
    y = pallas_conv_bn_relu_pool(q1, prep["w1"], prep["s1"], tile_p)    # (nb1*tile_p, 128) bf16
    y = y[:p_rows].reshape(n, hp1, wp1, C_PAD)[..., :6]                 # (N, 14, 14, 6)

    # conv_layer2 (+Dropout2d eval) + lin_layer1..3 (Dropout eval) fused in one kernel,
    # tiled over the batch; the 3200-wide fc1 activation never leaves VMEM.
    tile_b, n_pad = _pick_tile(n, FC_MAX_BATCH, align=8,
                               min_parts=2 if n >= 64 else 1)
    if n_pad != n:
        y = jnp.pad(y, ((0, n_pad - n), (0, 0), (0, 0), (0, 0)))
    q2 = _im2col_conv2_blocks(y, 5, tile_b)                             # (nb2, 100*tile_b, 150)
    out = pallas_conv2_fc_fused(q2, prep, tile_b)                       # (n_pad, 128) f32
    return out[:n, :10]                                                 # final ReLU per spec


# ----------------------------------------------------------------------------
# Pure-JAX reference (for correctness check)
# ----------------------------------------------------------------------------
def ref_forward(x_nchw, p):
    def conv_bn_relu_pool(x, w, b, g, beta, mean, var):
        y = lax.conv_general_dilated(
            x, w, (1, 1), "VALID",
            dimension_numbers=("NCHW", "OIHW", "NCHW"))
        y = y + b[None, :, None, None]
        y = g[None, :, None, None] * (y - mean[None, :, None, None]) \
            / jnp.sqrt(var[None, :, None, None] + EPS) + beta[None, :, None, None]
        y = jnp.maximum(y, 0.0)
        return lax.reduce_window(y, -jnp.inf, lax.max,
                                 (1, 1, 2, 2), (1, 1, 2, 2), "VALID")

    x = x_nchw.astype(jnp.float32)
    x = conv_bn_relu_pool(x, p["w_conv1"], p["b_conv1"], p["bn1_gamma"],
                          p["bn1_beta"], p["bn1_mean"], p["bn1_var"])
    x = conv_bn_relu_pool(x, p["w_conv2"], p["b_conv2"], p["bn2_gamma"],
                          p["bn2_beta"], p["bn2_mean"], p["bn2_var"])
    x = x.reshape(x.shape[0], -1)
    x = jnp.maximum(x @ p["w_fc1"].T + p["b_fc1"], 0.0)
    x = jnp.maximum(x @ p["w_fc2"].T + p["b_fc2"], 0.0)
    x = jnp.maximum(x @ p["w_fc3"].T + p["b_fc3"], 0.0)
    return x


if __name__ == "__main__":
    key = jax.random.PRNGKey(0)
    k_x, k_p = jax.random.split(key)
    # CIFAR-10 geometry is required by the flatten (16*5*5). Batch 8: conv1 runs a 2-step
    # "parallel" grid (784-row tiles, zero padding); conv2+FC runs one 8-sample tile.
    x = jax.random.normal(k_x, (8, 3, 32, 32), jnp.float32)
    params = init_params(k_p)
    prep = prepare_params(params)          # one-time layout/folding, outside jit

    out = cifarnet_forward(x, prep)
    out = jax.block_until_ready(out)
    assert out.shape == (8, 10), out.shape

    ref = ref_forward(x, params)
    # bf16 matmul operands with f32 accumulation: loosened tolerance vs the f32 reference.
    assert jnp.allclose(out, ref, atol=5e-2, rtol=5e-2), \
        float(jnp.max(jnp.abs(out - ref)))

    print("KERNEL_OK")
</pallas_src>

<mosaic_0001>
module attributes {stable_mosaic.version = 11 : i64} {
  func.func @_conv_bn_relu_pool_kernel(%arg0: i32, %arg1: memref<1x3136x75xbf16, #tpu.memory_space<vmem>>, %arg2: memref<75x128xbf16, #tpu.memory_space<vmem>>, %arg3: memref<1x128xf32, #tpu.memory_space<vmem>>, %arg4: memref<784x128xbf16, #tpu.memory_space<vmem>>) attributes {dimension_semantics = [#tpu.dimension_semantics<parallel>], iteration_bounds = array<i64: 2>, scalar_prefetch = 0 : i64, scratch_operands = 0 : i64, tpu.core_type = #tpu.core_type<tc>, window_params = [{transform_indices = @transform_0, window_bounds = array<i64: 1, 3136, 75>}, {pipeline_mode = #tpu.pipeline_mode<synchronous>, transform_indices = @transform_1, window_bounds = array<i64: 75, 128>}, {pipeline_mode = #tpu.pipeline_mode<synchronous>, transform_indices = @transform_2, window_bounds = array<i64: 1, 128>}, {transform_indices = @transform_3, window_bounds = array<i64: 784, 128>}]} {
    %c0 = arith.constant 0 : index
    %c0_0 = arith.constant 0 : index
    %c0_1 = arith.constant 0 : index
    %0 = vector.load %arg1[%c0, %c0_0, %c0_1] : memref<1x3136x75xbf16, #tpu.memory_space<vmem>>, vector<1x3136x75xbf16>
    %1 = vector.shape_cast %0 : vector<1x3136x75xbf16> to vector<3136x75xbf16>
    %c0_2 = arith.constant 0 : index
    %c0_3 = arith.constant 0 : index
    %2 = vector.load %arg2[%c0_2, %c0_3] : memref<75x128xbf16, #tpu.memory_space<vmem>>, vector<75x128xbf16>
    %cst = arith.constant dense<0.000000e+00> : vector<3136x128xf32>
    %3 = tpu.matmul %1, %2, %cst {dimension_numbers = #tpu.dot_dimension_numbers<[1], [0], [0], [1], [0, 0, 1, 1], [], []>} : vector<3136x75xbf16>, vector<75x128xbf16>, vector<3136x128xf32> -> vector<3136x128xf32>
    %4 = vector.shape_cast %3 : vector<3136x128xf32> to vector<4x784x128xf32>
    %5 = vector.extract_strided_slice %4 {offsets = [0, 0, 0], sizes = [1, 784, 128], strides = [1, 1, 1]} : vector<4x784x128xf32> to vector<1x784x128xf32>
    %6 = vector.shape_cast %5 : vector<1x784x128xf32> to vector<784x128xf32>
    %7 = vector.extract_strided_slice %4 {offsets = [1, 0, 0], sizes = [1, 784, 128], strides = [1, 1, 1]} : vector<4x784x128xf32> to vector<1x784x128xf32>
    %8 = vector.shape_cast %7 : vector<1x784x128xf32> to vector<784x128xf32>
    %9 = arith.maximumf %6, %8 : vector<784x128xf32>
    %10 = vector.extract_strided_slice %4 {offsets = [2, 0, 0], sizes = [1, 784, 128], strides = [1, 1, 1]} : vector<4x784x128xf32> to vector<1x784x128xf32>
    %11 = vector.shape_cast %10 : vector<1x784x128xf32> to vector<784x128xf32>
    %12 = vector.extract_strided_slice %4 {offsets = [3, 0, 0], sizes = [1, 784, 128], strides = [1, 1, 1]} : vector<4x784x128xf32> to vector<1x784x128xf32>
    %13 = vector.shape_cast %12 : vector<1x784x128xf32> to vector<784x128xf32>
    %14 = arith.maximumf %11, %13 : vector<784x128xf32>
    %15 = arith.maximumf %9, %14 : vector<784x128xf32>
    %c0_4 = arith.constant 0 : index
    %c0_5 = arith.constant 0 : index
    %16 = vector.load %arg3[%c0_4, %c0_5] : memref<1x128xf32, #tpu.memory_space<vmem>>, vector<1x128xf32>
    %17 = vector.broadcast %16 : vector<1x128xf32> to vector<784x128xf32>
    %18 = arith.addf %15, %17 : vector<784x128xf32>
    %cst_6 = arith.constant 0.000000e+00 : f32
    %19 = vector.broadcast %cst_6 : f32 to vector<784x128xf32>
    %20 = arith.maximumf %18, %19 : vector<784x128xf32>
    %21 = arith.truncf %20 : vector<784x128xf32> to vector<784x128xbf16>
    %c0_7 = arith.constant 0 : index
    %c0_8 = arith.constant 0 : index
    %22 = vector.load %arg4[%c0_7, %c0_8] : memref<784x128xbf16, #tpu.memory_space<vmem>>, vector<784x128xbf16>
    tpu.vector_store %arg4[%c0_7, %c0_8], %21 {strides = array<i32>} : memref<784x128xbf16, #tpu.memory_space<vmem>>, vector<784x128xbf16>,
    return
  }
  func.func @transform_0(%arg0: i32) -> (i32, i32, i32) {
    %c0_i32 = arith.constant 0 : i32
    %c0_i32_0 = arith.constant 0 : i32
    %c0_i32_1 = arith.constant 0 : i32
    return %arg0, %c0_i32, %c0_i32_0 : i32, i32, i32
  }
  func.func @transform_1(%arg0: i32) -> (i32, i32) {
    %c0_i32 = arith.constant 0 : i32
    %c0_i32_0 = arith.constant 0 : i32
    %c0_i32_1 = arith.constant 0 : i32
    return %c0_i32, %c0_i32_0 : i32, i32
  }
  func.func @transform_2(%arg0: i32) -> (i32, i32) {
    %c0_i32 = arith.constant 0 : i32
    %c0_i32_0 = arith.constant 0 : i32
    %c0_i32_1 = arith.constant 0 : i32
    return %c0_i32, %c0_i32_0 : i32, i32
  }
  func.func @transform_3(%arg0: i32) -> (i32, i32) {
    %c0_i32 = arith.constant 0 : i32
    %c0_i32_0 = arith.constant 0 : i32
    return %arg0, %c0_i32 : i32, i32
  }
}

module attributes {stable_mosaic.version = 11 : i64} {
  func.func @_conv2_fc_fused_kernel(%arg0: i32, %arg1: memref<1x800x150xbf16, #tpu.memory_space<vmem>>, %arg2: memref<150x128xbf16, #tpu.memory_space<vmem>>, %arg3: memref<1x128xf32, #tpu.memory_space<vmem>>, %arg4: memref<25x128x128xbf16, #tpu.memory_space<vmem>>, %arg5: memref<1x128xf32, #tpu.memory_space<vmem>>, %arg6: memref<128x128xbf16, #tpu.memory_space<vmem>>, %arg7: memref<1x128xf32, #tpu.memory_space<vmem>>, %arg8: memref<128x128xbf16, #tpu.memory_space<vmem>>, %arg9: memref<1x128xf32, #tpu.memory_space<vmem>>, %arg10: memref<8x128xf32, #tpu.memory_space<vmem>>) attributes {dimension_semantics = [#tpu.dimension_semantics<parallel>], iteration_bounds = array<i64: 1>, scalar_prefetch = 0 : i64, scratch_operands = 0 : i64, tpu.core_type = #tpu.core_type<tc>, window_params = [{transform_indices = @transform_0, window_bounds = array<i64: 1, 800, 150>}, {pipeline_mode = #tpu.pipeline_mode<synchronous>, transform_indices = @transform_1, window_bounds = array<i64: 150, 128>}, {pipeline_mode = #tpu.pipeline_mode<synchronous>, transform_indices = @transform_2, window_bounds = array<i64: 1, 128>}, {pipeline_mode = #tpu.pipeline_mode<synchronous>, transform_indices = @transform_3, window_bounds = array<i64: 25, 128, 128>}, {pipeline_mode = #tpu.pipeline_mode<synchronous>, transform_indices = @transform_4, window_bounds = array<i64: 1, 128>}, {pipeline_mode = #tpu.pipeline_mode<synchronous>, transform_indices = @transform_5, window_bounds = array<i64: 128, 128>}, {pipeline_mode = #tpu.pipeline_mode<synchronous>, transform_indices = @transform_6, window_bounds = array<i64: 1, 128>}, {pipeline_mode = #tpu.pipeline_mode<synchronous>, transform_indices = @transform_7, window_bounds = array<i64: 128, 128>}, {pipeline_mode = #tpu.pipeline_mode<synchronous>, transform_indices = @transform_8, window_bounds = array<i64: 1, 128>}, {transform_indices = @transform_9, window_bounds = array<i64: 8, 128>}]} {
    %c0 = arith.constant 0 : index
    %c0_0 = arith.constant 0 : index
    %c0_1 = arith.constant 0 : index
    %0 = vector.load %arg1[%c0, %c0_0, %c0_1] : memref<1x800x150xbf16, #tpu.memory_space<vmem>>, vector<1x800x150xbf16>
    %1 = vector.shape_cast %0 : vector<1x800x150xbf16> to vector<800x150xbf16>
    %c0_2 = arith.constant 0 : index
    %c0_3 = arith.constant 0 : index
    %2 = vector.load %arg2[%c0_2, %c0_3] : memref<150x128xbf16, #tpu.memory_space<vmem>>, vector<150x128xbf16>
    %cst = arith.constant dense<0.000000e+00> : vector<800x128xf32>
    %3 = tpu.matmul %1, %2, %cst {dimension_numbers = #tpu.dot_dimension_numbers<[1], [0], [0], [1], [0, 0, 1, 1], [], []>} : vector<800x150xbf16>, vector<150x128xbf16>, vector<800x128xf32> -> vector<800x128xf32>
    %4 = vector.shape_cast %3 : vector<800x128xf32> to vector<4x200x128xf32>
    %5 = vector.extract_strided_slice %4 {offsets = [0, 0, 0], sizes = [1, 200, 128], strides = [1, 1, 1]} : vector<4x200x128xf32> to vector<1x200x128xf32>
    %6 = vector.shape_cast %5 : vector<1x200x128xf32> to vector<200x128xf32>
    %7 = vector.extract_strided_slice %4 {offsets = [1, 0, 0], sizes = [1, 200, 128], strides = [1, 1, 1]} : vector<4x200x128xf32> to vector<1x200x128xf32>
    %8 = vector.shape_cast %7 : vector<1x200x128xf32> to vector<200x128xf32>
    %9 = arith.maximumf %6, %8 : vector<200x128xf32>
    %10 = vector.extract_strided_slice %4 {offsets = [2, 0, 0], sizes = [1, 200, 128], strides = [1, 1, 1]} : vector<4x200x128xf32> to vector<1x200x128xf32>
    %11 = vector.shape_cast %10 : vector<1x200x128xf32> to vector<200x128xf32>
    %12 = vector.extract_strided_slice %4 {offsets = [3, 0, 0], sizes = [1, 200, 128], strides = [1, 1, 1]} : vector<4x200x128xf32> to vector<1x200x128xf32>
    %13 = vector.shape_cast %12 : vector<1x200x128xf32> to vector<200x128xf32>
    %14 = arith.maximumf %11, %13 : vector<200x128xf32>
    %15 = arith.maximumf %9, %14 : vector<200x128xf32>
    %c0_4 = arith.constant 0 : index
    %c0_5 = arith.constant 0 : index
    %16 = vector.load %arg3[%c0_4, %c0_5] : memref<1x128xf32, #tpu.memory_space<vmem>>, vector<1x128xf32>
    %17 = vector.broadcast %16 : vector<1x128xf32> to vector<200x128xf32>
    %18 = arith.addf %15, %17 : vector<200x128xf32>
    %cst_6 = arith.constant 0.000000e+00 : f32
    %19 = vector.broadcast %cst_6 : f32 to vector<200x128xf32>
    %20 = arith.maximumf %18, %19 : vector<200x128xf32>
    %21 = vector.shape_cast %20 : vector<200x128xf32> to vector<25x8x128xf32>
    %22 = arith.truncf %21 : vector<25x8x128xf32> to vector<25x8x128xbf16>
    %c0_7 = arith.constant 0 : index
    %c0_8 = arith.constant 0 : index
    %c0_9 = arith.constant 0 : index
    %23 = vector.load %arg4[%c0_7, %c0_8, %c0_9] : memref<25x128x128xbf16, #tpu.memory_space<vmem>>, vector<25x128x128xbf16>
    "tpu.trace_start"() <{level = 10 : i32, message = "sbc,sco->sbo"}> : () -> ()
    %cst_10 = arith.constant dense<0.000000e+00> : vector<25x8x128xf32>
    %24 = tpu.matmul %22, %23, %cst_10 {dimension_numbers = #tpu.dot_dimension_numbers<[2], [1], [1], [2], [0, 0, 0, 1, 1, 2], [0], [0]>} : vector<25x8x128xbf16>, vector<25x128x128xbf16>, vector<25x8x128xf32> -> vector<25x8x128xf32>
    "tpu.trace_stop"() : () -> ()
    %cst_11 = arith.constant dense<0.000000e+00> : vector<8x128xf32>
    %25 = vector.multi_reduction <add>, %24, %cst_11 [0] : vector<25x8x128xf32> to vector<8x128xf32>
    %c0_12 = arith.constant 0 : index
    %c0_13 = arith.constant 0 : index
    %26 = vector.load %arg5[%c0_12, %c0_13] : memref<1x128xf32, #tpu.memory_space<vmem>>, vector<1x128xf32>
    %27 = vector.broadcast %26 : vector<1x128xf32> to vector<8x128xf32>
    %28 = arith.addf %25, %27 : vector<8x128xf32>
    %cst_14 = arith.constant 0.000000e+00 : f32
    %29 = vector.broadcast %cst_14 : f32 to vector<8x128xf32>
    %30 = arith.maximumf %28, %29 : vector<8x128xf32>
    %31 = arith.truncf %30 : vector<8x128xf32> to vector<8x128xbf16>
    %c0_15 = arith.constant 0 : index
    %c0_16 = arith.constant 0 : index
    %32 = vector.load %arg6[%c0_15, %c0_16] : memref<128x128xbf16, #tpu.memory_space<vmem>>, vector<128x128xbf16>
    %cst_17 = arith.constant dense<0.000000e+00> : vector<8x128xf32>
    %33 = tpu.matmul %31, %32, %cst_17 {dimension_numbers = #tpu.dot_dimension_numbers<[1], [0], [0], [1], [0, 0, 1, 1], [], []>} : vector<8x128xbf16>, vector<128x128xbf16>, vector<8x128xf32> -> vector<8x128xf32>
    %c0_18 = arith.constant 0 : index
    %c0_19 = arith.constant 0 : index
    %34 = vector.load %arg7[%c0_18, %c0_19] : memref<1x128xf32, #tpu.memory_space<vmem>>, vector<1x128xf32>
    %35 = vector.broadcast %34 : vector<1x128xf32> to vector<8x128xf32>
    %36 = arith.addf %33, %35 : vector<8x128xf32>
    %cst_20 = arith.constant 0.000000e+00 : f32
    %37 = vector.broadcast %cst_20 : f32 to vector<8x128xf32>
    %38 = arith.maximumf %36, %37 : vector<8x128xf32>
    %39 = arith.truncf %38 : vector<8x128xf32> to vector<8x128xbf16>
    %c0_21 = arith.constant 0 : index
    %c0_22 = arith.constant 0 : index
    %40 = vector.load %arg8[%c0_21, %c0_22] : memref<128x128xbf16, #tpu.memory_space<vmem>>, vector<128x128xbf16>
    %cst_23 = arith.constant dense<0.000000e+00> : vector<8x128xf32>
    %41 = tpu.matmul %39, %40, %cst_23 {dimension_numbers = #tpu.dot_dimension_numbers<[1], [0], [0], [1], [0, 0, 1, 1], [], []>} : vector<8x128xbf16>, vector<128x128xbf16>, vector<8x128xf32> -> vector<8x128xf32>
    %c0_24 = arith.constant 0 : index
    %c0_25 = arith.constant 0 : index
    %42 = vector.load %arg9[%c0_24, %c0_25] : memref<1x128xf32, #tpu.memory_space<vmem>>, vector<1x128xf32>
    %43 = vector.broadcast %42 : vector<1x128xf32> to vector<8x128xf32>
    %44 = arith.addf %41, %43 : vector<8x128xf32>
    %cst_26 = arith.constant 0.000000e+00 : f32
    %45 = vector.broadcast %cst_26 : f32 to vector<8x128xf32>
    %46 = arith.maximumf %44, %45 : vector<8x128xf32>
    %c0_27 = arith.constant 0 : index
    %c0_28 = arith.constant 0 : index
    %47 = vector.load %arg10[%c0_27, %c0_28] : memref<8x128xf32, #tpu.memory_space<vmem>>, vector<8x128xf32>
    tpu.vector_store %arg10[%c0_27, %c0_28], %46 {strides = array<i32>} : memref<8x128xf32, #tpu.memory_space<vmem>>, vector<8x128xf32>,
    return
  }
  func.func @transform_0(%arg0: i32) -> (i32, i32, i32) {
    %c0_i32 = arith.constant 0 : i32
    %c0_i32_0 = arith.constant 0 : i32
    %c0_i32_1 = arith.constant 0 : i32
    return %arg0, %c0_i32, %c0_i32_0 : i32, i32, i32
  }
  func.func @transform_1(%arg0: i32) -> (i32, i32) {
    %c0_i32 = arith.constant 0 : i32
    %c0_i32_0 = arith.constant 0 : i32
    %c0_i32_1 = arith.constant 0 : i32
    return %c0_i32, %c0_i32_0 : i32, i32
  }
  func.func @transform_2(%arg0: i32) -> (i32, i32) {
    %c0_i32 = arith.constant 0 : i32
    %c0_i32_0 = arith.constant 0 : i32
    %c0_i32_1 = arith.constant 0 : i32
    return %c0_i32, %c0_i32_0 : i32, i32
  }
  func.func @transform_3(%arg0: i32) -> (i32, i32, i32) {
    %c0_i32 = arith.constant 0 : i32
    %c0_i32_0 = arith.constant 0 : i32
    %c0_i32_1 = arith.constant 0 : i32
    %c0_i32_2 = arith.constant 0 : i32
    return %c0_i32, %c0_i32_0, %c0_i32_1 : i32, i32, i32
  }
  func.func @transform_4(%arg0: i32) -> (i32, i32) {
    %c0_i32 = arith.constant 0 : i32
    %c0_i32_0 = arith.constant 0 : i32
    %c0_i32_1 = arith.constant 0 : i32
    return %c0_i32, %c0_i32_0 : i32, i32
  }
  func.func @transform_5(%arg0: i32) -> (i32, i32) {
    %c0_i32 = arith.constant 0 : i32
    %c0_i32_0 = arith.constant 0 : i32
    %c0_i32_1 = arith.constant 0 : i32
    return %c0_i32, %c0_i32_0 : i32, i32
  }
  func.func @transform_6(%arg0: i32) -> (i32, i32) {
    %c0_i32 = arith.constant 0 : i32
    %c0_i32_0 = arith.constant 0 : i32
    %c0_i32_1 = arith.constant 0 : i32
    return %c0_i32, %c0_i32_0 : i32, i32
  }
  func.func @transform_7(%arg0: i32) -> (i32, i32) {
    %c0_i32 = arith.constant 0 : i32
    %c0_i32_0 = arith.constant 0 : i32
    %c0_i32_1 = arith.constant 0 : i32
    return %c0_i32, %c0_i32_0 : i32, i32
  }
  func.func @transform_8(%arg0: i32) -> (i32, i32) {
    %c0_i32 = arith.constant 0 : i32
    %c0_i32_0 = arith.constant 0 : i32
    %c0_i32_1 = arith.constant 0 : i32
    return %c0_i32, %c0_i32_0 : i32, i32
  }
  func.func @transform_9(%arg0: i32) -> (i32, i32) {
    %c0_i32 = arith.constant 0 : i32
    %c0_i32_0 = arith.constant 0 : i32
    return %arg0, %c0_i32 : i32, i32
  }
}

</mosaic_0001>

<llo_original>
// kernel: cifarnet_forward.2
$region0: #{cifarnet_forward.2}
  #allocation0 [shape = 'u32[]', space=smem, size = 0x4, offset = 0x4, fixed_abs, tag = 'smem constant byte address 0x4 - core index']
  #allocation1 [shape = 'u32[72,128]{1,0:T(1,128)}', space=vmem, size = 0x9000, scoped, tag = 'internal scratch']
  %s0 = inlined_call_operand.vmem [shape: bf16[2,3136,75], index: 0, kind: input, shape index: {}]
  %s1 = inlined_call_operand.vmem [shape: bf16[75,128], index: 1, kind: input, shape index: {}]
  %s2 = inlined_call_operand.vmem [shape: f32[1,128], index: 2, kind: input, shape index: {}]
  %s3 = inlined_call_operand.vmem [shape: bf16[1568,128], index: 3, kind: output, shape index: {}]
  %s4 = sld [smem:[#allocation0]]
  $region45: #{cifarnet_forward.2} parent=0
    _
  %s6 = ssub.s32 1, %s4
  %s7 = scalar_select 0, %s6, %s4
  loop: start=0, step=1, limit=4
  $region2: #{cifarnet_forward.2} parent=0 // loop_pre_header
    _
  $region3: #{cifarnet_forward.2} parent=0 // loop_header
    %s9 = sphi 0, %s13
    %p10 = scmp.ge.s32.totalorder %s9, 4
    %s19 = sphi 0, %s21
    %s22 = sphi 0, %s19
    %s23 = sphi 0, %s22
    %s39 = sphi 0, %s23
    %s43 = sphi 0, %s43
    %s45 = sphi 0, %s43
    %s46 = sphi 0, %s45
    %s60 = sphi 0, %s46
    %s64 = sphi 0, %s64
    %s66 = sphi 0, %s64
    %s67 = sphi 0, %s66
    %s81 = sphi 0, %s67
    %s87 = sphi 0, %s89
    %s90 = sphi 0, %s87
    %s91 = sphi 0, %s90
    %s107 = sphi 0, %s91
  $region4: #{cifarnet_forward.2} parent=0 // loop_header_branch
    %12 = sbr.rel (%p10) target = $region8
  $region5: #{cifarnet_forward.2} parent=0 // loop_body
    %s14 = ssub.s32 %s9, 1
    %s15 = ssub.s32 %s9, 2
    %s16 = sadd.s32 %s9, 1
    %s17 = ssub.s32 %s9, %s16
    %p18 = scmp.eq.s32.totalorder %s17, 0
    %s20 = sadd.s32 %s19, 1
    %s21 = scalar_select %p18, %s19, %s20
    %p24 = pneg %p18
    %p25 = scmp.eq.s32.totalorder %s9, 1
    %p26 = por %p24, %p25
    %p27 = scmp.ne.s32.totalorder %s19, %s22
    %p28 = scmp.eq.s32.totalorder %s9, 0
    %p29 = por %p27, %p28
    %p30 = scmp.ne.s32.totalorder %s19, %s22
    %p31 = scmp.eq.s32.totalorder %s14, 1
    %p32 = por %p30, %p31
    %p33 = scmp.ne.s32.totalorder %s22, %s23
    %p34 = scmp.eq.s32.totalorder %s14, 0
    %p35 = por %p33, %p34
    %p36 = scmp.ne.s32.totalorder %s22, %s23
    %p37 = scmp.eq.s32.totalorder %s15, 1
    %p38 = por %p36, %p37
    %p40 = scmp.ne.s32.totalorder %s23, %s39
    %p41 = scmp.eq.s32.totalorder %s15, 0
    %p42 = por %p40, %p41
    %s44 = sadd.s32 %s43, 1
    %p47 = scmp.eq.s32.totalorder %s9, 1
    %p48 = scmp.ne.s32.totalorder %s43, %s45
    %p49 = scmp.eq.s32.totalorder %s9, 0
    %p50 = por %p48, %p49
    %p51 = scmp.ne.s32.totalorder %s43, %s45
    %p52 = scmp.eq.s32.totalorder %s14, 1
    %p53 = por %p51, %p52
    %p54 = scmp.ne.s32.totalorder %s45, %s46
    %p55 = scmp.eq.s32.totalorder %s14, 0
    %p56 = por %p54, %p55
    %p57 = scmp.ne.s32.totalorder %s45, %s46
    %p58 = scmp.eq.s32.totalorder %s15, 1
    %p59 = por %p57, %p58
    %p61 = scmp.ne.s32.totalorder %s46, %s60
    %p62 = scmp.eq.s32.totalorder %s15, 0
    %p63 = por %p61, %p62
    %s65 = sadd.s32 %s64, 1
    %p68 = scmp.eq.s32.totalorder %s9, 1
    %p69 = scmp.ne.s32.totalorder %s64, %s66
    %p70 = scmp.eq.s32.totalorder %s9, 0
    %p71 = por %p69, %p70
    %p72 = scmp.ne.s32.totalorder %s64, %s66
    %p73 = scmp.eq.s32.totalorder %s14, 1
    %p74 = por %p72, %p73
    %p75 = scmp.ne.s32.totalorder %s66, %s67
    %p76 = scmp.eq.s32.totalorder %s14, 0
    %p77 = por %p75, %p76
    %p78 = scmp.ne.s32.totalorder %s66, %s67
    %p79 = scmp.eq.s32.totalorder %s15, 1
    %p80 = por %p78, %p79
    %p82 = scmp.ne.s32.totalorder %s67, %s81
    %p83 = scmp.eq.s32.totalorder %s15, 0
    %p84 = por %p82, %p83
    %s85 = ssub.s32 %s9, %s16
    %p86 = scmp.eq.s32.totalorder %s85, 0
    %s88 = sadd.s32 %s87, 1
    %s89 = scalar_select %p86, %s87, %s88
    %p92 = pneg %p86
    %p93 = scmp.eq.s32.totalorder %s9, 1
    %p94 = por %p92, %p93
    %p95 = scmp.ne.s32.totalorder %s87, %s90
    %p96 = scmp.eq.s32.totalorder %s9, 0
    %p97 = por %p95, %p96
    %p98 = scmp.ne.s32.totalorder %s87, %s90
    %p99 = scmp.eq.s32.totalorder %s14, 1
    %p100 = por %p98, %p99
    %p101 = scmp.ne.s32.totalorder %s90, %s91
    %p102 = scmp.eq.s32.totalorder %s14, 0
    %p103 = por %p101, %p102
    %p104 = scmp.ne.s32.totalorder %s90, %s91
    %p105 = scmp.eq.s32.totalorder %s15, 1
    %p106 = por %p104, %p105
    %p108 = scmp.ne.s32.totalorder %s91, %s107
    %p109 = scmp.eq.s32.totalorder %s15, 0
    %p110 = por %p108, %p109
    %p111 = scmp.le.s32.totalorder 1, %s9
    %p112 = scmp.lt.s32.totalorder %s9, 3
    %p113 = pnand %p111, %p112
    %p114 = pneg %p113
    // Predicated region
    $region9: #{cifarnet_forward.2} parent=5 // pred_check
      _
    $region10: #{cifarnet_forward.2} parent=5 // pred_check_branch
      %116 = sbr.rel (%p113) target = $region12
    $region11: #{cifarnet_forward.2} parent=5 // pred_region
      %s117 = ssub.s32 %s9, 1
      // Predicated region
      $region13: #{cifarnet_forward.2} parent=11 // pred_check
        %p118 = pneg %p56
      $region14: #{cifarnet_forward.2} parent=11 // pred_check_branch
        %120 = sbr.rel (%p118) target = $region16
      $region15: #{cifarnet_forward.2} parent=11 // pred_region
        _
      $region16: #{cifarnet_forward.2} parent=11 // pred_fallthru
        _
      // Predicated region
      $region17: #{cifarnet_forward.2} parent=11 // pred_check
        %p121 = pneg %p77
      $region18: #{cifarnet_forward.2} parent=11 // pred_check_branch
        %123 = sbr.rel (%p121) target = $region20
      $region19: #{cifarnet_forward.2} parent=11 // pred_region
        _
      $region20: #{cifarnet_forward.2} parent=11 // pred_fallthru
        _
    $region12: #{cifarnet_forward.2} parent=5 // pred_fallthru
      _
    %p124 = scmp.lt.s32.totalorder %s9, 2
    // Predicated region
    $region21: #{cifarnet_forward.2} parent=5 // pred_check
      %p125 = pneg %p124
    $region22: #{cifarnet_forward.2} parent=5 // pred_check_branch
      %127 = sbr.rel (%p125) target = $region24
    $region23: #{cifarnet_forward.2} parent=5 // pred_region
      // Predicated region
      $region25: #{cifarnet_forward.2} parent=23 // pred_check
        %p128 = pneg %p29
      $region26: #{cifarnet_forward.2} parent=23 // pred_check_branch
        %130 = sbr.rel (%p128) target = $region28
      $region27: #{cifarnet_forward.2} parent=23 // pred_region
        %p131 = scmp.lt.s32.totalorder %s9, 1
        %s132 = scalar_select %p131, %s9, 1
        %s133 = smul.addr %s132, 392
        %s134 = smul.addr %s133, 4
        %s135 = scalar_lea.vmem %s0, %s134
      $region28: #{cifarnet_forward.2} parent=23 // pred_fallthru
        _
    $region24: #{cifarnet_forward.2} parent=5 // pred_fallthru
      _
    %p136 = scmp.le.s32.totalorder 1, %s9
    %p137 = scmp.lt.s32.totalorder %s9, 3
    %p138 = pnand %p136, %p137
    %p139 = pneg %p138
    // Predicated region
    $region29: #{cifarnet_forward.2} parent=5 // pred_check
      _
    $region30: #{cifarnet_forward.2} parent=5 // pred_check_branch
      %141 = sbr.rel (%p138) target = $region32
    $region31: #{cifarnet_forward.2} parent=5 // pred_region
      %s142 = ssub.s32 %s9, 1
      %p143 = scmp.lt.s32.totalorder %s14, 1
      %s144 = scalar_select %p143, %s14, 1
      %s145 = smul.addr %s144, 392
      %s146 = smul.addr %s145, 4
      %s147 = scalar_lea.vmem %s0, %s146
      %p148 = pneg %p35
      %p149 = pneg %p32
      %p150 = pneg %p56
      %p151 = pneg %p53
      %p152 = pneg %p77
      %p153 = pneg %p74
      %p154 = pneg %p103
      %p155 = pneg %p100
      %s156 = smul.u32 98, %s14
      %p157 = scmp.lt.s32.totalorder %s156, 195
      %s158 = scalar_select %p157, %s156, 195
      %s159 = smul.addr %s158, 4
      %s160 = scalar_lea.vmem %s3, %s159
      %p161 = scmp.lt.s32.totalorder %s14, 1
      %s162 = scalar_select %p161, %s14, 1
      %s163 = smul.addr %s162, 392
      %s164 = smul.addr %s163, 4
      %s165 = scalar_lea.vmem %s0, %s164
      %s166 = smul.u32 98, %s14
      %p167 = scmp.lt.s32.totalorder %s166, 195
      %s168 = scalar_select %p167, %s166, 195
      %s169 = smul.addr %s168, 4
      %s170 = scalar_lea.vmem %s3, %s169
      %s171 = smul.u32 98, %s14
      %v173 = vld [vmem:[%s165] sm:$0xf]
      %v174 = vld [vmem:[%s165 + $0x4] sm:$0xf]
      %v175 = vld [vmem:[%s165 + $0x8] sm:$0xf]
      %v176 = vld [vmem:[%s165 + $0xc] sm:$0xf]
      %v177 = vld [vmem:[%s165 + $0x10] sm:$0xf]
      %v178 = vld [vmem:[%s165 + $0x14] sm:$0xf]
      %v179 = vld [vmem:[%s165 + $0x18] sm:$0xf]
      %v180 = vld [vmem:[%s165 + $0x1c] sm:$0xf]
      %v181 = vld [vmem:[%s165 + $0x20] sm:$0xf]
      %v182 = vld [vmem:[%s165 + $0x24] sm:$0xf]
      %v183 = vld [vmem:[%s165 + $0x28] sm:$0xf]
      %v184 = vld [vmem:[%s165 + $0x2c] sm:$0xf]
      %v185 = vld [vmem:[%s165 + $0x30] sm:$0xf]
      %v186 = vld [vmem:[%s165 + $0x34] sm:$0xf]
      %v187 = vld [vmem:[%s165 + $0x38] sm:$0xf]
      %v188 = vld [vmem:[%s165 + $0x3c] sm:$0xf]
      %v189 = vld [vmem:[%s165 + $0x40] sm:$0xf]
      %v190 = vld [vmem:[%s165 + $0x44] sm:$0xf]
      %v191 = vld [vmem:[%s165 + $0x48] sm:$0xf]
      %v192 = vld [vmem:[%s165 + $0x4c] sm:$0xf]
      %v193 = vld [vmem:[%s165 + $0x50] sm:$0xf]
      %v194 = vld [vmem:[%s165 + $0x54] sm:$0xf]
      %v195 = vld [vmem:[%s165 + $0x58] sm:$0xf]
      %v196 = vld [vmem:[%s165 + $0x5c] sm:$0xf]
      %v197 = vld [vmem:[%s165 + $0x60] sm:$0xf]
      %v198 = vld [vmem:[%s165 + $0x64] sm:$0xf]
      %v199 = vld [vmem:[%s165 + $0x68] sm:$0xf]
      %v200 = vld [vmem:[%s165 + $0x6c] sm:$0xf]
      %v201 = vld [vmem:[%s165 + $0x70] sm:$0xf]
      %v202 = vld [vmem:[%s165 + $0x74] sm:$0xf]
      %v203 = vld [vmem:[%s165 + $0x78] sm:$0xf]
      %v204 = vld [vmem:[%s165 + $0x7c] sm:$0xf]
      %v205 = vld [vmem:[%s165 + $0x80] sm:$0xf]
      %v206 = vld [vmem:[%s165 + $0x84] sm:$0xf]
      %v207 = vld [vmem:[%s165 + $0x88] sm:$0xf]
      %v208 = vld [vmem:[%s165 + $0x8c] sm:$0xf]
      %v209 = vld [vmem:[%s165 + $0x90] sm:$0xf]
      %v210 = vld [vmem:[%s165 + $0x94] sm:$0xf]
      %v211 = vld [vmem:[%s165 + $0x98] sm:$0xf]
      %v212 = vld [vmem:[%s165 + $0x9c] sm:$0xf]
      %v213 = vld [vmem:[%s165 + $0xa0] sm:$0xf]
      %v214 = vld [vmem:[%s165 + $0xa4] sm:$0xf]
      %v215 = vld [vmem:[%s165 + $0xa8] sm:$0xf]
      %v216 = vld [vmem:[%s165 + $0xac] sm:$0xf]
      %v217 = vld [vmem:[%s165 + $0xb0] sm:$0xf]
      %v218 = vld [vmem:[%s165 + $0xb4] sm:$0xf]
      %v219 = vld [vmem:[%s165 + $0xb8] sm:$0xf]
      %v220 = vld [vmem:[%s165 + $0xbc] sm:$0xf]
      %v221 = vld [vmem:[%s165 + $0xc0] sm:$0xf]
      %v222 = vld [vmem:[%s165 + $0xc4] sm:$0xf]
      %v223 = vld [vmem:[%s165 + $0xc8] sm:$0xf]
      %v224 = vld [vmem:[%s165 + $0xcc] sm:$0xf]
      %v225 = vld [vmem:[%s165 + $0xd0] sm:$0xf]
      %v226 = vld [vmem:[%s165 + $0xd4] sm:$0xf]
      %v227 = vld [vmem:[%s165 + $0xd8] sm:$0xf]
      %v228 = vld [vmem:[%s165 + $0xdc] sm:$0xf]
      %v229 = vld [vmem:[%s165 + $0xe0] sm:$0xf]
      %v230 = vld [vmem:[%s165 + $0xe4] sm:$0xf]
      %v231 = vld [vmem:[%s165 + $0xe8] sm:$0xf]
      %v232 = vld [vmem:[%s165 + $0xec] sm:$0xf]
      %v233 = vld [vmem:[%s165 + $0xf0] sm:$0xf]
      %v234 = vld [vmem:[%s165 + $0xf4] sm:$0xf]
      %v235 = vld [vmem:[%s165 + $0xf8] sm:$0xf]
      %v236 = vld [vmem:[%s165 + $0xfc] sm:$0xf]
      %v237 = vld [vmem:[%s165 + $0x100] sm:$0xf]
      %v238 = vld [vmem:[%s165 + $0x104] sm:$0xf]
      %v239 = vld [vmem:[%s165 + $0x108] sm:$0xf]
      %v240 = vld [vmem:[%s165 + $0x10c] sm:$0xf]
      %v241 = vld [vmem:[%s165 + $0x110] sm:$0xf]
      %v242 = vld [vmem:[%s165 + $0x114] sm:$0xf]
      %v243 = vld [vmem:[%s165 + $0x118] sm:$0xf]
      %v244 = vld [vmem:[%s165 + $0x11c] sm:$0xf]
      %v245 = vld [vmem:[%s165 + $0x120] sm:$0xf]
      %v246 = vld [vmem:[%s165 + $0x124] sm:$0xf]
      %v247 = vld [vmem:[%s165 + $0x128] sm:$0xf]
      %v248 = vld [vmem:[%s165 + $0x12c] sm:$0xf]
      %v249 = vld [vmem:[%s165 + $0x130] sm:$0xf]
      %v250 = vld [vmem:[%s165 + $0x134] sm:$0xf]
      %v251 = vld [vmem:[%s165 + $0x138] sm:$0xf]
      %v252 = vld [vmem:[%s165 + $0x13c] sm:$0xf]
      %v253 = vld [vmem:[%s165 + $0x140] sm:$0xf]
      %v254 = vld [vmem:[%s165 + $0x144] sm:$0xf]
      %v255 = vld [vmem:[%s165 + $0x148] sm:$0xf]
      %v256 = vld [vmem:[%s165 + $0x14c] sm:$0xf]
      %v257 = vld [vmem:[%s165 + $0x150] sm:$0xf]
      %v258 = vld [vmem:[%s165 + $0x154] sm:$0xf]
      %v259 = vld [vmem:[%s165 + $0x158] sm:$0xf]
      %v260 = vld [vmem:[%s165 + $0x15c] sm:$0xf]
      %v261 = vld [vmem:[%s165 + $0x160] sm:$0xf]
      %v262 = vld [vmem:[%s165 + $0x164] sm:$0xf]
      %v263 = vld [vmem:[%s165 + $0x168] sm:$0xf]
      %v264 = vld [vmem:[%s165 + $0x16c] sm:$0xf]
      %v265 = vld [vmem:[%s165 + $0x170] sm:$0xf]
      %v266 = vld [vmem:[%s165 + $0x174] sm:$0xf]
      %v267 = vld [vmem:[%s165 + $0x178] sm:$0xf]
      %v268 = vld [vmem:[%s165 + $0x17c] sm:$0xf]
      %v269 = vld [vmem:[%s165 + $0x180] sm:$0xf]
      %v270 = vld [vmem:[%s165 + $0x184] sm:$0xf]
      %v271 = vld [vmem:[%s165 + $0x188] sm:$0xf]
      %v272 = vld [vmem:[%s165 + $0x18c] sm:$0xf]
      %v273 = vld [vmem:[%s165 + $0x190] sm:$0xf]
      %v274 = vld [vmem:[%s165 + $0x194] sm:$0xf]
      %v275 = vld [vmem:[%s165 + $0x198] sm:$0xf]
      %v276 = vld [vmem:[%s165 + $0x19c] sm:$0xf]
      %v277 = vld [vmem:[%s165 + $0x1a0] sm:$0xf]
      %v278 = vld [vmem:[%s165 + $0x1a4] sm:$0xf]
      %v279 = vld [vmem:[%s165 + $0x1a8] sm:$0xf]
      %v280 = vld [vmem:[%s165 + $0x1ac] sm:$0xf]
      %v281 = vld [vmem:[%s165 + $0x1b0] sm:$0xf]
      %v282 = vld [vmem:[%s165 + $0x1b4] sm:$0xf]
      %v283 = vld [vmem:[%s165 + $0x1b8] sm:$0xf]
      %v284 = vld [vmem:[%s165 + $0x1bc] sm:$0xf]
      %v285 = vld [vmem:[%s165 + $0x1c0] sm:$0xf]
      %v286 = vld [vmem:[%s165 + $0x1c4] sm:$0xf]
      %v287 = vld [vmem:[%s165 + $0x1c8] sm:$0xf]
      %v288 = vld [vmem:[%s165 + $0x1cc] sm:$0xf]
      %v289 = vld [vmem:[%s165 + $0x1d0] sm:$0xf]
      %v290 = vld [vmem:[%s165 + $0x1d4] sm:$0xf]
      %v291 = vld [vmem:[%s165 + $0x1d8] sm:$0xf]
      %v292 = vld [vmem:[%s165 + $0x1dc] sm:$0xf]
      %v293 = vld [vmem:[%s165 + $0x1e0] sm:$0xf]
      %v294 = vld [vmem:[%s165 + $0x1e4] sm:$0xf]
      %v295 = vld [vmem:[%s165 + $0x1e8] sm:$0xf]
      %v296 = vld [vmem:[%s165 + $0x1ec] sm:$0xf]
      %v297 = vld [vmem:[%s165 + $0x1f0] sm:$0xf]
      %v298 = vld [vmem:[%s165 + $0x1f4] sm:$0xf]
      %v299 = vld [vmem:[%s165 + $0x1f8] sm:$0xf]
      %v300 = vld [vmem:[%s165 + $0x1fc] sm:$0xf]
      %v301 = vld [vmem:[%s165 + $0x200] sm:$0xf]
      %v302 = vld [vmem:[%s165 + $0x204] sm:$0xf]
      %v303 = vld [vmem:[%s165 + $0x208] sm:$0xf]
      %v304 = vld [vmem:[%s165 + $0x20c] sm:$0xf]
      %v305 = vld [vmem:[%s165 + $0x210] sm:$0xf]
      %v306 = vld [vmem:[%s165 + $0x214] sm:$0xf]
      %v307 = vld [vmem:[%s165 + $0x218] sm:$0xf]
      %v308 = vld [vmem:[%s165 + $0x21c] sm:$0xf]
      %v309 = vld [vmem:[%s165 + $0x220] sm:$0xf]
      %v310 = vld [vmem:[%s165 + $0x224] sm:$0xf]
      %v311 = vld [vmem:[%s165 + $0x228] sm:$0xf]
      %v312 = vld [vmem:[%s165 + $0x22c] sm:$0xf]
      %v313 = vld [vmem:[%s165 + $0x230] sm:$0xf]
      %v314 = vld [vmem:[%s165 + $0x234] sm:$0xf]
      %v315 = vld [vmem:[%s165 + $0x238] sm:$0xf]
      %v316 = vld [vmem:[%s165 + $0x23c] sm:$0xf]
      %v317 = vld [vmem:[%s165 + $0x240] sm:$0xf]
      %v318 = vld [vmem:[%s165 + $0x244] sm:$0xf]
      %v319 = vld [vmem:[%s165 + $0x248] sm:$0xf]
      %v320 = vld [vmem:[%s165 + $0x24c] sm:$0xf]
      %v321 = vld [vmem:[%s165 + $0x250] sm:$0xf]
      %v322 = vld [vmem:[%s165 + $0x254] sm:$0xf]
      %v323 = vld [vmem:[%s165 + $0x258] sm:$0xf]
      %v324 = vld [vmem:[%s165 + $0x25c] sm:$0xf]
      %v325 = vld [vmem:[%s165 + $0x260] sm:$0xf]
      %v326 = vld [vmem:[%s165 + $0x264] sm:$0xf]
      %v327 = vld [vmem:[%s165 + $0x268] sm:$0xf]
      %v328 = vld [vmem:[%s165 + $0x26c] sm:$0xf]
      %v329 = vld [vmem:[%s165 + $0x270] sm:$0xf]
      %v330 = vld [vmem:[%s165 + $0x274] sm:$0xf]
      %v331 = vld [vmem:[%s165 + $0x278] sm:$0xf]
      %v332 = vld [vmem:[%s165 + $0x27c] sm:$0xf]
      %v333 = vld [vmem:[%s165 + $0x280] sm:$0xf]
      %v334 = vld [vmem:[%s165 + $0x284] sm:$0xf]
      %v335 = vld [vmem:[%s165 + $0x288] sm:$0xf]
      %v336 = vld [vmem:[%s165 + $0x28c] sm:$0xf]
      %v337 = vld [vmem:[%s165 + $0x290] sm:$0xf]
      %v338 = vld [vmem:[%s165 + $0x294] sm:$0xf]
      %v339 = vld [vmem:[%s165 + $0x298] sm:$0xf]
      %v340 = vld [vmem:[%s165 + $0x29c] sm:$0xf]
      %v341 = vld [vmem:[%s165 + $0x2a0] sm:$0xf]
      %v342 = vld [vmem:[%s165 + $0x2a4] sm:$0xf]
      %v343 = vld [vmem:[%s165 + $0x2a8] sm:$0xf]
      %v344 = vld [vmem:[%s165 + $0x2ac] sm:$0xf]
      %v345 = vld [vmem:[%s165 + $0x2b0] sm:$0xf]
      %v346 = vld [vmem:[%s165 + $0x2b4] sm:$0xf]
      %v347 = vld [vmem:[%s165 + $0x2b8] sm:$0xf]
      %v348 = vld [vmem:[%s165 + $0x2bc] sm:$0xf]
      %v349 = vld [vmem:[%s165 + $0x2c0] sm:$0xf]
      %v350 = vld [vmem:[%s165 + $0x2c4] sm:$0xf]
      %v351 = vld [vmem:[%s165 + $0x2c8] sm:$0xf]
      %v352 = vld [vmem:[%s165 + $0x2cc] sm:$0xf]
      %v353 = vld [vmem:[%s165 + $0x2d0] sm:$0xf]
      %v354 = vld [vmem:[%s165 + $0x2d4] sm:$0xf]
      %v355 = vld [vmem:[%s165 + $0x2d8] sm:$0xf]
      %v356 = vld [vmem:[%s165 + $0x2dc] sm:$0xf]
      %v357 = vld [vmem:[%s165 + $0x2e0] sm:$0xf]
      %v358 = vld [vmem:[%s165 + $0x2e4] sm:$0xf]
      %v359 = vld [vmem:[%s165 + $0x2e8] sm:$0xf]
      %v360 = vld [vmem:[%s165 + $0x2ec] sm:$0xf]
      %v361 = vld [vmem:[%s165 + $0x2f0] sm:$0xf]
      %v362 = vld [vmem:[%s165 + $0x2f4] sm:$0xf]
      %v363 = vld [vmem:[%s165 + $0x2f8] sm:$0xf]
      %v364 = vld [vmem:[%s165 + $0x2fc] sm:$0xf]
      %v365 = vld [vmem:[%s165 + $0x300] sm:$0xf]
      %v366 = vld [vmem:[%s165 + $0x304] sm:$0xf]
      %v367 = vld [vmem:[%s165 + $0x308] sm:$0xf]
      %v368 = vld [vmem:[%s165 + $0x30c] sm:$0xf]
      %v369 = vld [vmem:[%s165 + $0x310] sm:$0xf]
      %v370 = vld [vmem:[%s165 + $0x314] sm:$0xf]
      %v371 = vld [vmem:[%s165 + $0x318] sm:$0xf]
      %v372 = vld [vmem:[%s165 + $0x31c] sm:$0xf]
      %v373 = vld [vmem:[%s165 + $0x320] sm:$0xf]
      %v374 = vld [vmem:[%s165 + $0x324] sm:$0xf]
      %v375 = vld [vmem:[%s165 + $0x328] sm:$0xf]
      %v376 = vld [vmem:[%s165 + $0x32c] sm:$0xf]
      %v377 = vld [vmem:[%s165 + $0x330] sm:$0xf]
      %v378 = vld [vmem:[%s165 + $0x334] sm:$0xf]
      %v379 = vld [vmem:[%s165 + $0x338] sm:$0xf]
      %v380 = vld [vmem:[%s165 + $0x33c] sm:$0xf]
      %v381 = vld [vmem:[%s165 + $0x340] sm:$0xf]
      %v382 = vld [vmem:[%s165 + $0x344] sm:$0xf]
      %v383 = vld [vmem:[%s165 + $0x348] sm:$0xf]
      %v384 = vld [vmem:[%s165 + $0x34c] sm:$0xf]
      %v385 = vld [vmem:[%s165 + $0x350] sm:$0xf]
      %v386 = vld [vmem:[%s165 + $0x354] sm:$0xf]
      %v387 = vld [vmem:[%s165 + $0x358] sm:$0xf]
      %v388 = vld [vmem:[%s165 + $0x35c] sm:$0xf]
      %v389 = vld [vmem:[%s165 + $0x360] sm:$0xf]
      %v390 = vld [vmem:[%s165 + $0x364] sm:$0xf]
      %v391 = vld [vmem:[%s165 + $0x368] sm:$0xf]
      %v392 = vld [vmem:[%s165 + $0x36c] sm:$0xf]
      %v393 = vld [vmem:[%s165 + $0x370] sm:$0xf]
      %v394 = vld [vmem:[%s165 + $0x374] sm:$0xf]
      %v395 = vld [vmem:[%s165 + $0x378] sm:$0xf]
      %v396 = vld [vmem:[%s165 + $0x37c] sm:$0xf]
      %v397 = vld [vmem:[%s165 + $0x380] sm:$0xf]
      %v398 = vld [vmem:[%s165 + $0x384] sm:$0xf]
      %v399 = vld [vmem:[%s165 + $0x388] sm:$0xf]
      %v400 = vld [vmem:[%s165 + $0x38c] sm:$0xf]
      %v401 = vld [vmem:[%s165 + $0x390] sm:$0xf]
      %v402 = vld [vmem:[%s165 + $0x394] sm:$0xf]
      %v403 = vld [vmem:[%s165 + $0x398] sm:$0xf]
      %v404 = vld [vmem:[%s165 + $0x39c] sm:$0xf]
      %v405 = vld [vmem:[%s165 + $0x3a0] sm:$0xf]
      %v406 = vld [vmem:[%s165 + $0x3a4] sm:$0xf]
      %v407 = vld [vmem:[%s165 + $0x3a8] sm:$0xf]
      %v408 = vld [vmem:[%s165 + $0x3ac] sm:$0xf]
      %v409 = vld [vmem:[%s165 + $0x3b0] sm:$0xf]
      %v410 = vld [vmem:[%s165 + $0x3b4] sm:$0xf]
      %v411 = vld [vmem:[%s165 + $0x3b8] sm:$0xf]
      %v412 = vld [vmem:[%s165 + $0x3bc] sm:$0xf]
      %v413 = vld [vmem:[%s165 + $0x3c0] sm:$0xf]
      %v414 = vld [vmem:[%s165 + $0x3c4] sm:$0xf]
      %v415 = vld [vmem:[%s165 + $0x3c8] sm:$0xf]
      %v416 = vld [vmem:[%s165 + $0x3cc] sm:$0xf]
      %v417 = vld [vmem:[%s165 + $0x3d0] sm:$0xf]
      %v418 = vld [vmem:[%s165 + $0x3d4] sm:$0xf]
      %v419 = vld [vmem:[%s165 + $0x3d8] sm:$0xf]
      %v420 = vld [vmem:[%s165 + $0x3dc] sm:$0xf]
      %v421 = vld [vmem:[%s165 + $0x3e0] sm:$0xf]
      %v422 = vld [vmem:[%s165 + $0x3e4] sm:$0xf]
      %v423 = vld [vmem:[%s165 + $0x3e8] sm:$0xf]
      %v424 = vld [vmem:[%s165 + $0x3ec] sm:$0xf]
      %v425 = vld [vmem:[%s165 + $0x3f0] sm:$0xf]
      %v426 = vld [vmem:[%s165 + $0x3f4] sm:$0xf]
      %v427 = vld [vmem:[%s165 + $0x3f8] sm:$0xf]
      %v428 = vld [vmem:[%s165 + $0x3fc] sm:$0xf]
      %v429 = vld [vmem:[%s165 + $0x400] sm:$0xf]
      %v430 = vld [vmem:[%s165 + $0x404] sm:$0xf]
      %v431 = vld [vmem:[%s165 + $0x408] sm:$0xf]
      %v432 = vld [vmem:[%s165 + $0x40c] sm:$0xf]
      %v433 = vld [vmem:[%s165 + $0x410] sm:$0xf]
      %v434 = vld [vmem:[%s165 + $0x414] sm:$0xf]
      %v435 = vld [vmem:[%s165 + $0x418] sm:$0xf]
      %v436 = vld [vmem:[%s165 + $0x41c] sm:$0xf]
      %v437 = vld [vmem:[%s165 + $0x420] sm:$0xf]
      %v438 = vld [vmem:[%s165 + $0x424] sm:$0xf]
      %v439 = vld [vmem:[%s165 + $0x428] sm:$0xf]
      %v440 = vld [vmem:[%s165 + $0x42c] sm:$0xf]
      %v441 = vld [vmem:[%s165 + $0x430] sm:$0xf]
      %v442 = vld [vmem:[%s165 + $0x434] sm:$0xf]
      %v443 = vld [vmem:[%s165 + $0x438] sm:$0xf]
      %v444 = vld [vmem:[%s165 + $0x43c] sm:$0xf]
      %v445 = vld [vmem:[%s165 + $0x440] sm:$0xf]
      %v446 = vld [vmem:[%s165 + $0x444] sm:$0xf]
      %v447 = vld [vmem:[%s165 + $0x448] sm:$0xf]
      %v448 = vld [vmem:[%s165 + $0x44c] sm:$0xf]
      %v449 = vld [vmem:[%s165 + $0x450] sm:$0xf]
      %v450 = vld [vmem:[%s165 + $0x454] sm:$0xf]
      %v451 = vld [vmem:[%s165 + $0x458] sm:$0xf]
      %v452 = vld [vmem:[%s165 + $0x45c] sm:$0xf]
      %v453 = vld [vmem:[%s165 + $0x460] sm:$0xf]
      %v454 = vld [vmem:[%s165 + $0x464] sm:$0xf]
      %v455 = vld [vmem:[%s165 + $0x468] sm:$0xf]
      %v456 = vld [vmem:[%s165 + $0x46c] sm:$0xf]
      %v457 = vld [vmem:[%s165 + $0x470] sm:$0xf]
      %v458 = vld [vmem:[%s165 + $0x474] sm:$0xf]
      %v459 = vld [vmem:[%s165 + $0x478] sm:$0xf]
      %v460 = vld [vmem:[%s165 + $0x47c] sm:$0xf]
      %v461 = vld [vmem:[%s165 + $0x480] sm:$0xf]
      %v462 = vld [vmem:[%s165 + $0x484] sm:$0xf]
      %v463 = vld [vmem:[%s165 + $0x488] sm:$0xf]
      %v464 = vld [vmem:[%s165 + $0x48c] sm:$0xf]
      %v465 = vld [vmem:[%s165 + $0x490] sm:$0xf]
      %v466 = vld [vmem:[%s165 + $0x494] sm:$0xf]
      %v467 = vld [vmem:[%s165 + $0x498] sm:$0xf]
      %v468 = vld [vmem:[%s165 + $0x49c] sm:$0xf]
      %v469 = vld [vmem:[%s165 + $0x4a0] sm:$0xf]
      %v470 = vld [vmem:[%s165 + $0x4a4] sm:$0xf]
      %v471 = vld [vmem:[%s165 + $0x4a8] sm:$0xf]
      %v472 = vld [vmem:[%s165 + $0x4ac] sm:$0xf]
      %v473 = vld [vmem:[%s165 + $0x4b0] sm:$0xf]
      %v474 = vld [vmem:[%s165 + $0x4b4] sm:$0xf]
      %v475 = vld [vmem:[%s165 + $0x4b8] sm:$0xf]
      %v476 = vld [vmem:[%s165 + $0x4bc] sm:$0xf]
      %v477 = vld [vmem:[%s165 + $0x4c0] sm:$0xf]
      %v478 = vld [vmem:[%s165 + $0x4c4] sm:$0xf]
      %v479 = vld [vmem:[%s165 + $0x4c8] sm:$0xf]
      %v480 = vld [vmem:[%s165 + $0x4cc] sm:$0xf]
      %v481 = vld [vmem:[%s165 + $0x4d0] sm:$0xf]
      %v482 = vld [vmem:[%s165 + $0x4d4] sm:$0xf]
      %v483 = vld [vmem:[%s165 + $0x4d8] sm:$0xf]
      %v484 = vld [vmem:[%s165 + $0x4dc] sm:$0xf]
      %v485 = vld [vmem:[%s165 + $0x4e0] sm:$0xf]
      %v486 = vld [vmem:[%s165 + $0x4e4] sm:$0xf]
      %v487 = vld [vmem:[%s165 + $0x4e8] sm:$0xf]
      %v488 = vld [vmem:[%s165 + $0x4ec] sm:$0xf]
      %v489 = vld [vmem:[%s165 + $0x4f0] sm:$0xf]
      %v490 = vld [vmem:[%s165 + $0x4f4] sm:$0xf]
      %v491 = vld [vmem:[%s165 + $0x4f8] sm:$0xf]
      %v492 = vld [vmem:[%s165 + $0x4fc] sm:$0xf]
      %v493 = vld [vmem:[%s165 + $0x500] sm:$0xf]
      %v494 = vld [vmem:[%s165 + $0x504] sm:$0xf]
      %v495 = vld [vmem:[%s165 + $0x508] sm:$0xf]
      %v496 = vld [vmem:[%s165 + $0x50c] sm:$0xf]
      %v497 = vld [vmem:[%s165 + $0x510] sm:$0xf]
      %v498 = vld [vmem:[%s165 + $0x514] sm:$0xf]
      %v499 = vld [vmem:[%s165 + $0x518] sm:$0xf]
      %v500 = vld [vmem:[%s165 + $0x51c] sm:$0xf]
      %v501 = vld [vmem:[%s165 + $0x520] sm:$0xf]
      %v502 = vld [vmem:[%s165 + $0x524] sm:$0xf]
      %v503 = vld [vmem:[%s165 + $0x528] sm:$0xf]
      %v504 = vld [vmem:[%s165 + $0x52c] sm:$0xf]
      %v505 = vld [vmem:[%s165 + $0x530] sm:$0xf]
      %v506 = vld [vmem:[%s165 + $0x534] sm:$0xf]
      %v507 = vld [vmem:[%s165 + $0x538] sm:$0xf]
      %v508 = vld [vmem:[%s165 + $0x53c] sm:$0xf]
      %v509 = vld [vmem:[%s165 + $0x540] sm:$0xf]
      %v510 = vld [vmem:[%s165 + $0x544] sm:$0xf]
      %v511 = vld [vmem:[%s165 + $0x548] sm:$0xf]
      %v512 = vld [vmem:[%s165 + $0x54c] sm:$0xf]
      %v513 = vld [vmem:[%s165 + $0x550] sm:$0xf]
      %v514 = vld [vmem:[%s165 + $0x554] sm:$0xf]
      %v515 = vld [vmem:[%s165 + $0x558] sm:$0xf]
      %v516 = vld [vmem:[%s165 + $0x55c] sm:$0xf]
      %v517 = vld [vmem:[%s165 + $0x560] sm:$0xf]
      %v518 = vld [vmem:[%s165 + $0x564] sm:$0xf]
      %v519 = vld [vmem:[%s165 + $0x568] sm:$0xf]
      %v520 = vld [vmem:[%s165 + $0x56c] sm:$0xf]
      %v521 = vld [vmem:[%s165 + $0x570] sm:$0xf]
      %v522 = vld [vmem:[%s165 + $0x574] sm:$0xf]
      %v523 = vld [vmem:[%s165 + $0x578] sm:$0xf]
      %v524 = vld [vmem:[%s165 + $0x57c] sm:$0xf]
      %v525 = vld [vmem:[%s165 + $0x580] sm:$0xf]
      %v526 = vld [vmem:[%s165 + $0x584] sm:$0xf]
      %v527 = vld [vmem:[%s165 + $0x588] sm:$0xf]
      %v528 = vld [vmem:[%s165 + $0x58c] sm:$0xf]
      %v529 = vld [vmem:[%s165 + $0x590] sm:$0xf]
      %v530 = vld [vmem:[%s165 + $0x594] sm:$0xf]
      %v531 = vld [vmem:[%s165 + $0x598] sm:$0xf]
      %v532 = vld [vmem:[%s165 + $0x59c] sm:$0xf]
      %v533 = vld [vmem:[%s165 + $0x5a0] sm:$0xf]
      %v534 = vld [vmem:[%s165 + $0x5a4] sm:$0xf]
      %v535 = vld [vmem:[%s165 + $0x5a8] sm:$0xf]
      %v536 = vld [vmem:[%s165 + $0x5ac] sm:$0xf]
      %v537 = vld [vmem:[%s165 + $0x5b0] sm:$0xf]
      %v538 = vld [vmem:[%s165 + $0x5b4] sm:$0xf]
      %v539 = vld [vmem:[%s165 + $0x5b8] sm:$0xf]
      %v540 = vld [vmem:[%s165 + $0x5bc] sm:$0xf]
      %v541 = vld [vmem:[%s165 + $0x5c0] sm:$0xf]
      %v542 = vld [vmem:[%s165 + $0x5c4] sm:$0xf]
      %v543 = vld [vmem:[%s165 + $0x5c8] sm:$0xf]
      %v544 = vld [vmem:[%s165 + $0x5cc] sm:$0xf]
      %v545 = vld [vmem:[%s165 + $0x5d0] sm:$0xf]
      %v546 = vld [vmem:[%s165 + $0x5d4] sm:$0xf]
      %v547 = vld [vmem:[%s165 + $0x5d8] sm:$0xf]
      %v548 = vld [vmem:[%s165 + $0x5dc] sm:$0xf]
      %v549 = vld [vmem:[%s165 + $0x5e0] sm:$0xf]
      %v550 = vld [vmem:[%s165 + $0x5e4] sm:$0xf]
      %v551 = vld [vmem:[%s165 + $0x5e8] sm:$0xf]
      %v552 = vld [vmem:[%s165 + $0x5ec] sm:$0xf]
      %v553 = vld [vmem:[%s165 + $0x5f0] sm:$0xf]
      %v554 = vld [vmem:[%s165 + $0x5f4] sm:$0xf]
      %v555 = vld [vmem:[%s165 + $0x5f8] sm:$0xf]
      %v556 = vld [vmem:[%s165 + $0x5fc] sm:$0xf]
      %v557 = vld [vmem:[%s165 + $0x600] sm:$0xf]
      %v558 = vld [vmem:[%s165 + $0x604] sm:$0xf]
      %v559 = vld [vmem:[%s165 + $0x608] sm:$0xf]
      %v560 = vld [vmem:[%s165 + $0x60c] sm:$0xf]
      %v561 = vld [vmem:[%s165 + $0x610] sm:$0xf]
      %v562 = vld [vmem:[%s165 + $0x614] sm:$0xf]
      %v563 = vld [vmem:[%s165 + $0x618] sm:$0xf]
      %v564 = vld [vmem:[%s165 + $0x61c] sm:$0xf]
      %v565 = vld [vmem:[%s1] sm:$0xf]
      %v566 = vld [vmem:[%s1 + $0x4] sm:$0xf]
      %v567 = vld [vmem:[%s1 + $0x8] sm:$0xf]
      %v568 = vld [vmem:[%s1 + $0xc] sm:$0xf]
      %v569 = vld [vmem:[%s1 + $0x10] sm:$0xf]
      %v570 = vld [vmem:[%s1 + $0x14] sm:$0xf]
      %v571 = vld [vmem:[%s1 + $0x18] sm:$0xf]
      %v572 = vld [vmem:[%s1 + $0x1c] sm:$0xf]
      %v573 = vld [vmem:[%s1 + $0x20] sm:$0xf]
      %v574 = vld [vmem:[%s1 + $0x24] sm:$0x3]
      %v967 = vunpack.c.l.b16 %v173
      %v968 = vunpack.c.l.b16 %v174
      %v969 = vunpack.c.l.b16 %v175
      %v970 = vunpack.c.l.b16 %v176
      %v971 = vunpack.c.l.b16 %v177
      %v972 = vunpack.c.l.b16 %v178
      %v973 = vunpack.c.l.b16 %v179
      %v974 = vunpack.c.l.b16 %v180
      %v975 = vunpack.c.l.b16 %v181
      %v976 = vunpack.c.l.b16 %v182
      %v977 = vunpack.c.l.b16 %v183
      %v978 = vunpack.c.l.b16 %v184
      %v979 = vunpack.c.l.b16 %v185
      %v980 = vunpack.c.l.b16 %v186
      %v981 = vunpack.c.l.b16 %v187
      %v982 = vunpack.c.l.b16 %v188
      %v983 = vunpack.c.l.b16 %v189
      %v984 = vunpack.c.l.b16 %v190
      %v985 = vunpack.c.l.b16 %v191
      %v986 = vunpack.c.l.b16 %v192
      %v987 = vunpack.c.l.b16 %v193
      %v988 = vunpack.c.l.b16 %v194
      %v989 = vunpack.c.l.b16 %v195
      %v990 = vunpack.c.l.b16 %v196
      %v991 = vunpack.c.l.b16 %v197
      %v992 = vunpack.c.l.b16 %v198
      %v993 = vunpack.c.l.b16 %v199
      %v994 = vunpack.c.l.b16 %v200
      %v995 = vunpack.c.l.b16 %v201
      %v996 = vunpack.c.l.b16 %v202
      %v997 = vunpack.c.l.b16 %v203
      %v998 = vunpack.c.l.b16 %v204
      %v999 = vunpack.c.l.b16 %v205
      %v1000 = vunpack.c.l.b16 %v206
      %v1001 = vunpack.c.l.b16 %v207
      %v1002 = vunpack.c.l.b16 %v208
      %v1003 = vunpack.c.l.b16 %v209
      %v1004 = vunpack.c.l.b16 %v210
      %v1005 = vunpack.c.l.b16 %v211
      %v1006 = vunpack.c.l.b16 %v212
      %v1007 = vunpack.c.l.b16 %v213
      %v1008 = vunpack.c.l.b16 %v214
      %v1009 = vunpack.c.l.b16 %v215
      %v1010 = vunpack.c.l.b16 %v216
      %v1011 = vunpack.c.l.b16 %v217
      %v1012 = vunpack.c.l.b16 %v218
      %v1013 = vunpack.c.l.b16 %v219
      %v1014 = vunpack.c.l.b16 %v220
      %v1015 = vunpack.c.l.b16 %v221
      %v1016 = vunpack.c.l.b16 %v222
      %v1017 = vunpack.c.l.b16 %v223
      %v1018 = vunpack.c.l.b16 %v224
      %v1019 = vunpack.c.l.b16 %v225
      %v1020 = vunpack.c.l.b16 %v226
      %v1021 = vunpack.c.l.b16 %v227
      %v1022 = vunpack.c.l.b16 %v228
      %v1023 = vunpack.c.l.b16 %v229
      %v1024 = vunpack.c.l.b16 %v230
      %v1025 = vunpack.c.l.b16 %v231
      %v1026 = vunpack.c.l.b16 %v232
      %v1027 = vunpack.c.l.b16 %v233
      %v1028 = vunpack.c.l.b16 %v234
      %v1029 = vunpack.c.l.b16 %v235
      %v1030 = vunpack.c.l.b16 %v236
      %v1031 = vunpack.c.l.b16 %v237
      %v1032 = vunpack.c.l.b16 %v238
      %v1033 = vunpack.c.l.b16 %v239
      %v1034 = vunpack.c.l.b16 %v240
      %v1035 = vunpack.c.l.b16 %v241
      %v1036 = vunpack.c.l.b16 %v242
      %v1037 = vunpack.c.l.b16 %v243
      %v1038 = vunpack.c.l.b16 %v244
      %v1039 = vunpack.c.l.b16 %v245
      %v1040 = vunpack.c.l.b16 %v246
      %v1041 = vunpack.c.l.b16 %v247
      %v1042 = vunpack.c.l.b16 %v248
      %v1043 = vunpack.c.l.b16 %v249
      %v1044 = vunpack.c.l.b16 %v250
      %v1045 = vunpack.c.l.b16 %v251
      %v1046 = vunpack.c.l.b16 %v252
      %v1047 = vunpack.c.l.b16 %v253
      %v1048 = vunpack.c.l.b16 %v254
      %v1049 = vunpack.c.l.b16 %v255
      %v1050 = vunpack.c.l.b16 %v256
      %v1051 = vunpack.c.l.b16 %v257
      %v1052 = vunpack.c.l.b16 %v258
      %v1053 = vunpack.c.l.b16 %v259
      %v1054 = vunpack.c.l.b16 %v260
      %v1055 = vunpack.c.l.b16 %v261
      %v1056 = vunpack.c.l.b16 %v262
      %v1057 = vunpack.c.l.b16 %v263
      %v1058 = vunpack.c.l.b16 %v264
      %v1059 = vunpack.c.l.b16 %v265
      %v1060 = vunpack.c.l.b16 %v266
      %v1061 = vunpack.c.l.b16 %v267
      %v1062 = vunpack.c.l.b16 %v268
      %v1063 = vunpack.c.l.b16 %v269
      %v1064 = vunpack.c.l.b16 %v270
      %v1065 = vunpack.c.l.b16 %v271
      %v1066 = vunpack.c.l.b16 %v272
      %v1067 = vunpack.c.l.b16 %v273
      %v1068 = vunpack.c.l.b16 %v274
      %v1069 = vunpack.c.l.b16 %v275
      %v1070 = vunpack.c.l.b16 %v276
      %v1071 = vunpack.c.l.b16 %v277
      %v1072 = vunpack.c.l.b16 %v278
      %v1073 = vunpack.c.l.b16 %v279
      %v1074 = vunpack.c.l.b16 %v280
      %v1075 = vunpack.c.l.b16 %v281
      %v1076 = vunpack.c.l.b16 %v282
      %v1077 = vunpack.c.l.b16 %v283
      %v1078 = vunpack.c.l.b16 %v284
      %v1079 = vunpack.c.l.b16 %v285
      %v1080 = vunpack.c.l.b16 %v286
      %v1081 = vunpack.c.l.b16 %v287
      %v1082 = vunpack.c.l.b16 %v288
      %v1083 = vunpack.c.l.b16 %v289
      %v1084 = vunpack.c.l.b16 %v290
      %v1085 = vunpack.c.l.b16 %v291
      %v1086 = vunpack.c.l.b16 %v292
      %v1087 = vunpack.c.l.b16 %v293
      %v1088 = vunpack.c.l.b16 %v294
      %v1089 = vunpack.c.l.b16 %v295
      %v1090 = vunpack.c.l.b16 %v296
      %v1091 = vunpack.c.l.b16 %v297
      %v1092 = vunpack.c.l.b16 %v298
      %v1093 = vunpack.c.l.b16 %v299
      %v1094 = vunpack.c.l.b16 %v300
      %v1095 = vunpack.c.l.b16 %v301
      %v1096 = vunpack.c.l.b16 %v302
      %v1097 = vunpack.c.l.b16 %v303
      %v1098 = vunpack.c.l.b16 %v304
      %v1099 = vunpack.c.l.b16 %v305
      %v1100 = vunpack.c.l.b16 %v306
      %v1101 = vunpack.c.l.b16 %v307
      %v1102 = vunpack.c.l.b16 %v308
      %v1103 = vunpack.c.l.b16 %v309
      %v1104 = vunpack.c.l.b16 %v310
      %v1105 = vunpack.c.l.b16 %v311
      %v1106 = vunpack.c.l.b16 %v312
      %v1107 = vunpack.c.l.b16 %v313
      %v1108 = vunpack.c.l.b16 %v314
      %v1109 = vunpack.c.l.b16 %v315
      %v1110 = vunpack.c.l.b16 %v316
      %v1111 = vunpack.c.l.b16 %v317
      %v1112 = vunpack.c.l.b16 %v318
      %v1113 = vunpack.c.l.b16 %v319
      %v1114 = vunpack.c.l.b16 %v320
      %v1115 = vunpack.c.l.b16 %v321
      %v1116 = vunpack.c.l.b16 %v322
      %v1117 = vunpack.c.l.b16 %v323
      %v1118 = vunpack.c.l.b16 %v324
      %v1119 = vunpack.c.l.b16 %v325
      %v1120 = vunpack.c.l.b16 %v326
      %v1121 = vunpack.c.l.b16 %v327
      %v1122 = vunpack.c.l.b16 %v328
      %v1123 = vunpack.c.l.b16 %v329
      %v1124 = vunpack.c.l.b16 %v330
      %v1125 = vunpack.c.l.b16 %v331
      %v1126 = vunpack.c.l.b16 %v332
      %v1127 = vunpack.c.l.b16 %v333
      %v1128 = vunpack.c.l.b16 %v334
      %v1129 = vunpack.c.l.b16 %v335
      %v1130 = vunpack.c.l.b16 %v336
      %v1131 = vunpack.c.l.b16 %v337
      %v1132 = vunpack.c.l.b16 %v338
      %v1133 = vunpack.c.l.b16 %v339
      %v1134 = vunpack.c.l.b16 %v340
      %v1135 = vunpack.c.l.b16 %v341
      %v1136 = vunpack.c.l.b16 %v342
      %v1137 = vunpack.c.l.b16 %v343
      %v1138 = vunpack.c.l.b16 %v344
      %v1139 = vunpack.c.l.b16 %v345
      %v1140 = vunpack.c.l.b16 %v346
      %v1141 = vunpack.c.l.b16 %v347
      %v1142 = vunpack.c.l.b16 %v348
      %v1143 = vunpack.c.l.b16 %v349
      %v1144 = vunpack.c.l.b16 %v350
      %v1145 = vunpack.c.l.b16 %v351
      %v1146 = vunpack.c.l.b16 %v352
      %v1147 = vunpack.c.l.b16 %v353
      %v1148 = vunpack.c.l.b16 %v354
      %v1149 = vunpack.c.l.b16 %v355
      %v1150 = vunpack.c.l.b16 %v356
      %v1151 = vunpack.c.l.b16 %v357
      %v1152 = vunpack.c.l.b16 %v358
      %v1153 = vunpack.c.l.b16 %v359
      %v1154 = vunpack.c.l.b16 %v360
      %v1155 = vunpack.c.l.b16 %v361
      %v1156 = vunpack.c.l.b16 %v362
      %v1157 = vunpack.c.l.b16 %v363
      %v1158 = vunpack.c.l.b16 %v364
      %v1159 = vunpack.c.l.b16 %v365
      %v1160 = vunpack.c.l.b16 %v366
      %v1161 = vunpack.c.l.b16 %v367
      %v1162 = vunpack.c.l.b16 %v368
      %v1163 = vunpack.c.l.b16 %v369
      %v1164 = vunpack.c.l.b16 %v370
      %v1165 = vunpack.c.l.b16 %v371
      %v1166 = vunpack.c.l.b16 %v372
      %v1167 = vunpack.c.l.b16 %v373
      %v1168 = vunpack.c.l.b16 %v374
      %v1169 = vunpack.c.l.b16 %v375
      %v1170 = vunpack.c.l.b16 %v376
      %v1171 = vunpack.c.l.b16 %v377
      %v1172 = vunpack.c.l.b16 %v378
      %v1173 = vunpack.c.l.b16 %v379
      %v1174 = vunpack.c.l.b16 %v380
      %v1175 = vunpack.c.l.b16 %v381
      %v1176 = vunpack.c.l.b16 %v382
      %v1177 = vunpack.c.l.b16 %v383
      %v1178 = vunpack.c.l.b16 %v384
      %v1179 = vunpack.c.l.b16 %v385
      %v1180 = vunpack.c.l.b16 %v386
      %v1181 = vunpack.c.l.b16 %v387
      %v1182 = vunpack.c.l.b16 %v388
      %v1183 = vunpack.c.l.b16 %v389
      %v1184 = vunpack.c.l.b16 %v390
      %v1185 = vunpack.c.l.b16 %v391
      %v1186 = vunpack.c.l.b16 %v392
      %v1187 = vunpack.c.l.b16 %v393
      %v1188 = vunpack.c.l.b16 %v394
      %v1189 = vunpack.c.l.b16 %v395
      %v1190 = vunpack.c.l.b16 %v396
      %v1191 = vunpack.c.l.b16 %v397
      %v1192 = vunpack.c.l.b16 %v398
      %v1193 = vunpack.c.l.b16 %v399
      %v1194 = vunpack.c.l.b16 %v400
      %v1195 = vunpack.c.l.b16 %v401
      %v1196 = vunpack.c.l.b16 %v402
      %v1197 = vunpack.c.l.b16 %v403
      %v1198 = vunpack.c.l.b16 %v404
      %v1199 = vunpack.c.l.b16 %v405
      %v1200 = vunpack.c.l.b16 %v406
      %v1201 = vunpack.c.l.b16 %v407
      %v1202 = vunpack.c.l.b16 %v408
      %v1203 = vunpack.c.l.b16 %v409
      %v1204 = vunpack.c.l.b16 %v410
      %v1205 = vunpack.c.l.b16 %v411
      %v1206 = vunpack.c.l.b16 %v412
      %v1207 = vunpack.c.l.b16 %v413
      %v1208 = vunpack.c.l.b16 %v414
      %v1209 = vunpack.c.l.b16 %v415
      %v1210 = vunpack.c.l.b16 %v416
      %v1211 = vunpack.c.l.b16 %v417
      %v1212 = vunpack.c.l.b16 %v418
      %v1213 = vunpack.c.l.b16 %v419
      %v1214 = vunpack.c.l.b16 %v420
      %v1215 = vunpack.c.l.b16 %v421
      %v1216 = vunpack.c.l.b16 %v422
      %v1217 = vunpack.c.l.b16 %v423
      %v1218 = vunpack.c.l.b16 %v424
      %v1219 = vunpack.c.l.b16 %v425
      %v1220 = vunpack.c.l.b16 %v426
      %v1221 = vunpack.c.l.b16 %v427
      %v1222 = vunpack.c.l.b16 %v428
      %v1223 = vunpack.c.l.b16 %v429
      %v1224 = vunpack.c.l.b16 %v430
      %v1225 = vunpack.c.l.b16 %v431
      %v1226 = vunpack.c.l.b16 %v432
      %v1227 = vunpack.c.l.b16 %v433
      %v1228 = vunpack.c.l.b16 %v434
      %v1229 = vunpack.c.l.b16 %v435
      %v1230 = vunpack.c.l.b16 %v436
      %v1231 = vunpack.c.l.b16 %v437
      %v1232 = vunpack.c.l.b16 %v438
      %v1233 = vunpack.c.l.b16 %v439
      %v1234 = vunpack.c.l.b16 %v440
      %v1235 = vunpack.c.l.b16 %v441
      %v1236 = vunpack.c.l.b16 %v442
      %v1237 = vunpack.c.l.b16 %v443
      %v1238 = vunpack.c.l.b16 %v444
      %v1239 = vunpack.c.l.b16 %v445
      %v1240 = vunpack.c.l.b16 %v446
      %v1241 = vunpack.c.l.b16 %v447
      %v1242 = vunpack.c.l.b16 %v448
      %v1243 = vunpack.c.l.b16 %v449
      %v1244 = vunpack.c.l.b16 %v450
      %v1245 = vunpack.c.l.b16 %v451
      %v1246 = vunpack.c.l.b16 %v452
      %v1247 = vunpack.c.l.b16 %v453
      %v1248 = vunpack.c.l.b16 %v454
      %v1249 = vunpack.c.l.b16 %v455
      %v1250 = vunpack.c.l.b16 %v456
      %v1251 = vunpack.c.l.b16 %v457
      %v1252 = vunpack.c.l.b16 %v458
      %v1253 = vunpack.c.l.b16 %v459
      %v1254 = vunpack.c.l.b16 %v460
      %v1255 = vunpack.c.l.b16 %v461
      %v1256 = vunpack.c.l.b16 %v462
      %v1257 = vunpack.c.l.b16 %v463
      %v1258 = vunpack.c.l.b16 %v464
      %v1259 = vunpack.c.l.b16 %v465
      %v1260 = vunpack.c.l.b16 %v466
      %v1261 = vunpack.c.l.b16 %v467
      %v1262 = vunpack.c.l.b16 %v468
      %v1263 = vunpack.c.l.b16 %v469
      %v1264 = vunpack.c.l.b16 %v470
      %v1265 = vunpack.c.l.b16 %v471
      %v1266 = vunpack.c.l.b16 %v472
      %v1267 = vunpack.c.l.b16 %v473
      %v1268 = vunpack.c.l.b16 %v474
      %v1269 = vunpack.c.l.b16 %v475
      %v1270 = vunpack.c.l.b16 %v476
      %v1271 = vunpack.c.l.b16 %v477
      %v1272 = vunpack.c.l.b16 %v478
      %v1273 = vunpack.c.l.b16 %v479
      %v1274 = vunpack.c.l.b16 %v480
      %v1275 = vunpack.c.l.b16 %v481
      %v1276 = vunpack.c.l.b16 %v482
      %v1277 = vunpack.c.l.b16 %v483
      %v1278 = vunpack.c.l.b16 %v484
      %v1279 = vunpack.c.l.b16 %v485
      %v1280 = vunpack.c.l.b16 %v486
      %v1281 = vunpack.c.l.b16 %v487
      %v1282 = vunpack.c.l.b16 %v488
      %v1283 = vunpack.c.l.b16 %v489
      %v1284 = vunpack.c.l.b16 %v490
      %v1285 = vunpack.c.l.b16 %v491
      %v1286 = vunpack.c.l.b16 %v492
      %v1287 = vunpack.c.l.b16 %v493
      %v1288 = vunpack.c.l.b16 %v494
      %v1289 = vunpack.c.l.b16 %v495
      %v1290 = vunpack.c.l.b16 %v496
      %v1291 = vunpack.c.l.b16 %v497
      %v1292 = vunpack.c.l.b16 %v498
      %v1293 = vunpack.c.l.b16 %v499
      %v1294 = vunpack.c.l.b16 %v500
      %v1295 = vunpack.c.l.b16 %v501
      %v1296 = vunpack.c.l.b16 %v502
      %v1297 = vunpack.c.l.b16 %v503
      %v1298 = vunpack.c.l.b16 %v504
      %v1299 = vunpack.c.l.b16 %v505
      %v1300 = vunpack.c.l.b16 %v506
      %v1301 = vunpack.c.l.b16 %v507
      %v1302 = vunpack.c.l.b16 %v508
      %v1303 = vunpack.c.l.b16 %v509
      %v1304 = vunpack.c.l.b16 %v510
      %v1305 = vunpack.c.l.b16 %v511
      %v1306 = vunpack.c.l.b16 %v512
      %v1307 = vunpack.c.l.b16 %v513
      %v1308 = vunpack.c.l.b16 %v514
      %v1309 = vunpack.c.l.b16 %v515
      %v1310 = vunpack.c.l.b16 %v516
      %v1311 = vunpack.c.l.b16 %v517
      %v1312 = vunpack.c.l.b16 %v518
      %v1313 = vunpack.c.l.b16 %v519
      %v1314 = vunpack.c.l.b16 %v520
      %v1315 = vunpack.c.l.b16 %v521
      %v1316 = vunpack.c.l.b16 %v522
      %v1317 = vunpack.c.l.b16 %v523
      %v1318 = vunpack.c.l.b16 %v524
      %v1319 = vunpack.c.l.b16 %v525
      %v1320 = vunpack.c.l.b16 %v526
      %v1321 = vunpack.c.l.b16 %v527
      %v1322 = vunpack.c.l.b16 %v528
      %v1323 = vunpack.c.l.b16 %v529
      %v1324 = vunpack.c.l.b16 %v530
      %v1325 = vunpack.c.l.b16 %v531
      %v1326 = vunpack.c.l.b16 %v532
      %v1327 = vunpack.c.l.b16 %v533
      %v1328 = vunpack.c.l.b16 %v534
      %v1329 = vunpack.c.l.b16 %v535
      %v1330 = vunpack.c.l.b16 %v536
      %v1331 = vunpack.c.l.b16 %v537
      %v1332 = vunpack.c.l.b16 %v538
      %v1333 = vunpack.c.l.b16 %v539
      %v1334 = vunpack.c.l.b16 %v540
      %v1335 = vunpack.c.l.b16 %v541
      %v1336 = vunpack.c.l.b16 %v542
      %v1337 = vunpack.c.l.b16 %v543
      %v1338 = vunpack.c.l.b16 %v544
      %v1339 = vunpack.c.l.b16 %v545
      %v1340 = vunpack.c.l.b16 %v546
      %v1341 = vunpack.c.l.b16 %v547
      %v1342 = vunpack.c.l.b16 %v548
      %v1343 = vunpack.c.l.b16 %v549
      %v1344 = vunpack.c.l.b16 %v550
      %v1345 = vunpack.c.l.b16 %v551
      %v1346 = vunpack.c.l.b16 %v552
      %v1347 = vunpack.c.l.b16 %v553
      %v1348 = vunpack.c.l.b16 %v554
      %v1349 = vunpack.c.l.b16 %v555
      %v1350 = vunpack.c.l.b16 %v556
      %v1351 = vunpack.c.l.b16 %v557
      %v1352 = vunpack.c.l.b16 %v558
      %v1353 = vunpack.c.l.b16 %v559
      %v1354 = vunpack.c.l.b16 %v560
      %v1355 = vunpack.c.l.b16 %v561
      %v1356 = vunpack.c.l.b16 %v562
      %v1357 = vunpack.c.l.b16 %v563
      %v1358 = vunpack.c.l.b16 %v564
      %v1359 = vpack.c.b16 %v968, %v967
      %v1360 = vpack.c.b16 %v970, %v969
      %v1361 = vpack.c.b16 %v972, %v971
      %v1362 = vpack.c.b16 %v974, %v973
      %v1363 = vpack.c.b16 %v976, %v975
      %v1364 = vpack.c.b16 %v978, %v977
      %v1365 = vpack.c.b16 %v980, %v979
      %v1366 = vpack.c.b16 %v982, %v981
      %v1367 = vpack.c.b16 %v984, %v983
      %v1368 = vpack.c.b16 %v986, %v985
      %v1369 = vpack.c.b16 %v988, %v987
      %v1370 = vpack.c.b16 %v990, %v989
      %v1371 = vpack.c.b16 %v992, %v991
      %v1372 = vpack.c.b16 %v994, %v993
      %v1373 = vpack.c.b16 %v996, %v995
      %v1374 = vpack.c.b16 %v998, %v997
      %v1375 = vpack.c.b16 %v1000, %v999
      %v1376 = vpack.c.b16 %v1002, %v1001
      %v1377 = vpack.c.b16 %v1004, %v1003
      %v1378 = vpack.c.b16 %v1006, %v1005
      %v1379 = vpack.c.b16 %v1008, %v1007
      %v1380 = vpack.c.b16 %v1010, %v1009
      %v1381 = vpack.c.b16 %v1012, %v1011
      %v1382 = vpack.c.b16 %v1014, %v1013
      %v1383 = vpack.c.b16 %v1016, %v1015
      %v1384 = vpack.c.b16 %v1018, %v1017
      %v1385 = vpack.c.b16 %v1020, %v1019
      %v1386 = vpack.c.b16 %v1022, %v1021
      %v1387 = vpack.c.b16 %v1024, %v1023
      %v1388 = vpack.c.b16 %v1026, %v1025
      %v1389 = vpack.c.b16 %v1028, %v1027
      %v1390 = vpack.c.b16 %v1030, %v1029
      %v1391 = vpack.c.b16 %v1032, %v1031
      %v1392 = vpack.c.b16 %v1034, %v1033
      %v1393 = vpack.c.b16 %v1036, %v1035
      %v1394 = vpack.c.b16 %v1038, %v1037
      %v1395 = vpack.c.b16 %v1040, %v1039
      %v1396 = vpack.c.b16 %v1042, %v1041
      %v1397 = vpack.c.b16 %v1044, %v1043
      %v1398 = vpack.c.b16 %v1046, %v1045
      %v1399 = vpack.c.b16 %v1048, %v1047
      %v1400 = vpack.c.b16 %v1050, %v1049
      %v1401 = vpack.c.b16 %v1052, %v1051
      %v1402 = vpack.c.b16 %v1054, %v1053
      %v1403 = vpack.c.b16 %v1056, %v1055
      %v1404 = vpack.c.b16 %v1058, %v1057
      %v1405 = vpack.c.b16 %v1060, %v1059
      %v1406 = vpack.c.b16 %v1062, %v1061
      %v1407 = vpack.c.b16 %v1064, %v1063
      %v1408 = vpack.c.b16 %v1066, %v1065
      %v1409 = vpack.c.b16 %v1068, %v1067
      %v1410 = vpack.c.b16 %v1070, %v1069
      %v1411 = vpack.c.b16 %v1072, %v1071
      %v1412 = vpack.c.b16 %v1074, %v1073
      %v1413 = vpack.c.b16 %v1076, %v1075
      %v1414 = vpack.c.b16 %v1078, %v1077
      %v1415 = vpack.c.b16 %v1080, %v1079
      %v1416 = vpack.c.b16 %v1082, %v1081
      %v1417 = vpack.c.b16 %v1084, %v1083
      %v1418 = vpack.c.b16 %v1086, %v1085
      %v1419 = vpack.c.b16 %v1088, %v1087
      %v1420 = vpack.c.b16 %v1090, %v1089
      %v1421 = vpack.c.b16 %v1092, %v1091
      %v1422 = vpack.c.b16 %v1094, %v1093
      %v1423 = vpack.c.b16 %v1096, %v1095
      %v1424 = vpack.c.b16 %v1098, %v1097
      %v1425 = vpack.c.b16 %v1100, %v1099
      %v1426 = vpack.c.b16 %v1102, %v1101
      %v1427 = vpack.c.b16 %v1104, %v1103
      %v1428 = vpack.c.b16 %v1106, %v1105
      %v1429 = vpack.c.b16 %v1108, %v1107
      %v1430 = vpack.c.b16 %v1110, %v1109
      %v1431 = vpack.c.b16 %v1112, %v1111
      %v1432 = vpack.c.b16 %v1114, %v1113
      %v1433 = vpack.c.b16 %v1116, %v1115
      %v1434 = vpack.c.b16 %v1118, %v1117
      %v1435 = vpack.c.b16 %v1120, %v1119
      %v1436 = vpack.c.b16 %v1122, %v1121
      %v1437 = vpack.c.b16 %v1124, %v1123
      %v1438 = vpack.c.b16 %v1126, %v1125
      %v1439 = vpack.c.b16 %v1128, %v1127
      %v1440 = vpack.c.b16 %v1130, %v1129
      %v1441 = vpack.c.b16 %v1132, %v1131
      %v1442 = vpack.c.b16 %v1134, %v1133
      %v1443 = vpack.c.b16 %v1136, %v1135
      %v1444 = vpack.c.b16 %v1138, %v1137
      %v1445 = vpack.c.b16 %v1140, %v1139
      %v1446 = vpack.c.b16 %v1142, %v1141
      %v1447 = vpack.c.b16 %v1144, %v1143
      %v1448 = vpack.c.b16 %v1146, %v1145
      %v1449 = vpack.c.b16 %v1148, %v1147
      %v1450 = vpack.c.b16 %v1150, %v1149
      %v1451 = vpack.c.b16 %v1152, %v1151
      %v1452 = vpack.c.b16 %v1154, %v1153
      %v1453 = vpack.c.b16 %v1156, %v1155
      %v1454 = vpack.c.b16 %v1158, %v1157
      %v1455 = vpack.c.b16 %v1160, %v1159
      %v1456 = vpack.c.b16 %v1162, %v1161
      %v1457 = vpack.c.b16 %v1164, %v1163
      %v1458 = vpack.c.b16 %v1166, %v1165
      %v1459 = vpack.c.b16 %v1168, %v1167
      %v1460 = vpack.c.b16 %v1170, %v1169
      %v1461 = vpack.c.b16 %v1172, %v1171
      %v1462 = vpack.c.b16 %v1174, %v1173
      %v1463 = vpack.c.b16 %v1176, %v1175
      %v1464 = vpack.c.b16 %v1178, %v1177
      %v1465 = vpack.c.b16 %v1180, %v1179
      %v1466 = vpack.c.b16 %v1182, %v1181
      %v1467 = vpack.c.b16 %v1184, %v1183
      %v1468 = vpack.c.b16 %v1186, %v1185
      %v1469 = vpack.c.b16 %v1188, %v1187
      %v1470 = vpack.c.b16 %v1190, %v1189
      %v1471 = vpack.c.b16 %v1192, %v1191
      %v1472 = vpack.c.b16 %v1194, %v1193
      %v1473 = vpack.c.b16 %v1196, %v1195
      %v1474 = vpack.c.b16 %v1198, %v1197
      %v1475 = vpack.c.b16 %v1200, %v1199
      %v1476 = vpack.c.b16 %v1202, %v1201
      %v1477 = vpack.c.b16 %v1204, %v1203
      %v1478 = vpack.c.b16 %v1206, %v1205
      %v1479 = vpack.c.b16 %v1208, %v1207
      %v1480 = vpack.c.b16 %v1210, %v1209
      %v1481 = vpack.c.b16 %v1212, %v1211
      %v1482 = vpack.c.b16 %v1214, %v1213
      %v1483 = vpack.c.b16 %v1216, %v1215
      %v1484 = vpack.c.b16 %v1218, %v1217
      %v1485 = vpack.c.b16 %v1220, %v1219
      %v1486 = vpack.c.b16 %v1222, %v1221
      %v1487 = vpack.c.b16 %v1224, %v1223
      %v1488 = vpack.c.b16 %v1226, %v1225
      %v1489 = vpack.c.b16 %v1228, %v1227
      %v1490 = vpack.c.b16 %v1230, %v1229
      %v1491 = vpack.c.b16 %v1232, %v1231
      %v1492 = vpack.c.b16 %v1234, %v1233
      %v1493 = vpack.c.b16 %v1236, %v1235
      %v1494 = vpack.c.b16 %v1238, %v1237
      %v1495 = vpack.c.b16 %v1240, %v1239
      %v1496 = vpack.c.b16 %v1242, %v1241
      %v1497 = vpack.c.b16 %v1244, %v1243
      %v1498 = vpack.c.b16 %v1246, %v1245
      %v1499 = vpack.c.b16 %v1248, %v1247
      %v1500 = vpack.c.b16 %v1250, %v1249
      %v1501 = vpack.c.b16 %v1252, %v1251
      %v1502 = vpack.c.b16 %v1254, %v1253
      %v1503 = vpack.c.b16 %v1256, %v1255
      %v1504 = vpack.c.b16 %v1258, %v1257
      %v1505 = vpack.c.b16 %v1260, %v1259
      %v1506 = vpack.c.b16 %v1262, %v1261
      %v1507 = vpack.c.b16 %v1264, %v1263
      %v1508 = vpack.c.b16 %v1266, %v1265
      %v1509 = vpack.c.b16 %v1268, %v1267
      %v1510 = vpack.c.b16 %v1270, %v1269
      %v1511 = vpack.c.b16 %v1272, %v1271
      %v1512 = vpack.c.b16 %v1274, %v1273
      %v1513 = vpack.c.b16 %v1276, %v1275
      %v1514 = vpack.c.b16 %v1278, %v1277
      %v1515 = vpack.c.b16 %v1280, %v1279
      %v1516 = vpack.c.b16 %v1282, %v1281
      %v1517 = vpack.c.b16 %v1284, %v1283
      %v1518 = vpack.c.b16 %v1286, %v1285
      %v1519 = vpack.c.b16 %v1288, %v1287
      %v1520 = vpack.c.b16 %v1290, %v1289
      %v1521 = vpack.c.b16 %v1292, %v1291
      %v1522 = vpack.c.b16 %v1294, %v1293
      %v1523 = vpack.c.b16 %v1296, %v1295
      %v1524 = vpack.c.b16 %v1298, %v1297
      %v1525 = vpack.c.b16 %v1300, %v1299
      %v1526 = vpack.c.b16 %v1302, %v1301
      %v1527 = vpack.c.b16 %v1304, %v1303
      %v1528 = vpack.c.b16 %v1306, %v1305
      %v1529 = vpack.c.b16 %v1308, %v1307
      %v1530 = vpack.c.b16 %v1310, %v1309
      %v1531 = vpack.c.b16 %v1312, %v1311
      %v1532 = vpack.c.b16 %v1314, %v1313
      %v1533 = vpack.c.b16 %v1316, %v1315
      %v1534 = vpack.c.b16 %v1318, %v1317
      %v1535 = vpack.c.b16 %v1320, %v1319
      %v1536 = vpack.c.b16 %v1322, %v1321
      %v1537 = vpack.c.b16 %v1324, %v1323
      %v1538 = vpack.c.b16 %v1326, %v1325
      %v1539 = vpack.c.b16 %v1328, %v1327
      %v1540 = vpack.c.b16 %v1330, %v1329
      %v1541 = vpack.c.b16 %v1332, %v1331
      %v1542 = vpack.c.b16 %v1334, %v1333
      %v1543 = vpack.c.b16 %v1336, %v1335
      %v1544 = vpack.c.b16 %v1338, %v1337
      %v1545 = vpack.c.b16 %v1340, %v1339
      %v1546 = vpack.c.b16 %v1342, %v1341
      %v1547 = vpack.c.b16 %v1344, %v1343
      %v1548 = vpack.c.b16 %v1346, %v1345
      %v1549 = vpack.c.b16 %v1348, %v1347
      %v1550 = vpack.c.b16 %v1350, %v1349
      %v1551 = vpack.c.b16 %v1352, %v1351
      %v1552 = vpack.c.b16 %v1354, %v1353
      %v1553 = vpack.c.b16 %v1356, %v1355
      %v1554 = vpack.c.b16 %v1358, %v1357
      %v1565 = vunpack.c.l.b16 %v565
      %v1566 = vunpack.c.l.b16 %v566
      %v1567 = vunpack.c.l.b16 %v567
      %v1568 = vunpack.c.l.b16 %v568
      %v1569 = vunpack.c.l.b16 %v569
      %v1570 = vunpack.c.l.b16 %v570
      %v1571 = vunpack.c.l.b16 %v571
      %v1572 = vunpack.c.l.b16 %v572
      %v1573 = vunpack.c.l.b16 %v573
      %v1574 = vunpack.c.l.b16 %v574
      %v1575 = vpack.c.b16 %v1566, %v1565
      %v1576 = vpack.c.b16 %v1568, %v1567
      %v1577 = vpack.c.b16 %v1570, %v1569
      %v1578 = vpack.c.b16 %v1572, %v1571
      %v1579 = vpack.c.b16 %v1574, %v1573
      %vm1584 = vcmask 613376
      %v1586 = vsel %vm1584, %v1359, 0
      %v1589 = vsel %vm1584, %v1360, 0
      %v1592 = vsel %vm1584, %v1361, 0
      %v1595 = vsel %vm1584, %v1362, 0
      %v1598 = vsel %vm1584, %v1363, 0
      %v1601 = vsel %vm1584, %v1364, 0
      %v1604 = vsel %vm1584, %v1365, 0
      %v1607 = vsel %vm1584, %v1366, 0
      %v1610 = vsel %vm1584, %v1367, 0
      %v1613 = vsel %vm1584, %v1368, 0
      %v1616 = vsel %vm1584, %v1369, 0
      %v1619 = vsel %vm1584, %v1370, 0
      %v1622 = vsel %vm1584, %v1371, 0
      %v1625 = vsel %vm1584, %v1372, 0
      %v1628 = vsel %vm1584, %v1373, 0
      %v1631 = vsel %vm1584, %v1374, 0
      %v1634 = vsel %vm1584, %v1375, 0
      %v1637 = vsel %vm1584, %v1376, 0
      %v1640 = vsel %vm1584, %v1377, 0
      %v1643 = vsel %vm1584, %v1378, 0
      %v1646 = vsel %vm1584, %v1379, 0
      %v1649 = vsel %vm1584, %v1380, 0
      %v1652 = vsel %vm1584, %v1381, 0
      %v1655 = vsel %vm1584, %v1382, 0
      %v1658 = vsel %vm1584, %v1383, 0
      %v1661 = vsel %vm1584, %v1384, 0
      %v1664 = vsel %vm1584, %v1385, 0
      %v1667 = vsel %vm1584, %v1386, 0
      %v1670 = vsel %vm1584, %v1387, 0
      %v1673 = vsel %vm1584, %v1388, 0
      %v1676 = vsel %vm1584, %v1389, 0
      %v1679 = vsel %vm1584, %v1390, 0
      %v1682 = vsel %vm1584, %v1391, 0
      %v1685 = vsel %vm1584, %v1392, 0
      %v1688 = vsel %vm1584, %v1393, 0
      %v1691 = vsel %vm1584, %v1394, 0
      %v1694 = vsel %vm1584, %v1395, 0
      %v1697 = vsel %vm1584, %v1396, 0
      %v1700 = vsel %vm1584, %v1397, 0
      %v1703 = vsel %vm1584, %v1398, 0
      %v1706 = vsel %vm1584, %v1399, 0
      %v1709 = vsel %vm1584, %v1400, 0
      %v1712 = vsel %vm1584, %v1401, 0
      %v1715 = vsel %vm1584, %v1402, 0
      %v1718 = vsel %vm1584, %v1403, 0
      %v1721 = vsel %vm1584, %v1404, 0
      %v1724 = vsel %vm1584, %v1405, 0
      %v1727 = vsel %vm1584, %v1406, 0
      %v1730 = vsel %vm1584, %v1407, 0
      %v1733 = vsel %vm1584, %v1408, 0
      %v1736 = vsel %vm1584, %v1409, 0
      %v1739 = vsel %vm1584, %v1410, 0
      %v1742 = vsel %vm1584, %v1411, 0
      %v1745 = vsel %vm1584, %v1412, 0
      %v1748 = vsel %vm1584, %v1413, 0
      %v1751 = vsel %vm1584, %v1414, 0
      %v1754 = vsel %vm1584, %v1415, 0
      %v1757 = vsel %vm1584, %v1416, 0
      %v1760 = vsel %vm1584, %v1417, 0
      %v1763 = vsel %vm1584, %v1418, 0
      %v1766 = vsel %vm1584, %v1419, 0
      %v1769 = vsel %vm1584, %v1420, 0
      %v1772 = vsel %vm1584, %v1421, 0
      %v1775 = vsel %vm1584, %v1422, 0
      %v1778 = vsel %vm1584, %v1423, 0
      %v1781 = vsel %vm1584, %v1424, 0
      %v1784 = vsel %vm1584, %v1425, 0
      %v1787 = vsel %vm1584, %v1426, 0
      %v1790 = vsel %vm1584, %v1427, 0
      %v1793 = vsel %vm1584, %v1428, 0
      %v1796 = vsel %vm1584, %v1429, 0
      %v1799 = vsel %vm1584, %v1430, 0
      %v1802 = vsel %vm1584, %v1431, 0
      %v1805 = vsel %vm1584, %v1432, 0
      %v1808 = vsel %vm1584, %v1433, 0
      %v1811 = vsel %vm1584, %v1434, 0
      %v1814 = vsel %vm1584, %v1435, 0
      %v1817 = vsel %vm1584, %v1436, 0
      %v1820 = vsel %vm1584, %v1437, 0
      %v1823 = vsel %vm1584, %v1438, 0
      %v1826 = vsel %vm1584, %v1439, 0
      %v1829 = vsel %vm1584, %v1440, 0
      %v1832 = vsel %vm1584, %v1441, 0
      %v1835 = vsel %vm1584, %v1442, 0
      %v1838 = vsel %vm1584, %v1443, 0
      %v1841 = vsel %vm1584, %v1444, 0
      %v1844 = vsel %vm1584, %v1445, 0
      %v1847 = vsel %vm1584, %v1446, 0
      %v1850 = vsel %vm1584, %v1447, 0
      %v1853 = vsel %vm1584, %v1448, 0
      %v1856 = vsel %vm1584, %v1449, 0
      %v1859 = vsel %vm1584, %v1450, 0
      %v1862 = vsel %vm1584, %v1451, 0
      %v1865 = vsel %vm1584, %v1452, 0
      %v1868 = vsel %vm1584, %v1453, 0
      %v1871 = vsel %vm1584, %v1454, 0
      %v1874 = vsel %vm1584, %v1455, 0
      %v1877 = vsel %vm1584, %v1456, 0
      %v1880 = vsel %vm1584, %v1457, 0
      %v1883 = vsel %vm1584, %v1458, 0
      %v1886 = vsel %vm1584, %v1459, 0
      %v1889 = vsel %vm1584, %v1460, 0
      %v1892 = vsel %vm1584, %v1461, 0
      %v1895 = vsel %vm1584, %v1462, 0
      %v1898 = vsel %vm1584, %v1463, 0
      %v1901 = vsel %vm1584, %v1464, 0
      %v1904 = vsel %vm1584, %v1465, 0
      %v1907 = vsel %vm1584, %v1466, 0
      %v1910 = vsel %vm1584, %v1467, 0
      %v1913 = vsel %vm1584, %v1468, 0
      %v1916 = vsel %vm1584, %v1469, 0
      %v1919 = vsel %vm1584, %v1470, 0
      %v1922 = vsel %vm1584, %v1471, 0
      %v1925 = vsel %vm1584, %v1472, 0
      %v1928 = vsel %vm1584, %v1473, 0
      %v1931 = vsel %vm1584, %v1474, 0
      %v1934 = vsel %vm1584, %v1475, 0
      %v1937 = vsel %vm1584, %v1476, 0
      %v1940 = vsel %vm1584, %v1477, 0
      %v1943 = vsel %vm1584, %v1478, 0
      %v1946 = vsel %vm1584, %v1479, 0
      %v1949 = vsel %vm1584, %v1480, 0
      %v1952 = vsel %vm1584, %v1481, 0
      %v1955 = vsel %vm1584, %v1482, 0
      %v1958 = vsel %vm1584, %v1483, 0
      %v1961 = vsel %vm1584, %v1484, 0
      %v1964 = vsel %vm1584, %v1485, 0
      %v1967 = vsel %vm1584, %v1486, 0
      %v1970 = vsel %vm1584, %v1487, 0
      %v1973 = vsel %vm1584, %v1488, 0
      %v1976 = vsel %vm1584, %v1489, 0
      %v1979 = vsel %vm1584, %v1490, 0
      %v1982 = vsel %vm1584, %v1491, 0
      %v1985 = vsel %vm1584, %v1492, 0
      %v1988 = vsel %vm1584, %v1493, 0
      %v1991 = vsel %vm1584, %v1494, 0
      %v1994 = vsel %vm1584, %v1495, 0
      %v1997 = vsel %vm1584, %v1496, 0
      %v2000 = vsel %vm1584, %v1497, 0
      %v2003 = vsel %vm1584, %v1498, 0
      %v2006 = vsel %vm1584, %v1499, 0
      %v2009 = vsel %vm1584, %v1500, 0
      %v2012 = vsel %vm1584, %v1501, 0
      %v2015 = vsel %vm1584, %v1502, 0
      %v2018 = vsel %vm1584, %v1503, 0
      %v2021 = vsel %vm1584, %v1504, 0
      %v2024 = vsel %vm1584, %v1505, 0
      %v2027 = vsel %vm1584, %v1506, 0
      %v2030 = vsel %vm1584, %v1507, 0
      %v2033 = vsel %vm1584, %v1508, 0
      %v2036 = vsel %vm1584, %v1509, 0
      %v2039 = vsel %vm1584, %v1510, 0
      %v2042 = vsel %vm1584, %v1511, 0
      %v2045 = vsel %vm1584, %v1512, 0
      %v2048 = vsel %vm1584, %v1513, 0
      %v2051 = vsel %vm1584, %v1514, 0
      %v2054 = vsel %vm1584, %v1515, 0
      %v2057 = vsel %vm1584, %v1516, 0
      %v2060 = vsel %vm1584, %v1517, 0
      %v2063 = vsel %vm1584, %v1518, 0
      %v2066 = vsel %vm1584, %v1519, 0
      %v2069 = vsel %vm1584, %v1520, 0
      %v2072 = vsel %vm1584, %v1521, 0
      %v2075 = vsel %vm1584, %v1522, 0
      %v2078 = vsel %vm1584, %v1523, 0
      %v2081 = vsel %vm1584, %v1524, 0
      %v2084 = vsel %vm1584, %v1525, 0
      %v2087 = vsel %vm1584, %v1526, 0
      %v2090 = vsel %vm1584, %v1527, 0
      %v2093 = vsel %vm1584, %v1528, 0
      %v2096 = vsel %vm1584, %v1529, 0
      %v2099 = vsel %vm1584, %v1530, 0
      %v2102 = vsel %vm1584, %v1531, 0
      %v2105 = vsel %vm1584, %v1532, 0
      %v2108 = vsel %vm1584, %v1533, 0
      %v2111 = vsel %vm1584, %v1534, 0
      %v2114 = vsel %vm1584, %v1535, 0
      %v2117 = vsel %vm1584, %v1536, 0
      %v2120 = vsel %vm1584, %v1537, 0
      %v2123 = vsel %vm1584, %v1538, 0
      %v2126 = vsel %vm1584, %v1539, 0
      %v2129 = vsel %vm1584, %v1540, 0
      %v2132 = vsel %vm1584, %v1541, 0
      %v2135 = vsel %vm1584, %v1542, 0
      %v2138 = vsel %vm1584, %v1543, 0
      %v2141 = vsel %vm1584, %v1544, 0
      %v2144 = vsel %vm1584, %v1545, 0
      %v2147 = vsel %vm1584, %v1546, 0
      %v2150 = vsel %vm1584, %v1547, 0
      %v2153 = vsel %vm1584, %v1548, 0
      %v2156 = vsel %vm1584, %v1549, 0
      %v2159 = vsel %vm1584, %v1550, 0
      %v2162 = vsel %vm1584, %v1551, 0
      %v2165 = vsel %vm1584, %v1552, 0
      %v2168 = vsel %vm1584, %v1553, 0
      %v2171 = vsel %vm1584, %v1554, 0
      %vm2173 = vcmask 1044480
      %vm2174 = vcmask 1045504
      %v2175 = vsel %vm2173, 4294967295, 65535
      %v2176 = vsel %vm2174, %v2175, 0
      %v2178 = vand.u32 %v1579, %v2176
      %2180 = vmatpush.bf16.msra.mxu0 0
      %2181 = vmatpush.bf16.msra.mxu0 0
      %2182 = vmatpush.bf16.msra.mxu0 0
      %2183 = vmatpush.bf16.msra.mxu0 %v2178
      %2184 = vmatpush.bf16.msra.mxu0 %v1578
      %2185 = vmatpush.bf16.msra.mxu0 %v1577
      %2186 = vmatpush.bf16.msra.mxu0 %v1576
      %2187 = vmatpush.bf16.msra.mxu0 %v1575
      %2188 = vmatmul.bf16.gmra.mxu0 %v1586
      %v2189 = vpop.f32.mrf.mxu0
      %v2190 = vadd.f32 0.0, %v2189
      %v2191 = vpop.f32.mrf.mxu0
      %v2192 = vadd.f32 0.0, %v2191
      %2193 = vmatmul.bf16.gmra.mxu0 %v1589
      %v2194 = vpop.f32.mrf.mxu0
      %v2195 = vadd.f32 0.0, %v2194
      %v2196 = vpop.f32.mrf.mxu0
      %v2197 = vadd.f32 0.0, %v2196
      %2198 = vmatmul.bf16.gmra.mxu0 %v1592
      %v2199 = vpop.f32.mrf.mxu0
      %v2200 = vadd.f32 0.0, %v2199
      %v2201 = vpop.f32.mrf.mxu0
      %v2202 = vadd.f32 0.0, %v2201
      %2203 = vmatmul.bf16.gmra.mxu0 %v1595
      %v2204 = vpop.f32.mrf.mxu0
      %v2205 = vadd.f32 0.0, %v2204
      %v2206 = vpop.f32.mrf.mxu0
      %v2207 = vadd.f32 0.0, %v2206
      %2208 = vmatmul.bf16.gmra.mxu0 %v1598
      %v2209 = vpop.f32.mrf.mxu0
      %v2210 = vadd.f32 0.0, %v2209
      %v2211 = vpop.f32.mrf.mxu0
      %v2212 = vadd.f32 0.0, %v2211
      %2213 = vmatmul.bf16.gmra.mxu0 %v1601
      %v2214 = vpop.f32.mrf.mxu0
      %v2215 = vadd.f32 0.0, %v2214
      %v2216 = vpop.f32.mrf.mxu0
      %v2217 = vadd.f32 0.0, %v2216
      %2218 = vmatmul.bf16.gmra.mxu0 %v1604
      %v2219 = vpop.f32.mrf.mxu0
      %v2220 = vadd.f32 0.0, %v2219
      %v2221 = vpop.f32.mrf.mxu0
      %v2222 = vadd.f32 0.0, %v2221
      %2223 = vmatmul.bf16.gmra.mxu0 %v1607
      %v2224 = vpop.f32.mrf.mxu0
      %v2225 = vadd.f32 0.0, %v2224
      %v2226 = vpop.f32.mrf.mxu0
      %v2227 = vadd.f32 0.0, %v2226
      %2228 = vmatmul.bf16.gmra.mxu0 %v1610
      %v2229 = vpop.f32.mrf.mxu0
      %v2230 = vadd.f32 0.0, %v2229
      %v2231 = vpop.f32.mrf.mxu0
      %v2232 = vadd.f32 0.0, %v2231
      %2233 = vmatmul.bf16.gmra.mxu0 %v1613
      %v2234 = vpop.f32.mrf.mxu0
      %v2235 = vadd.f32 0.0, %v2234
      %v2236 = vpop.f32.mrf.mxu0
      %v2237 = vadd.f32 0.0, %v2236
      %2238 = vmatmul.bf16.gmra.mxu0 %v1616
      %v2239 = vpop.f32.mrf.mxu0
      %v2240 = vadd.f32 0.0, %v2239
      %v2241 = vpop.f32.mrf.mxu0
      %v2242 = vadd.f32 0.0, %v2241
      %2243 = vmatmul.bf16.gmra.mxu0 %v1619
      %v2244 = vpop.f32.mrf.mxu0
      %v2245 = vadd.f32 0.0, %v2244
      %v2246 = vpop.f32.mrf.mxu0
      %v2247 = vadd.f32 0.0, %v2246
      %2248 = vmatmul.bf16.gmra.mxu0 %v1622
      %v2249 = vpop.f32.mrf.mxu0
      %v2250 = vadd.f32 0.0, %v2249
      %v2251 = vpop.f32.mrf.mxu0
      %v2252 = vadd.f32 0.0, %v2251
      %2253 = vmatmul.bf16.gmra.mxu0 %v1625
      %v2254 = vpop.f32.mrf.mxu0
      %v2255 = vadd.f32 0.0, %v2254
      %v2256 = vpop.f32.mrf.mxu0
      %v2257 = vadd.f32 0.0, %v2256
      %2258 = vmatmul.bf16.gmra.mxu0 %v1628
      %v2259 = vpop.f32.mrf.mxu0
      %v2260 = vadd.f32 0.0, %v2259
      %v2261 = vpop.f32.mrf.mxu0
      %v2262 = vadd.f32 0.0, %v2261
      %2263 = vmatmul.bf16.gmra.mxu0 %v1631
      %v2264 = vpop.f32.mrf.mxu0
      %v2265 = vadd.f32 0.0, %v2264
      %v2266 = vpop.f32.mrf.mxu0
      %v2267 = vadd.f32 0.0, %v2266
      %2268 = vmatmul.bf16.gmra.mxu0 %v1634
      %v2269 = vpop.f32.mrf.mxu0
      %v2270 = vadd.f32 0.0, %v2269
      %v2271 = vpop.f32.mrf.mxu0
      %v2272 = vadd.f32 0.0, %v2271
      %2273 = vmatmul.bf16.gmra.mxu0 %v1637
      %v2274 = vpop.f32.mrf.mxu0
      %v2275 = vadd.f32 0.0, %v2274
      %v2276 = vpop.f32.mrf.mxu0
      %v2277 = vadd.f32 0.0, %v2276
      %2278 = vmatmul.bf16.gmra.mxu0 %v1640
      %v2279 = vpop.f32.mrf.mxu0
      %v2280 = vadd.f32 0.0, %v2279
      %v2281 = vpop.f32.mrf.mxu0
      %v2282 = vadd.f32 0.0, %v2281
      %2283 = vmatmul.bf16.gmra.mxu0 %v1643
      %v2284 = vpop.f32.mrf.mxu0
      %v2285 = vadd.f32 0.0, %v2284
      %v2286 = vpop.f32.mrf.mxu0
      %v2287 = vadd.f32 0.0, %v2286
      %2288 = vmatmul.bf16.gmra.mxu0 %v1646
      %v2289 = vpop.f32.mrf.mxu0
      %v2290 = vadd.f32 0.0, %v2289
      %v2291 = vpop.f32.mrf.mxu0
      %v2292 = vadd.f32 0.0, %v2291
      %2293 = vmatmul.bf16.gmra.mxu0 %v1649
      %v2294 = vpop.f32.mrf.mxu0
      %v2295 = vadd.f32 0.0, %v2294
      %v2296 = vpop.f32.mrf.mxu0
      %v2297 = vadd.f32 0.0, %v2296
      %2298 = vmatmul.bf16.gmra.mxu0 %v1652
      %v2299 = vpop.f32.mrf.mxu0
      %v2300 = vadd.f32 0.0, %v2299
      %v2301 = vpop.f32.mrf.mxu0
      %v2302 = vadd.f32 0.0, %v2301
      %2303 = vmatmul.bf16.gmra.mxu0 %v1655
      %v2304 = vpop.f32.mrf.mxu0
      %v2305 = vadd.f32 0.0, %v2304
      %v2306 = vpop.f32.mrf.mxu0
      %v2307 = vadd.f32 0.0, %v2306
      %2308 = vmatmul.bf16.gmra.mxu0 %v1658
      %v2309 = vpop.f32.mrf.mxu0
      %v2310 = vadd.f32 0.0, %v2309
      %v2311 = vpop.f32.mrf.mxu0
      %v2312 = vadd.f32 0.0, %v2311
      %2313 = vmatmul.bf16.gmra.mxu0 %v1661
      %v2314 = vpop.f32.mrf.mxu0
      %v2315 = vadd.f32 0.0, %v2314
      %v2316 = vpop.f32.mrf.mxu0
      %v2317 = vadd.f32 0.0, %v2316
      %2318 = vmatmul.bf16.gmra.mxu0 %v1664
      %v2319 = vpop.f32.mrf.mxu0
      %v2320 = vadd.f32 0.0, %v2319
      %v2321 = vpop.f32.mrf.mxu0
      %v2322 = vadd.f32 0.0, %v2321
      %2323 = vmatmul.bf16.gmra.mxu0 %v1667
      %v2324 = vpop.f32.mrf.mxu0
      %v2325 = vadd.f32 0.0, %v2324
      %v2326 = vpop.f32.mrf.mxu0
      %v2327 = vadd.f32 0.0, %v2326
      %2328 = vmatmul.bf16.gmra.mxu0 %v1670
      %v2329 = vpop.f32.mrf.mxu0
      %v2330 = vadd.f32 0.0, %v2329
      %v2331 = vpop.f32.mrf.mxu0
      %v2332 = vadd.f32 0.0, %v2331
      %2333 = vmatmul.bf16.gmra.mxu0 %v1673
      %v2334 = vpop.f32.mrf.mxu0
      %v2335 = vadd.f32 0.0, %v2334
      %v2336 = vpop.f32.mrf.mxu0
      %v2337 = vadd.f32 0.0, %v2336
      %2338 = vmatmul.bf16.gmra.mxu0 %v1676
      %v2339 = vpop.f32.mrf.mxu0
      %v2340 = vadd.f32 0.0, %v2339
      %v2341 = vpop.f32.mrf.mxu0
      %v2342 = vadd.f32 0.0, %v2341
      %2343 = vmatmul.bf16.gmra.mxu0 %v1679
      %v2344 = vpop.f32.mrf.mxu0
      %v2345 = vadd.f32 0.0, %v2344
      %v2346 = vpop.f32.mrf.mxu0
      %v2347 = vadd.f32 0.0, %v2346
      %2348 = vmatmul.bf16.gmra.mxu0 %v1682
      %v2349 = vpop.f32.mrf.mxu0
      %v2350 = vadd.f32 0.0, %v2349
      %v2351 = vpop.f32.mrf.mxu0
      %v2352 = vadd.f32 0.0, %v2351
      %2353 = vmatmul.bf16.gmra.mxu0 %v1685
      %v2354 = vpop.f32.mrf.mxu0
      %v2355 = vadd.f32 0.0, %v2354
      %v2356 = vpop.f32.mrf.mxu0
      %v2357 = vadd.f32 0.0, %v2356
      %2358 = vmatmul.bf16.gmra.mxu0 %v1688
      %v2359 = vpop.f32.mrf.mxu0
      %v2360 = vadd.f32 0.0, %v2359
      %v2361 = vpop.f32.mrf.mxu0
      %v2362 = vadd.f32 0.0, %v2361
      %2363 = vmatmul.bf16.gmra.mxu0 %v1691
      %v2364 = vpop.f32.mrf.mxu0
      %v2365 = vadd.f32 0.0, %v2364
      %v2366 = vpop.f32.mrf.mxu0
      %v2367 = vadd.f32 0.0, %v2366
      %2368 = vmatmul.bf16.gmra.mxu0 %v1694
      %v2369 = vpop.f32.mrf.mxu0
      %v2370 = vadd.f32 0.0, %v2369
      %v2371 = vpop.f32.mrf.mxu0
      %v2372 = vadd.f32 0.0, %v2371
      %2373 = vmatmul.bf16.gmra.mxu0 %v1697
      %v2374 = vpop.f32.mrf.mxu0
      %v2375 = vadd.f32 0.0, %v2374
      %v2376 = vpop.f32.mrf.mxu0
      %v2377 = vadd.f32 0.0, %v2376
      %2378 = vmatmul.bf16.gmra.mxu0 %v1700
      %v2379 = vpop.f32.mrf.mxu0
      %v2380 = vadd.f32 0.0, %v2379
      %v2381 = vpop.f32.mrf.mxu0
      %v2382 = vadd.f32 0.0, %v2381
      %2383 = vmatmul.bf16.gmra.mxu0 %v1703
      %v2384 = vpop.f32.mrf.mxu0
      %v2385 = vadd.f32 0.0, %v2384
      %v2386 = vpop.f32.mrf.mxu0
      %v2387 = vadd.f32 0.0, %v2386
      %2388 = vmatmul.bf16.gmra.mxu0 %v1706
      %v2389 = vpop.f32.mrf.mxu0
      %v2390 = vadd.f32 0.0, %v2389
      %v2391 = vpop.f32.mrf.mxu0
      %v2392 = vadd.f32 0.0, %v2391
      %2393 = vmatmul.bf16.gmra.mxu0 %v1709
      %v2394 = vpop.f32.mrf.mxu0
      %v2395 = vadd.f32 0.0, %v2394
      %v2396 = vpop.f32.mrf.mxu0
      %v2397 = vadd.f32 0.0, %v2396
      %2398 = vmatmul.bf16.gmra.mxu0 %v1712
      %v2399 = vpop.f32.mrf.mxu0
      %v2400 = vadd.f32 0.0, %v2399
      %v2401 = vpop.f32.mrf.mxu0
      %v2402 = vadd.f32 0.0, %v2401
      %2403 = vmatmul.bf16.gmra.mxu0 %v1715
      %v2404 = vpop.f32.mrf.mxu0
      %v2405 = vadd.f32 0.0, %v2404
      %v2406 = vpop.f32.mrf.mxu0
      %v2407 = vadd.f32 0.0, %v2406
      %2408 = vmatmul.bf16.gmra.mxu0 %v1718
      %v2409 = vpop.f32.mrf.mxu0
      %v2410 = vadd.f32 0.0, %v2409
      %v2411 = vpop.f32.mrf.mxu0
      %v2412 = vadd.f32 0.0, %v2411
      %2413 = vmatmul.bf16.gmra.mxu0 %v1721
      %v2414 = vpop.f32.mrf.mxu0
      %v2415 = vadd.f32 0.0, %v2414
      %v2416 = vpop.f32.mrf.mxu0
      %v2417 = vadd.f32 0.0, %v2416
      %2418 = vmatmul.bf16.gmra.mxu0 %v1724
      %v2419 = vpop.f32.mrf.mxu0
      %v2420 = vadd.f32 0.0, %v2419
      %v2421 = vpop.f32.mrf.mxu0
      %v2422 = vadd.f32 0.0, %v2421
      %2423 = vmatmul.bf16.gmra.mxu0 %v1727
      %v2424 = vpop.f32.mrf.mxu0
      %v2425 = vadd.f32 0.0, %v2424
      %v2426 = vpop.f32.mrf.mxu0
      %v2427 = vadd.f32 0.0, %v2426
      %2428 = vmatmul.bf16.gmra.mxu0 %v1730
      %v2429 = vpop.f32.mrf.mxu0
      %v2430 = vadd.f32 0.0, %v2429
      %v2431 = vpop.f32.mrf.mxu0
      %v2432 = vadd.f32 0.0, %v2431
      %2433 = vmatmul.bf16.gmra.mxu0 %v1733
      %v2434 = vpop.f32.mrf.mxu0
      %v2435 = vadd.f32 0.0, %v2434
      %v2436 = vpop.f32.mrf.mxu0
      %v2437 = vadd.f32 0.0, %v2436
      %2438 = vmatmul.bf16.gmra.mxu0 %v1736
      %v2439 = vpop.f32.mrf.mxu0
      %v2440 = vadd.f32 0.0, %v2439
      %v2441 = vpop.f32.mrf.mxu0
      %v2442 = vadd.f32 0.0, %v2441
      %2443 = vmatmul.bf16.gmra.mxu0 %v1739
      %v2444 = vpop.f32.mrf.mxu0
      %v2445 = vadd.f32 0.0, %v2444
      %v2446 = vpop.f32.mrf.mxu0
      %v2447 = vadd.f32 0.0, %v2446
      %2448 = vmatmul.bf16.gmra.mxu0 %v1742
      %v2449 = vpop.f32.mrf.mxu0
      %v2450 = vadd.f32 0.0, %v2449
      %v2451 = vpop.f32.mrf.mxu0
      %v2452 = vadd.f32 0.0, %v2451
      %2453 = vmatmul.bf16.gmra.mxu0 %v1745
      %v2454 = vpop.f32.mrf.mxu0
      %v2455 = vadd.f32 0.0, %v2454
      %v2456 = vpop.f32.mrf.mxu0
      %v2457 = vadd.f32 0.0, %v2456
      %2458 = vmatmul.bf16.gmra.mxu0 %v1748
      %v2459 = vpop.f32.mrf.mxu0
      %v2460 = vadd.f32 0.0, %v2459
      %v2461 = vpop.f32.mrf.mxu0
      %v2462 = vadd.f32 0.0, %v2461
      %2463 = vmatmul.bf16.gmra.mxu0 %v1751
      %v2464 = vpop.f32.mrf.mxu0
      %v2465 = vadd.f32 0.0, %v2464
      %v2466 = vpop.f32.mrf.mxu0
      %v2467 = vadd.f32 0.0, %v2466
      %2468 = vmatmul.bf16.gmra.mxu0 %v1754
      %v2469 = vpop.f32.mrf.mxu0
      %v2470 = vadd.f32 0.0, %v2469
      %v2471 = vpop.f32.mrf.mxu0
      %v2472 = vadd.f32 0.0, %v2471
      %2473 = vmatmul.bf16.gmra.mxu0 %v1757
      %v2474 = vpop.f32.mrf.mxu0
      %v2475 = vadd.f32 0.0, %v2474
      %v2476 = vpop.f32.mrf.mxu0
      %v2477 = vadd.f32 0.0, %v2476
      %2478 = vmatmul.bf16.gmra.mxu0 %v1760
      %v2479 = vpop.f32.mrf.mxu0
      %v2480 = vadd.f32 0.0, %v2479
      %v2481 = vpop.f32.mrf.mxu0
      %v2482 = vadd.f32 0.0, %v2481
      %2483 = vmatmul.bf16.gmra.mxu0 %v1763
      %v2484 = vpop.f32.mrf.mxu0
      %v2485 = vadd.f32 0.0, %v2484
      %v2486 = vpop.f32.mrf.mxu0
      %v2487 = vadd.f32 0.0, %v2486
      %2488 = vmatmul.bf16.gmra.mxu0 %v1766
      %v2489 = vpop.f32.mrf.mxu0
      %v2490 = vadd.f32 0.0, %v2489
      %v2491 = vpop.f32.mrf.mxu0
      %v2492 = vadd.f32 0.0, %v2491
      %2493 = vmatmul.bf16.gmra.mxu0 %v1769
      %v2494 = vpop.f32.mrf.mxu0
      %v2495 = vadd.f32 0.0, %v2494
      %v2496 = vpop.f32.mrf.mxu0
      %v2497 = vadd.f32 0.0, %v2496
      %2498 = vmatmul.bf16.gmra.mxu0 %v1772
      %v2499 = vpop.f32.mrf.mxu0
      %v2500 = vadd.f32 0.0, %v2499
      %v2501 = vpop.f32.mrf.mxu0
      %v2502 = vadd.f32 0.0, %v2501
      %2503 = vmatmul.bf16.gmra.mxu0 %v1775
      %v2504 = vpop.f32.mrf.mxu0
      %v2505 = vadd.f32 0.0, %v2504
      %v2506 = vpop.f32.mrf.mxu0
      %v2507 = vadd.f32 0.0, %v2506
      %2508 = vmatmul.bf16.gmra.mxu0 %v1778
      %v2509 = vpop.f32.mrf.mxu0
      %v2510 = vadd.f32 0.0, %v2509
      %v2511 = vpop.f32.mrf.mxu0
      %v2512 = vadd.f32 0.0, %v2511
      %2513 = vmatmul.bf16.gmra.mxu0 %v1781
      %v2514 = vpop.f32.mrf.mxu0
      %v2515 = vadd.f32 0.0, %v2514
      %v2516 = vpop.f32.mrf.mxu0
      %v2517 = vadd.f32 0.0, %v2516
      %2518 = vmatmul.bf16.gmra.mxu0 %v1784
      %v2519 = vpop.f32.mrf.mxu0
      %v2520 = vadd.f32 0.0, %v2519
      %v2521 = vpop.f32.mrf.mxu0
      %v2522 = vadd.f32 0.0, %v2521
      %2523 = vmatmul.bf16.gmra.mxu0 %v1787
      %v2524 = vpop.f32.mrf.mxu0
      %v2525 = vadd.f32 0.0, %v2524
      %v2526 = vpop.f32.mrf.mxu0
      %v2527 = vadd.f32 0.0, %v2526
      %2528 = vmatmul.bf16.gmra.mxu0 %v1790
      %v2529 = vpop.f32.mrf.mxu0
      %v2530 = vadd.f32 0.0, %v2529
      %v2531 = vpop.f32.mrf.mxu0
      %v2532 = vadd.f32 0.0, %v2531
      %2533 = vmatmul.bf16.gmra.mxu0 %v1793
      %v2534 = vpop.f32.mrf.mxu0
      %v2535 = vadd.f32 0.0, %v2534
      %v2536 = vpop.f32.mrf.mxu0
      %v2537 = vadd.f32 0.0, %v2536
      %2538 = vmatmul.bf16.gmra.mxu0 %v1796
      %v2539 = vpop.f32.mrf.mxu0
      %v2540 = vadd.f32 0.0, %v2539
      %v2541 = vpop.f32.mrf.mxu0
      %v2542 = vadd.f32 0.0, %v2541
      %2543 = vmatmul.bf16.gmra.mxu0 %v1799
      %v2544 = vpop.f32.mrf.mxu0
      %v2545 = vadd.f32 0.0, %v2544
      %v2546 = vpop.f32.mrf.mxu0
      %v2547 = vadd.f32 0.0, %v2546
      %2548 = vmatmul.bf16.gmra.mxu0 %v1802
      %v2549 = vpop.f32.mrf.mxu0
      %v2550 = vadd.f32 0.0, %v2549
      %v2551 = vpop.f32.mrf.mxu0
      %v2552 = vadd.f32 0.0, %v2551
      %2553 = vmatmul.bf16.gmra.mxu0 %v1805
      %v2554 = vpop.f32.mrf.mxu0
      %v2555 = vadd.f32 0.0, %v2554
      %v2556 = vpop.f32.mrf.mxu0
      %v2557 = vadd.f32 0.0, %v2556
      %2558 = vmatmul.bf16.gmra.mxu0 %v1808
      %v2559 = vpop.f32.mrf.mxu0
      %v2560 = vadd.f32 0.0, %v2559
      %v2561 = vpop.f32.mrf.mxu0
      %v2562 = vadd.f32 0.0, %v2561
      %2563 = vmatmul.bf16.gmra.mxu0 %v1811
      %v2564 = vpop.f32.mrf.mxu0
      %v2565 = vadd.f32 0.0, %v2564
      %v2566 = vpop.f32.mrf.mxu0
      %v2567 = vadd.f32 0.0, %v2566
      %2568 = vmatmul.bf16.gmra.mxu0 %v1814
      %v2569 = vpop.f32.mrf.mxu0
      %v2570 = vadd.f32 0.0, %v2569
      %v2571 = vpop.f32.mrf.mxu0
      %v2572 = vadd.f32 0.0, %v2571
      %2573 = vmatmul.bf16.gmra.mxu0 %v1817
      %v2574 = vpop.f32.mrf.mxu0
      %v2575 = vadd.f32 0.0, %v2574
      %v2576 = vpop.f32.mrf.mxu0
      %v2577 = vadd.f32 0.0, %v2576
      %2578 = vmatmul.bf16.gmra.mxu0 %v1820
      %v2579 = vpop.f32.mrf.mxu0
      %v2580 = vadd.f32 0.0, %v2579
      %v2581 = vpop.f32.mrf.mxu0
      %v2582 = vadd.f32 0.0, %v2581
      %2583 = vmatmul.bf16.gmra.mxu0 %v1823
      %v2584 = vpop.f32.mrf.mxu0
      %v2585 = vadd.f32 0.0, %v2584
      %v2586 = vpop.f32.mrf.mxu0
      %v2587 = vadd.f32 0.0, %v2586
      %2588 = vmatmul.bf16.gmra.mxu0 %v1826
      %v2589 = vpop.f32.mrf.mxu0
      %v2590 = vadd.f32 0.0, %v2589
      %v2591 = vpop.f32.mrf.mxu0
      %v2592 = vadd.f32 0.0, %v2591
      %2593 = vmatmul.bf16.gmra.mxu0 %v1829
      %v2594 = vpop.f32.mrf.mxu0
      %v2595 = vadd.f32 0.0, %v2594
      %v2596 = vpop.f32.mrf.mxu0
      %v2597 = vadd.f32 0.0, %v2596
      %2598 = vmatmul.bf16.gmra.mxu0 %v1832
      %v2599 = vpop.f32.mrf.mxu0
      %v2600 = vadd.f32 0.0, %v2599
      %v2601 = vpop.f32.mrf.mxu0
      %v2602 = vadd.f32 0.0, %v2601
      %2603 = vmatmul.bf16.gmra.mxu0 %v1835
      %v2604 = vpop.f32.mrf.mxu0
      %v2605 = vadd.f32 0.0, %v2604
      %v2606 = vpop.f32.mrf.mxu0
      %v2607 = vadd.f32 0.0, %v2606
      %2608 = vmatmul.bf16.gmra.mxu0 %v1838
      %v2609 = vpop.f32.mrf.mxu0
      %v2610 = vadd.f32 0.0, %v2609
      %v2611 = vpop.f32.mrf.mxu0
      %v2612 = vadd.f32 0.0, %v2611
      %2613 = vmatmul.bf16.gmra.mxu0 %v1841
      %v2614 = vpop.f32.mrf.mxu0
      %v2615 = vadd.f32 0.0, %v2614
      %v2616 = vpop.f32.mrf.mxu0
      %v2617 = vadd.f32 0.0, %v2616
      %2618 = vmatmul.bf16.gmra.mxu0 %v1844
      %v2619 = vpop.f32.mrf.mxu0
      %v2620 = vadd.f32 0.0, %v2619
      %v2621 = vpop.f32.mrf.mxu0
      %v2622 = vadd.f32 0.0, %v2621
      %2623 = vmatmul.bf16.gmra.mxu0 %v1847
      %v2624 = vpop.f32.mrf.mxu0
      %v2625 = vadd.f32 0.0, %v2624
      %v2626 = vpop.f32.mrf.mxu0
      %v2627 = vadd.f32 0.0, %v2626
      %2628 = vmatmul.bf16.gmra.mxu0 %v1850
      %v2629 = vpop.f32.mrf.mxu0
      %v2630 = vadd.f32 0.0, %v2629
      %v2631 = vpop.f32.mrf.mxu0
      %v2632 = vadd.f32 0.0, %v2631
      %2633 = vmatmul.bf16.gmra.mxu0 %v1853
      %v2634 = vpop.f32.mrf.mxu0
      %v2635 = vadd.f32 0.0, %v2634
      %v2636 = vpop.f32.mrf.mxu0
      %v2637 = vadd.f32 0.0, %v2636
      %2638 = vmatmul.bf16.gmra.mxu0 %v1856
      %v2639 = vpop.f32.mrf.mxu0
      %v2640 = vadd.f32 0.0, %v2639
      %v2641 = vpop.f32.mrf.mxu0
      %v2642 = vadd.f32 0.0, %v2641
      %2643 = vmatmul.bf16.gmra.mxu0 %v1859
      %v2644 = vpop.f32.mrf.mxu0
      %v2645 = vadd.f32 0.0, %v2644
      %v2646 = vpop.f32.mrf.mxu0
      %v2647 = vadd.f32 0.0, %v2646
      %2648 = vmatmul.bf16.gmra.mxu0 %v1862
      %v2649 = vpop.f32.mrf.mxu0
      %v2650 = vadd.f32 0.0, %v2649
      %v2651 = vpop.f32.mrf.mxu0
      %v2652 = vadd.f32 0.0, %v2651
      %2653 = vmatmul.bf16.gmra.mxu0 %v1865
      %v2654 = vpop.f32.mrf.mxu0
      %v2655 = vadd.f32 0.0, %v2654
      %v2656 = vpop.f32.mrf.mxu0
      %v2657 = vadd.f32 0.0, %v2656
      %2658 = vmatmul.bf16.gmra.mxu0 %v1868
      %v2659 = vpop.f32.mrf.mxu0
      %v2660 = vadd.f32 0.0, %v2659
      %v2661 = vpop.f32.mrf.mxu0
      %v2662 = vadd.f32 0.0, %v2661
      %2663 = vmatmul.bf16.gmra.mxu0 %v1871
      %v2664 = vpop.f32.mrf.mxu0
      %v2665 = vadd.f32 0.0, %v2664
      %v2666 = vpop.f32.mrf.mxu0
      %v2667 = vadd.f32 0.0, %v2666
      %2668 = vmatmul.bf16.gmra.mxu0 %v1874
      %v2669 = vpop.f32.mrf.mxu0
      %v2670 = vadd.f32 0.0, %v2669
      %v2671 = vpop.f32.mrf.mxu0
      %v2672 = vadd.f32 0.0, %v2671
      %2673 = vmatmul.bf16.gmra.mxu0 %v1877
      %v2674 = vpop.f32.mrf.mxu0
      %v2675 = vadd.f32 0.0, %v2674
      %v2676 = vpop.f32.mrf.mxu0
      %v2677 = vadd.f32 0.0, %v2676
      %2678 = vmatmul.bf16.gmra.mxu0 %v1880
      %v2679 = vpop.f32.mrf.mxu0
      %v2680 = vadd.f32 0.0, %v2679
      %v2681 = vpop.f32.mrf.mxu0
      %v2682 = vadd.f32 0.0, %v2681
      %2683 = vmatmul.bf16.gmra.mxu0 %v1883
      %v2684 = vpop.f32.mrf.mxu0
      %v2685 = vadd.f32 0.0, %v2684
      %v2686 = vpop.f32.mrf.mxu0
      %v2687 = vadd.f32 0.0, %v2686
      %2688 = vmatmul.bf16.gmra.mxu0 %v1886
      %v2689 = vpop.f32.mrf.mxu0
      %v2690 = vadd.f32 0.0, %v2689
      %v2691 = vpop.f32.mrf.mxu0
      %v2692 = vadd.f32 0.0, %v2691
      %2693 = vmatmul.bf16.gmra.mxu0 %v1889
      %v2694 = vpop.f32.mrf.mxu0
      %v2695 = vadd.f32 0.0, %v2694
      %v2696 = vpop.f32.mrf.mxu0
      %v2697 = vadd.f32 0.0, %v2696
      %2698 = vmatmul.bf16.gmra.mxu0 %v1892
      %v2699 = vpop.f32.mrf.mxu0
      %v2700 = vadd.f32 0.0, %v2699
      %v2701 = vpop.f32.mrf.mxu0
      %v2702 = vadd.f32 0.0, %v2701
      %2703 = vmatmul.bf16.gmra.mxu0 %v1895
      %v2704 = vpop.f32.mrf.mxu0
      %v2705 = vadd.f32 0.0, %v2704
      %v2706 = vpop.f32.mrf.mxu0
      %v2707 = vadd.f32 0.0, %v2706
      %2708 = vmatmul.bf16.gmra.mxu0 %v1898
      %v2709 = vpop.f32.mrf.mxu0
      %v2710 = vadd.f32 0.0, %v2709
      %v2711 = vpop.f32.mrf.mxu0
      %v2712 = vadd.f32 0.0, %v2711
      %2713 = vmatmul.bf16.gmra.mxu0 %v1901
      %v2714 = vpop.f32.mrf.mxu0
      %v2715 = vadd.f32 0.0, %v2714
      %v2716 = vpop.f32.mrf.mxu0
      %v2717 = vadd.f32 0.0, %v2716
      %2718 = vmatmul.bf16.gmra.mxu0 %v1904
      %v2719 = vpop.f32.mrf.mxu0
      %v2720 = vadd.f32 0.0, %v2719
      %v2721 = vpop.f32.mrf.mxu0
      %v2722 = vadd.f32 0.0, %v2721
      %2723 = vmatmul.bf16.gmra.mxu0 %v1907
      %v2724 = vpop.f32.mrf.mxu0
      %v2725 = vadd.f32 0.0, %v2724
      %v2726 = vpop.f32.mrf.mxu0
      %v2727 = vadd.f32 0.0, %v2726
      %2728 = vmatmul.bf16.gmra.mxu0 %v1910
      %v2729 = vpop.f32.mrf.mxu0
      %v2730 = vadd.f32 0.0, %v2729
      %v2731 = vpop.f32.mrf.mxu0
      %v2732 = vadd.f32 0.0, %v2731
      %2733 = vmatmul.bf16.gmra.mxu0 %v1913
      %v2734 = vpop.f32.mrf.mxu0
      %v2735 = vadd.f32 0.0, %v2734
      %v2736 = vpop.f32.mrf.mxu0
      %v2737 = vadd.f32 0.0, %v2736
      %2738 = vmatmul.bf16.gmra.mxu0 %v1916
      %v2739 = vpop.f32.mrf.mxu0
      %v2740 = vadd.f32 0.0, %v2739
      %v2741 = vpop.f32.mrf.mxu0
      %v2742 = vadd.f32 0.0, %v2741
      %2743 = vmatmul.bf16.gmra.mxu0 %v1919
      %v2744 = vpop.f32.mrf.mxu0
      %v2745 = vadd.f32 0.0, %v2744
      %v2746 = vpop.f32.mrf.mxu0
      %v2747 = vadd.f32 0.0, %v2746
      %2748 = vmatmul.bf16.gmra.mxu0 %v1922
      %v2749 = vpop.f32.mrf.mxu0
      %v2750 = vadd.f32 0.0, %v2749
      %v2751 = vpop.f32.mrf.mxu0
      %v2752 = vadd.f32 0.0, %v2751
      %2753 = vmatmul.bf16.gmra.mxu0 %v1925
      %v2754 = vpop.f32.mrf.mxu0
      %v2755 = vadd.f32 0.0, %v2754
      %v2756 = vpop.f32.mrf.mxu0
      %v2757 = vadd.f32 0.0, %v2756
      %2758 = vmatmul.bf16.gmra.mxu0 %v1928
      %v2759 = vpop.f32.mrf.mxu0
      %v2760 = vadd.f32 0.0, %v2759
      %v2761 = vpop.f32.mrf.mxu0
      %v2762 = vadd.f32 0.0, %v2761
      %2763 = vmatmul.bf16.gmra.mxu0 %v1931
      %v2764 = vpop.f32.mrf.mxu0
      %v2765 = vadd.f32 0.0, %v2764
      %v2766 = vpop.f32.mrf.mxu0
      %v2767 = vadd.f32 0.0, %v2766
      %2768 = vmatmul.bf16.gmra.mxu0 %v1934
      %v2769 = vpop.f32.mrf.mxu0
      %v2770 = vadd.f32 0.0, %v2769
      %v2771 = vpop.f32.mrf.mxu0
      %v2772 = vadd.f32 0.0, %v2771
      %2773 = vmatmul.bf16.gmra.mxu0 %v1937
      %v2774 = vpop.f32.mrf.mxu0
      %v2775 = vadd.f32 0.0, %v2774
      %v2776 = vpop.f32.mrf.mxu0
      %v2777 = vadd.f32 0.0, %v2776
      %2778 = vmatmul.bf16.gmra.mxu0 %v1940
      %v2779 = vpop.f32.mrf.mxu0
      %v2780 = vadd.f32 0.0, %v2779
      %v2781 = vpop.f32.mrf.mxu0
      %v2782 = vadd.f32 0.0, %v2781
      %2783 = vmatmul.bf16.gmra.mxu0 %v1943
      %v2784 = vpop.f32.mrf.mxu0
      %v2785 = vadd.f32 0.0, %v2784
      %v2786 = vpop.f32.mrf.mxu0
      %v2787 = vadd.f32 0.0, %v2786
      %2788 = vmatmul.bf16.gmra.mxu0 %v1946
      %v2789 = vpop.f32.mrf.mxu0
      %v2790 = vadd.f32 0.0, %v2789
      %v2791 = vpop.f32.mrf.mxu0
      %v2792 = vadd.f32 0.0, %v2791
      %2793 = vmatmul.bf16.gmra.mxu0 %v1949
      %v2794 = vpop.f32.mrf.mxu0
      %v2795 = vadd.f32 0.0, %v2794
      %v2796 = vpop.f32.mrf.mxu0
      %v2797 = vadd.f32 0.0, %v2796
      %2798 = vmatmul.bf16.gmra.mxu0 %v1952
      %v2799 = vpop.f32.mrf.mxu0
      %v2800 = vadd.f32 0.0, %v2799
      %v2801 = vpop.f32.mrf.mxu0
      %v2802 = vadd.f32 0.0, %v2801
      %2803 = vmatmul.bf16.gmra.mxu0 %v1955
      %v2804 = vpop.f32.mrf.mxu0
      %v2805 = vadd.f32 0.0, %v2804
      %v2806 = vpop.f32.mrf.mxu0
      %v2807 = vadd.f32 0.0, %v2806
      %2808 = vmatmul.bf16.gmra.mxu0 %v1958
      %v2809 = vpop.f32.mrf.mxu0
      %v2810 = vadd.f32 0.0, %v2809
      %v2811 = vpop.f32.mrf.mxu0
      %v2812 = vadd.f32 0.0, %v2811
      %2813 = vmatmul.bf16.gmra.mxu0 %v1961
      %v2814 = vpop.f32.mrf.mxu0
      %v2815 = vadd.f32 0.0, %v2814
      %v2816 = vpop.f32.mrf.mxu0
      %v2817 = vadd.f32 0.0, %v2816
      %2818 = vmatmul.bf16.gmra.mxu0 %v1964
      %v2819 = vpop.f32.mrf.mxu0
      %v2820 = vadd.f32 0.0, %v2819
      %v2821 = vpop.f32.mrf.mxu0
      %v2822 = vadd.f32 0.0, %v2821
      %2823 = vmatmul.bf16.gmra.mxu0 %v1967
      %v2824 = vpop.f32.mrf.mxu0
      %v2825 = vadd.f32 0.0, %v2824
      %v2826 = vpop.f32.mrf.mxu0
      %v2827 = vadd.f32 0.0, %v2826
      %2828 = vmatmul.bf16.gmra.mxu0 %v1970
      %v2829 = vpop.f32.mrf.mxu0
      %v2830 = vadd.f32 0.0, %v2829
      %v2831 = vpop.f32.mrf.mxu0
      %v2832 = vadd.f32 0.0, %v2831
      %2833 = vmatmul.bf16.gmra.mxu0 %v1973
      %v2834 = vpop.f32.mrf.mxu0
      %v2835 = vadd.f32 0.0, %v2834
      %v2836 = vpop.f32.mrf.mxu0
      %v2837 = vadd.f32 0.0, %v2836
      %2838 = vmatmul.bf16.gmra.mxu0 %v1976
      %v2839 = vpop.f32.mrf.mxu0
      %v2840 = vadd.f32 0.0, %v2839
      %v2841 = vpop.f32.mrf.mxu0
      %v2842 = vadd.f32 0.0, %v2841
      %2843 = vmatmul.bf16.gmra.mxu0 %v1979
      %v2844 = vpop.f32.mrf.mxu0
      %v2845 = vadd.f32 0.0, %v2844
      %v2846 = vpop.f32.mrf.mxu0
      %v2847 = vadd.f32 0.0, %v2846
      %2848 = vmatmul.bf16.gmra.mxu0 %v1982
      %v2849 = vpop.f32.mrf.mxu0
      %v2850 = vadd.f32 0.0, %v2849
      %v2851 = vpop.f32.mrf.mxu0
      %v2852 = vadd.f32 0.0, %v2851
      %2853 = vmatmul.bf16.gmra.mxu0 %v1985
      %v2854 = vpop.f32.mrf.mxu0
      %v2855 = vadd.f32 0.0, %v2854
      %v2856 = vpop.f32.mrf.mxu0
      %v2857 = vadd.f32 0.0, %v2856
      %2858 = vmatmul.bf16.gmra.mxu0 %v1988
      %v2859 = vpop.f32.mrf.mxu0
      %v2860 = vadd.f32 0.0, %v2859
      %v2861 = vpop.f32.mrf.mxu0
      %v2862 = vadd.f32 0.0, %v2861
      %2863 = vmatmul.bf16.gmra.mxu0 %v1991
      %v2864 = vpop.f32.mrf.mxu0
      %v2865 = vadd.f32 0.0, %v2864
      %v2866 = vpop.f32.mrf.mxu0
      %v2867 = vadd.f32 0.0, %v2866
      %2868 = vmatmul.bf16.gmra.mxu0 %v1994
      %v2869 = vpop.f32.mrf.mxu0
      %v2870 = vadd.f32 0.0, %v2869
      %v2871 = vpop.f32.mrf.mxu0
      %v2872 = vadd.f32 0.0, %v2871
      %2873 = vmatmul.bf16.gmra.mxu0 %v1997
      %v2874 = vpop.f32.mrf.mxu0
      %v2875 = vadd.f32 0.0, %v2874
      %v2876 = vpop.f32.mrf.mxu0
      %v2877 = vadd.f32 0.0, %v2876
      %2878 = vmatmul.bf16.gmra.mxu0 %v2000
      %v2879 = vpop.f32.mrf.mxu0
      %v2880 = vadd.f32 0.0, %v2879
      %v2881 = vpop.f32.mrf.mxu0
      %v2882 = vadd.f32 0.0, %v2881
      %2883 = vmatmul.bf16.gmra.mxu0 %v2003
      %v2884 = vpop.f32.mrf.mxu0
      %v2885 = vadd.f32 0.0, %v2884
      %v2886 = vpop.f32.mrf.mxu0
      %v2887 = vadd.f32 0.0, %v2886
      %2888 = vmatmul.bf16.gmra.mxu0 %v2006
      %v2889 = vpop.f32.mrf.mxu0
      %v2890 = vadd.f32 0.0, %v2889
      %v2891 = vpop.f32.mrf.mxu0
      %v2892 = vadd.f32 0.0, %v2891
      %2893 = vmatmul.bf16.gmra.mxu0 %v2009
      %v2894 = vpop.f32.mrf.mxu0
      %v2895 = vadd.f32 0.0, %v2894
      %v2896 = vpop.f32.mrf.mxu0
      %v2897 = vadd.f32 0.0, %v2896
      %2898 = vmatmul.bf16.gmra.mxu0 %v2012
      %v2899 = vpop.f32.mrf.mxu0
      %v2900 = vadd.f32 0.0, %v2899
      %v2901 = vpop.f32.mrf.mxu0
      %v2902 = vadd.f32 0.0, %v2901
      %2903 = vmatmul.bf16.gmra.mxu0 %v2015
      %v2904 = vpop.f32.mrf.mxu0
      %v2905 = vadd.f32 0.0, %v2904
      %v2906 = vpop.f32.mrf.mxu0
      %v2907 = vadd.f32 0.0, %v2906
      %2908 = vmatmul.bf16.gmra.mxu0 %v2018
      %v2909 = vpop.f32.mrf.mxu0
      %v2910 = vadd.f32 0.0, %v2909
      %v2911 = vpop.f32.mrf.mxu0
      %v2912 = vadd.f32 0.0, %v2911
      %2913 = vmatmul.bf16.gmra.mxu0 %v2021
      %v2914 = vpop.f32.mrf.mxu0
      %v2915 = vadd.f32 0.0, %v2914
      %v2916 = vpop.f32.mrf.mxu0
      %v2917 = vadd.f32 0.0, %v2916
      %2918 = vmatmul.bf16.gmra.mxu0 %v2024
      %v2919 = vpop.f32.mrf.mxu0
      %v2920 = vadd.f32 0.0, %v2919
      %v2921 = vpop.f32.mrf.mxu0
      %v2922 = vadd.f32 0.0, %v2921
      %2923 = vmatmul.bf16.gmra.mxu0 %v2027
      %v2924 = vpop.f32.mrf.mxu0
      %v2925 = vadd.f32 0.0, %v2924
      %v2926 = vpop.f32.mrf.mxu0
      %v2927 = vadd.f32 0.0, %v2926
      %2928 = vmatmul.bf16.gmra.mxu0 %v2030
      %v2929 = vpop.f32.mrf.mxu0
      %v2930 = vadd.f32 0.0, %v2929
      %v2931 = vpop.f32.mrf.mxu0
      %v2932 = vadd.f32 0.0, %v2931
      %2933 = vmatmul.bf16.gmra.mxu0 %v2033
      %v2934 = vpop.f32.mrf.mxu0
      %v2935 = vadd.f32 0.0, %v2934
      %v2936 = vpop.f32.mrf.mxu0
      %v2937 = vadd.f32 0.0, %v2936
      %2938 = vmatmul.bf16.gmra.mxu0 %v2036
      %v2939 = vpop.f32.mrf.mxu0
      %v2940 = vadd.f32 0.0, %v2939
      %v2941 = vpop.f32.mrf.mxu0
      %v2942 = vadd.f32 0.0, %v2941
      %2943 = vmatmul.bf16.gmra.mxu0 %v2039
      %v2944 = vpop.f32.mrf.mxu0
      %v2945 = vadd.f32 0.0, %v2944
      %v2946 = vpop.f32.mrf.mxu0
      %v2947 = vadd.f32 0.0, %v2946
      %2948 = vmatmul.bf16.gmra.mxu0 %v2042
      %v2949 = vpop.f32.mrf.mxu0
      %v2950 = vadd.f32 0.0, %v2949
      %v2951 = vpop.f32.mrf.mxu0
      %v2952 = vadd.f32 0.0, %v2951
      %2953 = vmatmul.bf16.gmra.mxu0 %v2045
      %v2954 = vpop.f32.mrf.mxu0
      %v2955 = vadd.f32 0.0, %v2954
      %v2956 = vpop.f32.mrf.mxu0
      %v2957 = vadd.f32 0.0, %v2956
      %2958 = vmatmul.bf16.gmra.mxu0 %v2048
      %v2959 = vpop.f32.mrf.mxu0
      %v2960 = vadd.f32 0.0, %v2959
      %v2961 = vpop.f32.mrf.mxu0
      %v2962 = vadd.f32 0.0, %v2961
      %2963 = vmatmul.bf16.gmra.mxu0 %v2051
      %v2964 = vpop.f32.mrf.mxu0
      %v2965 = vadd.f32 0.0, %v2964
      %v2966 = vpop.f32.mrf.mxu0
      %v2967 = vadd.f32 0.0, %v2966
      %2968 = vmatmul.bf16.gmra.mxu0 %v2054
      %v2969 = vpop.f32.mrf.mxu0
      %v2970 = vadd.f32 0.0, %v2969
      %v2971 = vpop.f32.mrf.mxu0
      %v2972 = vadd.f32 0.0, %v2971
      %2973 = vmatmul.bf16.gmra.mxu0 %v2057
      %v2974 = vpop.f32.mrf.mxu0
      %v2975 = vadd.f32 0.0, %v2974
      %v2976 = vpop.f32.mrf.mxu0
      %v2977 = vadd.f32 0.0, %v2976
      %2978 = vmatmul.bf16.gmra.mxu0 %v2060
      %v2979 = vpop.f32.mrf.mxu0
      %v2980 = vadd.f32 0.0, %v2979
      %v2981 = vpop.f32.mrf.mxu0
      %v2982 = vadd.f32 0.0, %v2981
      %2983 = vmatmul.bf16.gmra.mxu0 %v2063
      %v2984 = vpop.f32.mrf.mxu0
      %v2985 = vadd.f32 0.0, %v2984
      %v2986 = vpop.f32.mrf.mxu0
      %v2987 = vadd.f32 0.0, %v2986
      %2988 = vmatmul.bf16.gmra.mxu0 %v2066
      %v2989 = vpop.f32.mrf.mxu0
      %v2990 = vadd.f32 0.0, %v2989
      %v2991 = vpop.f32.mrf.mxu0
      %v2992 = vadd.f32 0.0, %v2991
      %2993 = vmatmul.bf16.gmra.mxu0 %v2069
      %v2994 = vpop.f32.mrf.mxu0
      %v2995 = vadd.f32 0.0, %v2994
      %v2996 = vpop.f32.mrf.mxu0
      %v2997 = vadd.f32 0.0, %v2996
      %2998 = vmatmul.bf16.gmra.mxu0 %v2072
      %v2999 = vpop.f32.mrf.mxu0
      %v3000 = vadd.f32 0.0, %v2999
      %v3001 = vpop.f32.mrf.mxu0
      %v3002 = vadd.f32 0.0, %v3001
      %3003 = vmatmul.bf16.gmra.mxu0 %v2075
      %v3004 = vpop.f32.mrf.mxu0
      %v3005 = vadd.f32 0.0, %v3004
      %v3006 = vpop.f32.mrf.mxu0
      %v3007 = vadd.f32 0.0, %v3006
      %3008 = vmatmul.bf16.gmra.mxu0 %v2078
      %v3009 = vpop.f32.mrf.mxu0
      %v3010 = vadd.f32 0.0, %v3009
      %v3011 = vpop.f32.mrf.mxu0
      %v3012 = vadd.f32 0.0, %v3011
      %3013 = vmatmul.bf16.gmra.mxu0 %v2081
      %v3014 = vpop.f32.mrf.mxu0
      %v3015 = vadd.f32 0.0, %v3014
      %v3016 = vpop.f32.mrf.mxu0
      %v3017 = vadd.f32 0.0, %v3016
      %3018 = vmatmul.bf16.gmra.mxu0 %v2084
      %v3019 = vpop.f32.mrf.mxu0
      %v3020 = vadd.f32 0.0, %v3019
      %v3021 = vpop.f32.mrf.mxu0
      %v3022 = vadd.f32 0.0, %v3021
      %3023 = vmatmul.bf16.gmra.mxu0 %v2087
      %v3024 = vpop.f32.mrf.mxu0
      %v3025 = vadd.f32 0.0, %v3024
      %v3026 = vpop.f32.mrf.mxu0
      %v3027 = vadd.f32 0.0, %v3026
      %3028 = vmatmul.bf16.gmra.mxu0 %v2090
      %v3029 = vpop.f32.mrf.mxu0
      %v3030 = vadd.f32 0.0, %v3029
      %v3031 = vpop.f32.mrf.mxu0
      %v3032 = vadd.f32 0.0, %v3031
      %3033 = vmatmul.bf16.gmra.mxu0 %v2093
      %v3034 = vpop.f32.mrf.mxu0
      %v3035 = vadd.f32 0.0, %v3034
      %v3036 = vpop.f32.mrf.mxu0
      %v3037 = vadd.f32 0.0, %v3036
      %3038 = vmatmul.bf16.gmra.mxu0 %v2096
      %v3039 = vpop.f32.mrf.mxu0
      %v3040 = vadd.f32 0.0, %v3039
      %v3041 = vpop.f32.mrf.mxu0
      %v3042 = vadd.f32 0.0, %v3041
      %3043 = vmatmul.bf16.gmra.mxu0 %v2099
      %v3044 = vpop.f32.mrf.mxu0
      %v3045 = vadd.f32 0.0, %v3044
      %v3046 = vpop.f32.mrf.mxu0
      %v3047 = vadd.f32 0.0, %v3046
      %3048 = vmatmul.bf16.gmra.mxu0 %v2102
      %v3049 = vpop.f32.mrf.mxu0
      %v3050 = vadd.f32 0.0, %v3049
      %v3051 = vpop.f32.mrf.mxu0
      %v3052 = vadd.f32 0.0, %v3051
      %3053 = vmatmul.bf16.gmra.mxu0 %v2105
      %v3054 = vpop.f32.mrf.mxu0
      %v3055 = vadd.f32 0.0, %v3054
      %v3056 = vpop.f32.mrf.mxu0
      %v3057 = vadd.f32 0.0, %v3056
      %3058 = vmatmul.bf16.gmra.mxu0 %v2108
      %v3059 = vpop.f32.mrf.mxu0
      %v3060 = vadd.f32 0.0, %v3059
      %v3061 = vpop.f32.mrf.mxu0
      %v3062 = vadd.f32 0.0, %v3061
      %3063 = vmatmul.bf16.gmra.mxu0 %v2111
      %v3064 = vpop.f32.mrf.mxu0
      %v3065 = vadd.f32 0.0, %v3064
      %v3066 = vpop.f32.mrf.mxu0
      %v3067 = vadd.f32 0.0, %v3066
      %3068 = vmatmul.bf16.gmra.mxu0 %v2114
      %v3069 = vpop.f32.mrf.mxu0
      %v3070 = vadd.f32 0.0, %v3069
      %v3071 = vpop.f32.mrf.mxu0
      %v3072 = vadd.f32 0.0, %v3071
      %3073 = vmatmul.bf16.gmra.mxu0 %v2117
      %v3074 = vpop.f32.mrf.mxu0
      %v3075 = vadd.f32 0.0, %v3074
      %v3076 = vpop.f32.mrf.mxu0
      %v3077 = vadd.f32 0.0, %v3076
      %3078 = vmatmul.bf16.gmra.mxu0 %v2120
      %v3079 = vpop.f32.mrf.mxu0
      %v3080 = vadd.f32 0.0, %v3079
      %v3081 = vpop.f32.mrf.mxu0
      %v3082 = vadd.f32 0.0, %v3081
      %3083 = vmatmul.bf16.gmra.mxu0 %v2123
      %v3084 = vpop.f32.mrf.mxu0
      %v3085 = vadd.f32 0.0, %v3084
      %v3086 = vpop.f32.mrf.mxu0
      %v3087 = vadd.f32 0.0, %v3086
      %3088 = vmatmul.bf16.gmra.mxu0 %v2126
      %v3089 = vpop.f32.mrf.mxu0
      %v3090 = vadd.f32 0.0, %v3089
      %v3091 = vpop.f32.mrf.mxu0
      %v3092 = vadd.f32 0.0, %v3091
      %3093 = vmatmul.bf16.gmra.mxu0 %v2129
      %v3094 = vpop.f32.mrf.mxu0
      %v3095 = vadd.f32 0.0, %v3094
      %v3096 = vpop.f32.mrf.mxu0
      %v3097 = vadd.f32 0.0, %v3096
      %3098 = vmatmul.bf16.gmra.mxu0 %v2132
      %v3099 = vpop.f32.mrf.mxu0
      %v3100 = vadd.f32 0.0, %v3099
      %v3101 = vpop.f32.mrf.mxu0
      %v3102 = vadd.f32 0.0, %v3101
      %3103 = vmatmul.bf16.gmra.mxu0 %v2135
      %v3104 = vpop.f32.mrf.mxu0
      %v3105 = vadd.f32 0.0, %v3104
      %v3106 = vpop.f32.mrf.mxu0
      %v3107 = vadd.f32 0.0, %v3106
      %3108 = vmatmul.bf16.gmra.mxu0 %v2138
      %v3109 = vpop.f32.mrf.mxu0
      %v3110 = vadd.f32 0.0, %v3109
      %v3111 = vpop.f32.mrf.mxu0
      %v3112 = vadd.f32 0.0, %v3111
      %3113 = vmatmul.bf16.gmra.mxu0 %v2141
      %v3114 = vpop.f32.mrf.mxu0
      %v3115 = vadd.f32 0.0, %v3114
      %v3116 = vpop.f32.mrf.mxu0
      %v3117 = vadd.f32 0.0, %v3116
      %3118 = vmatmul.bf16.gmra.mxu0 %v2144
      %v3119 = vpop.f32.mrf.mxu0
      %v3120 = vadd.f32 0.0, %v3119
      %v3121 = vpop.f32.mrf.mxu0
      %v3122 = vadd.f32 0.0, %v3121
      %3123 = vmatmul.bf16.gmra.mxu0 %v2147
      %v3124 = vpop.f32.mrf.mxu0
      %v3125 = vadd.f32 0.0, %v3124
      %v3126 = vpop.f32.mrf.mxu0
      %v3127 = vadd.f32 0.0, %v3126
      %3128 = vmatmul.bf16.gmra.mxu0 %v2150
      %v3129 = vpop.f32.mrf.mxu0
      %v3130 = vadd.f32 0.0, %v3129
      %v3131 = vpop.f32.mrf.mxu0
      %v3132 = vadd.f32 0.0, %v3131
      %3133 = vmatmul.bf16.gmra.mxu0 %v2153
      %v3134 = vpop.f32.mrf.mxu0
      %v3135 = vadd.f32 0.0, %v3134
      %v3136 = vpop.f32.mrf.mxu0
      %v3137 = vadd.f32 0.0, %v3136
      %3138 = vmatmul.bf16.gmra.mxu0 %v2156
      %v3139 = vpop.f32.mrf.mxu0
      %v3140 = vadd.f32 0.0, %v3139
      %v3141 = vpop.f32.mrf.mxu0
      %v3142 = vadd.f32 0.0, %v3141
      %3143 = vmatmul.bf16.gmra.mxu0 %v2159
      %v3144 = vpop.f32.mrf.mxu0
      %v3145 = vadd.f32 0.0, %v3144
      %v3146 = vpop.f32.mrf.mxu0
      %v3147 = vadd.f32 0.0, %v3146
      %3148 = vmatmul.bf16.gmra.mxu0 %v2162
      %v3149 = vpop.f32.mrf.mxu0
      %v3150 = vadd.f32 0.0, %v3149
      %v3151 = vpop.f32.mrf.mxu0
      %v3152 = vadd.f32 0.0, %v3151
      %3153 = vmatmul.bf16.gmra.mxu0 %v2165
      %v3154 = vpop.f32.mrf.mxu0
      %v3155 = vadd.f32 0.0, %v3154
      %v3156 = vpop.f32.mrf.mxu0
      %v3157 = vadd.f32 0.0, %v3156
      %3158 = vmatmul.bf16.gmra.mxu0 %v2168
      %v3159 = vpop.f32.mrf.mxu0
      %v3160 = vadd.f32 0.0, %v3159
      %v3161 = vpop.f32.mrf.mxu0
      %v3162 = vadd.f32 0.0, %v3161
      %3163 = vmatmul.bf16.gmra.mxu0 %v2171
      %v3164 = vpop.f32.mrf.mxu0
      %v3165 = vadd.f32 0.0, %v3164
      %v3166 = vpop.f32.mrf.mxu0
      %v3167 = vadd.f32 0.0, %v3166
      %3168 = vdwg.mxu0
      %v3169 = vmax.f32 %v2190, %v2435
      %v3170 = vmax.f32 %v2192, %v2437
      %v3171 = vmax.f32 %v2195, %v2440
      %v3172 = vmax.f32 %v2197, %v2442
      %v3173 = vmax.f32 %v2200, %v2445
      %v3174 = vmax.f32 %v2202, %v2447
      %v3175 = vmax.f32 %v2205, %v2450
      %v3176 = vmax.f32 %v2207, %v2452
      %v3177 = vmax.f32 %v2210, %v2455
      %v3178 = vmax.f32 %v2212, %v2457
      %v3179 = vmax.f32 %v2215, %v2460
      %v3180 = vmax.f32 %v2217, %v2462
      %v3181 = vmax.f32 %v2220, %v2465
      %v3182 = vmax.f32 %v2222, %v2467
      %v3183 = vmax.f32 %v2225, %v2470
      %v3184 = vmax.f32 %v2227, %v2472
      %v3185 = vmax.f32 %v2230, %v2475
      %v3186 = vmax.f32 %v2232, %v2477
      %v3187 = vmax.f32 %v2235, %v2480
      %v3188 = vmax.f32 %v2237, %v2482
      %v3189 = vmax.f32 %v2240, %v2485
      %v3190 = vmax.f32 %v2242, %v2487
      %v3191 = vmax.f32 %v2245, %v2490
      %v3192 = vmax.f32 %v2247, %v2492
      %v3193 = vmax.f32 %v2250, %v2495
      %v3194 = vmax.f32 %v2252, %v2497
      %v3195 = vmax.f32 %v2255, %v2500
      %v3196 = vmax.f32 %v2257, %v2502
      %v3197 = vmax.f32 %v2260, %v2505
      %v3198 = vmax.f32 %v2262, %v2507
      %v3199 = vmax.f32 %v2265, %v2510
      %v3200 = vmax.f32 %v2267, %v2512
      %v3201 = vmax.f32 %v2270, %v2515
      %v3202 = vmax.f32 %v2272, %v2517
      %v3203 = vmax.f32 %v2275, %v2520
      %v3204 = vmax.f32 %v2277, %v2522
      %v3205 = vmax.f32 %v2280, %v2525
      %v3206 = vmax.f32 %v2282, %v2527
      %v3207 = vmax.f32 %v2285, %v2530
      %v3208 = vmax.f32 %v2287, %v2532
      %v3209 = vmax.f32 %v2290, %v2535
      %v3210 = vmax.f32 %v2292, %v2537
      %v3211 = vmax.f32 %v2295, %v2540
      %v3212 = vmax.f32 %v2297, %v2542
      %v3213 = vmax.f32 %v2300, %v2545
      %v3214 = vmax.f32 %v2302, %v2547
      %v3215 = vmax.f32 %v2305, %v2550
      %v3216 = vmax.f32 %v2307, %v2552
      %v3217 = vmax.f32 %v2310, %v2555
      %v3218 = vmax.f32 %v2312, %v2557
      %v3219 = vmax.f32 %v2315, %v2560
      %v3220 = vmax.f32 %v2317, %v2562
      %v3221 = vmax.f32 %v2320, %v2565
      %v3222 = vmax.f32 %v2322, %v2567
      %v3223 = vmax.f32 %v2325, %v2570
      %v3224 = vmax.f32 %v2327, %v2572
      %v3225 = vmax.f32 %v2330, %v2575
      %v3226 = vmax.f32 %v2332, %v2577
      %v3227 = vmax.f32 %v2335, %v2580
      %v3228 = vmax.f32 %v2337, %v2582
      %v3229 = vmax.f32 %v2340, %v2585
      %v3230 = vmax.f32 %v2342, %v2587
      %v3231 = vmax.f32 %v2345, %v2590
      %v3232 = vmax.f32 %v2347, %v2592
      %v3233 = vmax.f32 %v2350, %v2595
      %v3234 = vmax.f32 %v2352, %v2597
      %v3235 = vmax.f32 %v2355, %v2600
      %v3236 = vmax.f32 %v2357, %v2602
      %v3237 = vmax.f32 %v2360, %v2605
      %v3238 = vmax.f32 %v2362, %v2607
      %v3239 = vmax.f32 %v2365, %v2610
      %v3240 = vmax.f32 %v2367, %v2612
      %v3241 = vmax.f32 %v2370, %v2615
      %v3242 = vmax.f32 %v2372, %v2617
      %v3243 = vmax.f32 %v2375, %v2620
      %v3244 = vmax.f32 %v2377, %v2622
      %v3245 = vmax.f32 %v2380, %v2625
      %v3246 = vmax.f32 %v2382, %v2627
      %v3247 = vmax.f32 %v2385, %v2630
      %v3248 = vmax.f32 %v2387, %v2632
      %v3249 = vmax.f32 %v2390, %v2635
      %v3250 = vmax.f32 %v2392, %v2637
      %v3251 = vmax.f32 %v2395, %v2640
      %v3252 = vmax.f32 %v2397, %v2642
      %v3253 = vmax.f32 %v2400, %v2645
      %v3254 = vmax.f32 %v2402, %v2647
      %v3255 = vmax.f32 %v2405, %v2650
      %v3256 = vmax.f32 %v2407, %v2652
      %v3257 = vmax.f32 %v2410, %v2655
      %v3258 = vmax.f32 %v2412, %v2657
      %v3259 = vmax.f32 %v2415, %v2660
      %v3260 = vmax.f32 %v2417, %v2662
      %v3261 = vmax.f32 %v2420, %v2665
      %v3262 = vmax.f32 %v2422, %v2667
      %v3263 = vmax.f32 %v2425, %v2670
      %v3264 = vmax.f32 %v2427, %v2672
      %v3265 = vmax.f32 %v2430, %v2675
      %v3266 = vmax.f32 %v2432, %v2677
      %v3267 = vmax.f32 %v2680, %v2925
      %v3268 = vmax.f32 %v2682, %v2927
      %v3269 = vmax.f32 %v2685, %v2930
      %v3270 = vmax.f32 %v2687, %v2932
      %v3271 = vmax.f32 %v2690, %v2935
      %v3272 = vmax.f32 %v2692, %v2937
      %v3273 = vmax.f32 %v2695, %v2940
      %v3274 = vmax.f32 %v2697, %v2942
      %v3275 = vmax.f32 %v2700, %v2945
      %v3276 = vmax.f32 %v2702, %v2947
      %v3277 = vmax.f32 %v2705, %v2950
      %v3278 = vmax.f32 %v2707, %v2952
      %v3279 = vmax.f32 %v2710, %v2955
      %v3280 = vmax.f32 %v2712, %v2957
      %v3281 = vmax.f32 %v2715, %v2960
      %v3282 = vmax.f32 %v2717, %v2962
      %v3283 = vmax.f32 %v2720, %v2965
      %v3284 = vmax.f32 %v2722, %v2967
      %v3285 = vmax.f32 %v2725, %v2970
      %v3286 = vmax.f32 %v2727, %v2972
      %v3287 = vmax.f32 %v2730, %v2975
      %v3288 = vmax.f32 %v2732, %v2977
      %v3289 = vmax.f32 %v2735, %v2980
      %v3290 = vmax.f32 %v2737, %v2982
      %v3291 = vmax.f32 %v2740, %v2985
      %v3292 = vmax.f32 %v2742, %v2987
      %v3293 = vmax.f32 %v2745, %v2990
      %v3294 = vmax.f32 %v2747, %v2992
      %v3295 = vmax.f32 %v2750, %v2995
      %v3296 = vmax.f32 %v2752, %v2997
      %v3297 = vmax.f32 %v2755, %v3000
      %v3298 = vmax.f32 %v2757, %v3002
      %v3299 = vmax.f32 %v2760, %v3005
      %v3300 = vmax.f32 %v2762, %v3007
      %v3301 = vmax.f32 %v2765, %v3010
      %v3302 = vmax.f32 %v2767, %v3012
      %v3303 = vmax.f32 %v2770, %v3015
      %v3304 = vmax.f32 %v2772, %v3017
      %v3305 = vmax.f32 %v2775, %v3020
      %v3306 = vmax.f32 %v2777, %v3022
      %v3307 = vmax.f32 %v2780, %v3025
      %v3308 = vmax.f32 %v2782, %v3027
      %v3309 = vmax.f32 %v2785, %v3030
      %v3310 = vmax.f32 %v2787, %v3032
      %v3311 = vmax.f32 %v2790, %v3035
      %v3312 = vmax.f32 %v2792, %v3037
      %v3313 = vmax.f32 %v2795, %v3040
      %v3314 = vmax.f32 %v2797, %v3042
      %v3315 = vmax.f32 %v2800, %v3045
      %v3316 = vmax.f32 %v2802, %v3047
      %v3317 = vmax.f32 %v2805, %v3050
      %v3318 = vmax.f32 %v2807, %v3052
      %v3319 = vmax.f32 %v2810, %v3055
      %v3320 = vmax.f32 %v2812, %v3057
      %v3321 = vmax.f32 %v2815, %v3060
      %v3322 = vmax.f32 %v2817, %v3062
      %v3323 = vmax.f32 %v2820, %v3065
      %v3324 = vmax.f32 %v2822, %v3067
      %v3325 = vmax.f32 %v2825, %v3070
      %v3326 = vmax.f32 %v2827, %v3072
      %v3327 = vmax.f32 %v2830, %v3075
      %v3328 = vmax.f32 %v2832, %v3077
      %v3329 = vmax.f32 %v2835, %v3080
      %v3330 = vmax.f32 %v2837, %v3082
      %v3331 = vmax.f32 %v2840, %v3085
      %v3332 = vmax.f32 %v2842, %v3087
      %v3333 = vmax.f32 %v2845, %v3090
      %v3334 = vmax.f32 %v2847, %v3092
      %v3335 = vmax.f32 %v2850, %v3095
      %v3336 = vmax.f32 %v2852, %v3097
      %v3337 = vmax.f32 %v2855, %v3100
      %v3338 = vmax.f32 %v2857, %v3102
      %v3339 = vmax.f32 %v2860, %v3105
      %v3340 = vmax.f32 %v2862, %v3107
      %v3341 = vmax.f32 %v2865, %v3110
      %v3342 = vmax.f32 %v2867, %v3112
      %v3343 = vmax.f32 %v2870, %v3115
      %v3344 = vmax.f32 %v2872, %v3117
      %v3345 = vmax.f32 %v2875, %v3120
      %v3346 = vmax.f32 %v2877, %v3122
      %v3347 = vmax.f32 %v2880, %v3125
      %v3348 = vmax.f32 %v2882, %v3127
      %v3349 = vmax.f32 %v2885, %v3130
      %v3350 = vmax.f32 %v2887, %v3132
      %v3351 = vmax.f32 %v2890, %v3135
      %v3352 = vmax.f32 %v2892, %v3137
      %v3353 = vmax.f32 %v2895, %v3140
      %v3354 = vmax.f32 %v2897, %v3142
      %v3355 = vmax.f32 %v2900, %v3145
      %v3356 = vmax.f32 %v2902, %v3147
      %v3357 = vmax.f32 %v2905, %v3150
      %v3358 = vmax.f32 %v2907, %v3152
      %v3359 = vmax.f32 %v2910, %v3155
      %v3360 = vmax.f32 %v2912, %v3157
      %v3361 = vmax.f32 %v2915, %v3160
      %v3362 = vmax.f32 %v2917, %v3162
      %v3363 = vmax.f32 %v2920, %v3165
      %v3364 = vmax.f32 %v2922, %v3167
      %v3365 = vmax.f32 %v3169, %v3267
      %v3366 = vmax.f32 %v3170, %v3268
      %v3367 = vmax.f32 %v3171, %v3269
      %v3368 = vmax.f32 %v3172, %v3270
      %v3369 = vmax.f32 %v3173, %v3271
      %v3370 = vmax.f32 %v3174, %v3272
      %v3371 = vmax.f32 %v3175, %v3273
      %v3372 = vmax.f32 %v3176, %v3274
      %v3373 = vmax.f32 %v3177, %v3275
      %v3374 = vmax.f32 %v3178, %v3276
      %v3375 = vmax.f32 %v3179, %v3277
      %v3376 = vmax.f32 %v3180, %v3278
      %v3377 = vmax.f32 %v3181, %v3279
      %v3378 = vmax.f32 %v3182, %v3280
      %v3379 = vmax.f32 %v3183, %v3281
      %v3380 = vmax.f32 %v3184, %v3282
      %v3381 = vmax.f32 %v3185, %v3283
      %v3382 = vmax.f32 %v3186, %v3284
      %v3383 = vmax.f32 %v3187, %v3285
      %v3384 = vmax.f32 %v3188, %v3286
      %v3385 = vmax.f32 %v3189, %v3287
      %v3386 = vmax.f32 %v3190, %v3288
      %v3387 = vmax.f32 %v3191, %v3289
      %v3388 = vmax.f32 %v3192, %v3290
      %v3389 = vmax.f32 %v3193, %v3291
      %v3390 = vmax.f32 %v3194, %v3292
      %v3391 = vmax.f32 %v3195, %v3293
      %v3392 = vmax.f32 %v3196, %v3294
      %v3393 = vmax.f32 %v3197, %v3295
      %v3394 = vmax.f32 %v3198, %v3296
      %v3395 = vmax.f32 %v3199, %v3297
      %v3396 = vmax.f32 %v3200, %v3298
      %v3397 = vmax.f32 %v3201, %v3299
      %v3398 = vmax.f32 %v3202, %v3300
      %v3399 = vmax.f32 %v3203, %v3301
      %v3400 = vmax.f32 %v3204, %v3302
      %v3401 = vmax.f32 %v3205, %v3303
      %v3402 = vmax.f32 %v3206, %v3304
      %v3403 = vmax.f32 %v3207, %v3305
      %v3404 = vmax.f32 %v3208, %v3306
      %v3405 = vmax.f32 %v3209, %v3307
      %v3406 = vmax.f32 %v3210, %v3308
      %v3407 = vmax.f32 %v3211, %v3309
      %v3408 = vmax.f32 %v3212, %v3310
      %v3409 = vmax.f32 %v3213, %v3311
      %v3410 = vmax.f32 %v3214, %v3312
      %v3411 = vmax.f32 %v3215, %v3313
      %v3412 = vmax.f32 %v3216, %v3314
      %v3413 = vmax.f32 %v3217, %v3315
      %v3414 = vmax.f32 %v3218, %v3316
      %v3415 = vmax.f32 %v3219, %v3317
      %v3416 = vmax.f32 %v3220, %v3318
      %v3417 = vmax.f32 %v3221, %v3319
      %v3418 = vmax.f32 %v3222, %v3320
      %v3419 = vmax.f32 %v3223, %v3321
      %v3420 = vmax.f32 %v3224, %v3322
      %v3421 = vmax.f32 %v3225, %v3323
      %v3422 = vmax.f32 %v3226, %v3324
      %v3423 = vmax.f32 %v3227, %v3325
      %v3424 = vmax.f32 %v3228, %v3326
      %v3425 = vmax.f32 %v3229, %v3327
      %v3426 = vmax.f32 %v3230, %v3328
      %v3427 = vmax.f32 %v3231, %v3329
      %v3428 = vmax.f32 %v3232, %v3330
      %v3429 = vmax.f32 %v3233, %v3331
      %v3430 = vmax.f32 %v3234, %v3332
      %v3431 = vmax.f32 %v3235, %v3333
      %v3432 = vmax.f32 %v3236, %v3334
      %v3433 = vmax.f32 %v3237, %v3335
      %v3434 = vmax.f32 %v3238, %v3336
      %v3435 = vmax.f32 %v3239, %v3337
      %v3436 = vmax.f32 %v3240, %v3338
      %v3437 = vmax.f32 %v3241, %v3339
      %v3438 = vmax.f32 %v3242, %v3340
      %v3439 = vmax.f32 %v3243, %v3341
      %v3440 = vmax.f32 %v3244, %v3342
      %v3441 = vmax.f32 %v3245, %v3343
      %v3442 = vmax.f32 %v3246, %v3344
      %v3443 = vmax.f32 %v3247, %v3345
      %v3444 = vmax.f32 %v3248, %v3346
      %v3445 = vmax.f32 %v3249, %v3347
      %v3446 = vmax.f32 %v3250, %v3348
      %v3447 = vmax.f32 %v3251, %v3349
      %v3448 = vmax.f32 %v3252, %v3350
      %v3449 = vmax.f32 %v3253, %v3351
      %v3450 = vmax.f32 %v3254, %v3352
      %v3451 = vmax.f32 %v3255, %v3353
      %v3452 = vmax.f32 %v3256, %v3354
      %v3453 = vmax.f32 %v3257, %v3355
      %v3454 = vmax.f32 %v3258, %v3356
      %v3455 = vmax.f32 %v3259, %v3357
      %v3456 = vmax.f32 %v3260, %v3358
      %v3457 = vmax.f32 %v3261, %v3359
      %v3458 = vmax.f32 %v3262, %v3360
      %v3459 = vmax.f32 %v3263, %v3361
      %v3460 = vmax.f32 %v3264, %v3362
      %v3461 = vmax.f32 %v3265, %v3363
      %v3462 = vmax.f32 %v3266, %v3364
      %v3463 = vld [vmem:[%s2] sm:$0x1]
      %v3465 = vperm.slane %v3463, 0
      %v3467 = vadd.f32 %v3365, %v3465
      %v3468 = vadd.f32 %v3366, %v3465
      %v3469 = vadd.f32 %v3367, %v3465
      %v3470 = vadd.f32 %v3368, %v3465
      %v3471 = vadd.f32 %v3369, %v3465
      %v3472 = vadd.f32 %v3370, %v3465
      %v3473 = vadd.f32 %v3371, %v3465
      %v3474 = vadd.f32 %v3372, %v3465
      %v3475 = vadd.f32 %v3373, %v3465
      %v3476 = vadd.f32 %v3374, %v3465
      %v3477 = vadd.f32 %v3375, %v3465
      %v3478 = vadd.f32 %v3376, %v3465
      %v3479 = vadd.f32 %v3377, %v3465
      %v3480 = vadd.f32 %v3378, %v3465
      %v3481 = vadd.f32 %v3379, %v3465
      %v3482 = vadd.f32 %v3380, %v3465
      %v3483 = vadd.f32 %v3381, %v3465
      %v3484 = vadd.f32 %v3382, %v3465
      %v3485 = vadd.f32 %v3383, %v3465
      %v3486 = vadd.f32 %v3384, %v3465
      %v3487 = vadd.f32 %v3385, %v3465
      %v3488 = vadd.f32 %v3386, %v3465
      %v3489 = vadd.f32 %v3387, %v3465
      %v3490 = vadd.f32 %v3388, %v3465
      %v3491 = vadd.f32 %v3389, %v3465
      %v3492 = vadd.f32 %v3390, %v3465
      %v3493 = vadd.f32 %v3391, %v3465
      %v3494 = vadd.f32 %v3392, %v3465
      %v3495 = vadd.f32 %v3393, %v3465
      %v3496 = vadd.f32 %v3394, %v3465
      %v3497 = vadd.f32 %v3395, %v3465
      %v3498 = vadd.f32 %v3396, %v3465
      %v3499 = vadd.f32 %v3397, %v3465
      %v3500 = vadd.f32 %v3398, %v3465
      %v3501 = vadd.f32 %v3399, %v3465
      %v3502 = vadd.f32 %v3400, %v3465
      %v3503 = vadd.f32 %v3401, %v3465
      %v3504 = vadd.f32 %v3402, %v3465
      %v3505 = vadd.f32 %v3403, %v3465
      %v3506 = vadd.f32 %v3404, %v3465
      %v3507 = vadd.f32 %v3405, %v3465
      %v3508 = vadd.f32 %v3406, %v3465
      %v3509 = vadd.f32 %v3407, %v3465
      %v3510 = vadd.f32 %v3408, %v3465
      %v3511 = vadd.f32 %v3409, %v3465
      %v3512 = vadd.f32 %v3410, %v3465
      %v3513 = vadd.f32 %v3411, %v3465
      %v3514 = vadd.f32 %v3412, %v3465
      %v3515 = vadd.f32 %v3413, %v3465
      %v3516 = vadd.f32 %v3414, %v3465
      %v3517 = vadd.f32 %v3415, %v3465
      %v3518 = vadd.f32 %v3416, %v3465
      %v3519 = vadd.f32 %v3417, %v3465
      %v3520 = vadd.f32 %v3418, %v3465
      %v3521 = vadd.f32 %v3419, %v3465
      %v3522 = vadd.f32 %v3420, %v3465
      %v3523 = vadd.f32 %v3421, %v3465
      %v3524 = vadd.f32 %v3422, %v3465
      %v3525 = vadd.f32 %v3423, %v3465
      %v3526 = vadd.f32 %v3424, %v3465
      %v3527 = vadd.f32 %v3425, %v3465
      %v3528 = vadd.f32 %v3426, %v3465
      %v3529 = vadd.f32 %v3427, %v3465
      %v3530 = vadd.f32 %v3428, %v3465
      %v3531 = vadd.f32 %v3429, %v3465
      %v3532 = vadd.f32 %v3430, %v3465
      %v3533 = vadd.f32 %v3431, %v3465
      %v3534 = vadd.f32 %v3432, %v3465
      %v3535 = vadd.f32 %v3433, %v3465
      %v3536 = vadd.f32 %v3434, %v3465
      %v3537 = vadd.f32 %v3435, %v3465
      %v3538 = vadd.f32 %v3436, %v3465
      %v3539 = vadd.f32 %v3437, %v3465
      %v3540 = vadd.f32 %v3438, %v3465
      %v3541 = vadd.f32 %v3439, %v3465
      %v3542 = vadd.f32 %v3440, %v3465
      %v3543 = vadd.f32 %v3441, %v3465
      %v3544 = vadd.f32 %v3442, %v3465
      %v3545 = vadd.f32 %v3443, %v3465
      %v3546 = vadd.f32 %v3444, %v3465
      %v3547 = vadd.f32 %v3445, %v3465
      %v3548 = vadd.f32 %v3446, %v3465
      %v3549 = vadd.f32 %v3447, %v3465
      %v3550 = vadd.f32 %v3448, %v3465
      %v3551 = vadd.f32 %v3449, %v3465
      %v3552 = vadd.f32 %v3450, %v3465
      %v3553 = vadd.f32 %v3451, %v3465
      %v3554 = vadd.f32 %v3452, %v3465
      %v3555 = vadd.f32 %v3453, %v3465
      %v3556 = vadd.f32 %v3454, %v3465
      %v3557 = vadd.f32 %v3455, %v3465
      %v3558 = vadd.f32 %v3456, %v3465
      %v3559 = vadd.f32 %v3457, %v3465
      %v3560 = vadd.f32 %v3458, %v3465
      %v3561 = vadd.f32 %v3459, %v3465
      %v3562 = vadd.f32 %v3460, %v3465
      %v3563 = vadd.f32 %v3461, %v3465
      %v3564 = vadd.f32 %v3462, %v3465
      %v3565 = vmax.f32 %v3467, 0.0
      %v3566 = vmax.f32 %v3468, 0.0
      %v3567 = vmax.f32 %v3469, 0.0
      %v3568 = vmax.f32 %v3470, 0.0
      %v3569 = vmax.f32 %v3471, 0.0
      %v3570 = vmax.f32 %v3472, 0.0
      %v3571 = vmax.f32 %v3473, 0.0
      %v3572 = vmax.f32 %v3474, 0.0
      %v3573 = vmax.f32 %v3475, 0.0
      %v3574 = vmax.f32 %v3476, 0.0
      %v3575 = vmax.f32 %v3477, 0.0
      %v3576 = vmax.f32 %v3478, 0.0
      %v3577 = vmax.f32 %v3479, 0.0
      %v3578 = vmax.f32 %v3480, 0.0
      %v3579 = vmax.f32 %v3481, 0.0
      %v3580 = vmax.f32 %v3482, 0.0
      %v3581 = vmax.f32 %v3483, 0.0
      %v3582 = vmax.f32 %v3484, 0.0
      %v3583 = vmax.f32 %v3485, 0.0
      %v3584 = vmax.f32 %v3486, 0.0
      %v3585 = vmax.f32 %v3487, 0.0
      %v3586 = vmax.f32 %v3488, 0.0
      %v3587 = vmax.f32 %v3489, 0.0
      %v3588 = vmax.f32 %v3490, 0.0
      %v3589 = vmax.f32 %v3491, 0.0
      %v3590 = vmax.f32 %v3492, 0.0
      %v3591 = vmax.f32 %v3493, 0.0
      %v3592 = vmax.f32 %v3494, 0.0
      %v3593 = vmax.f32 %v3495, 0.0
      %v3594 = vmax.f32 %v3496, 0.0
      %v3595 = vmax.f32 %v3497, 0.0
      %v3596 = vmax.f32 %v3498, 0.0
      %v3597 = vmax.f32 %v3499, 0.0
      %v3598 = vmax.f32 %v3500, 0.0
      %v3599 = vmax.f32 %v3501, 0.0
      %v3600 = vmax.f32 %v3502, 0.0
      %v3601 = vmax.f32 %v3503, 0.0
      %v3602 = vmax.f32 %v3504, 0.0
      %v3603 = vmax.f32 %v3505, 0.0
      %v3604 = vmax.f32 %v3506, 0.0
      %v3605 = vmax.f32 %v3507, 0.0
      %v3606 = vmax.f32 %v3508, 0.0
      %v3607 = vmax.f32 %v3509, 0.0
      %v3608 = vmax.f32 %v3510, 0.0
      %v3609 = vmax.f32 %v3511, 0.0
      %v3610 = vmax.f32 %v3512, 0.0
      %v3611 = vmax.f32 %v3513, 0.0
      %v3612 = vmax.f32 %v3514, 0.0
      %v3613 = vmax.f32 %v3515, 0.0
      %v3614 = vmax.f32 %v3516, 0.0
      %v3615 = vmax.f32 %v3517, 0.0
      %v3616 = vmax.f32 %v3518, 0.0
      %v3617 = vmax.f32 %v3519, 0.0
      %v3618 = vmax.f32 %v3520, 0.0
      %v3619 = vmax.f32 %v3521, 0.0
      %v3620 = vmax.f32 %v3522, 0.0
      %v3621 = vmax.f32 %v3523, 0.0
      %v3622 = vmax.f32 %v3524, 0.0
      %v3623 = vmax.f32 %v3525, 0.0
      %v3624 = vmax.f32 %v3526, 0.0
      %v3625 = vmax.f32 %v3527, 0.0
      %v3626 = vmax.f32 %v3528, 0.0
      %v3627 = vmax.f32 %v3529, 0.0
      %v3628 = vmax.f32 %v3530, 0.0
      %v3629 = vmax.f32 %v3531, 0.0
      %v3630 = vmax.f32 %v3532, 0.0
      %v3631 = vmax.f32 %v3533, 0.0
      %v3632 = vmax.f32 %v3534, 0.0
      %v3633 = vmax.f32 %v3535, 0.0
      %v3634 = vmax.f32 %v3536, 0.0
      %v3635 = vmax.f32 %v3537, 0.0
      %v3636 = vmax.f32 %v3538, 0.0
      %v3637 = vmax.f32 %v3539, 0.0
      %v3638 = vmax.f32 %v3540, 0.0
      %v3639 = vmax.f32 %v3541, 0.0
      %v3640 = vmax.f32 %v3542, 0.0
      %v3641 = vmax.f32 %v3543, 0.0
      %v3642 = vmax.f32 %v3544, 0.0
      %v3643 = vmax.f32 %v3545, 0.0
      %v3644 = vmax.f32 %v3546, 0.0
      %v3645 = vmax.f32 %v3547, 0.0
      %v3646 = vmax.f32 %v3548, 0.0
      %v3647 = vmax.f32 %v3549, 0.0
      %v3648 = vmax.f32 %v3550, 0.0
      %v3649 = vmax.f32 %v3551, 0.0
      %v3650 = vmax.f32 %v3552, 0.0
      %v3651 = vmax.f32 %v3553, 0.0
      %v3652 = vmax.f32 %v3554, 0.0
      %v3653 = vmax.f32 %v3555, 0.0
      %v3654 = vmax.f32 %v3556, 0.0
      %v3655 = vmax.f32 %v3557, 0.0
      %v3656 = vmax.f32 %v3558, 0.0
      %v3657 = vmax.f32 %v3559, 0.0
      %v3658 = vmax.f32 %v3560, 0.0
      %v3659 = vmax.f32 %v3561, 0.0
      %v3660 = vmax.f32 %v3562, 0.0
      %v3661 = vmax.f32 %v3563, 0.0
      %v3662 = vmax.f32 %v3564, 0.0
      %v3663 = vpack.c.bf16 %v3565, %v3565
      %v3664 = vpack.c.bf16 %v3566, %v3566
      %v3665 = vpack.c.bf16 %v3567, %v3567
      %v3666 = vpack.c.bf16 %v3568, %v3568
      %v3667 = vpack.c.bf16 %v3569, %v3569
      %v3668 = vpack.c.bf16 %v3570, %v3570
      %v3669 = vpack.c.bf16 %v3571, %v3571
      %v3670 = vpack.c.bf16 %v3572, %v3572
      %v3671 = vpack.c.bf16 %v3573, %v3573
      %v3672 = vpack.c.bf16 %v3574, %v3574
      %v3673 = vpack.c.bf16 %v3575, %v3575
      %v3674 = vpack.c.bf16 %v3576, %v3576
      %v3675 = vpack.c.bf16 %v3577, %v3577
      %v3676 = vpack.c.bf16 %v3578, %v3578
      %v3677 = vpack.c.bf16 %v3579, %v3579
      %v3678 = vpack.c.bf16 %v3580, %v3580
      %v3679 = vpack.c.bf16 %v3581, %v3581
      %v3680 = vpack.c.bf16 %v3582, %v3582
      %v3681 = vpack.c.bf16 %v3583, %v3583
      %v3682 = vpack.c.bf16 %v3584, %v3584
      %v3683 = vpack.c.bf16 %v3585, %v3585
      %v3684 = vpack.c.bf16 %v3586, %v3586
      %v3685 = vpack.c.bf16 %v3587, %v3587
      %v3686 = vpack.c.bf16 %v3588, %v3588
      %v3687 = vpack.c.bf16 %v3589, %v3589
      %v3688 = vpack.c.bf16 %v3590, %v3590
      %v3689 = vpack.c.bf16 %v3591, %v3591
      %v3690 = vpack.c.bf16 %v3592, %v3592
      %v3691 = vpack.c.bf16 %v3593, %v3593
      %v3692 = vpack.c.bf16 %v3594, %v3594
      %v3693 = vpack.c.bf16 %v3595, %v3595
      %v3694 = vpack.c.bf16 %v3596, %v3596
      %v3695 = vpack.c.bf16 %v3597, %v3597
      %v3696 = vpack.c.bf16 %v3598, %v3598
      %v3697 = vpack.c.bf16 %v3599, %v3599
      %v3698 = vpack.c.bf16 %v3600, %v3600
      %v3699 = vpack.c.bf16 %v3601, %v3601
      %v3700 = vpack.c.bf16 %v3602, %v3602
      %v3701 = vpack.c.bf16 %v3603, %v3603
      %v3702 = vpack.c.bf16 %v3604, %v3604
      %v3703 = vpack.c.bf16 %v3605, %v3605
      %v3704 = vpack.c.bf16 %v3606, %v3606
      %v3705 = vpack.c.bf16 %v3607, %v3607
      %v3706 = vpack.c.bf16 %v3608, %v3608
      %v3707 = vpack.c.bf16 %v3609, %v3609
      %v3708 = vpack.c.bf16 %v3610, %v3610
      %v3709 = vpack.c.bf16 %v3611, %v3611
      %v3710 = vpack.c.bf16 %v3612, %v3612
      %v3711 = vpack.c.bf16 %v3613, %v3613
      %v3712 = vpack.c.bf16 %v3614, %v3614
      %v3713 = vpack.c.bf16 %v3615, %v3615
      %v3714 = vpack.c.bf16 %v3616, %v3616
      %v3715 = vpack.c.bf16 %v3617, %v3617
      %v3716 = vpack.c.bf16 %v3618, %v3618
      %v3717 = vpack.c.bf16 %v3619, %v3619
      %v3718 = vpack.c.bf16 %v3620, %v3620
      %v3719 = vpack.c.bf16 %v3621, %v3621
      %v3720 = vpack.c.bf16 %v3622, %v3622
      %v3721 = vpack.c.bf16 %v3623, %v3623
      %v3722 = vpack.c.bf16 %v3624, %v3624
      %v3723 = vpack.c.bf16 %v3625, %v3625
      %v3724 = vpack.c.bf16 %v3626, %v3626
      %v3725 = vpack.c.bf16 %v3627, %v3627
      %v3726 = vpack.c.bf16 %v3628, %v3628
      %v3727 = vpack.c.bf16 %v3629, %v3629
      %v3728 = vpack.c.bf16 %v3630, %v3630
      %v3729 = vpack.c.bf16 %v3631, %v3631
      %v3730 = vpack.c.bf16 %v3632, %v3632
      %v3731 = vpack.c.bf16 %v3633, %v3633
      %v3732 = vpack.c.bf16 %v3634, %v3634
      %v3733 = vpack.c.bf16 %v3635, %v3635
      %v3734 = vpack.c.bf16 %v3636, %v3636
      %v3735 = vpack.c.bf16 %v3637, %v3637
      %v3736 = vpack.c.bf16 %v3638, %v3638
      %v3737 = vpack.c.bf16 %v3639, %v3639
      %v3738 = vpack.c.bf16 %v3640, %v3640
      %v3739 = vpack.c.bf16 %v3641, %v3641
      %v3740 = vpack.c.bf16 %v3642, %v3642
      %v3741 = vpack.c.bf16 %v3643, %v3643
      %v3742 = vpack.c.bf16 %v3644, %v3644
      %v3743 = vpack.c.bf16 %v3645, %v3645
      %v3744 = vpack.c.bf16 %v3646, %v3646
      %v3745 = vpack.c.bf16 %v3647, %v3647
      %v3746 = vpack.c.bf16 %v3648, %v3648
      %v3747 = vpack.c.bf16 %v3649, %v3649
      %v3748 = vpack.c.bf16 %v3650, %v3650
      %v3749 = vpack.c.bf16 %v3651, %v3651
      %v3750 = vpack.c.bf16 %v3652, %v3652
      %v3751 = vpack.c.bf16 %v3653, %v3653
      %v3752 = vpack.c.bf16 %v3654, %v3654
      %v3753 = vpack.c.bf16 %v3655, %v3655
      %v3754 = vpack.c.bf16 %v3656, %v3656
      %v3755 = vpack.c.bf16 %v3657, %v3657
      %v3756 = vpack.c.bf16 %v3658, %v3658
      %v3757 = vpack.c.bf16 %v3659, %v3659
      %v3758 = vpack.c.bf16 %v3660, %v3660
      %v3759 = vpack.c.bf16 %v3661, %v3661
      %v3760 = vpack.c.bf16 %v3662, %v3662
      %3761 = vst [vmem:[%s170] sm:$0xf] %v3663
      %3762 = vst [vmem:[%s170 + $0x4] sm:$0xf] %v3664
      %3763 = vst [vmem:[%s170 + $0x8] sm:$0xf] %v3665
      %3764 = vst [vmem:[%s170 + $0xc] sm:$0xf] %v3666
      %3765 = vst [vmem:[%s170 + $0x10] sm:$0xf] %v3667
      %3766 = vst [vmem:[%s170 + $0x14] sm:$0xf] %v3668
      %3767 = vst [vmem:[%s170 + $0x18] sm:$0xf] %v3669
      %3768 = vst [vmem:[%s170 + $0x1c] sm:$0xf] %v3670
      %3769 = vst [vmem:[%s170 + $0x20] sm:$0xf] %v3671
      %3770 = vst [vmem:[%s170 + $0x24] sm:$0xf] %v3672
      %3771 = vst [vmem:[%s170 + $0x28] sm:$0xf] %v3673
      %3772 = vst [vmem:[%s170 + $0x2c] sm:$0xf] %v3674
      %3773 = vst [vmem:[%s170 + $0x30] sm:$0xf] %v3675
      %3774 = vst [vmem:[%s170 + $0x34] sm:$0xf] %v3676
      %3775 = vst [vmem:[%s170 + $0x38] sm:$0xf] %v3677
      %3776 = vst [vmem:[%s170 + $0x3c] sm:$0xf] %v3678
      %3777 = vst [vmem:[%s170 + $0x40] sm:$0xf] %v3679
      %3778 = vst [vmem:[%s170 + $0x44] sm:$0xf] %v3680
      %3779 = vst [vmem:[%s170 + $0x48] sm:$0xf] %v3681
      %3780 = vst [vmem:[%s170 + $0x4c] sm:$0xf] %v3682
      %3781 = vst [vmem:[%s170 + $0x50] sm:$0xf] %v3683
      %3782 = vst [vmem:[%s170 + $0x54] sm:$0xf] %v3684
      %3783 = vst [vmem:[%s170 + $0x58] sm:$0xf] %v3685
      %3784 = vst [vmem:[%s170 + $0x5c] sm:$0xf] %v3686
      %3785 = vst [vmem:[%s170 + $0x60] sm:$0xf] %v3687
      %3786 = vst [vmem:[%s170 + $0x64] sm:$0xf] %v3688
      %3787 = vst [vmem:[%s170 + $0x68] sm:$0xf] %v3689
      %3788 = vst [vmem:[%s170 + $0x6c] sm:$0xf] %v3690
      %3789 = vst [vmem:[%s170 + $0x70] sm:$0xf] %v3691
      %3790 = vst [vmem:[%s170 + $0x74] sm:$0xf] %v3692
      %3791 = vst [vmem:[%s170 + $0x78] sm:$0xf] %v3693
      %3792 = vst [vmem:[%s170 + $0x7c] sm:$0xf] %v3694
      %3793 = vst [vmem:[%s170 + $0x80] sm:$0xf] %v3695
      %3794 = vst [vmem:[%s170 + $0x84] sm:$0xf] %v3696
      %3795 = vst [vmem:[%s170 + $0x88] sm:$0xf] %v3697
      %3796 = vst [vmem:[%s170 + $0x8c] sm:$0xf] %v3698
      %3797 = vst [vmem:[%s170 + $0x90] sm:$0xf] %v3699
      %3798 = vst [vmem:[%s170 + $0x94] sm:$0xf] %v3700
      %3799 = vst [vmem:[%s170 + $0x98] sm:$0xf] %v3701
      %3800 = vst [vmem:[%s170 + $0x9c] sm:$0xf] %v3702
      %3801 = vst [vmem:[%s170 + $0xa0] sm:$0xf] %v3703
      %3802 = vst [vmem:[%s170 + $0xa4] sm:$0xf] %v3704
      %3803 = vst [vmem:[%s170 + $0xa8] sm:$0xf] %v3705
      %3804 = vst [vmem:[%s170 + $0xac] sm:$0xf] %v3706
      %3805 = vst [vmem:[%s170 + $0xb0] sm:$0xf] %v3707
      %3806 = vst [vmem:[%s170 + $0xb4] sm:$0xf] %v3708
      %3807 = vst [vmem:[%s170 + $0xb8] sm:$0xf] %v3709
      %3808 = vst [vmem:[%s170 + $0xbc] sm:$0xf] %v3710
      %3809 = vst [vmem:[%s170 + $0xc0] sm:$0xf] %v3711
      %3810 = vst [vmem:[%s170 + $0xc4] sm:$0xf] %v3712
      %3811 = vst [vmem:[%s170 + $0xc8] sm:$0xf] %v3713
      %3812 = vst [vmem:[%s170 + $0xcc] sm:$0xf] %v3714
      %3813 = vst [vmem:[%s170 + $0xd0] sm:$0xf] %v3715
      %3814 = vst [vmem:[%s170 + $0xd4] sm:$0xf] %v3716
      %3815 = vst [vmem:[%s170 + $0xd8] sm:$0xf] %v3717
      %3816 = vst [vmem:[%s170 + $0xdc] sm:$0xf] %v3718
      %3817 = vst [vmem:[%s170 + $0xe0] sm:$0xf] %v3719
      %3818 = vst [vmem:[%s170 + $0xe4] sm:$0xf] %v3720
      %3819 = vst [vmem:[%s170 + $0xe8] sm:$0xf] %v3721
      %3820 = vst [vmem:[%s170 + $0xec] sm:$0xf] %v3722
      %3821 = vst [vmem:[%s170 + $0xf0] sm:$0xf] %v3723
      %3822 = vst [vmem:[%s170 + $0xf4] sm:$0xf] %v3724
      %3823 = vst [vmem:[%s170 + $0xf8] sm:$0xf] %v3725
      %3824 = vst [vmem:[%s170 + $0xfc] sm:$0xf] %v3726
      %3825 = vst [vmem:[%s170 + $0x100] sm:$0xf] %v3727
      %3826 = vst [vmem:[%s170 + $0x104] sm:$0xf] %v3728
      %3827 = vst [vmem:[%s170 + $0x108] sm:$0xf] %v3729
      %3828 = vst [vmem:[%s170 + $0x10c] sm:$0xf] %v3730
      %3829 = vst [vmem:[%s170 + $0x110] sm:$0xf] %v3731
      %3830 = vst [vmem:[%s170 + $0x114] sm:$0xf] %v3732
      %3831 = vst [vmem:[%s170 + $0x118] sm:$0xf] %v3733
      %3832 = vst [vmem:[%s170 + $0x11c] sm:$0xf] %v3734
      %3833 = vst [vmem:[%s170 + $0x120] sm:$0xf] %v3735
      %3834 = vst [vmem:[%s170 + $0x124] sm:$0xf] %v3736
      %3835 = vst [vmem:[%s170 + $0x128] sm:$0xf] %v3737
      %3836 = vst [vmem:[%s170 + $0x12c] sm:$0xf] %v3738
      %3837 = vst [vmem:[%s170 + $0x130] sm:$0xf] %v3739
      %3838 = vst [vmem:[%s170 + $0x134] sm:$0xf] %v3740
      %3839 = vst [vmem:[%s170 + $0x138] sm:$0xf] %v3741
      %3840 = vst [vmem:[%s170 + $0x13c] sm:$0xf] %v3742
      %3841 = vst [vmem:[%s170 + $0x140] sm:$0xf] %v3743
      %3842 = vst [vmem:[%s170 + $0x144] sm:$0xf] %v3744
      %3843 = vst [vmem:[%s170 + $0x148] sm:$0xf] %v3745
      %3844 = vst [vmem:[%s170 + $0x14c] sm:$0xf] %v3746
      %3845 = vst [vmem:[%s170 + $0x150] sm:$0xf] %v3747
      %3846 = vst [vmem:[%s170 + $0x154] sm:$0xf] %v3748
      %3847 = vst [vmem:[%s170 + $0x158] sm:$0xf] %v3749
      %3848 = vst [vmem:[%s170 + $0x15c] sm:$0xf] %v3750
      %3849 = vst [vmem:[%s170 + $0x160] sm:$0xf] %v3751
      %3850 = vst [vmem:[%s170 + $0x164] sm:$0xf] %v3752
      %3851 = vst [vmem:[%s170 + $0x168] sm:$0xf] %v3753
      %3852 = vst [vmem:[%s170 + $0x16c] sm:$0xf] %v3754
      %3853 = vst [vmem:[%s170 + $0x170] sm:$0xf] %v3755
      %3854 = vst [vmem:[%s170 + $0x174] sm:$0xf] %v3756
      %3855 = vst [vmem:[%s170 + $0x178] sm:$0xf] %v3757
      %3856 = vst [vmem:[%s170 + $0x17c] sm:$0xf] %v3758
      %3857 = vst [vmem:[%s170 + $0x180] sm:$0xf] %v3759
      %3858 = vst [vmem:[%s170 + $0x184] sm:$0xf] %v3760
      %s3859 = smul.u32 98, %s14
      %p3860 = scmp.lt.s32.totalorder %s3859, 195
      %s3861 = scalar_select %p3860, %s3859, 195
      %s3862 = smul.addr %s3861, 4
      %s3863 = scalar_lea.vmem %s3, %s3862
      // Predicated region
      $region33: #{cifarnet_forward.2} parent=31 // pred_check
        %p3864 = pneg %p100
      $region34: #{cifarnet_forward.2} parent=31 // pred_check_branch
        %3866 = sbr.rel (%p3864) target = $region36
      $region35: #{cifarnet_forward.2} parent=31 // pred_region
        %s3867 = smul.u32 98, %s14
      $region36: #{cifarnet_forward.2} parent=31 // pred_fallthru
        _
    $region32: #{cifarnet_forward.2} parent=5 // pred_fallthru
      _
    %p3868 = scmp.le.s32.totalorder 2, %s9
    // Predicated region
    $region37: #{cifarnet_forward.2} parent=5 // pred_check
      %p3869 = pneg %p3868
    $region38: #{cifarnet_forward.2} parent=5 // pred_check_branch
      %3871 = sbr.rel (%p3869) target = $region40
    $region39: #{cifarnet_forward.2} parent=5 // pred_region
      %s3872 = ssub.s32 %s9, 2
      // Predicated region
      $region41: #{cifarnet_forward.2} parent=39 // pred_check
        %p3873 = pneg %p106
      $region42: #{cifarnet_forward.2} parent=39 // pred_check_branch
        %3875 = sbr.rel (%p3873) target = $region44
      $region43: #{cifarnet_forward.2} parent=39 // pred_region
        %s3876 = smul.u32 98, %s15
        %p3877 = scmp.lt.s32.totalorder %s3876, 195
        %s3878 = scalar_select %p3877, %s3876, 195
        %s3879 = smul.addr %s3878, 4
        %s3880 = scalar_lea.vmem %s3, %s3879
      $region44: #{cifarnet_forward.2} parent=39 // pred_fallthru
        _
    $region40: #{cifarnet_forward.2} parent=5 // pred_fallthru
      _
  $region6: #{cifarnet_forward.2} parent=0 // loop_footer
    %s13 = sadd.s32 1, %s9
  $region7: #{cifarnet_forward.2} parent=0 // loop_footer_branch
    %8 = sbr.rel target = $region3
  $region8: #{cifarnet_forward.2} parent=0 // loop_exit
    _

// kernel: cifarnet_forward.3
$region0: #{cifarnet_forward.3}
  #allocation0 [shape = 'u32[]', space=smem, size = 0x4, offset = 0x4, fixed_abs, tag = 'smem constant byte address 0x4 - core index']
  #allocation1 [shape = 'u32[72,128]{1,0:T(1,128)}', space=vmem, size = 0x9000, scoped, tag = 'internal scratch']
  %s0 = inlined_call_operand.vmem [shape: bf16[1,800,150], index: 0, kind: input, shape index: {}]
  %s1 = inlined_call_operand.vmem [shape: bf16[150,128], index: 1, kind: input, shape index: {}]
  %s2 = inlined_call_operand.vmem [shape: f32[1,128], index: 2, kind: input, shape index: {}]
  %s3 = inlined_call_operand.vmem [shape: bf16[25,128,128], index: 3, kind: input, shape index: {}]
  %s4 = inlined_call_operand.vmem [shape: f32[1,128], index: 4, kind: input, shape index: {}]
  %s5 = inlined_call_operand.vmem [shape: bf16[128,128], index: 5, kind: input, shape index: {}]
  %s6 = inlined_call_operand.vmem [shape: f32[1,128], index: 6, kind: input, shape index: {}]
  %s7 = inlined_call_operand.vmem [shape: bf16[128,128], index: 7, kind: input, shape index: {}]
  %s8 = inlined_call_operand.vmem [shape: f32[1,128], index: 8, kind: input, shape index: {}]
  %s9 = inlined_call_operand.hbm [shape: f32[8,128], index: 9, kind: output, shape index: {}]
  %s10 = sld [smem:[#allocation0]]
  $region46: #{cifarnet_forward.3} parent=0
    _
  %s12 = ssub.s32 1, %s10
  %s13 = scalar_select 0, %s12, %s10
  $region1: #{cifarnet_forward.3} parent=0
    #allocation2 [shape = 'u8[4096]{0}', space=vmem, size = 0x1000, scoped, tag = 'output window, operand 0, single buffered']
    #allocation3 [shape = 's32[1]{0}', space=sflag, size = 0x4, scoped, tag = 'scoped memory for cifarnet_forward.3']
    %14 = vsyncpa [#allocation3], 0
    // Predicated region
    $region2: #{cifarnet_forward.3} parent=1 // pred_check
      _
    $region3: #{cifarnet_forward.3} parent=1 // pred_check_branch
      %16 = sbr.rel (0) target = $region5
    $region4: #{cifarnet_forward.3} parent=1 // pred_region
      _
    $region5: #{cifarnet_forward.3} parent=1 // pred_fallthru
      _
    // Predicated region
    $region6: #{cifarnet_forward.3} parent=1 // pred_check
      _
    $region7: #{cifarnet_forward.3} parent=1 // pred_check_branch
      %18 = sbr.rel (0) target = $region9
    $region8: #{cifarnet_forward.3} parent=1 // pred_region
      _
    $region9: #{cifarnet_forward.3} parent=1 // pred_fallthru
      _
    // Predicated region
    $region10: #{cifarnet_forward.3} parent=1 // pred_check
      _
    $region11: #{cifarnet_forward.3} parent=1 // pred_check_branch
      %20 = sbr.rel (0) target = $region13
    $region12: #{cifarnet_forward.3} parent=1 // pred_region
      _
    $region13: #{cifarnet_forward.3} parent=1 // pred_fallthru
      _
    // Predicated region
    $region14: #{cifarnet_forward.3} parent=1 // pred_check
      _
    $region15: #{cifarnet_forward.3} parent=1 // pred_check_branch
      %22 = sbr.rel (0) target = $region17
    $region16: #{cifarnet_forward.3} parent=1 // pred_region
      _
    $region17: #{cifarnet_forward.3} parent=1 // pred_fallthru
      _
    // Predicated region
    $region18: #{cifarnet_forward.3} parent=1 // pred_check
      _
    $region19: #{cifarnet_forward.3} parent=1 // pred_check_branch
      %24 = sbr.rel (0) target = $region21
    $region20: #{cifarnet_forward.3} parent=1 // pred_region
      _
    $region21: #{cifarnet_forward.3} parent=1 // pred_fallthru
      _
    // Predicated region
    $region22: #{cifarnet_forward.3} parent=1 // pred_check
      _
    $region23: #{cifarnet_forward.3} parent=1 // pred_check_branch
      %26 = sbr.rel (0) target = $region25
    $region24: #{cifarnet_forward.3} parent=1 // pred_region
      _
    $region25: #{cifarnet_forward.3} parent=1 // pred_fallthru
      _
    // Predicated region
    $region26: #{cifarnet_forward.3} parent=1 // pred_check
      _
    $region27: #{cifarnet_forward.3} parent=1 // pred_check_branch
      %28 = sbr.rel (0) target = $region29
    $region28: #{cifarnet_forward.3} parent=1 // pred_region
      _
    $region29: #{cifarnet_forward.3} parent=1 // pred_fallthru
      _
    // Predicated region
    $region30: #{cifarnet_forward.3} parent=1 // pred_check
      _
    $region31: #{cifarnet_forward.3} parent=1 // pred_check_branch
      %30 = sbr.rel (0) target = $region33
    $region32: #{cifarnet_forward.3} parent=1 // pred_region
      _
    $region33: #{cifarnet_forward.3} parent=1 // pred_fallthru
      _
    // Predicated region
    $region34: #{cifarnet_forward.3} parent=1 // pred_check
      _
    $region35: #{cifarnet_forward.3} parent=1 // pred_check_branch
      %32 = sbr.rel (0) target = $region37
    $region36: #{cifarnet_forward.3} parent=1 // pred_region
      _
    $region37: #{cifarnet_forward.3} parent=1 // pred_fallthru
      _
    %v34 = vld [vmem:[%s0] sm:$0xff]
    %v35 = vld [vmem:[%s0 + $0x8] sm:$0xff]
    %v36 = vld [vmem:[%s0 + $0x10] sm:$0xff]
    %v37 = vld [vmem:[%s0 + $0x18] sm:$0xff]
    %v38 = vld [vmem:[%s0 + $0x20] sm:$0xff]
    %v39 = vld [vmem:[%s0 + $0x28] sm:$0xff]
    %v40 = vld [vmem:[%s0 + $0x30] sm:$0xff]
    %v41 = vld [vmem:[%s0 + $0x38] sm:$0xff]
    %v42 = vld [vmem:[%s0 + $0x40] sm:$0xff]
    %v43 = vld [vmem:[%s0 + $0x48] sm:$0xff]
    %v44 = vld [vmem:[%s0 + $0x50] sm:$0xff]
    %v45 = vld [vmem:[%s0 + $0x58] sm:$0xff]
    %v46 = vld [vmem:[%s0 + $0x60] sm:$0xff]
    %v47 = vld [vmem:[%s0 + $0x68] sm:$0xff]
    %v48 = vld [vmem:[%s0 + $0x70] sm:$0xff]
    %v49 = vld [vmem:[%s0 + $0x78] sm:$0xff]
    %v50 = vld [vmem:[%s0 + $0x80] sm:$0xff]
    %v51 = vld [vmem:[%s0 + $0x88] sm:$0xff]
    %v52 = vld [vmem:[%s0 + $0x90] sm:$0xff]
    %v53 = vld [vmem:[%s0 + $0x98] sm:$0xff]
    %v54 = vld [vmem:[%s0 + $0xa0] sm:$0xff]
    %v55 = vld [vmem:[%s0 + $0xa8] sm:$0xff]
    %v56 = vld [vmem:[%s0 + $0xb0] sm:$0xff]
    %v57 = vld [vmem:[%s0 + $0xb8] sm:$0xff]
    %v58 = vld [vmem:[%s0 + $0xc0] sm:$0xff]
    %v59 = vld [vmem:[%s0 + $0xc8] sm:$0xff]
    %v60 = vld [vmem:[%s0 + $0xd0] sm:$0xff]
    %v61 = vld [vmem:[%s0 + $0xd8] sm:$0xff]
    %v62 = vld [vmem:[%s0 + $0xe0] sm:$0xff]
    %v63 = vld [vmem:[%s0 + $0xe8] sm:$0xff]
    %v64 = vld [vmem:[%s0 + $0xf0] sm:$0xff]
    %v65 = vld [vmem:[%s0 + $0xf8] sm:$0xff]
    %v66 = vld [vmem:[%s0 + $0x100] sm:$0xff]
    %v67 = vld [vmem:[%s0 + $0x108] sm:$0xff]
    %v68 = vld [vmem:[%s0 + $0x110] sm:$0xff]
    %v69 = vld [vmem:[%s0 + $0x118] sm:$0xff]
    %v70 = vld [vmem:[%s0 + $0x120] sm:$0xff]
    %v71 = vld [vmem:[%s0 + $0x128] sm:$0xff]
    %v72 = vld [vmem:[%s0 + $0x130] sm:$0xff]
    %v73 = vld [vmem:[%s0 + $0x138] sm:$0xff]
    %v74 = vld [vmem:[%s0 + $0x140] sm:$0xff]
    %v75 = vld [vmem:[%s0 + $0x148] sm:$0xff]
    %v76 = vld [vmem:[%s0 + $0x150] sm:$0xff]
    %v77 = vld [vmem:[%s0 + $0x158] sm:$0xff]
    %v78 = vld [vmem:[%s0 + $0x160] sm:$0xff]
    %v79 = vld [vmem:[%s0 + $0x168] sm:$0xff]
    %v80 = vld [vmem:[%s0 + $0x170] sm:$0xff]
    %v81 = vld [vmem:[%s0 + $0x178] sm:$0xff]
    %v82 = vld [vmem:[%s0 + $0x180] sm:$0xff]
    %v83 = vld [vmem:[%s0 + $0x188] sm:$0xff]
    %v84 = vld [vmem:[%s0 + $0x190] sm:$0xff]
    %v85 = vld [vmem:[%s0 + $0x198] sm:$0xff]
    %v86 = vld [vmem:[%s0 + $0x1a0] sm:$0xff]
    %v87 = vld [vmem:[%s0 + $0x1a8] sm:$0xff]
    %v88 = vld [vmem:[%s0 + $0x1b0] sm:$0xff]
    %v89 = vld [vmem:[%s0 + $0x1b8] sm:$0xff]
    %v90 = vld [vmem:[%s0 + $0x1c0] sm:$0xff]
    %v91 = vld [vmem:[%s0 + $0x1c8] sm:$0xff]
    %v92 = vld [vmem:[%s0 + $0x1d0] sm:$0xff]
    %v93 = vld [vmem:[%s0 + $0x1d8] sm:$0xff]
    %v94 = vld [vmem:[%s0 + $0x1e0] sm:$0xff]
    %v95 = vld [vmem:[%s0 + $0x1e8] sm:$0xff]
    %v96 = vld [vmem:[%s0 + $0x1f0] sm:$0xff]
    %v97 = vld [vmem:[%s0 + $0x1f8] sm:$0xff]
    %v98 = vld [vmem:[%s0 + $0x200] sm:$0xff]
    %v99 = vld [vmem:[%s0 + $0x208] sm:$0xff]
    %v100 = vld [vmem:[%s0 + $0x210] sm:$0xff]
    %v101 = vld [vmem:[%s0 + $0x218] sm:$0xff]
    %v102 = vld [vmem:[%s0 + $0x220] sm:$0xff]
    %v103 = vld [vmem:[%s0 + $0x228] sm:$0xff]
    %v104 = vld [vmem:[%s0 + $0x230] sm:$0xff]
    %v105 = vld [vmem:[%s0 + $0x238] sm:$0xff]
    %v106 = vld [vmem:[%s0 + $0x240] sm:$0xff]
    %v107 = vld [vmem:[%s0 + $0x248] sm:$0xff]
    %v108 = vld [vmem:[%s0 + $0x250] sm:$0xff]
    %v109 = vld [vmem:[%s0 + $0x258] sm:$0xff]
    %v110 = vld [vmem:[%s0 + $0x260] sm:$0xff]
    %v111 = vld [vmem:[%s0 + $0x268] sm:$0xff]
    %v112 = vld [vmem:[%s0 + $0x270] sm:$0xff]
    %v113 = vld [vmem:[%s0 + $0x278] sm:$0xff]
    %v114 = vld [vmem:[%s0 + $0x280] sm:$0xff]
    %v115 = vld [vmem:[%s0 + $0x288] sm:$0xff]
    %v116 = vld [vmem:[%s0 + $0x290] sm:$0xff]
    %v117 = vld [vmem:[%s0 + $0x298] sm:$0xff]
    %v118 = vld [vmem:[%s0 + $0x2a0] sm:$0xff]
    %v119 = vld [vmem:[%s0 + $0x2a8] sm:$0xff]
    %v120 = vld [vmem:[%s0 + $0x2b0] sm:$0xff]
    %v121 = vld [vmem:[%s0 + $0x2b8] sm:$0xff]
    %v122 = vld [vmem:[%s0 + $0x2c0] sm:$0xff]
    %v123 = vld [vmem:[%s0 + $0x2c8] sm:$0xff]
    %v124 = vld [vmem:[%s0 + $0x2d0] sm:$0xff]
    %v125 = vld [vmem:[%s0 + $0x2d8] sm:$0xff]
    %v126 = vld [vmem:[%s0 + $0x2e0] sm:$0xff]
    %v127 = vld [vmem:[%s0 + $0x2e8] sm:$0xff]
    %v128 = vld [vmem:[%s0 + $0x2f0] sm:$0xff]
    %v129 = vld [vmem:[%s0 + $0x2f8] sm:$0xff]
    %v130 = vld [vmem:[%s0 + $0x300] sm:$0xff]
    %v131 = vld [vmem:[%s0 + $0x308] sm:$0xff]
    %v132 = vld [vmem:[%s0 + $0x310] sm:$0xff]
    %v133 = vld [vmem:[%s0 + $0x318] sm:$0xff]
    %v134 = vld [vmem:[%s1] sm:$0xf]
    %v135 = vld [vmem:[%s1 + $0x4] sm:$0xf]
    %v136 = vld [vmem:[%s1 + $0x8] sm:$0xf]
    %v137 = vld [vmem:[%s1 + $0xc] sm:$0xf]
    %v138 = vld [vmem:[%s1 + $0x10] sm:$0xf]
    %v139 = vld [vmem:[%s1 + $0x14] sm:$0xf]
    %v140 = vld [vmem:[%s1 + $0x18] sm:$0xf]
    %v141 = vld [vmem:[%s1 + $0x1c] sm:$0xf]
    %v142 = vld [vmem:[%s1 + $0x20] sm:$0xf]
    %v143 = vld [vmem:[%s1 + $0x24] sm:$0xf]
    %v144 = vld [vmem:[%s1 + $0x28] sm:$0xf]
    %v145 = vld [vmem:[%s1 + $0x2c] sm:$0xf]
    %v146 = vld [vmem:[%s1 + $0x30] sm:$0xf]
    %v147 = vld [vmem:[%s1 + $0x34] sm:$0xf]
    %v148 = vld [vmem:[%s1 + $0x38] sm:$0xf]
    %v149 = vld [vmem:[%s1 + $0x3c] sm:$0xf]
    %v150 = vld [vmem:[%s1 + $0x40] sm:$0xf]
    %v151 = vld [vmem:[%s1 + $0x44] sm:$0xf]
    %v152 = vld [vmem:[%s1 + $0x48] sm:$0x7]
    %v253 = vunpack.c.l.b16 %v34
    %v254 = vunpack.c.h.b16 %v34
    %v255 = vunpack.c.l.b16 %v35
    %v256 = vunpack.c.h.b16 %v35
    %v257 = vunpack.c.l.b16 %v36
    %v258 = vunpack.c.h.b16 %v36
    %v259 = vunpack.c.l.b16 %v37
    %v260 = vunpack.c.h.b16 %v37
    %v261 = vunpack.c.l.b16 %v38
    %v262 = vunpack.c.h.b16 %v38
    %v263 = vunpack.c.l.b16 %v39
    %v264 = vunpack.c.h.b16 %v39
    %v265 = vunpack.c.l.b16 %v40
    %v266 = vunpack.c.h.b16 %v40
    %v267 = vunpack.c.l.b16 %v41
    %v268 = vunpack.c.h.b16 %v41
    %v269 = vunpack.c.l.b16 %v42
    %v270 = vunpack.c.h.b16 %v42
    %v271 = vunpack.c.l.b16 %v43
    %v272 = vunpack.c.h.b16 %v43
    %v273 = vunpack.c.l.b16 %v44
    %v274 = vunpack.c.h.b16 %v44
    %v275 = vunpack.c.l.b16 %v45
    %v276 = vunpack.c.h.b16 %v45
    %v277 = vunpack.c.l.b16 %v46
    %v278 = vunpack.c.h.b16 %v46
    %v279 = vunpack.c.l.b16 %v47
    %v280 = vunpack.c.h.b16 %v47
    %v281 = vunpack.c.l.b16 %v48
    %v282 = vunpack.c.h.b16 %v48
    %v283 = vunpack.c.l.b16 %v49
    %v284 = vunpack.c.h.b16 %v49
    %v285 = vunpack.c.l.b16 %v50
    %v286 = vunpack.c.h.b16 %v50
    %v287 = vunpack.c.l.b16 %v51
    %v288 = vunpack.c.h.b16 %v51
    %v289 = vunpack.c.l.b16 %v52
    %v290 = vunpack.c.h.b16 %v52
    %v291 = vunpack.c.l.b16 %v53
    %v292 = vunpack.c.h.b16 %v53
    %v293 = vunpack.c.l.b16 %v54
    %v294 = vunpack.c.h.b16 %v54
    %v295 = vunpack.c.l.b16 %v55
    %v296 = vunpack.c.h.b16 %v55
    %v297 = vunpack.c.l.b16 %v56
    %v298 = vunpack.c.h.b16 %v56
    %v299 = vunpack.c.l.b16 %v57
    %v300 = vunpack.c.h.b16 %v57
    %v301 = vunpack.c.l.b16 %v58
    %v302 = vunpack.c.h.b16 %v58
    %v303 = vunpack.c.l.b16 %v59
    %v304 = vunpack.c.h.b16 %v59
    %v305 = vunpack.c.l.b16 %v60
    %v306 = vunpack.c.h.b16 %v60
    %v307 = vunpack.c.l.b16 %v61
    %v308 = vunpack.c.h.b16 %v61
    %v309 = vunpack.c.l.b16 %v62
    %v310 = vunpack.c.h.b16 %v62
    %v311 = vunpack.c.l.b16 %v63
    %v312 = vunpack.c.h.b16 %v63
    %v313 = vunpack.c.l.b16 %v64
    %v314 = vunpack.c.h.b16 %v64
    %v315 = vunpack.c.l.b16 %v65
    %v316 = vunpack.c.h.b16 %v65
    %v317 = vunpack.c.l.b16 %v66
    %v318 = vunpack.c.h.b16 %v66
    %v319 = vunpack.c.l.b16 %v67
    %v320 = vunpack.c.h.b16 %v67
    %v321 = vunpack.c.l.b16 %v68
    %v322 = vunpack.c.h.b16 %v68
    %v323 = vunpack.c.l.b16 %v69
    %v324 = vunpack.c.h.b16 %v69
    %v325 = vunpack.c.l.b16 %v70
    %v326 = vunpack.c.h.b16 %v70
    %v327 = vunpack.c.l.b16 %v71
    %v328 = vunpack.c.h.b16 %v71
    %v329 = vunpack.c.l.b16 %v72
    %v330 = vunpack.c.h.b16 %v72
    %v331 = vunpack.c.l.b16 %v73
    %v332 = vunpack.c.h.b16 %v73
    %v333 = vunpack.c.l.b16 %v74
    %v334 = vunpack.c.h.b16 %v74
    %v335 = vunpack.c.l.b16 %v75
    %v336 = vunpack.c.h.b16 %v75
    %v337 = vunpack.c.l.b16 %v76
    %v338 = vunpack.c.h.b16 %v76
    %v339 = vunpack.c.l.b16 %v77
    %v340 = vunpack.c.h.b16 %v77
    %v341 = vunpack.c.l.b16 %v78
    %v342 = vunpack.c.h.b16 %v78
    %v343 = vunpack.c.l.b16 %v79
    %v344 = vunpack.c.h.b16 %v79
    %v345 = vunpack.c.l.b16 %v80
    %v346 = vunpack.c.h.b16 %v80
    %v347 = vunpack.c.l.b16 %v81
    %v348 = vunpack.c.h.b16 %v81
    %v349 = vunpack.c.l.b16 %v82
    %v350 = vunpack.c.h.b16 %v82
    %v351 = vunpack.c.l.b16 %v83
    %v352 = vunpack.c.h.b16 %v83
    %v353 = vunpack.c.l.b16 %v84
    %v354 = vunpack.c.h.b16 %v84
    %v355 = vunpack.c.l.b16 %v85
    %v356 = vunpack.c.h.b16 %v85
    %v357 = vunpack.c.l.b16 %v86
    %v358 = vunpack.c.h.b16 %v86
    %v359 = vunpack.c.l.b16 %v87
    %v360 = vunpack.c.h.b16 %v87
    %v361 = vunpack.c.l.b16 %v88
    %v362 = vunpack.c.h.b16 %v88
    %v363 = vunpack.c.l.b16 %v89
    %v364 = vunpack.c.h.b16 %v89
    %v365 = vunpack.c.l.b16 %v90
    %v366 = vunpack.c.h.b16 %v90
    %v367 = vunpack.c.l.b16 %v91
    %v368 = vunpack.c.h.b16 %v91
    %v369 = vunpack.c.l.b16 %v92
    %v370 = vunpack.c.h.b16 %v92
    %v371 = vunpack.c.l.b16 %v93
    %v372 = vunpack.c.h.b16 %v93
    %v373 = vunpack.c.l.b16 %v94
    %v374 = vunpack.c.h.b16 %v94
    %v375 = vunpack.c.l.b16 %v95
    %v376 = vunpack.c.h.b16 %v95
    %v377 = vunpack.c.l.b16 %v96
    %v378 = vunpack.c.h.b16 %v96
    %v379 = vunpack.c.l.b16 %v97
    %v380 = vunpack.c.h.b16 %v97
    %v381 = vunpack.c.l.b16 %v98
    %v382 = vunpack.c.h.b16 %v98
    %v383 = vunpack.c.l.b16 %v99
    %v384 = vunpack.c.h.b16 %v99
    %v385 = vunpack.c.l.b16 %v100
    %v386 = vunpack.c.h.b16 %v100
    %v387 = vunpack.c.l.b16 %v101
    %v388 = vunpack.c.h.b16 %v101
    %v389 = vunpack.c.l.b16 %v102
    %v390 = vunpack.c.h.b16 %v102
    %v391 = vunpack.c.l.b16 %v103
    %v392 = vunpack.c.h.b16 %v103
    %v393 = vunpack.c.l.b16 %v104
    %v394 = vunpack.c.h.b16 %v104
    %v395 = vunpack.c.l.b16 %v105
    %v396 = vunpack.c.h.b16 %v105
    %v397 = vunpack.c.l.b16 %v106
    %v398 = vunpack.c.h.b16 %v106
    %v399 = vunpack.c.l.b16 %v107
    %v400 = vunpack.c.h.b16 %v107
    %v401 = vunpack.c.l.b16 %v108
    %v402 = vunpack.c.h.b16 %v108
    %v403 = vunpack.c.l.b16 %v109
    %v404 = vunpack.c.h.b16 %v109
    %v405 = vunpack.c.l.b16 %v110
    %v406 = vunpack.c.h.b16 %v110
    %v407 = vunpack.c.l.b16 %v111
    %v408 = vunpack.c.h.b16 %v111
    %v409 = vunpack.c.l.b16 %v112
    %v410 = vunpack.c.h.b16 %v112
    %v411 = vunpack.c.l.b16 %v113
    %v412 = vunpack.c.h.b16 %v113
    %v413 = vunpack.c.l.b16 %v114
    %v414 = vunpack.c.h.b16 %v114
    %v415 = vunpack.c.l.b16 %v115
    %v416 = vunpack.c.h.b16 %v115
    %v417 = vunpack.c.l.b16 %v116
    %v418 = vunpack.c.h.b16 %v116
    %v419 = vunpack.c.l.b16 %v117
    %v420 = vunpack.c.h.b16 %v117
    %v421 = vunpack.c.l.b16 %v118
    %v422 = vunpack.c.h.b16 %v118
    %v423 = vunpack.c.l.b16 %v119
    %v424 = vunpack.c.h.b16 %v119
    %v425 = vunpack.c.l.b16 %v120
    %v426 = vunpack.c.h.b16 %v120
    %v427 = vunpack.c.l.b16 %v121
    %v428 = vunpack.c.h.b16 %v121
    %v429 = vunpack.c.l.b16 %v122
    %v430 = vunpack.c.h.b16 %v122
    %v431 = vunpack.c.l.b16 %v123
    %v432 = vunpack.c.h.b16 %v123
    %v433 = vunpack.c.l.b16 %v124
    %v434 = vunpack.c.h.b16 %v124
    %v435 = vunpack.c.l.b16 %v125
    %v436 = vunpack.c.h.b16 %v125
    %v437 = vunpack.c.l.b16 %v126
    %v438 = vunpack.c.h.b16 %v126
    %v439 = vunpack.c.l.b16 %v127
    %v440 = vunpack.c.h.b16 %v127
    %v441 = vunpack.c.l.b16 %v128
    %v442 = vunpack.c.h.b16 %v128
    %v443 = vunpack.c.l.b16 %v129
    %v444 = vunpack.c.h.b16 %v129
    %v445 = vunpack.c.l.b16 %v130
    %v446 = vunpack.c.h.b16 %v130
    %v447 = vunpack.c.l.b16 %v131
    %v448 = vunpack.c.h.b16 %v131
    %v449 = vunpack.c.l.b16 %v132
    %v450 = vunpack.c.h.b16 %v132
    %v451 = vunpack.c.l.b16 %v133
    %v452 = vunpack.c.h.b16 %v133
    %v453 = vpack.c.b16 %v255, %v253
    %v454 = vpack.c.b16 %v256, %v254
    %v455 = vpack.c.b16 %v259, %v257
    %v456 = vpack.c.b16 %v260, %v258
    %v457 = vpack.c.b16 %v263, %v261
    %v458 = vpack.c.b16 %v264, %v262
    %v459 = vpack.c.b16 %v267, %v265
    %v460 = vpack.c.b16 %v268, %v266
    %v461 = vpack.c.b16 %v271, %v269
    %v462 = vpack.c.b16 %v272, %v270
    %v463 = vpack.c.b16 %v275, %v273
    %v464 = vpack.c.b16 %v276, %v274
    %v465 = vpack.c.b16 %v279, %v277
    %v466 = vpack.c.b16 %v280, %v278
    %v467 = vpack.c.b16 %v283, %v281
    %v468 = vpack.c.b16 %v284, %v282
    %v469 = vpack.c.b16 %v287, %v285
    %v470 = vpack.c.b16 %v288, %v286
    %v471 = vpack.c.b16 %v291, %v289
    %v472 = vpack.c.b16 %v292, %v290
    %v473 = vpack.c.b16 %v295, %v293
    %v474 = vpack.c.b16 %v296, %v294
    %v475 = vpack.c.b16 %v299, %v297
    %v476 = vpack.c.b16 %v300, %v298
    %v477 = vpack.c.b16 %v303, %v301
    %v478 = vpack.c.b16 %v304, %v302
    %v479 = vpack.c.b16 %v307, %v305
    %v480 = vpack.c.b16 %v308, %v306
    %v481 = vpack.c.b16 %v311, %v309
    %v482 = vpack.c.b16 %v312, %v310
    %v483 = vpack.c.b16 %v315, %v313
    %v484 = vpack.c.b16 %v316, %v314
    %v485 = vpack.c.b16 %v319, %v317
    %v486 = vpack.c.b16 %v320, %v318
    %v487 = vpack.c.b16 %v323, %v321
    %v488 = vpack.c.b16 %v324, %v322
    %v489 = vpack.c.b16 %v327, %v325
    %v490 = vpack.c.b16 %v328, %v326
    %v491 = vpack.c.b16 %v331, %v329
    %v492 = vpack.c.b16 %v332, %v330
    %v493 = vpack.c.b16 %v335, %v333
    %v494 = vpack.c.b16 %v336, %v334
    %v495 = vpack.c.b16 %v339, %v337
    %v496 = vpack.c.b16 %v340, %v338
    %v497 = vpack.c.b16 %v343, %v341
    %v498 = vpack.c.b16 %v344, %v342
    %v499 = vpack.c.b16 %v347, %v345
    %v500 = vpack.c.b16 %v348, %v346
    %v501 = vpack.c.b16 %v351, %v349
    %v502 = vpack.c.b16 %v352, %v350
    %v503 = vpack.c.b16 %v355, %v353
    %v504 = vpack.c.b16 %v356, %v354
    %v505 = vpack.c.b16 %v359, %v357
    %v506 = vpack.c.b16 %v360, %v358
    %v507 = vpack.c.b16 %v363, %v361
    %v508 = vpack.c.b16 %v364, %v362
    %v509 = vpack.c.b16 %v367, %v365
    %v510 = vpack.c.b16 %v368, %v366
    %v511 = vpack.c.b16 %v371, %v369
    %v512 = vpack.c.b16 %v372, %v370
    %v513 = vpack.c.b16 %v375, %v373
    %v514 = vpack.c.b16 %v376, %v374
    %v515 = vpack.c.b16 %v379, %v377
    %v516 = vpack.c.b16 %v380, %v378
    %v517 = vpack.c.b16 %v383, %v381
    %v518 = vpack.c.b16 %v384, %v382
    %v519 = vpack.c.b16 %v387, %v385
    %v520 = vpack.c.b16 %v388, %v386
    %v521 = vpack.c.b16 %v391, %v389
    %v522 = vpack.c.b16 %v392, %v390
    %v523 = vpack.c.b16 %v395, %v393
    %v524 = vpack.c.b16 %v396, %v394
    %v525 = vpack.c.b16 %v399, %v397
    %v526 = vpack.c.b16 %v400, %v398
    %v527 = vpack.c.b16 %v403, %v401
    %v528 = vpack.c.b16 %v404, %v402
    %v529 = vpack.c.b16 %v407, %v405
    %v530 = vpack.c.b16 %v408, %v406
    %v531 = vpack.c.b16 %v411, %v409
    %v532 = vpack.c.b16 %v412, %v410
    %v533 = vpack.c.b16 %v415, %v413
    %v534 = vpack.c.b16 %v416, %v414
    %v535 = vpack.c.b16 %v419, %v417
    %v536 = vpack.c.b16 %v420, %v418
    %v537 = vpack.c.b16 %v423, %v421
    %v538 = vpack.c.b16 %v424, %v422
    %v539 = vpack.c.b16 %v427, %v425
    %v540 = vpack.c.b16 %v428, %v426
    %v541 = vpack.c.b16 %v431, %v429
    %v542 = vpack.c.b16 %v432, %v430
    %v543 = vpack.c.b16 %v435, %v433
    %v544 = vpack.c.b16 %v436, %v434
    %v545 = vpack.c.b16 %v439, %v437
    %v546 = vpack.c.b16 %v440, %v438
    %v547 = vpack.c.b16 %v443, %v441
    %v548 = vpack.c.b16 %v444, %v442
    %v549 = vpack.c.b16 %v447, %v445
    %v550 = vpack.c.b16 %v448, %v446
    %v551 = vpack.c.b16 %v451, %v449
    %v552 = vpack.c.b16 %v452, %v450
    %v622 = vunpack.c.l.b16 %v134
    %v623 = vunpack.c.l.b16 %v135
    %v624 = vunpack.c.l.b16 %v136
    %v625 = vunpack.c.l.b16 %v137
    %v626 = vunpack.c.l.b16 %v138
    %v627 = vunpack.c.l.b16 %v139
    %v628 = vunpack.c.l.b16 %v140
    %v629 = vunpack.c.l.b16 %v141
    %v630 = vunpack.c.l.b16 %v142
    %v631 = vunpack.c.l.b16 %v143
    %v632 = vunpack.c.l.b16 %v144
    %v633 = vunpack.c.l.b16 %v145
    %v634 = vunpack.c.l.b16 %v146
    %v635 = vunpack.c.l.b16 %v147
    %v636 = vunpack.c.l.b16 %v148
    %v637 = vunpack.c.l.b16 %v149
    %v638 = vunpack.c.l.b16 %v150
    %v639 = vunpack.c.l.b16 %v151
    %v640 = vunpack.c.l.b16 %v152
    %v641 = vpack.c.b16 %v623, %v622
    %v642 = vpack.c.b16 %v625, %v624
    %v643 = vpack.c.b16 %v627, %v626
    %v644 = vpack.c.b16 %v629, %v628
    %v645 = vpack.c.b16 %v631, %v630
    %v646 = vpack.c.b16 %v633, %v632
    %v647 = vpack.c.b16 %v635, %v634
    %v648 = vpack.c.b16 %v637, %v636
    %v649 = vpack.c.b16 %v639, %v638
    %v650 = vpack.c.b16 %v640, %v640
    %vm660 = vcmask 179200
    %v662 = vsel %vm660, %v454, 0
    %v665 = vsel %vm660, %v456, 0
    %v668 = vsel %vm660, %v458, 0
    %v671 = vsel %vm660, %v460, 0
    %v674 = vsel %vm660, %v462, 0
    %v677 = vsel %vm660, %v464, 0
    %v680 = vsel %vm660, %v466, 0
    %v683 = vsel %vm660, %v468, 0
    %v686 = vsel %vm660, %v470, 0
    %v689 = vsel %vm660, %v472, 0
    %v692 = vsel %vm660, %v474, 0
    %v695 = vsel %vm660, %v476, 0
    %v698 = vsel %vm660, %v478, 0
    %v701 = vsel %vm660, %v480, 0
    %v704 = vsel %vm660, %v482, 0
    %v707 = vsel %vm660, %v484, 0
    %v710 = vsel %vm660, %v486, 0
    %v713 = vsel %vm660, %v488, 0
    %v716 = vsel %vm660, %v490, 0
    %v719 = vsel %vm660, %v492, 0
    %v722 = vsel %vm660, %v494, 0
    %v725 = vsel %vm660, %v496, 0
    %v728 = vsel %vm660, %v498, 0
    %v731 = vsel %vm660, %v500, 0
    %v734 = vsel %vm660, %v502, 0
    %v737 = vsel %vm660, %v504, 0
    %v740 = vsel %vm660, %v506, 0
    %v743 = vsel %vm660, %v508, 0
    %v746 = vsel %vm660, %v510, 0
    %v749 = vsel %vm660, %v512, 0
    %v752 = vsel %vm660, %v514, 0
    %v755 = vsel %vm660, %v516, 0
    %v758 = vsel %vm660, %v518, 0
    %v761 = vsel %vm660, %v520, 0
    %v764 = vsel %vm660, %v522, 0
    %v767 = vsel %vm660, %v524, 0
    %v770 = vsel %vm660, %v526, 0
    %v773 = vsel %vm660, %v528, 0
    %v776 = vsel %vm660, %v530, 0
    %v779 = vsel %vm660, %v532, 0
    %v782 = vsel %vm660, %v534, 0
    %v785 = vsel %vm660, %v536, 0
    %v788 = vsel %vm660, %v538, 0
    %v791 = vsel %vm660, %v540, 0
    %v794 = vsel %vm660, %v542, 0
    %v797 = vsel %vm660, %v544, 0
    %v800 = vsel %vm660, %v546, 0
    %v803 = vsel %vm660, %v548, 0
    %v806 = vsel %vm660, %v550, 0
    %v809 = vsel %vm660, %v552, 0
    %vm811 = vcmask 1042432
    %v813 = vsel %vm811, %v650, 0
    %815 = vmatpush.bf16.msra.mxu0 %v648
    %816 = vmatpush.bf16.msra.mxu0 %v647
    %817 = vmatpush.bf16.msra.mxu0 %v646
    %818 = vmatpush.bf16.msra.mxu0 %v645
    %819 = vmatpush.bf16.msra.mxu0 %v644
    %820 = vmatpush.bf16.msra.mxu0 %v643
    %821 = vmatpush.bf16.msra.mxu0 %v642
    %822 = vmatpush.bf16.msra.mxu0 %v641
    %823 = vmatmul.bf16.gmra.mxu0 %v453
    %v824 = vpop.f32.mrf.mxu0
    %v825 = vadd.f32 0.0, %v824
    %v826 = vpop.f32.mrf.mxu0
    %v827 = vadd.f32 0.0, %v826
    %828 = vmatmul.bf16.gmra.mxu0 %v455
    %v829 = vpop.f32.mrf.mxu0
    %v830 = vadd.f32 0.0, %v829
    %v831 = vpop.f32.mrf.mxu0
    %v832 = vadd.f32 0.0, %v831
    %833 = vmatmul.bf16.gmra.mxu0 %v457
    %v834 = vpop.f32.mrf.mxu0
    %v835 = vadd.f32 0.0, %v834
    %v836 = vpop.f32.mrf.mxu0
    %v837 = vadd.f32 0.0, %v836
    %838 = vmatmul.bf16.gmra.mxu0 %v459
    %v839 = vpop.f32.mrf.mxu0
    %v840 = vadd.f32 0.0, %v839
    %v841 = vpop.f32.mrf.mxu0
    %v842 = vadd.f32 0.0, %v841
    %843 = vmatmul.bf16.gmra.mxu0 %v461
    %v844 = vpop.f32.mrf.mxu0
    %v845 = vadd.f32 0.0, %v844
    %v846 = vpop.f32.mrf.mxu0
    %v847 = vadd.f32 0.0, %v846
    %848 = vmatmul.bf16.gmra.mxu0 %v463
    %v849 = vpop.f32.mrf.mxu0
    %v850 = vadd.f32 0.0, %v849
    %v851 = vpop.f32.mrf.mxu0
    %v852 = vadd.f32 0.0, %v851
    %853 = vmatmul.bf16.gmra.mxu0 %v465
    %v854 = vpop.f32.mrf.mxu0
    %v855 = vadd.f32 0.0, %v854
    %v856 = vpop.f32.mrf.mxu0
    %v857 = vadd.f32 0.0, %v856
    %858 = vmatmul.bf16.gmra.mxu0 %v467
    %v859 = vpop.f32.mrf.mxu0
    %v860 = vadd.f32 0.0, %v859
    %v861 = vpop.f32.mrf.mxu0
    %v862 = vadd.f32 0.0, %v861
    %863 = vmatmul.bf16.gmra.mxu0 %v469
    %v864 = vpop.f32.mrf.mxu0
    %v865 = vadd.f32 0.0, %v864
    %v866 = vpop.f32.mrf.mxu0
    %v867 = vadd.f32 0.0, %v866
    %868 = vmatmul.bf16.gmra.mxu0 %v471
    %v869 = vpop.f32.mrf.mxu0
    %v870 = vadd.f32 0.0, %v869
    %v871 = vpop.f32.mrf.mxu0
    %v872 = vadd.f32 0.0, %v871
    %873 = vmatmul.bf16.gmra.mxu0 %v473
    %v874 = vpop.f32.mrf.mxu0
    %v875 = vadd.f32 0.0, %v874
    %v876 = vpop.f32.mrf.mxu0
    %v877 = vadd.f32 0.0, %v876
    %878 = vmatmul.bf16.gmra.mxu0 %v475
    %v879 = vpop.f32.mrf.mxu0
    %v880 = vadd.f32 0.0, %v879
    %v881 = vpop.f32.mrf.mxu0
    %v882 = vadd.f32 0.0, %v881
    %883 = vmatmul.bf16.gmra.mxu0 %v477
    %v884 = vpop.f32.mrf.mxu0
    %v885 = vadd.f32 0.0, %v884
    %v886 = vpop.f32.mrf.mxu0
    %v887 = vadd.f32 0.0, %v886
    %888 = vmatmul.bf16.gmra.mxu0 %v479
    %v889 = vpop.f32.mrf.mxu0
    %v890 = vadd.f32 0.0, %v889
    %v891 = vpop.f32.mrf.mxu0
    %v892 = vadd.f32 0.0, %v891
    %893 = vmatmul.bf16.gmra.mxu0 %v481
    %v894 = vpop.f32.mrf.mxu0
    %v895 = vadd.f32 0.0, %v894
    %v896 = vpop.f32.mrf.mxu0
    %v897 = vadd.f32 0.0, %v896
    %898 = vmatmul.bf16.gmra.mxu0 %v483
    %v899 = vpop.f32.mrf.mxu0
    %v900 = vadd.f32 0.0, %v899
    %v901 = vpop.f32.mrf.mxu0
    %v902 = vadd.f32 0.0, %v901
    %903 = vmatmul.bf16.gmra.mxu0 %v485
    %v904 = vpop.f32.mrf.mxu0
    %v905 = vadd.f32 0.0, %v904
    %v906 = vpop.f32.mrf.mxu0
    %v907 = vadd.f32 0.0, %v906
    %908 = vmatmul.bf16.gmra.mxu0 %v487
    %v909 = vpop.f32.mrf.mxu0
    %v910 = vadd.f32 0.0, %v909
    %v911 = vpop.f32.mrf.mxu0
    %v912 = vadd.f32 0.0, %v911
    %913 = vmatmul.bf16.gmra.mxu0 %v489
    %v914 = vpop.f32.mrf.mxu0
    %v915 = vadd.f32 0.0, %v914
    %v916 = vpop.f32.mrf.mxu0
    %v917 = vadd.f32 0.0, %v916
    %918 = vmatmul.bf16.gmra.mxu0 %v491
    %v919 = vpop.f32.mrf.mxu0
    %v920 = vadd.f32 0.0, %v919
    %v921 = vpop.f32.mrf.mxu0
    %v922 = vadd.f32 0.0, %v921
    %923 = vmatmul.bf16.gmra.mxu0 %v493
    %v924 = vpop.f32.mrf.mxu0
    %v925 = vadd.f32 0.0, %v924
    %v926 = vpop.f32.mrf.mxu0
    %v927 = vadd.f32 0.0, %v926
    %928 = vmatmul.bf16.gmra.mxu0 %v495
    %v929 = vpop.f32.mrf.mxu0
    %v930 = vadd.f32 0.0, %v929
    %v931 = vpop.f32.mrf.mxu0
    %v932 = vadd.f32 0.0, %v931
    %933 = vmatmul.bf16.gmra.mxu0 %v497
    %v934 = vpop.f32.mrf.mxu0
    %v935 = vadd.f32 0.0, %v934
    %v936 = vpop.f32.mrf.mxu0
    %v937 = vadd.f32 0.0, %v936
    %938 = vmatmul.bf16.gmra.mxu0 %v499
    %v939 = vpop.f32.mrf.mxu0
    %v940 = vadd.f32 0.0, %v939
    %v941 = vpop.f32.mrf.mxu0
    %v942 = vadd.f32 0.0, %v941
    %943 = vmatmul.bf16.gmra.mxu0 %v501
    %v944 = vpop.f32.mrf.mxu0
    %v945 = vadd.f32 0.0, %v944
    %v946 = vpop.f32.mrf.mxu0
    %v947 = vadd.f32 0.0, %v946
    %948 = vmatmul.bf16.gmra.mxu0 %v503
    %v949 = vpop.f32.mrf.mxu0
    %v950 = vadd.f32 0.0, %v949
    %v951 = vpop.f32.mrf.mxu0
    %v952 = vadd.f32 0.0, %v951
    %953 = vmatmul.bf16.gmra.mxu0 %v505
    %v954 = vpop.f32.mrf.mxu0
    %v955 = vadd.f32 0.0, %v954
    %v956 = vpop.f32.mrf.mxu0
    %v957 = vadd.f32 0.0, %v956
    %958 = vmatmul.bf16.gmra.mxu0 %v507
    %v959 = vpop.f32.mrf.mxu0
    %v960 = vadd.f32 0.0, %v959
    %v961 = vpop.f32.mrf.mxu0
    %v962 = vadd.f32 0.0, %v961
    %963 = vmatmul.bf16.gmra.mxu0 %v509
    %v964 = vpop.f32.mrf.mxu0
    %v965 = vadd.f32 0.0, %v964
    %v966 = vpop.f32.mrf.mxu0
    %v967 = vadd.f32 0.0, %v966
    %968 = vmatmul.bf16.gmra.mxu0 %v511
    %v969 = vpop.f32.mrf.mxu0
    %v970 = vadd.f32 0.0, %v969
    %v971 = vpop.f32.mrf.mxu0
    %v972 = vadd.f32 0.0, %v971
    %973 = vmatmul.bf16.gmra.mxu0 %v513
    %v974 = vpop.f32.mrf.mxu0
    %v975 = vadd.f32 0.0, %v974
    %v976 = vpop.f32.mrf.mxu0
    %v977 = vadd.f32 0.0, %v976
    %978 = vmatmul.bf16.gmra.mxu0 %v515
    %v979 = vpop.f32.mrf.mxu0
    %v980 = vadd.f32 0.0, %v979
    %v981 = vpop.f32.mrf.mxu0
    %v982 = vadd.f32 0.0, %v981
    %983 = vmatmul.bf16.gmra.mxu0 %v517
    %v984 = vpop.f32.mrf.mxu0
    %v985 = vadd.f32 0.0, %v984
    %v986 = vpop.f32.mrf.mxu0
    %v987 = vadd.f32 0.0, %v986
    %988 = vmatmul.bf16.gmra.mxu0 %v519
    %v989 = vpop.f32.mrf.mxu0
    %v990 = vadd.f32 0.0, %v989
    %v991 = vpop.f32.mrf.mxu0
    %v992 = vadd.f32 0.0, %v991
    %993 = vmatmul.bf16.gmra.mxu0 %v521
    %v994 = vpop.f32.mrf.mxu0
    %v995 = vadd.f32 0.0, %v994
    %v996 = vpop.f32.mrf.mxu0
    %v997 = vadd.f32 0.0, %v996
    %998 = vmatmul.bf16.gmra.mxu0 %v523
    %v999 = vpop.f32.mrf.mxu0
    %v1000 = vadd.f32 0.0, %v999
    %v1001 = vpop.f32.mrf.mxu0
    %v1002 = vadd.f32 0.0, %v1001
    %1003 = vmatmul.bf16.gmra.mxu0 %v525
    %v1004 = vpop.f32.mrf.mxu0
    %v1005 = vadd.f32 0.0, %v1004
    %v1006 = vpop.f32.mrf.mxu0
    %v1007 = vadd.f32 0.0, %v1006
    %1008 = vmatmul.bf16.gmra.mxu0 %v527
    %v1009 = vpop.f32.mrf.mxu0
    %v1010 = vadd.f32 0.0, %v1009
    %v1011 = vpop.f32.mrf.mxu0
    %v1012 = vadd.f32 0.0, %v1011
    %1013 = vmatmul.bf16.gmra.mxu0 %v529
    %v1014 = vpop.f32.mrf.mxu0
    %v1015 = vadd.f32 0.0, %v1014
    %v1016 = vpop.f32.mrf.mxu0
    %v1017 = vadd.f32 0.0, %v1016
    %1018 = vmatmul.bf16.gmra.mxu0 %v531
    %v1019 = vpop.f32.mrf.mxu0
    %v1020 = vadd.f32 0.0, %v1019
    %v1021 = vpop.f32.mrf.mxu0
    %v1022 = vadd.f32 0.0, %v1021
    %1023 = vmatmul.bf16.gmra.mxu0 %v533
    %v1024 = vpop.f32.mrf.mxu0
    %v1025 = vadd.f32 0.0, %v1024
    %v1026 = vpop.f32.mrf.mxu0
    %v1027 = vadd.f32 0.0, %v1026
    %1028 = vmatmul.bf16.gmra.mxu0 %v535
    %v1029 = vpop.f32.mrf.mxu0
    %v1030 = vadd.f32 0.0, %v1029
    %v1031 = vpop.f32.mrf.mxu0
    %v1032 = vadd.f32 0.0, %v1031
    %1033 = vmatmul.bf16.gmra.mxu0 %v537
    %v1034 = vpop.f32.mrf.mxu0
    %v1035 = vadd.f32 0.0, %v1034
    %v1036 = vpop.f32.mrf.mxu0
    %v1037 = vadd.f32 0.0, %v1036
    %1038 = vmatmul.bf16.gmra.mxu0 %v539
    %v1039 = vpop.f32.mrf.mxu0
    %v1040 = vadd.f32 0.0, %v1039
    %v1041 = vpop.f32.mrf.mxu0
    %v1042 = vadd.f32 0.0, %v1041
    %1043 = vmatmul.bf16.gmra.mxu0 %v541
    %v1044 = vpop.f32.mrf.mxu0
    %v1045 = vadd.f32 0.0, %v1044
    %v1046 = vpop.f32.mrf.mxu0
    %v1047 = vadd.f32 0.0, %v1046
    %1048 = vmatmul.bf16.gmra.mxu0 %v543
    %v1049 = vpop.f32.mrf.mxu0
    %v1050 = vadd.f32 0.0, %v1049
    %v1051 = vpop.f32.mrf.mxu0
    %v1052 = vadd.f32 0.0, %v1051
    %1053 = vmatmul.bf16.gmra.mxu0 %v545
    %v1054 = vpop.f32.mrf.mxu0
    %v1055 = vadd.f32 0.0, %v1054
    %v1056 = vpop.f32.mrf.mxu0
    %v1057 = vadd.f32 0.0, %v1056
    %1058 = vmatmul.bf16.gmra.mxu0 %v547
    %v1059 = vpop.f32.mrf.mxu0
    %v1060 = vadd.f32 0.0, %v1059
    %v1061 = vpop.f32.mrf.mxu0
    %v1062 = vadd.f32 0.0, %v1061
    %1063 = vmatmul.bf16.gmra.mxu0 %v549
    %v1064 = vpop.f32.mrf.mxu0
    %v1065 = vadd.f32 0.0, %v1064
    %v1066 = vpop.f32.mrf.mxu0
    %v1067 = vadd.f32 0.0, %v1066
    %1068 = vmatmul.bf16.gmra.mxu0 %v551
    %v1069 = vpop.f32.mrf.mxu0
    %v1070 = vadd.f32 0.0, %v1069
    %v1071 = vpop.f32.mrf.mxu0
    %v1072 = vadd.f32 0.0, %v1071
    %1073 = vdwg.mxu0
    %1074 = vmatpush.bf16.msra.mxu0 0
    %1075 = vmatpush.bf16.msra.mxu0 0
    %1076 = vmatpush.bf16.msra.mxu0 0
    %1077 = vmatpush.bf16.msra.mxu0 0
    %1078 = vmatpush.bf16.msra.mxu0 0
    %1079 = vmatpush.bf16.msra.mxu0 0
    %1080 = vmatpush.bf16.msra.mxu0 %v813
    %1081 = vmatpush.bf16.msra.mxu0 %v649
    %1082 = vmatmul.bf16.gmra.mxu0 %v662
    %v1083 = vpop.f32.mrf.mxu0
    %v1084 = vadd.f32 %v825, %v1083
    %v1085 = vpop.f32.mrf.mxu0
    %v1086 = vadd.f32 %v827, %v1085
    %1087 = vmatmul.bf16.gmra.mxu0 %v665
    %v1088 = vpop.f32.mrf.mxu0
    %v1089 = vadd.f32 %v830, %v1088
    %v1090 = vpop.f32.mrf.mxu0
    %v1091 = vadd.f32 %v832, %v1090
    %1092 = vmatmul.bf16.gmra.mxu0 %v668
    %v1093 = vpop.f32.mrf.mxu0
    %v1094 = vadd.f32 %v835, %v1093
    %v1095 = vpop.f32.mrf.mxu0
    %v1096 = vadd.f32 %v837, %v1095
    %1097 = vmatmul.bf16.gmra.mxu0 %v671
    %v1098 = vpop.f32.mrf.mxu0
    %v1099 = vadd.f32 %v840, %v1098
    %v1100 = vpop.f32.mrf.mxu0
    %v1101 = vadd.f32 %v842, %v1100
    %1102 = vmatmul.bf16.gmra.mxu0 %v674
    %v1103 = vpop.f32.mrf.mxu0
    %v1104 = vadd.f32 %v845, %v1103
    %v1105 = vpop.f32.mrf.mxu0
    %v1106 = vadd.f32 %v847, %v1105
    %1107 = vmatmul.bf16.gmra.mxu0 %v677
    %v1108 = vpop.f32.mrf.mxu0
    %v1109 = vadd.f32 %v850, %v1108
    %v1110 = vpop.f32.mrf.mxu0
    %v1111 = vadd.f32 %v852, %v1110
    %1112 = vmatmul.bf16.gmra.mxu0 %v680
    %v1113 = vpop.f32.mrf.mxu0
    %v1114 = vadd.f32 %v855, %v1113
    %v1115 = vpop.f32.mrf.mxu0
    %v1116 = vadd.f32 %v857, %v1115
    %1117 = vmatmul.bf16.gmra.mxu0 %v683
    %v1118 = vpop.f32.mrf.mxu0
    %v1119 = vadd.f32 %v860, %v1118
    %v1120 = vpop.f32.mrf.mxu0
    %v1121 = vadd.f32 %v862, %v1120
    %1122 = vmatmul.bf16.gmra.mxu0 %v686
    %v1123 = vpop.f32.mrf.mxu0
    %v1124 = vadd.f32 %v865, %v1123
    %v1125 = vpop.f32.mrf.mxu0
    %v1126 = vadd.f32 %v867, %v1125
    %1127 = vmatmul.bf16.gmra.mxu0 %v689
    %v1128 = vpop.f32.mrf.mxu0
    %v1129 = vadd.f32 %v870, %v1128
    %v1130 = vpop.f32.mrf.mxu0
    %v1131 = vadd.f32 %v872, %v1130
    %1132 = vmatmul.bf16.gmra.mxu0 %v692
    %v1133 = vpop.f32.mrf.mxu0
    %v1134 = vadd.f32 %v875, %v1133
    %v1135 = vpop.f32.mrf.mxu0
    %v1136 = vadd.f32 %v877, %v1135
    %1137 = vmatmul.bf16.gmra.mxu0 %v695
    %v1138 = vpop.f32.mrf.mxu0
    %v1139 = vadd.f32 %v880, %v1138
    %v1140 = vpop.f32.mrf.mxu0
    %v1141 = vadd.f32 %v882, %v1140
    %1142 = vmatmul.bf16.gmra.mxu0 %v698
    %v1143 = vpop.f32.mrf.mxu0
    %v1144 = vadd.f32 %v885, %v1143
    %v1145 = vpop.f32.mrf.mxu0
    %v1146 = vadd.f32 %v887, %v1145
    %1147 = vmatmul.bf16.gmra.mxu0 %v701
    %v1148 = vpop.f32.mrf.mxu0
    %v1149 = vadd.f32 %v890, %v1148
    %v1150 = vpop.f32.mrf.mxu0
    %v1151 = vadd.f32 %v892, %v1150
    %1152 = vmatmul.bf16.gmra.mxu0 %v704
    %v1153 = vpop.f32.mrf.mxu0
    %v1154 = vadd.f32 %v895, %v1153
    %v1155 = vpop.f32.mrf.mxu0
    %v1156 = vadd.f32 %v897, %v1155
    %1157 = vmatmul.bf16.gmra.mxu0 %v707
    %v1158 = vpop.f32.mrf.mxu0
    %v1159 = vadd.f32 %v900, %v1158
    %v1160 = vpop.f32.mrf.mxu0
    %v1161 = vadd.f32 %v902, %v1160
    %1162 = vmatmul.bf16.gmra.mxu0 %v710
    %v1163 = vpop.f32.mrf.mxu0
    %v1164 = vadd.f32 %v905, %v1163
    %v1165 = vpop.f32.mrf.mxu0
    %v1166 = vadd.f32 %v907, %v1165
    %1167 = vmatmul.bf16.gmra.mxu0 %v713
    %v1168 = vpop.f32.mrf.mxu0
    %v1169 = vadd.f32 %v910, %v1168
    %v1170 = vpop.f32.mrf.mxu0
    %v1171 = vadd.f32 %v912, %v1170
    %1172 = vmatmul.bf16.gmra.mxu0 %v716
    %v1173 = vpop.f32.mrf.mxu0
    %v1174 = vadd.f32 %v915, %v1173
    %v1175 = vpop.f32.mrf.mxu0
    %v1176 = vadd.f32 %v917, %v1175
    %1177 = vmatmul.bf16.gmra.mxu0 %v719
    %v1178 = vpop.f32.mrf.mxu0
    %v1179 = vadd.f32 %v920, %v1178
    %v1180 = vpop.f32.mrf.mxu0
    %v1181 = vadd.f32 %v922, %v1180
    %1182 = vmatmul.bf16.gmra.mxu0 %v722
    %v1183 = vpop.f32.mrf.mxu0
    %v1184 = vadd.f32 %v925, %v1183
    %v1185 = vpop.f32.mrf.mxu0
    %v1186 = vadd.f32 %v927, %v1185
    %1187 = vmatmul.bf16.gmra.mxu0 %v725
    %v1188 = vpop.f32.mrf.mxu0
    %v1189 = vadd.f32 %v930, %v1188
    %v1190 = vpop.f32.mrf.mxu0
    %v1191 = vadd.f32 %v932, %v1190
    %1192 = vmatmul.bf16.gmra.mxu0 %v728
    %v1193 = vpop.f32.mrf.mxu0
    %v1194 = vadd.f32 %v935, %v1193
    %v1195 = vpop.f32.mrf.mxu0
    %v1196 = vadd.f32 %v937, %v1195
    %1197 = vmatmul.bf16.gmra.mxu0 %v731
    %v1198 = vpop.f32.mrf.mxu0
    %v1199 = vadd.f32 %v940, %v1198
    %v1200 = vpop.f32.mrf.mxu0
    %v1201 = vadd.f32 %v942, %v1200
    %1202 = vmatmul.bf16.gmra.mxu0 %v734
    %v1203 = vpop.f32.mrf.mxu0
    %v1204 = vadd.f32 %v945, %v1203
    %v1205 = vpop.f32.mrf.mxu0
    %v1206 = vadd.f32 %v947, %v1205
    %1207 = vmatmul.bf16.gmra.mxu0 %v737
    %v1208 = vpop.f32.mrf.mxu0
    %v1209 = vadd.f32 %v950, %v1208
    %v1210 = vpop.f32.mrf.mxu0
    %v1211 = vadd.f32 %v952, %v1210
    %1212 = vmatmul.bf16.gmra.mxu0 %v740
    %v1213 = vpop.f32.mrf.mxu0
    %v1214 = vadd.f32 %v955, %v1213
    %v1215 = vpop.f32.mrf.mxu0
    %v1216 = vadd.f32 %v957, %v1215
    %1217 = vmatmul.bf16.gmra.mxu0 %v743
    %v1218 = vpop.f32.mrf.mxu0
    %v1219 = vadd.f32 %v960, %v1218
    %v1220 = vpop.f32.mrf.mxu0
    %v1221 = vadd.f32 %v962, %v1220
    %1222 = vmatmul.bf16.gmra.mxu0 %v746
    %v1223 = vpop.f32.mrf.mxu0
    %v1224 = vadd.f32 %v965, %v1223
    %v1225 = vpop.f32.mrf.mxu0
    %v1226 = vadd.f32 %v967, %v1225
    %1227 = vmatmul.bf16.gmra.mxu0 %v749
    %v1228 = vpop.f32.mrf.mxu0
    %v1229 = vadd.f32 %v970, %v1228
    %v1230 = vpop.f32.mrf.mxu0
    %v1231 = vadd.f32 %v972, %v1230
    %1232 = vmatmul.bf16.gmra.mxu0 %v752
    %v1233 = vpop.f32.mrf.mxu0
    %v1234 = vadd.f32 %v975, %v1233
    %v1235 = vpop.f32.mrf.mxu0
    %v1236 = vadd.f32 %v977, %v1235
    %1237 = vmatmul.bf16.gmra.mxu0 %v755
    %v1238 = vpop.f32.mrf.mxu0
    %v1239 = vadd.f32 %v980, %v1238
    %v1240 = vpop.f32.mrf.mxu0
    %v1241 = vadd.f32 %v982, %v1240
    %1242 = vmatmul.bf16.gmra.mxu0 %v758
    %v1243 = vpop.f32.mrf.mxu0
    %v1244 = vadd.f32 %v985, %v1243
    %v1245 = vpop.f32.mrf.mxu0
    %v1246 = vadd.f32 %v987, %v1245
    %1247 = vmatmul.bf16.gmra.mxu0 %v761
    %v1248 = vpop.f32.mrf.mxu0
    %v1249 = vadd.f32 %v990, %v1248
    %v1250 = vpop.f32.mrf.mxu0
    %v1251 = vadd.f32 %v992, %v1250
    %1252 = vmatmul.bf16.gmra.mxu0 %v764
    %v1253 = vpop.f32.mrf.mxu0
    %v1254 = vadd.f32 %v995, %v1253
    %v1255 = vpop.f32.mrf.mxu0
    %v1256 = vadd.f32 %v997, %v1255
    %1257 = vmatmul.bf16.gmra.mxu0 %v767
    %v1258 = vpop.f32.mrf.mxu0
    %v1259 = vadd.f32 %v1000, %v1258
    %v1260 = vpop.f32.mrf.mxu0
    %v1261 = vadd.f32 %v1002, %v1260
    %1262 = vmatmul.bf16.gmra.mxu0 %v770
    %v1263 = vpop.f32.mrf.mxu0
    %v1264 = vadd.f32 %v1005, %v1263
    %v1265 = vpop.f32.mrf.mxu0
    %v1266 = vadd.f32 %v1007, %v1265
    %1267 = vmatmul.bf16.gmra.mxu0 %v773
    %v1268 = vpop.f32.mrf.mxu0
    %v1269 = vadd.f32 %v1010, %v1268
    %v1270 = vpop.f32.mrf.mxu0
    %v1271 = vadd.f32 %v1012, %v1270
    %1272 = vmatmul.bf16.gmra.mxu0 %v776
    %v1273 = vpop.f32.mrf.mxu0
    %v1274 = vadd.f32 %v1015, %v1273
    %v1275 = vpop.f32.mrf.mxu0
    %v1276 = vadd.f32 %v1017, %v1275
    %1277 = vmatmul.bf16.gmra.mxu0 %v779
    %v1278 = vpop.f32.mrf.mxu0
    %v1279 = vadd.f32 %v1020, %v1278
    %v1280 = vpop.f32.mrf.mxu0
    %v1281 = vadd.f32 %v1022, %v1280
    %1282 = vmatmul.bf16.gmra.mxu0 %v782
    %v1283 = vpop.f32.mrf.mxu0
    %v1284 = vadd.f32 %v1025, %v1283
    %v1285 = vpop.f32.mrf.mxu0
    %v1286 = vadd.f32 %v1027, %v1285
    %1287 = vmatmul.bf16.gmra.mxu0 %v785
    %v1288 = vpop.f32.mrf.mxu0
    %v1289 = vadd.f32 %v1030, %v1288
    %v1290 = vpop.f32.mrf.mxu0
    %v1291 = vadd.f32 %v1032, %v1290
    %1292 = vmatmul.bf16.gmra.mxu0 %v788
    %v1293 = vpop.f32.mrf.mxu0
    %v1294 = vadd.f32 %v1035, %v1293
    %v1295 = vpop.f32.mrf.mxu0
    %v1296 = vadd.f32 %v1037, %v1295
    %1297 = vmatmul.bf16.gmra.mxu0 %v791
    %v1298 = vpop.f32.mrf.mxu0
    %v1299 = vadd.f32 %v1040, %v1298
    %v1300 = vpop.f32.mrf.mxu0
    %v1301 = vadd.f32 %v1042, %v1300
    %1302 = vmatmul.bf16.gmra.mxu0 %v794
    %v1303 = vpop.f32.mrf.mxu0
    %v1304 = vadd.f32 %v1045, %v1303
    %v1305 = vpop.f32.mrf.mxu0
    %v1306 = vadd.f32 %v1047, %v1305
    %1307 = vmatmul.bf16.gmra.mxu0 %v797
    %v1308 = vpop.f32.mrf.mxu0
    %v1309 = vadd.f32 %v1050, %v1308
    %v1310 = vpop.f32.mrf.mxu0
    %v1311 = vadd.f32 %v1052, %v1310
    %1312 = vmatmul.bf16.gmra.mxu0 %v800
    %v1313 = vpop.f32.mrf.mxu0
    %v1314 = vadd.f32 %v1055, %v1313
    %v1315 = vpop.f32.mrf.mxu0
    %v1316 = vadd.f32 %v1057, %v1315
    %1317 = vmatmul.bf16.gmra.mxu0 %v803
    %v1318 = vpop.f32.mrf.mxu0
    %v1319 = vadd.f32 %v1060, %v1318
    %v1320 = vpop.f32.mrf.mxu0
    %v1321 = vadd.f32 %v1062, %v1320
    %1322 = vmatmul.bf16.gmra.mxu0 %v806
    %v1323 = vpop.f32.mrf.mxu0
    %v1324 = vadd.f32 %v1065, %v1323
    %v1325 = vpop.f32.mrf.mxu0
    %v1326 = vadd.f32 %v1067, %v1325
    %1327 = vmatmul.bf16.gmra.mxu0 %v809
    %v1328 = vpop.f32.mrf.mxu0
    %v1329 = vadd.f32 %v1070, %v1328
    %v1330 = vpop.f32.mrf.mxu0
    %v1331 = vadd.f32 %v1072, %v1330
    %1332 = vdwg.mxu0
    %v1333 = vmax.f32 %v1084, %v1146
    %v1334 = vmax.f32 %v1086, %v1149
    %v1335 = vmax.f32 %v1089, %v1151
    %v1336 = vmax.f32 %v1091, %v1154
    %v1337 = vmax.f32 %v1094, %v1156
    %v1338 = vmax.f32 %v1096, %v1159
    %v1339 = vmax.f32 %v1099, %v1161
    %v1340 = vmax.f32 %v1101, %v1164
    %v1341 = vmax.f32 %v1104, %v1166
    %v1342 = vmax.f32 %v1106, %v1169
    %v1343 = vmax.f32 %v1109, %v1171
    %v1344 = vmax.f32 %v1111, %v1174
    %v1345 = vmax.f32 %v1114, %v1176
    %v1346 = vmax.f32 %v1116, %v1179
    %v1347 = vmax.f32 %v1119, %v1181
    %v1348 = vmax.f32 %v1121, %v1184
    %v1349 = vmax.f32 %v1124, %v1186
    %v1350 = vmax.f32 %v1126, %v1189
    %v1351 = vmax.f32 %v1129, %v1191
    %v1352 = vmax.f32 %v1131, %v1194
    %v1353 = vmax.f32 %v1134, %v1196
    %v1354 = vmax.f32 %v1136, %v1199
    %v1355 = vmax.f32 %v1139, %v1201
    %v1356 = vmax.f32 %v1141, %v1204
    %v1357 = vmax.f32 %v1144, %v1206
    %v1358 = vmax.f32 %v1209, %v1271
    %v1359 = vmax.f32 %v1211, %v1274
    %v1360 = vmax.f32 %v1214, %v1276
    %v1361 = vmax.f32 %v1216, %v1279
    %v1362 = vmax.f32 %v1219, %v1281
    %v1363 = vmax.f32 %v1221, %v1284
    %v1364 = vmax.f32 %v1224, %v1286
    %v1365 = vmax.f32 %v1226, %v1289
    %v1366 = vmax.f32 %v1229, %v1291
    %v1367 = vmax.f32 %v1231, %v1294
    %v1368 = vmax.f32 %v1234, %v1296
    %v1369 = vmax.f32 %v1236, %v1299
    %v1370 = vmax.f32 %v1239, %v1301
    %v1371 = vmax.f32 %v1241, %v1304
    %v1372 = vmax.f32 %v1244, %v1306
    %v1373 = vmax.f32 %v1246, %v1309
    %v1374 = vmax.f32 %v1249, %v1311
    %v1375 = vmax.f32 %v1251, %v1314
    %v1376 = vmax.f32 %v1254, %v1316
    %v1377 = vmax.f32 %v1256, %v1319
    %v1378 = vmax.f32 %v1259, %v1321
    %v1379 = vmax.f32 %v1261, %v1324
    %v1380 = vmax.f32 %v1264, %v1326
    %v1381 = vmax.f32 %v1266, %v1329
    %v1382 = vmax.f32 %v1269, %v1331
    %v1383 = vmax.f32 %v1333, %v1358
    %v1384 = vmax.f32 %v1334, %v1359
    %v1385 = vmax.f32 %v1335, %v1360
    %v1386 = vmax.f32 %v1336, %v1361
    %v1387 = vmax.f32 %v1337, %v1362
    %v1388 = vmax.f32 %v1338, %v1363
    %v1389 = vmax.f32 %v1339, %v1364
    %v1390 = vmax.f32 %v1340, %v1365
    %v1391 = vmax.f32 %v1341, %v1366
    %v1392 = vmax.f32 %v1342, %v1367
    %v1393 = vmax.f32 %v1343, %v1368
    %v1394 = vmax.f32 %v1344, %v1369
    %v1395 = vmax.f32 %v1345, %v1370
    %v1396 = vmax.f32 %v1346, %v1371
    %v1397 = vmax.f32 %v1347, %v1372
    %v1398 = vmax.f32 %v1348, %v1373
    %v1399 = vmax.f32 %v1349, %v1374
    %v1400 = vmax.f32 %v1350, %v1375
    %v1401 = vmax.f32 %v1351, %v1376
    %v1402 = vmax.f32 %v1352, %v1377
    %v1403 = vmax.f32 %v1353, %v1378
    %v1404 = vmax.f32 %v1354, %v1379
    %v1405 = vmax.f32 %v1355, %v1380
    %v1406 = vmax.f32 %v1356, %v1381
    %v1407 = vmax.f32 %v1357, %v1382
    %v1408 = vld [vmem:[%s2] sm:$0x1]
    %v1410 = vperm.slane %v1408, 0
    %v1412 = vadd.f32 %v1383, %v1410
    %v1413 = vadd.f32 %v1384, %v1410
    %v1414 = vadd.f32 %v1385, %v1410
    %v1415 = vadd.f32 %v1386, %v1410
    %v1416 = vadd.f32 %v1387, %v1410
    %v1417 = vadd.f32 %v1388, %v1410
    %v1418 = vadd.f32 %v1389, %v1410
    %v1419 = vadd.f32 %v1390, %v1410
    %v1420 = vadd.f32 %v1391, %v1410
    %v1421 = vadd.f32 %v1392, %v1410
    %v1422 = vadd.f32 %v1393, %v1410
    %v1423 = vadd.f32 %v1394, %v1410
    %v1424 = vadd.f32 %v1395, %v1410
    %v1425 = vadd.f32 %v1396, %v1410
    %v1426 = vadd.f32 %v1397, %v1410
    %v1427 = vadd.f32 %v1398, %v1410
    %v1428 = vadd.f32 %v1399, %v1410
    %v1429 = vadd.f32 %v1400, %v1410
    %v1430 = vadd.f32 %v1401, %v1410
    %v1431 = vadd.f32 %v1402, %v1410
    %v1432 = vadd.f32 %v1403, %v1410
    %v1433 = vadd.f32 %v1404, %v1410
    %v1434 = vadd.f32 %v1405, %v1410
    %v1435 = vadd.f32 %v1406, %v1410
    %v1436 = vadd.f32 %v1407, %v1410
    %v1437 = vmax.f32 %v1412, 0.0
    %v1438 = vmax.f32 %v1413, 0.0
    %v1439 = vmax.f32 %v1414, 0.0
    %v1440 = vmax.f32 %v1415, 0.0
    %v1441 = vmax.f32 %v1416, 0.0
    %v1442 = vmax.f32 %v1417, 0.0
    %v1443 = vmax.f32 %v1418, 0.0
    %v1444 = vmax.f32 %v1419, 0.0
    %v1445 = vmax.f32 %v1420, 0.0
    %v1446 = vmax.f32 %v1421, 0.0
    %v1447 = vmax.f32 %v1422, 0.0
    %v1448 = vmax.f32 %v1423, 0.0
    %v1449 = vmax.f32 %v1424, 0.0
    %v1450 = vmax.f32 %v1425, 0.0
    %v1451 = vmax.f32 %v1426, 0.0
    %v1452 = vmax.f32 %v1427, 0.0
    %v1453 = vmax.f32 %v1428, 0.0
    %v1454 = vmax.f32 %v1429, 0.0
    %v1455 = vmax.f32 %v1430, 0.0
    %v1456 = vmax.f32 %v1431, 0.0
    %v1457 = vmax.f32 %v1432, 0.0
    %v1458 = vmax.f32 %v1433, 0.0
    %v1459 = vmax.f32 %v1434, 0.0
    %v1460 = vmax.f32 %v1435, 0.0
    %v1461 = vmax.f32 %v1436, 0.0
    %v1462 = vpack.c.bf16 %v1437, %v1437
    %v1463 = vpack.c.bf16 %v1438, %v1438
    %v1464 = vpack.c.bf16 %v1439, %v1439
    %v1465 = vpack.c.bf16 %v1440, %v1440
    %v1466 = vpack.c.bf16 %v1441, %v1441
    %v1467 = vpack.c.bf16 %v1442, %v1442
    %v1468 = vpack.c.bf16 %v1443, %v1443
    %v1469 = vpack.c.bf16 %v1444, %v1444
    %v1470 = vpack.c.bf16 %v1445, %v1445
    %v1471 = vpack.c.bf16 %v1446, %v1446
    %v1472 = vpack.c.bf16 %v1447, %v1447
    %v1473 = vpack.c.bf16 %v1448, %v1448
    %v1474 = vpack.c.bf16 %v1449, %v1449
    %v1475 = vpack.c.bf16 %v1450, %v1450
    %v1476 = vpack.c.bf16 %v1451, %v1451
    %v1477 = vpack.c.bf16 %v1452, %v1452
    %v1478 = vpack.c.bf16 %v1453, %v1453
    %v1479 = vpack.c.bf16 %v1454, %v1454
    %v1480 = vpack.c.bf16 %v1455, %v1455
    %v1481 = vpack.c.bf16 %v1456, %v1456
    %v1482 = vpack.c.bf16 %v1457, %v1457
    %v1483 = vpack.c.bf16 %v1458, %v1458
    %v1484 = vpack.c.bf16 %v1459, %v1459
    %v1485 = vpack.c.bf16 %v1460, %v1460
    %v1486 = vpack.c.bf16 %v1461, %v1461
    %v1487 = vld [vmem:[%s3] sm:$0xf]
    %v1488 = vld [vmem:[%s3 + $0x4] sm:$0xf]
    %v1489 = vld [vmem:[%s3 + $0x8] sm:$0xf]
    %v1490 = vld [vmem:[%s3 + $0xc] sm:$0xf]
    %v1491 = vld [vmem:[%s3 + $0x10] sm:$0xf]
    %v1492 = vld [vmem:[%s3 + $0x14] sm:$0xf]
    %v1493 = vld [vmem:[%s3 + $0x18] sm:$0xf]
    %v1494 = vld [vmem:[%s3 + $0x1c] sm:$0xf]
    %v1495 = vld [vmem:[%s3 + $0x20] sm:$0xf]
    %v1496 = vld [vmem:[%s3 + $0x24] sm:$0xf]
    %v1497 = vld [vmem:[%s3 + $0x28] sm:$0xf]
    %v1498 = vld [vmem:[%s3 + $0x2c] sm:$0xf]
    %v1499 = vld [vmem:[%s3 + $0x30] sm:$0xf]
    %v1500 = vld [vmem:[%s3 + $0x34] sm:$0xf]
    %v1501 = vld [vmem:[%s3 + $0x38] sm:$0xf]
    %v1502 = vld [vmem:[%s3 + $0x3c] sm:$0xf]
    %v1503 = vld [vmem:[%s3 + $0x40] sm:$0xf]
    %v1504 = vld [vmem:[%s3 + $0x44] sm:$0xf]
    %v1505 = vld [vmem:[%s3 + $0x48] sm:$0xf]
    %v1506 = vld [vmem:[%s3 + $0x4c] sm:$0xf]
    %v1507 = vld [vmem:[%s3 + $0x50] sm:$0xf]
    %v1508 = vld [vmem:[%s3 + $0x54] sm:$0xf]
    %v1509 = vld [vmem:[%s3 + $0x58] sm:$0xf]
    %v1510 = vld [vmem:[%s3 + $0x5c] sm:$0xf]
    %v1511 = vld [vmem:[%s3 + $0x60] sm:$0xf]
    %v1512 = vld [vmem:[%s3 + $0x64] sm:$0xf]
    %v1513 = vld [vmem:[%s3 + $0x68] sm:$0xf]
    %v1514 = vld [vmem:[%s3 + $0x6c] sm:$0xf]
    %v1515 = vld [vmem:[%s3 + $0x70] sm:$0xf]
    %v1516 = vld [vmem:[%s3 + $0x74] sm:$0xf]
    %v1517 = vld [vmem:[%s3 + $0x78] sm:$0xf]
    %v1518 = vld [vmem:[%s3 + $0x7c] sm:$0xf]
    %v1519 = vld [vmem:[%s3 + $0x80] sm:$0xf]
    %v1520 = vld [vmem:[%s3 + $0x84] sm:$0xf]
    %v1521 = vld [vmem:[%s3 + $0x88] sm:$0xf]
    %v1522 = vld [vmem:[%s3 + $0x8c] sm:$0xf]
    %v1523 = vld [vmem:[%s3 + $0x90] sm:$0xf]
    %v1524 = vld [vmem:[%s3 + $0x94] sm:$0xf]
    %v1525 = vld [vmem:[%s3 + $0x98] sm:$0xf]
    %v1526 = vld [vmem:[%s3 + $0x9c] sm:$0xf]
    %v1527 = vld [vmem:[%s3 + $0xa0] sm:$0xf]
    %v1528 = vld [vmem:[%s3 + $0xa4] sm:$0xf]
    %v1529 = vld [vmem:[%s3 + $0xa8] sm:$0xf]
    %v1530 = vld [vmem:[%s3 + $0xac] sm:$0xf]
    %v1531 = vld [vmem:[%s3 + $0xb0] sm:$0xf]
    %v1532 = vld [vmem:[%s3 + $0xb4] sm:$0xf]
    %v1533 = vld [vmem:[%s3 + $0xb8] sm:$0xf]
    %v1534 = vld [vmem:[%s3 + $0xbc] sm:$0xf]
    %v1535 = vld [vmem:[%s3 + $0xc0] sm:$0xf]
    %v1536 = vld [vmem:[%s3 + $0xc4] sm:$0xf]
    %v1537 = vld [vmem:[%s3 + $0xc8] sm:$0xf]
    %v1538 = vld [vmem:[%s3 + $0xcc] sm:$0xf]
    %v1539 = vld [vmem:[%s3 + $0xd0] sm:$0xf]
    %v1540 = vld [vmem:[%s3 + $0xd4] sm:$0xf]
    %v1541 = vld [vmem:[%s3 + $0xd8] sm:$0xf]
    %v1542 = vld [vmem:[%s3 + $0xdc] sm:$0xf]
    %v1543 = vld [vmem:[%s3 + $0xe0] sm:$0xf]
    %v1544 = vld [vmem:[%s3 + $0xe4] sm:$0xf]
    %v1545 = vld [vmem:[%s3 + $0xe8] sm:$0xf]
    %v1546 = vld [vmem:[%s3 + $0xec] sm:$0xf]
    %v1547 = vld [vmem:[%s3 + $0xf0] sm:$0xf]
    %v1548 = vld [vmem:[%s3 + $0xf4] sm:$0xf]
    %v1549 = vld [vmem:[%s3 + $0xf8] sm:$0xf]
    %v1550 = vld [vmem:[%s3 + $0xfc] sm:$0xf]
    %v1551 = vld [vmem:[%s3 + $0x100] sm:$0xf]
    %v1552 = vld [vmem:[%s3 + $0x104] sm:$0xf]
    %v1553 = vld [vmem:[%s3 + $0x108] sm:$0xf]
    %v1554 = vld [vmem:[%s3 + $0x10c] sm:$0xf]
    %v1555 = vld [vmem:[%s3 + $0x110] sm:$0xf]
    %v1556 = vld [vmem:[%s3 + $0x114] sm:$0xf]
    %v1557 = vld [vmem:[%s3 + $0x118] sm:$0xf]
    %v1558 = vld [vmem:[%s3 + $0x11c] sm:$0xf]
    %v1559 = vld [vmem:[%s3 + $0x120] sm:$0xf]
    %v1560 = vld [vmem:[%s3 + $0x124] sm:$0xf]
    %v1561 = vld [vmem:[%s3 + $0x128] sm:$0xf]
    %v1562 = vld [vmem:[%s3 + $0x12c] sm:$0xf]
    %v1563 = vld [vmem:[%s3 + $0x130] sm:$0xf]
    %v1564 = vld [vmem:[%s3 + $0x134] sm:$0xf]
    %v1565 = vld [vmem:[%s3 + $0x138] sm:$0xf]
    %v1566 = vld [vmem:[%s3 + $0x13c] sm:$0xf]
    %v1567 = vld [vmem:[%s3 + $0x140] sm:$0xf]
    %v1568 = vld [vmem:[%s3 + $0x144] sm:$0xf]
    %v1569 = vld [vmem:[%s3 + $0x148] sm:$0xf]
    %v1570 = vld [vmem:[%s3 + $0x14c] sm:$0xf]
    %v1571 = vld [vmem:[%s3 + $0x150] sm:$0xf]
    %v1572 = vld [vmem:[%s3 + $0x154] sm:$0xf]
    %v1573 = vld [vmem:[%s3 + $0x158] sm:$0xf]
    %v1574 = vld [vmem:[%s3 + $0x15c] sm:$0xf]
    %v1575 = vld [vmem:[%s3 + $0x160] sm:$0xf]
    %v1576 = vld [vmem:[%s3 + $0x164] sm:$0xf]
    %v1577 = vld [vmem:[%s3 + $0x168] sm:$0xf]
    %v1578 = vld [vmem:[%s3 + $0x16c] sm:$0xf]
    %v1579 = vld [vmem:[%s3 + $0x170] sm:$0xf]
    %v1580 = vld [vmem:[%s3 + $0x174] sm:$0xf]
    %v1581 = vld [vmem:[%s3 + $0x178] sm:$0xf]
    %v1582 = vld [vmem:[%s3 + $0x17c] sm:$0xf]
    %v1583 = vld [vmem:[%s3 + $0x180] sm:$0xf]
    %v1584 = vld [vmem:[%s3 + $0x184] sm:$0xf]
    %v1585 = vld [vmem:[%s3 + $0x188] sm:$0xf]
    %v1586 = vld [vmem:[%s3 + $0x18c] sm:$0xf]
    %v1587 = vld [vmem:[%s3 + $0x190] sm:$0xf]
    %v1588 = vld [vmem:[%s3 + $0x194] sm:$0xf]
    %v1589 = vld [vmem:[%s3 + $0x198] sm:$0xf]
    %v1590 = vld [vmem:[%s3 + $0x19c] sm:$0xf]
    %v1591 = vld [vmem:[%s3 + $0x1a0] sm:$0xf]
    %v1592 = vld [vmem:[%s3 + $0x1a4] sm:$0xf]
    %v1593 = vld [vmem:[%s3 + $0x1a8] sm:$0xf]
    %v1594 = vld [vmem:[%s3 + $0x1ac] sm:$0xf]
    %v1595 = vld [vmem:[%s3 + $0x1b0] sm:$0xf]
    %v1596 = vld [vmem:[%s3 + $0x1b4] sm:$0xf]
    %v1597 = vld [vmem:[%s3 + $0x1b8] sm:$0xf]
    %v1598 = vld [vmem:[%s3 + $0x1bc] sm:$0xf]
    %v1599 = vld [vmem:[%s3 + $0x1c0] sm:$0xf]
    %v1600 = vld [vmem:[%s3 + $0x1c4] sm:$0xf]
    %v1601 = vld [vmem:[%s3 + $0x1c8] sm:$0xf]
    %v1602 = vld [vmem:[%s3 + $0x1cc] sm:$0xf]
    %v1603 = vld [vmem:[%s3 + $0x1d0] sm:$0xf]
    %v1604 = vld [vmem:[%s3 + $0x1d4] sm:$0xf]
    %v1605 = vld [vmem:[%s3 + $0x1d8] sm:$0xf]
    %v1606 = vld [vmem:[%s3 + $0x1dc] sm:$0xf]
    %v1607 = vld [vmem:[%s3 + $0x1e0] sm:$0xf]
    %v1608 = vld [vmem:[%s3 + $0x1e4] sm:$0xf]
    %v1609 = vld [vmem:[%s3 + $0x1e8] sm:$0xf]
    %v1610 = vld [vmem:[%s3 + $0x1ec] sm:$0xf]
    %v1611 = vld [vmem:[%s3 + $0x1f0] sm:$0xf]
    %v1612 = vld [vmem:[%s3 + $0x1f4] sm:$0xf]
    %v1613 = vld [vmem:[%s3 + $0x1f8] sm:$0xf]
    %v1614 = vld [vmem:[%s3 + $0x1fc] sm:$0xf]
    %v1615 = vld [vmem:[%s3 + $0x200] sm:$0xf]
    %v1616 = vld [vmem:[%s3 + $0x204] sm:$0xf]
    %v1617 = vld [vmem:[%s3 + $0x208] sm:$0xf]
    %v1618 = vld [vmem:[%s3 + $0x20c] sm:$0xf]
    %v1619 = vld [vmem:[%s3 + $0x210] sm:$0xf]
    %v1620 = vld [vmem:[%s3 + $0x214] sm:$0xf]
    %v1621 = vld [vmem:[%s3 + $0x218] sm:$0xf]
    %v1622 = vld [vmem:[%s3 + $0x21c] sm:$0xf]
    %v1623 = vld [vmem:[%s3 + $0x220] sm:$0xf]
    %v1624 = vld [vmem:[%s3 + $0x224] sm:$0xf]
    %v1625 = vld [vmem:[%s3 + $0x228] sm:$0xf]
    %v1626 = vld [vmem:[%s3 + $0x22c] sm:$0xf]
    %v1627 = vld [vmem:[%s3 + $0x230] sm:$0xf]
    %v1628 = vld [vmem:[%s3 + $0x234] sm:$0xf]
    %v1629 = vld [vmem:[%s3 + $0x238] sm:$0xf]
    %v1630 = vld [vmem:[%s3 + $0x23c] sm:$0xf]
    %v1631 = vld [vmem:[%s3 + $0x240] sm:$0xf]
    %v1632 = vld [vmem:[%s3 + $0x244] sm:$0xf]
    %v1633 = vld [vmem:[%s3 + $0x248] sm:$0xf]
    %v1634 = vld [vmem:[%s3 + $0x24c] sm:$0xf]
    %v1635 = vld [vmem:[%s3 + $0x250] sm:$0xf]
    %v1636 = vld [vmem:[%s3 + $0x254] sm:$0xf]
    %v1637 = vld [vmem:[%s3 + $0x258] sm:$0xf]
    %v1638 = vld [vmem:[%s3 + $0x25c] sm:$0xf]
    %v1639 = vld [vmem:[%s3 + $0x260] sm:$0xf]
    %v1640 = vld [vmem:[%s3 + $0x264] sm:$0xf]
    %v1641 = vld [vmem:[%s3 + $0x268] sm:$0xf]
    %v1642 = vld [vmem:[%s3 + $0x26c] sm:$0xf]
    %v1643 = vld [vmem:[%s3 + $0x270] sm:$0xf]
    %v1644 = vld [vmem:[%s3 + $0x274] sm:$0xf]
    %v1645 = vld [vmem:[%s3 + $0x278] sm:$0xf]
    %v1646 = vld [vmem:[%s3 + $0x27c] sm:$0xf]
    %v1647 = vld [vmem:[%s3 + $0x280] sm:$0xf]
    %v1648 = vld [vmem:[%s3 + $0x284] sm:$0xf]
    %v1649 = vld [vmem:[%s3 + $0x288] sm:$0xf]
    %v1650 = vld [vmem:[%s3 + $0x28c] sm:$0xf]
    %v1651 = vld [vmem:[%s3 + $0x290] sm:$0xf]
    %v1652 = vld [vmem:[%s3 + $0x294] sm:$0xf]
    %v1653 = vld [vmem:[%s3 + $0x298] sm:$0xf]
    %v1654 = vld [vmem:[%s3 + $0x29c] sm:$0xf]
    %v1655 = vld [vmem:[%s3 + $0x2a0] sm:$0xf]
    %v1656 = vld [vmem:[%s3 + $0x2a4] sm:$0xf]
    %v1657 = vld [vmem:[%s3 + $0x2a8] sm:$0xf]
    %v1658 = vld [vmem:[%s3 + $0x2ac] sm:$0xf]
    %v1659 = vld [vmem:[%s3 + $0x2b0] sm:$0xf]
    %v1660 = vld [vmem:[%s3 + $0x2b4] sm:$0xf]
    %v1661 = vld [vmem:[%s3 + $0x2b8] sm:$0xf]
    %v1662 = vld [vmem:[%s3 + $0x2bc] sm:$0xf]
    %v1663 = vld [vmem:[%s3 + $0x2c0] sm:$0xf]
    %v1664 = vld [vmem:[%s3 + $0x2c4] sm:$0xf]
    %v1665 = vld [vmem:[%s3 + $0x2c8] sm:$0xf]
    %v1666 = vld [vmem:[%s3 + $0x2cc] sm:$0xf]
    %v1667 = vld [vmem:[%s3 + $0x2d0] sm:$0xf]
    %v1668 = vld [vmem:[%s3 + $0x2d4] sm:$0xf]
    %v1669 = vld [vmem:[%s3 + $0x2d8] sm:$0xf]
    %v1670 = vld [vmem:[%s3 + $0x2dc] sm:$0xf]
    %v1671 = vld [vmem:[%s3 + $0x2e0] sm:$0xf]
    %v1672 = vld [vmem:[%s3 + $0x2e4] sm:$0xf]
    %v1673 = vld [vmem:[%s3 + $0x2e8] sm:$0xf]
    %v1674 = vld [vmem:[%s3 + $0x2ec] sm:$0xf]
    %v1675 = vld [vmem:[%s3 + $0x2f0] sm:$0xf]
    %v1676 = vld [vmem:[%s3 + $0x2f4] sm:$0xf]
    %v1677 = vld [vmem:[%s3 + $0x2f8] sm:$0xf]
    %v1678 = vld [vmem:[%s3 + $0x2fc] sm:$0xf]
    %v1679 = vld [vmem:[%s3 + $0x300] sm:$0xf]
    %v1680 = vld [vmem:[%s3 + $0x304] sm:$0xf]
    %v1681 = vld [vmem:[%s3 + $0x308] sm:$0xf]
    %v1682 = vld [vmem:[%s3 + $0x30c] sm:$0xf]
    %v1683 = vld [vmem:[%s3 + $0x310] sm:$0xf]
    %v1684 = vld [vmem:[%s3 + $0x314] sm:$0xf]
    %v1685 = vld [vmem:[%s3 + $0x318] sm:$0xf]
    %v1686 = vld [vmem:[%s3 + $0x31c] sm:$0xf]
    %v1687 = vld [vmem:[%s3 + $0x320] sm:$0xf]
    %v1688 = vld [vmem:[%s3 + $0x324] sm:$0xf]
    %v1689 = vld [vmem:[%s3 + $0x328] sm:$0xf]
    %v1690 = vld [vmem:[%s3 + $0x32c] sm:$0xf]
    %v1691 = vld [vmem:[%s3 + $0x330] sm:$0xf]
    %v1692 = vld [vmem:[%s3 + $0x334] sm:$0xf]
    %v1693 = vld [vmem:[%s3 + $0x338] sm:$0xf]
    %v1694 = vld [vmem:[%s3 + $0x33c] sm:$0xf]
    %v1695 = vld [vmem:[%s3 + $0x340] sm:$0xf]
    %v1696 = vld [vmem:[%s3 + $0x344] sm:$0xf]
    %v1697 = vld [vmem:[%s3 + $0x348] sm:$0xf]
    %v1698 = vld [vmem:[%s3 + $0x34c] sm:$0xf]
    %v1699 = vld [vmem:[%s3 + $0x350] sm:$0xf]
    %v1700 = vld [vmem:[%s3 + $0x354] sm:$0xf]
    %v1701 = vld [vmem:[%s3 + $0x358] sm:$0xf]
    %v1702 = vld [vmem:[%s3 + $0x35c] sm:$0xf]
    %v1703 = vld [vmem:[%s3 + $0x360] sm:$0xf]
    %v1704 = vld [vmem:[%s3 + $0x364] sm:$0xf]
    %v1705 = vld [vmem:[%s3 + $0x368] sm:$0xf]
    %v1706 = vld [vmem:[%s3 + $0x36c] sm:$0xf]
    %v1707 = vld [vmem:[%s3 + $0x370] sm:$0xf]
    %v1708 = vld [vmem:[%s3 + $0x374] sm:$0xf]
    %v1709 = vld [vmem:[%s3 + $0x378] sm:$0xf]
    %v1710 = vld [vmem:[%s3 + $0x37c] sm:$0xf]
    %v1711 = vld [vmem:[%s3 + $0x380] sm:$0xf]
    %v1712 = vld [vmem:[%s3 + $0x384] sm:$0xf]
    %v1713 = vld [vmem:[%s3 + $0x388] sm:$0xf]
    %v1714 = vld [vmem:[%s3 + $0x38c] sm:$0xf]
    %v1715 = vld [vmem:[%s3 + $0x390] sm:$0xf]
    %v1716 = vld [vmem:[%s3 + $0x394] sm:$0xf]
    %v1717 = vld [vmem:[%s3 + $0x398] sm:$0xf]
    %v1718 = vld [vmem:[%s3 + $0x39c] sm:$0xf]
    %v1719 = vld [vmem:[%s3 + $0x3a0] sm:$0xf]
    %v1720 = vld [vmem:[%s3 + $0x3a4] sm:$0xf]
    %v1721 = vld [vmem:[%s3 + $0x3a8] sm:$0xf]
    %v1722 = vld [vmem:[%s3 + $0x3ac] sm:$0xf]
    %v1723 = vld [vmem:[%s3 + $0x3b0] sm:$0xf]
    %v1724 = vld [vmem:[%s3 + $0x3b4] sm:$0xf]
    %v1725 = vld [vmem:[%s3 + $0x3b8] sm:$0xf]
    %v1726 = vld [vmem:[%s3 + $0x3bc] sm:$0xf]
    %v1727 = vld [vmem:[%s3 + $0x3c0] sm:$0xf]
    %v1728 = vld [vmem:[%s3 + $0x3c4] sm:$0xf]
    %v1729 = vld [vmem:[%s3 + $0x3c8] sm:$0xf]
    %v1730 = vld [vmem:[%s3 + $0x3cc] sm:$0xf]
    %v1731 = vld [vmem:[%s3 + $0x3d0] sm:$0xf]
    %v1732 = vld [vmem:[%s3 + $0x3d4] sm:$0xf]
    %v1733 = vld [vmem:[%s3 + $0x3d8] sm:$0xf]
    %v1734 = vld [vmem:[%s3 + $0x3dc] sm:$0xf]
    %v1735 = vld [vmem:[%s3 + $0x3e0] sm:$0xf]
    %v1736 = vld [vmem:[%s3 + $0x3e4] sm:$0xf]
    %v1737 = vld [vmem:[%s3 + $0x3e8] sm:$0xf]
    %v1738 = vld [vmem:[%s3 + $0x3ec] sm:$0xf]
    %v1739 = vld [vmem:[%s3 + $0x3f0] sm:$0xf]
    %v1740 = vld [vmem:[%s3 + $0x3f4] sm:$0xf]
    %v1741 = vld [vmem:[%s3 + $0x3f8] sm:$0xf]
    %v1742 = vld [vmem:[%s3 + $0x3fc] sm:$0xf]
    %v1743 = vld [vmem:[%s3 + $0x400] sm:$0xf]
    %v1744 = vld [vmem:[%s3 + $0x404] sm:$0xf]
    %v1745 = vld [vmem:[%s3 + $0x408] sm:$0xf]
    %v1746 = vld [vmem:[%s3 + $0x40c] sm:$0xf]
    %v1747 = vld [vmem:[%s3 + $0x410] sm:$0xf]
    %v1748 = vld [vmem:[%s3 + $0x414] sm:$0xf]
    %v1749 = vld [vmem:[%s3 + $0x418] sm:$0xf]
    %v1750 = vld [vmem:[%s3 + $0x41c] sm:$0xf]
    %v1751 = vld [vmem:[%s3 + $0x420] sm:$0xf]
    %v1752 = vld [vmem:[%s3 + $0x424] sm:$0xf]
    %v1753 = vld [vmem:[%s3 + $0x428] sm:$0xf]
    %v1754 = vld [vmem:[%s3 + $0x42c] sm:$0xf]
    %v1755 = vld [vmem:[%s3 + $0x430] sm:$0xf]
    %v1756 = vld [vmem:[%s3 + $0x434] sm:$0xf]
    %v1757 = vld [vmem:[%s3 + $0x438] sm:$0xf]
    %v1758 = vld [vmem:[%s3 + $0x43c] sm:$0xf]
    %v1759 = vld [vmem:[%s3 + $0x440] sm:$0xf]
    %v1760 = vld [vmem:[%s3 + $0x444] sm:$0xf]
    %v1761 = vld [vmem:[%s3 + $0x448] sm:$0xf]
    %v1762 = vld [vmem:[%s3 + $0x44c] sm:$0xf]
    %v1763 = vld [vmem:[%s3 + $0x450] sm:$0xf]
    %v1764 = vld [vmem:[%s3 + $0x454] sm:$0xf]
    %v1765 = vld [vmem:[%s3 + $0x458] sm:$0xf]
    %v1766 = vld [vmem:[%s3 + $0x45c] sm:$0xf]
    %v1767 = vld [vmem:[%s3 + $0x460] sm:$0xf]
    %v1768 = vld [vmem:[%s3 + $0x464] sm:$0xf]
    %v1769 = vld [vmem:[%s3 + $0x468] sm:$0xf]
    %v1770 = vld [vmem:[%s3 + $0x46c] sm:$0xf]
    %v1771 = vld [vmem:[%s3 + $0x470] sm:$0xf]
    %v1772 = vld [vmem:[%s3 + $0x474] sm:$0xf]
    %v1773 = vld [vmem:[%s3 + $0x478] sm:$0xf]
    %v1774 = vld [vmem:[%s3 + $0x47c] sm:$0xf]
    %v1775 = vld [vmem:[%s3 + $0x480] sm:$0xf]
    %v1776 = vld [vmem:[%s3 + $0x484] sm:$0xf]
    %v1777 = vld [vmem:[%s3 + $0x488] sm:$0xf]
    %v1778 = vld [vmem:[%s3 + $0x48c] sm:$0xf]
    %v1779 = vld [vmem:[%s3 + $0x490] sm:$0xf]
    %v1780 = vld [vmem:[%s3 + $0x494] sm:$0xf]
    %v1781 = vld [vmem:[%s3 + $0x498] sm:$0xf]
    %v1782 = vld [vmem:[%s3 + $0x49c] sm:$0xf]
    %v1783 = vld [vmem:[%s3 + $0x4a0] sm:$0xf]
    %v1784 = vld [vmem:[%s3 + $0x4a4] sm:$0xf]
    %v1785 = vld [vmem:[%s3 + $0x4a8] sm:$0xf]
    %v1786 = vld [vmem:[%s3 + $0x4ac] sm:$0xf]
    %v1787 = vld [vmem:[%s3 + $0x4b0] sm:$0xf]
    %v1788 = vld [vmem:[%s3 + $0x4b4] sm:$0xf]
    %v1789 = vld [vmem:[%s3 + $0x4b8] sm:$0xf]
    %v1790 = vld [vmem:[%s3 + $0x4bc] sm:$0xf]
    %v1791 = vld [vmem:[%s3 + $0x4c0] sm:$0xf]
    %v1792 = vld [vmem:[%s3 + $0x4c4] sm:$0xf]
    %v1793 = vld [vmem:[%s3 + $0x4c8] sm:$0xf]
    %v1794 = vld [vmem:[%s3 + $0x4cc] sm:$0xf]
    %v1795 = vld [vmem:[%s3 + $0x4d0] sm:$0xf]
    %v1796 = vld [vmem:[%s3 + $0x4d4] sm:$0xf]
    %v1797 = vld [vmem:[%s3 + $0x4d8] sm:$0xf]
    %v1798 = vld [vmem:[%s3 + $0x4dc] sm:$0xf]
    %v1799 = vld [vmem:[%s3 + $0x4e0] sm:$0xf]
    %v1800 = vld [vmem:[%s3 + $0x4e4] sm:$0xf]
    %v1801 = vld [vmem:[%s3 + $0x4e8] sm:$0xf]
    %v1802 = vld [vmem:[%s3 + $0x4ec] sm:$0xf]
    %v1803 = vld [vmem:[%s3 + $0x4f0] sm:$0xf]
    %v1804 = vld [vmem:[%s3 + $0x4f4] sm:$0xf]
    %v1805 = vld [vmem:[%s3 + $0x4f8] sm:$0xf]
    %v1806 = vld [vmem:[%s3 + $0x4fc] sm:$0xf]
    %v1807 = vld [vmem:[%s3 + $0x500] sm:$0xf]
    %v1808 = vld [vmem:[%s3 + $0x504] sm:$0xf]
    %v1809 = vld [vmem:[%s3 + $0x508] sm:$0xf]
    %v1810 = vld [vmem:[%s3 + $0x50c] sm:$0xf]
    %v1811 = vld [vmem:[%s3 + $0x510] sm:$0xf]
    %v1812 = vld [vmem:[%s3 + $0x514] sm:$0xf]
    %v1813 = vld [vmem:[%s3 + $0x518] sm:$0xf]
    %v1814 = vld [vmem:[%s3 + $0x51c] sm:$0xf]
    %v1815 = vld [vmem:[%s3 + $0x520] sm:$0xf]
    %v1816 = vld [vmem:[%s3 + $0x524] sm:$0xf]
    %v1817 = vld [vmem:[%s3 + $0x528] sm:$0xf]
    %v1818 = vld [vmem:[%s3 + $0x52c] sm:$0xf]
    %v1819 = vld [vmem:[%s3 + $0x530] sm:$0xf]
    %v1820 = vld [vmem:[%s3 + $0x534] sm:$0xf]
    %v1821 = vld [vmem:[%s3 + $0x538] sm:$0xf]
    %v1822 = vld [vmem:[%s3 + $0x53c] sm:$0xf]
    %v1823 = vld [vmem:[%s3 + $0x540] sm:$0xf]
    %v1824 = vld [vmem:[%s3 + $0x544] sm:$0xf]
    %v1825 = vld [vmem:[%s3 + $0x548] sm:$0xf]
    %v1826 = vld [vmem:[%s3 + $0x54c] sm:$0xf]
    %v1827 = vld [vmem:[%s3 + $0x550] sm:$0xf]
    %v1828 = vld [vmem:[%s3 + $0x554] sm:$0xf]
    %v1829 = vld [vmem:[%s3 + $0x558] sm:$0xf]
    %v1830 = vld [vmem:[%s3 + $0x55c] sm:$0xf]
    %v1831 = vld [vmem:[%s3 + $0x560] sm:$0xf]
    %v1832 = vld [vmem:[%s3 + $0x564] sm:$0xf]
    %v1833 = vld [vmem:[%s3 + $0x568] sm:$0xf]
    %v1834 = vld [vmem:[%s3 + $0x56c] sm:$0xf]
    %v1835 = vld [vmem:[%s3 + $0x570] sm:$0xf]
    %v1836 = vld [vmem:[%s3 + $0x574] sm:$0xf]
    %v1837 = vld [vmem:[%s3 + $0x578] sm:$0xf]
    %v1838 = vld [vmem:[%s3 + $0x57c] sm:$0xf]
    %v1839 = vld [vmem:[%s3 + $0x580] sm:$0xf]
    %v1840 = vld [vmem:[%s3 + $0x584] sm:$0xf]
    %v1841 = vld [vmem:[%s3 + $0x588] sm:$0xf]
    %v1842 = vld [vmem:[%s3 + $0x58c] sm:$0xf]
    %v1843 = vld [vmem:[%s3 + $0x590] sm:$0xf]
    %v1844 = vld [vmem:[%s3 + $0x594] sm:$0xf]
    %v1845 = vld [vmem:[%s3 + $0x598] sm:$0xf]
    %v1846 = vld [vmem:[%s3 + $0x59c] sm:$0xf]
    %v1847 = vld [vmem:[%s3 + $0x5a0] sm:$0xf]
    %v1848 = vld [vmem:[%s3 + $0x5a4] sm:$0xf]
    %v1849 = vld [vmem:[%s3 + $0x5a8] sm:$0xf]
    %v1850 = vld [vmem:[%s3 + $0x5ac] sm:$0xf]
    %v1851 = vld [vmem:[%s3 + $0x5b0] sm:$0xf]
    %v1852 = vld [vmem:[%s3 + $0x5b4] sm:$0xf]
    %v1853 = vld [vmem:[%s3 + $0x5b8] sm:$0xf]
    %v1854 = vld [vmem:[%s3 + $0x5bc] sm:$0xf]
    %v1855 = vld [vmem:[%s3 + $0x5c0] sm:$0xf]
    %v1856 = vld [vmem:[%s3 + $0x5c4] sm:$0xf]
    %v1857 = vld [vmem:[%s3 + $0x5c8] sm:$0xf]
    %v1858 = vld [vmem:[%s3 + $0x5cc] sm:$0xf]
    %v1859 = vld [vmem:[%s3 + $0x5d0] sm:$0xf]
    %v1860 = vld [vmem:[%s3 + $0x5d4] sm:$0xf]
    %v1861 = vld [vmem:[%s3 + $0x5d8] sm:$0xf]
    %v1862 = vld [vmem:[%s3 + $0x5dc] sm:$0xf]
    %v1863 = vld [vmem:[%s3 + $0x5e0] sm:$0xf]
    %v1864 = vld [vmem:[%s3 + $0x5e4] sm:$0xf]
    %v1865 = vld [vmem:[%s3 + $0x5e8] sm:$0xf]
    %v1866 = vld [vmem:[%s3 + $0x5ec] sm:$0xf]
    %v1867 = vld [vmem:[%s3 + $0x5f0] sm:$0xf]
    %v1868 = vld [vmem:[%s3 + $0x5f4] sm:$0xf]
    %v1869 = vld [vmem:[%s3 + $0x5f8] sm:$0xf]
    %v1870 = vld [vmem:[%s3 + $0x5fc] sm:$0xf]
    %v1871 = vld [vmem:[%s3 + $0x600] sm:$0xf]
    %v1872 = vld [vmem:[%s3 + $0x604] sm:$0xf]
    %v1873 = vld [vmem:[%s3 + $0x608] sm:$0xf]
    %v1874 = vld [vmem:[%s3 + $0x60c] sm:$0xf]
    %v1875 = vld [vmem:[%s3 + $0x610] sm:$0xf]
    %v1876 = vld [vmem:[%s3 + $0x614] sm:$0xf]
    %v1877 = vld [vmem:[%s3 + $0x618] sm:$0xf]
    %v1878 = vld [vmem:[%s3 + $0x61c] sm:$0xf]
    %v1879 = vld [vmem:[%s3 + $0x620] sm:$0xf]
    %v1880 = vld [vmem:[%s3 + $0x624] sm:$0xf]
    %v1881 = vld [vmem:[%s3 + $0x628] sm:$0xf]
    %v1882 = vld [vmem:[%s3 + $0x62c] sm:$0xf]
    %v1883 = vld [vmem:[%s3 + $0x630] sm:$0xf]
    %v1884 = vld [vmem:[%s3 + $0x634] sm:$0xf]
    %v1885 = vld [vmem:[%s3 + $0x638] sm:$0xf]
    %v1886 = vld [vmem:[%s3 + $0x63c] sm:$0xf]
    %v1903 = vunpack.c.l.b16 %v1487
    %v1904 = vunpack.c.l.b16 %v1488
    %v1905 = vunpack.c.l.b16 %v1489
    %v1906 = vunpack.c.l.b16 %v1490
    %v1907 = vunpack.c.l.b16 %v1491
    %v1908 = vunpack.c.l.b16 %v1492
    %v1909 = vunpack.c.l.b16 %v1493
    %v1910 = vunpack.c.l.b16 %v1494
    %v1911 = vunpack.c.l.b16 %v1495
    %v1912 = vunpack.c.l.b16 %v1496
    %v1913 = vunpack.c.l.b16 %v1497
    %v1914 = vunpack.c.l.b16 %v1498
    %v1915 = vunpack.c.l.b16 %v1499
    %v1916 = vunpack.c.l.b16 %v1500
    %v1917 = vunpack.c.l.b16 %v1501
    %v1918 = vunpack.c.l.b16 %v1502
    %v1919 = vpack.c.b16 %v1904, %v1903
    %v1920 = vpack.c.b16 %v1906, %v1905
    %v1921 = vpack.c.b16 %v1908, %v1907
    %v1922 = vpack.c.b16 %v1910, %v1909
    %v1923 = vpack.c.b16 %v1912, %v1911
    %v1924 = vpack.c.b16 %v1914, %v1913
    %v1925 = vpack.c.b16 %v1916, %v1915
    %v1926 = vpack.c.b16 %v1918, %v1917
    %1935 = vmatpush.bf16.msra.mxu0 %v1926
    %1936 = vmatpush.bf16.msra.mxu0 %v1925
    %1937 = vmatpush.bf16.msra.mxu0 %v1924
    %1938 = vmatpush.bf16.msra.mxu0 %v1923
    %1939 = vmatpush.bf16.msra.mxu0 %v1922
    %1940 = vmatpush.bf16.msra.mxu0 %v1921
    %1941 = vmatpush.bf16.msra.mxu0 %v1920
    %1942 = vmatpush.bf16.msra.mxu0 %v1919
    %1943 = vmatmul.bf16.gmra.mxu0 %v1462
    %v1944 = vpop.f32.mrf.mxu0
    %v1945 = vadd.f32 0.0, %v1944
    %v1946 = vpop.f32.mrf.mxu0
    %1947 = vdwg.mxu0
    %v1964 = vunpack.c.l.b16 %v1503
    %v1965 = vunpack.c.l.b16 %v1504
    %v1966 = vunpack.c.l.b16 %v1505
    %v1967 = vunpack.c.l.b16 %v1506
    %v1968 = vunpack.c.l.b16 %v1507
    %v1969 = vunpack.c.l.b16 %v1508
    %v1970 = vunpack.c.l.b16 %v1509
    %v1971 = vunpack.c.l.b16 %v1510
    %v1972 = vunpack.c.l.b16 %v1511
    %v1973 = vunpack.c.l.b16 %v1512
    %v1974 = vunpack.c.l.b16 %v1513
    %v1975 = vunpack.c.l.b16 %v1514
    %v1976 = vunpack.c.l.b16 %v1515
    %v1977 = vunpack.c.l.b16 %v1516
    %v1978 = vunpack.c.l.b16 %v1517
    %v1979 = vunpack.c.l.b16 %v1518
    %v1980 = vpack.c.b16 %v1965, %v1964
    %v1981 = vpack.c.b16 %v1967, %v1966
    %v1982 = vpack.c.b16 %v1969, %v1968
    %v1983 = vpack.c.b16 %v1971, %v1970
    %v1984 = vpack.c.b16 %v1973, %v1972
    %v1985 = vpack.c.b16 %v1975, %v1974
    %v1986 = vpack.c.b16 %v1977, %v1976
    %v1987 = vpack.c.b16 %v1979, %v1978
    %1996 = vmatpush.bf16.msra.mxu0 %v1987
    %1997 = vmatpush.bf16.msra.mxu0 %v1986
    %1998 = vmatpush.bf16.msra.mxu0 %v1985
    %1999 = vmatpush.bf16.msra.mxu0 %v1984
    %2000 = vmatpush.bf16.msra.mxu0 %v1983
    %2001 = vmatpush.bf16.msra.mxu0 %v1982
    %2002 = vmatpush.bf16.msra.mxu0 %v1981
    %2003 = vmatpush.bf16.msra.mxu0 %v1980
    %2004 = vmatmul.bf16.gmra.mxu0 %v1463
    %v2005 = vpop.f32.mrf.mxu0
    %v2006 = vadd.f32 0.0, %v2005
    %v2007 = vpop.f32.mrf.mxu0
    %2008 = vdwg.mxu0
    %v2025 = vunpack.c.l.b16 %v1519
    %v2026 = vunpack.c.l.b16 %v1520
    %v2027 = vunpack.c.l.b16 %v1521
    %v2028 = vunpack.c.l.b16 %v1522
    %v2029 = vunpack.c.l.b16 %v1523
    %v2030 = vunpack.c.l.b16 %v1524
    %v2031 = vunpack.c.l.b16 %v1525
    %v2032 = vunpack.c.l.b16 %v1526
    %v2033 = vunpack.c.l.b16 %v1527
    %v2034 = vunpack.c.l.b16 %v1528
    %v2035 = vunpack.c.l.b16 %v1529
    %v2036 = vunpack.c.l.b16 %v1530
    %v2037 = vunpack.c.l.b16 %v1531
    %v2038 = vunpack.c.l.b16 %v1532
    %v2039 = vunpack.c.l.b16 %v1533
    %v2040 = vunpack.c.l.b16 %v1534
    %v2041 = vpack.c.b16 %v2026, %v2025
    %v2042 = vpack.c.b16 %v2028, %v2027
    %v2043 = vpack.c.b16 %v2030, %v2029
    %v2044 = vpack.c.b16 %v2032, %v2031
    %v2045 = vpack.c.b16 %v2034, %v2033
    %v2046 = vpack.c.b16 %v2036, %v2035
    %v2047 = vpack.c.b16 %v2038, %v2037
    %v2048 = vpack.c.b16 %v2040, %v2039
    %2057 = vmatpush.bf16.msra.mxu0 %v2048
    %2058 = vmatpush.bf16.msra.mxu0 %v2047
    %2059 = vmatpush.bf16.msra.mxu0 %v2046
    %2060 = vmatpush.bf16.msra.mxu0 %v2045
    %2061 = vmatpush.bf16.msra.mxu0 %v2044
    %2062 = vmatpush.bf16.msra.mxu0 %v2043
    %2063 = vmatpush.bf16.msra.mxu0 %v2042
    %2064 = vmatpush.bf16.msra.mxu0 %v2041
    %2065 = vmatmul.bf16.gmra.mxu0 %v1464
    %v2066 = vpop.f32.mrf.mxu0
    %v2067 = vadd.f32 0.0, %v2066
    %v2068 = vpop.f32.mrf.mxu0
    %2069 = vdwg.mxu0
    %v2086 = vunpack.c.l.b16 %v1535
    %v2087 = vunpack.c.l.b16 %v1536
    %v2088 = vunpack.c.l.b16 %v1537
    %v2089 = vunpack.c.l.b16 %v1538
    %v2090 = vunpack.c.l.b16 %v1539
    %v2091 = vunpack.c.l.b16 %v1540
    %v2092 = vunpack.c.l.b16 %v1541
    %v2093 = vunpack.c.l.b16 %v1542
    %v2094 = vunpack.c.l.b16 %v1543
    %v2095 = vunpack.c.l.b16 %v1544
    %v2096 = vunpack.c.l.b16 %v1545
    %v2097 = vunpack.c.l.b16 %v1546
    %v2098 = vunpack.c.l.b16 %v1547
    %v2099 = vunpack.c.l.b16 %v1548
    %v2100 = vunpack.c.l.b16 %v1549
    %v2101 = vunpack.c.l.b16 %v1550
    %v2102 = vpack.c.b16 %v2087, %v2086
    %v2103 = vpack.c.b16 %v2089, %v2088
    %v2104 = vpack.c.b16 %v2091, %v2090
    %v2105 = vpack.c.b16 %v2093, %v2092
    %v2106 = vpack.c.b16 %v2095, %v2094
    %v2107 = vpack.c.b16 %v2097, %v2096
    %v2108 = vpack.c.b16 %v2099, %v2098
    %v2109 = vpack.c.b16 %v2101, %v2100
    %2118 = vmatpush.bf16.msra.mxu0 %v2109
    %2119 = vmatpush.bf16.msra.mxu0 %v2108
    %2120 = vmatpush.bf16.msra.mxu0 %v2107
    %2121 = vmatpush.bf16.msra.mxu0 %v2106
    %2122 = vmatpush.bf16.msra.mxu0 %v2105
    %2123 = vmatpush.bf16.msra.mxu0 %v2104
    %2124 = vmatpush.bf16.msra.mxu0 %v2103
    %2125 = vmatpush.bf16.msra.mxu0 %v2102
    %2126 = vmatmul.bf16.gmra.mxu0 %v1465
    %v2127 = vpop.f32.mrf.mxu0
    %v2128 = vadd.f32 0.0, %v2127
    %v2129 = vpop.f32.mrf.mxu0
    %2130 = vdwg.mxu0
    %v2147 = vunpack.c.l.b16 %v1551
    %v2148 = vunpack.c.l.b16 %v1552
    %v2149 = vunpack.c.l.b16 %v1553
    %v2150 = vunpack.c.l.b16 %v1554
    %v2151 = vunpack.c.l.b16 %v1555
    %v2152 = vunpack.c.l.b16 %v1556
    %v2153 = vunpack.c.l.b16 %v1557
    %v2154 = vunpack.c.l.b16 %v1558
    %v2155 = vunpack.c.l.b16 %v1559
    %v2156 = vunpack.c.l.b16 %v1560
    %v2157 = vunpack.c.l.b16 %v1561
    %v2158 = vunpack.c.l.b16 %v1562
    %v2159 = vunpack.c.l.b16 %v1563
    %v2160 = vunpack.c.l.b16 %v1564
    %v2161 = vunpack.c.l.b16 %v1565
    %v2162 = vunpack.c.l.b16 %v1566
    %v2163 = vpack.c.b16 %v2148, %v2147
    %v2164 = vpack.c.b16 %v2150, %v2149
    %v2165 = vpack.c.b16 %v2152, %v2151
    %v2166 = vpack.c.b16 %v2154, %v2153
    %v2167 = vpack.c.b16 %v2156, %v2155
    %v2168 = vpack.c.b16 %v2158, %v2157
    %v2169 = vpack.c.b16 %v2160, %v2159
    %v2170 = vpack.c.b16 %v2162, %v2161
    %2179 = vmatpush.bf16.msra.mxu0 %v2170
    %2180 = vmatpush.bf16.msra.mxu0 %v2169
    %2181 = vmatpush.bf16.msra.mxu0 %v2168
    %2182 = vmatpush.bf16.msra.mxu0 %v2167
    %2183 = vmatpush.bf16.msra.mxu0 %v2166
    %2184 = vmatpush.bf16.msra.mxu0 %v2165
    %2185 = vmatpush.bf16.msra.mxu0 %v2164
    %2186 = vmatpush.bf16.msra.mxu0 %v2163
    %2187 = vmatmul.bf16.gmra.mxu0 %v1466
    %v2188 = vpop.f32.mrf.mxu0
    %v2189 = vadd.f32 0.0, %v2188
    %v2190 = vpop.f32.mrf.mxu0
    %2191 = vdwg.mxu0
    %v2208 = vunpack.c.l.b16 %v1567
    %v2209 = vunpack.c.l.b16 %v1568
    %v2210 = vunpack.c.l.b16 %v1569
    %v2211 = vunpack.c.l.b16 %v1570
    %v2212 = vunpack.c.l.b16 %v1571
    %v2213 = vunpack.c.l.b16 %v1572
    %v2214 = vunpack.c.l.b16 %v1573
    %v2215 = vunpack.c.l.b16 %v1574
    %v2216 = vunpack.c.l.b16 %v1575
    %v2217 = vunpack.c.l.b16 %v1576
    %v2218 = vunpack.c.l.b16 %v1577
    %v2219 = vunpack.c.l.b16 %v1578
    %v2220 = vunpack.c.l.b16 %v1579
    %v2221 = vunpack.c.l.b16 %v1580
    %v2222 = vunpack.c.l.b16 %v1581
    %v2223 = vunpack.c.l.b16 %v1582
    %v2224 = vpack.c.b16 %v2209, %v2208
    %v2225 = vpack.c.b16 %v2211, %v2210
    %v2226 = vpack.c.b16 %v2213, %v2212
    %v2227 = vpack.c.b16 %v2215, %v2214
    %v2228 = vpack.c.b16 %v2217, %v2216
    %v2229 = vpack.c.b16 %v2219, %v2218
    %v2230 = vpack.c.b16 %v2221, %v2220
    %v2231 = vpack.c.b16 %v2223, %v2222
    %2240 = vmatpush.bf16.msra.mxu0 %v2231
    %2241 = vmatpush.bf16.msra.mxu0 %v2230
    %2242 = vmatpush.bf16.msra.mxu0 %v2229
    %2243 = vmatpush.bf16.msra.mxu0 %v2228
    %2244 = vmatpush.bf16.msra.mxu0 %v2227
    %2245 = vmatpush.bf16.msra.mxu0 %v2226
    %2246 = vmatpush.bf16.msra.mxu0 %v2225
    %2247 = vmatpush.bf16.msra.mxu0 %v2224
    %2248 = vmatmul.bf16.gmra.mxu0 %v1467
    %v2249 = vpop.f32.mrf.mxu0
    %v2250 = vadd.f32 0.0, %v2249
    %v2251 = vpop.f32.mrf.mxu0
    %2252 = vdwg.mxu0
    %v2269 = vunpack.c.l.b16 %v1583
    %v2270 = vunpack.c.l.b16 %v1584
    %v2271 = vunpack.c.l.b16 %v1585
    %v2272 = vunpack.c.l.b16 %v1586
    %v2273 = vunpack.c.l.b16 %v1587
    %v2274 = vunpack.c.l.b16 %v1588
    %v2275 = vunpack.c.l.b16 %v1589
    %v2276 = vunpack.c.l.b16 %v1590
    %v2277 = vunpack.c.l.b16 %v1591
    %v2278 = vunpack.c.l.b16 %v1592
    %v2279 = vunpack.c.l.b16 %v1593
    %v2280 = vunpack.c.l.b16 %v1594
    %v2281 = vunpack.c.l.b16 %v1595
    %v2282 = vunpack.c.l.b16 %v1596
    %v2283 = vunpack.c.l.b16 %v1597
    %v2284 = vunpack.c.l.b16 %v1598
    %v2285 = vpack.c.b16 %v2270, %v2269
    %v2286 = vpack.c.b16 %v2272, %v2271
    %v2287 = vpack.c.b16 %v2274, %v2273
    %v2288 = vpack.c.b16 %v2276, %v2275
    %v2289 = vpack.c.b16 %v2278, %v2277
    %v2290 = vpack.c.b16 %v2280, %v2279
    %v2291 = vpack.c.b16 %v2282, %v2281
    %v2292 = vpack.c.b16 %v2284, %v2283
    %2301 = vmatpush.bf16.msra.mxu0 %v2292
    %2302 = vmatpush.bf16.msra.mxu0 %v2291
    %2303 = vmatpush.bf16.msra.mxu0 %v2290
    %2304 = vmatpush.bf16.msra.mxu0 %v2289
    %2305 = vmatpush.bf16.msra.mxu0 %v2288
    %2306 = vmatpush.bf16.msra.mxu0 %v2287
    %2307 = vmatpush.bf16.msra.mxu0 %v2286
    %2308 = vmatpush.bf16.msra.mxu0 %v2285
    %2309 = vmatmul.bf16.gmra.mxu0 %v1468
    %v2310 = vpop.f32.mrf.mxu0
    %v2311 = vadd.f32 0.0, %v2310
    %v2312 = vpop.f32.mrf.mxu0
    %2313 = vdwg.mxu0
    %v2330 = vunpack.c.l.b16 %v1599
    %v2331 = vunpack.c.l.b16 %v1600
    %v2332 = vunpack.c.l.b16 %v1601
    %v2333 = vunpack.c.l.b16 %v1602
    %v2334 = vunpack.c.l.b16 %v1603
    %v2335 = vunpack.c.l.b16 %v1604
    %v2336 = vunpack.c.l.b16 %v1605
    %v2337 = vunpack.c.l.b16 %v1606
    %v2338 = vunpack.c.l.b16 %v1607
    %v2339 = vunpack.c.l.b16 %v1608
    %v2340 = vunpack.c.l.b16 %v1609
    %v2341 = vunpack.c.l.b16 %v1610
    %v2342 = vunpack.c.l.b16 %v1611
    %v2343 = vunpack.c.l.b16 %v1612
    %v2344 = vunpack.c.l.b16 %v1613
    %v2345 = vunpack.c.l.b16 %v1614
    %v2346 = vpack.c.b16 %v2331, %v2330
    %v2347 = vpack.c.b16 %v2333, %v2332
    %v2348 = vpack.c.b16 %v2335, %v2334
    %v2349 = vpack.c.b16 %v2337, %v2336
    %v2350 = vpack.c.b16 %v2339, %v2338
    %v2351 = vpack.c.b16 %v2341, %v2340
    %v2352 = vpack.c.b16 %v2343, %v2342
    %v2353 = vpack.c.b16 %v2345, %v2344
    %2362 = vmatpush.bf16.msra.mxu0 %v2353
    %2363 = vmatpush.bf16.msra.mxu0 %v2352
    %2364 = vmatpush.bf16.msra.mxu0 %v2351
    %2365 = vmatpush.bf16.msra.mxu0 %v2350
    %2366 = vmatpush.bf16.msra.mxu0 %v2349
    %2367 = vmatpush.bf16.msra.mxu0 %v2348
    %2368 = vmatpush.bf16.msra.mxu0 %v2347
    %2369 = vmatpush.bf16.msra.mxu0 %v2346
    %2370 = vmatmul.bf16.gmra.mxu0 %v1469
    %v2371 = vpop.f32.mrf.mxu0
    %v2372 = vadd.f32 0.0, %v2371
    %v2373 = vpop.f32.mrf.mxu0
    %2374 = vdwg.mxu0
    %v2391 = vunpack.c.l.b16 %v1615
    %v2392 = vunpack.c.l.b16 %v1616
    %v2393 = vunpack.c.l.b16 %v1617
    %v2394 = vunpack.c.l.b16 %v1618
    %v2395 = vunpack.c.l.b16 %v1619
    %v2396 = vunpack.c.l.b16 %v1620
    %v2397 = vunpack.c.l.b16 %v1621
    %v2398 = vunpack.c.l.b16 %v1622
    %v2399 = vunpack.c.l.b16 %v1623
    %v2400 = vunpack.c.l.b16 %v1624
    %v2401 = vunpack.c.l.b16 %v1625
    %v2402 = vunpack.c.l.b16 %v1626
    %v2403 = vunpack.c.l.b16 %v1627
    %v2404 = vunpack.c.l.b16 %v1628
    %v2405 = vunpack.c.l.b16 %v1629
    %v2406 = vunpack.c.l.b16 %v1630
    %v2407 = vpack.c.b16 %v2392, %v2391
    %v2408 = vpack.c.b16 %v2394, %v2393
    %v2409 = vpack.c.b16 %v2396, %v2395
    %v2410 = vpack.c.b16 %v2398, %v2397
    %v2411 = vpack.c.b16 %v2400, %v2399
    %v2412 = vpack.c.b16 %v2402, %v2401
    %v2413 = vpack.c.b16 %v2404, %v2403
    %v2414 = vpack.c.b16 %v2406, %v2405
    %2423 = vmatpush.bf16.msra.mxu0 %v2414
    %2424 = vmatpush.bf16.msra.mxu0 %v2413
    %2425 = vmatpush.bf16.msra.mxu0 %v2412
    %2426 = vmatpush.bf16.msra.mxu0 %v2411
    %2427 = vmatpush.bf16.msra.mxu0 %v2410
    %2428 = vmatpush.bf16.msra.mxu0 %v2409
    %2429 = vmatpush.bf16.msra.mxu0 %v2408
    %2430 = vmatpush.bf16.msra.mxu0 %v2407
    %2431 = vmatmul.bf16.gmra.mxu0 %v1470
    %v2432 = vpop.f32.mrf.mxu0
    %v2433 = vadd.f32 0.0, %v2432
    %v2434 = vpop.f32.mrf.mxu0
    %2435 = vdwg.mxu0
    %v2452 = vunpack.c.l.b16 %v1631
    %v2453 = vunpack.c.l.b16 %v1632
    %v2454 = vunpack.c.l.b16 %v1633
    %v2455 = vunpack.c.l.b16 %v1634
    %v2456 = vunpack.c.l.b16 %v1635
    %v2457 = vunpack.c.l.b16 %v1636
    %v2458 = vunpack.c.l.b16 %v1637
    %v2459 = vunpack.c.l.b16 %v1638
    %v2460 = vunpack.c.l.b16 %v1639
    %v2461 = vunpack.c.l.b16 %v1640
    %v2462 = vunpack.c.l.b16 %v1641
    %v2463 = vunpack.c.l.b16 %v1642
    %v2464 = vunpack.c.l.b16 %v1643
    %v2465 = vunpack.c.l.b16 %v1644
    %v2466 = vunpack.c.l.b16 %v1645
    %v2467 = vunpack.c.l.b16 %v1646
    %v2468 = vpack.c.b16 %v2453, %v2452
    %v2469 = vpack.c.b16 %v2455, %v2454
    %v2470 = vpack.c.b16 %v2457, %v2456
    %v2471 = vpack.c.b16 %v2459, %v2458
    %v2472 = vpack.c.b16 %v2461, %v2460
    %v2473 = vpack.c.b16 %v2463, %v2462
    %v2474 = vpack.c.b16 %v2465, %v2464
    %v2475 = vpack.c.b16 %v2467, %v2466
    %2484 = vmatpush.bf16.msra.mxu0 %v2475
    %2485 = vmatpush.bf16.msra.mxu0 %v2474
    %2486 = vmatpush.bf16.msra.mxu0 %v2473
    %2487 = vmatpush.bf16.msra.mxu0 %v2472
    %2488 = vmatpush.bf16.msra.mxu0 %v2471
    %2489 = vmatpush.bf16.msra.mxu0 %v2470
    %2490 = vmatpush.bf16.msra.mxu0 %v2469
    %2491 = vmatpush.bf16.msra.mxu0 %v2468
    %2492 = vmatmul.bf16.gmra.mxu0 %v1471
    %v2493 = vpop.f32.mrf.mxu0
    %v2494 = vadd.f32 0.0, %v2493
    %v2495 = vpop.f32.mrf.mxu0
    %2496 = vdwg.mxu0
    %v2513 = vunpack.c.l.b16 %v1647
    %v2514 = vunpack.c.l.b16 %v1648
    %v2515 = vunpack.c.l.b16 %v1649
    %v2516 = vunpack.c.l.b16 %v1650
    %v2517 = vunpack.c.l.b16 %v1651
    %v2518 = vunpack.c.l.b16 %v1652
    %v2519 = vunpack.c.l.b16 %v1653
    %v2520 = vunpack.c.l.b16 %v1654
    %v2521 = vunpack.c.l.b16 %v1655
    %v2522 = vunpack.c.l.b16 %v1656
    %v2523 = vunpack.c.l.b16 %v1657
    %v2524 = vunpack.c.l.b16 %v1658
    %v2525 = vunpack.c.l.b16 %v1659
    %v2526 = vunpack.c.l.b16 %v1660
    %v2527 = vunpack.c.l.b16 %v1661
    %v2528 = vunpack.c.l.b16 %v1662
    %v2529 = vpack.c.b16 %v2514, %v2513
    %v2530 = vpack.c.b16 %v2516, %v2515
    %v2531 = vpack.c.b16 %v2518, %v2517
    %v2532 = vpack.c.b16 %v2520, %v2519
    %v2533 = vpack.c.b16 %v2522, %v2521
    %v2534 = vpack.c.b16 %v2524, %v2523
    %v2535 = vpack.c.b16 %v2526, %v2525
    %v2536 = vpack.c.b16 %v2528, %v2527
    %2545 = vmatpush.bf16.msra.mxu0 %v2536
    %2546 = vmatpush.bf16.msra.mxu0 %v2535
    %2547 = vmatpush.bf16.msra.mxu0 %v2534
    %2548 = vmatpush.bf16.msra.mxu0 %v2533
    %2549 = vmatpush.bf16.msra.mxu0 %v2532
    %2550 = vmatpush.bf16.msra.mxu0 %v2531
    %2551 = vmatpush.bf16.msra.mxu0 %v2530
    %2552 = vmatpush.bf16.msra.mxu0 %v2529
    %2553 = vmatmul.bf16.gmra.mxu0 %v1472
    %v2554 = vpop.f32.mrf.mxu0
    %v2555 = vadd.f32 0.0, %v2554
    %v2556 = vpop.f32.mrf.mxu0
    %2557 = vdwg.mxu0
    %v2574 = vunpack.c.l.b16 %v1663
    %v2575 = vunpack.c.l.b16 %v1664
    %v2576 = vunpack.c.l.b16 %v1665
    %v2577 = vunpack.c.l.b16 %v1666
    %v2578 = vunpack.c.l.b16 %v1667
    %v2579 = vunpack.c.l.b16 %v1668
    %v2580 = vunpack.c.l.b16 %v1669
    %v2581 = vunpack.c.l.b16 %v1670
    %v2582 = vunpack.c.l.b16 %v1671
    %v2583 = vunpack.c.l.b16 %v1672
    %v2584 = vunpack.c.l.b16 %v1673
    %v2585 = vunpack.c.l.b16 %v1674
    %v2586 = vunpack.c.l.b16 %v1675
    %v2587 = vunpack.c.l.b16 %v1676
    %v2588 = vunpack.c.l.b16 %v1677
    %v2589 = vunpack.c.l.b16 %v1678
    %v2590 = vpack.c.b16 %v2575, %v2574
    %v2591 = vpack.c.b16 %v2577, %v2576
    %v2592 = vpack.c.b16 %v2579, %v2578
    %v2593 = vpack.c.b16 %v2581, %v2580
    %v2594 = vpack.c.b16 %v2583, %v2582
    %v2595 = vpack.c.b16 %v2585, %v2584
    %v2596 = vpack.c.b16 %v2587, %v2586
    %v2597 = vpack.c.b16 %v2589, %v2588
    %2606 = vmatpush.bf16.msra.mxu0 %v2597
    %2607 = vmatpush.bf16.msra.mxu0 %v2596
    %2608 = vmatpush.bf16.msra.mxu0 %v2595
    %2609 = vmatpush.bf16.msra.mxu0 %v2594
    %2610 = vmatpush.bf16.msra.mxu0 %v2593
    %2611 = vmatpush.bf16.msra.mxu0 %v2592
    %2612 = vmatpush.bf16.msra.mxu0 %v2591
    %2613 = vmatpush.bf16.msra.mxu0 %v2590
    %2614 = vmatmul.bf16.gmra.mxu0 %v1473
    %v2615 = vpop.f32.mrf.mxu0
    %v2616 = vadd.f32 0.0, %v2615
    %v2617 = vpop.f32.mrf.mxu0
    %2618 = vdwg.mxu0
    %v2635 = vunpack.c.l.b16 %v1679
    %v2636 = vunpack.c.l.b16 %v1680
    %v2637 = vunpack.c.l.b16 %v1681
    %v2638 = vunpack.c.l.b16 %v1682
    %v2639 = vunpack.c.l.b16 %v1683
    %v2640 = vunpack.c.l.b16 %v1684
    %v2641 = vunpack.c.l.b16 %v1685
    %v2642 = vunpack.c.l.b16 %v1686
    %v2643 = vunpack.c.l.b16 %v1687
    %v2644 = vunpack.c.l.b16 %v1688
    %v2645 = vunpack.c.l.b16 %v1689
    %v2646 = vunpack.c.l.b16 %v1690
    %v2647 = vunpack.c.l.b16 %v1691
    %v2648 = vunpack.c.l.b16 %v1692
    %v2649 = vunpack.c.l.b16 %v1693
    %v2650 = vunpack.c.l.b16 %v1694
    %v2651 = vpack.c.b16 %v2636, %v2635
    %v2652 = vpack.c.b16 %v2638, %v2637
    %v2653 = vpack.c.b16 %v2640, %v2639
    %v2654 = vpack.c.b16 %v2642, %v2641
    %v2655 = vpack.c.b16 %v2644, %v2643
    %v2656 = vpack.c.b16 %v2646, %v2645
    %v2657 = vpack.c.b16 %v2648, %v2647
    %v2658 = vpack.c.b16 %v2650, %v2649
    %2667 = vmatpush.bf16.msra.mxu0 %v2658
    %2668 = vmatpush.bf16.msra.mxu0 %v2657
    %2669 = vmatpush.bf16.msra.mxu0 %v2656
    %2670 = vmatpush.bf16.msra.mxu0 %v2655
    %2671 = vmatpush.bf16.msra.mxu0 %v2654
    %2672 = vmatpush.bf16.msra.mxu0 %v2653
    %2673 = vmatpush.bf16.msra.mxu0 %v2652
    %2674 = vmatpush.bf16.msra.mxu0 %v2651
    %2675 = vmatmul.bf16.gmra.mxu0 %v1474
    %v2676 = vpop.f32.mrf.mxu0
    %v2677 = vadd.f32 0.0, %v2676
    %v2678 = vpop.f32.mrf.mxu0
    %2679 = vdwg.mxu0
    %v2696 = vunpack.c.l.b16 %v1695
    %v2697 = vunpack.c.l.b16 %v1696
    %v2698 = vunpack.c.l.b16 %v1697
    %v2699 = vunpack.c.l.b16 %v1698
    %v2700 = vunpack.c.l.b16 %v1699
    %v2701 = vunpack.c.l.b16 %v1700
    %v2702 = vunpack.c.l.b16 %v1701
    %v2703 = vunpack.c.l.b16 %v1702
    %v2704 = vunpack.c.l.b16 %v1703
    %v2705 = vunpack.c.l.b16 %v1704
    %v2706 = vunpack.c.l.b16 %v1705
    %v2707 = vunpack.c.l.b16 %v1706
    %v2708 = vunpack.c.l.b16 %v1707
    %v2709 = vunpack.c.l.b16 %v1708
    %v2710 = vunpack.c.l.b16 %v1709
    %v2711 = vunpack.c.l.b16 %v1710
    %v2712 = vpack.c.b16 %v2697, %v2696
    %v2713 = vpack.c.b16 %v2699, %v2698
    %v2714 = vpack.c.b16 %v2701, %v2700
    %v2715 = vpack.c.b16 %v2703, %v2702
    %v2716 = vpack.c.b16 %v2705, %v2704
    %v2717 = vpack.c.b16 %v2707, %v2706
    %v2718 = vpack.c.b16 %v2709, %v2708
    %v2719 = vpack.c.b16 %v2711, %v2710
    %2728 = vmatpush.bf16.msra.mxu0 %v2719
    %2729 = vmatpush.bf16.msra.mxu0 %v2718
    %2730 = vmatpush.bf16.msra.mxu0 %v2717
    %2731 = vmatpush.bf16.msra.mxu0 %v2716
    %2732 = vmatpush.bf16.msra.mxu0 %v2715
    %2733 = vmatpush.bf16.msra.mxu0 %v2714
    %2734 = vmatpush.bf16.msra.mxu0 %v2713
    %2735 = vmatpush.bf16.msra.mxu0 %v2712
    %2736 = vmatmul.bf16.gmra.mxu0 %v1475
    %v2737 = vpop.f32.mrf.mxu0
    %v2738 = vadd.f32 0.0, %v2737
    %v2739 = vpop.f32.mrf.mxu0
    %2740 = vdwg.mxu0
    %v2757 = vunpack.c.l.b16 %v1711
    %v2758 = vunpack.c.l.b16 %v1712
    %v2759 = vunpack.c.l.b16 %v1713
    %v2760 = vunpack.c.l.b16 %v1714
    %v2761 = vunpack.c.l.b16 %v1715
    %v2762 = vunpack.c.l.b16 %v1716
    %v2763 = vunpack.c.l.b16 %v1717
    %v2764 = vunpack.c.l.b16 %v1718
    %v2765 = vunpack.c.l.b16 %v1719
    %v2766 = vunpack.c.l.b16 %v1720
    %v2767 = vunpack.c.l.b16 %v1721
    %v2768 = vunpack.c.l.b16 %v1722
    %v2769 = vunpack.c.l.b16 %v1723
    %v2770 = vunpack.c.l.b16 %v1724
    %v2771 = vunpack.c.l.b16 %v1725
    %v2772 = vunpack.c.l.b16 %v1726
    %v2773 = vpack.c.b16 %v2758, %v2757
    %v2774 = vpack.c.b16 %v2760, %v2759
    %v2775 = vpack.c.b16 %v2762, %v2761
    %v2776 = vpack.c.b16 %v2764, %v2763
    %v2777 = vpack.c.b16 %v2766, %v2765
    %v2778 = vpack.c.b16 %v2768, %v2767
    %v2779 = vpack.c.b16 %v2770, %v2769
    %v2780 = vpack.c.b16 %v2772, %v2771
    %2789 = vmatpush.bf16.msra.mxu0 %v2780
    %2790 = vmatpush.bf16.msra.mxu0 %v2779
    %2791 = vmatpush.bf16.msra.mxu0 %v2778
    %2792 = vmatpush.bf16.msra.mxu0 %v2777
    %2793 = vmatpush.bf16.msra.mxu0 %v2776
    %2794 = vmatpush.bf16.msra.mxu0 %v2775
    %2795 = vmatpush.bf16.msra.mxu0 %v2774
    %2796 = vmatpush.bf16.msra.mxu0 %v2773
    %2797 = vmatmul.bf16.gmra.mxu0 %v1476
    %v2798 = vpop.f32.mrf.mxu0
    %v2799 = vadd.f32 0.0, %v2798
    %v2800 = vpop.f32.mrf.mxu0
    %2801 = vdwg.mxu0
    %v2818 = vunpack.c.l.b16 %v1727
    %v2819 = vunpack.c.l.b16 %v1728
    %v2820 = vunpack.c.l.b16 %v1729
    %v2821 = vunpack.c.l.b16 %v1730
    %v2822 = vunpack.c.l.b16 %v1731
    %v2823 = vunpack.c.l.b16 %v1732
    %v2824 = vunpack.c.l.b16 %v1733
    %v2825 = vunpack.c.l.b16 %v1734
    %v2826 = vunpack.c.l.b16 %v1735
    %v2827 = vunpack.c.l.b16 %v1736
    %v2828 = vunpack.c.l.b16 %v1737
    %v2829 = vunpack.c.l.b16 %v1738
    %v2830 = vunpack.c.l.b16 %v1739
    %v2831 = vunpack.c.l.b16 %v1740
    %v2832 = vunpack.c.l.b16 %v1741
    %v2833 = vunpack.c.l.b16 %v1742
    %v2834 = vpack.c.b16 %v2819, %v2818
    %v2835 = vpack.c.b16 %v2821, %v2820
    %v2836 = vpack.c.b16 %v2823, %v2822
    %v2837 = vpack.c.b16 %v2825, %v2824
    %v2838 = vpack.c.b16 %v2827, %v2826
    %v2839 = vpack.c.b16 %v2829, %v2828
    %v2840 = vpack.c.b16 %v2831, %v2830
    %v2841 = vpack.c.b16 %v2833, %v2832
    %2850 = vmatpush.bf16.msra.mxu0 %v2841
    %2851 = vmatpush.bf16.msra.mxu0 %v2840
    %2852 = vmatpush.bf16.msra.mxu0 %v2839
    %2853 = vmatpush.bf16.msra.mxu0 %v2838
    %2854 = vmatpush.bf16.msra.mxu0 %v2837
    %2855 = vmatpush.bf16.msra.mxu0 %v2836
    %2856 = vmatpush.bf16.msra.mxu0 %v2835
    %2857 = vmatpush.bf16.msra.mxu0 %v2834
    %2858 = vmatmul.bf16.gmra.mxu0 %v1477
    %v2859 = vpop.f32.mrf.mxu0
    %v2860 = vadd.f32 0.0, %v2859
    %v2861 = vpop.f32.mrf.mxu0
    %2862 = vdwg.mxu0
    %v2879 = vunpack.c.l.b16 %v1743
    %v2880 = vunpack.c.l.b16 %v1744
    %v2881 = vunpack.c.l.b16 %v1745
    %v2882 = vunpack.c.l.b16 %v1746
    %v2883 = vunpack.c.l.b16 %v1747
    %v2884 = vunpack.c.l.b16 %v1748
    %v2885 = vunpack.c.l.b16 %v1749
    %v2886 = vunpack.c.l.b16 %v1750
    %v2887 = vunpack.c.l.b16 %v1751
    %v2888 = vunpack.c.l.b16 %v1752
    %v2889 = vunpack.c.l.b16 %v1753
    %v2890 = vunpack.c.l.b16 %v1754
    %v2891 = vunpack.c.l.b16 %v1755
    %v2892 = vunpack.c.l.b16 %v1756
    %v2893 = vunpack.c.l.b16 %v1757
    %v2894 = vunpack.c.l.b16 %v1758
    %v2895 = vpack.c.b16 %v2880, %v2879
    %v2896 = vpack.c.b16 %v2882, %v2881
    %v2897 = vpack.c.b16 %v2884, %v2883
    %v2898 = vpack.c.b16 %v2886, %v2885
    %v2899 = vpack.c.b16 %v2888, %v2887
    %v2900 = vpack.c.b16 %v2890, %v2889
    %v2901 = vpack.c.b16 %v2892, %v2891
    %v2902 = vpack.c.b16 %v2894, %v2893
    %2911 = vmatpush.bf16.msra.mxu0 %v2902
    %2912 = vmatpush.bf16.msra.mxu0 %v2901
    %2913 = vmatpush.bf16.msra.mxu0 %v2900
    %2914 = vmatpush.bf16.msra.mxu0 %v2899
    %2915 = vmatpush.bf16.msra.mxu0 %v2898
    %2916 = vmatpush.bf16.msra.mxu0 %v2897
    %2917 = vmatpush.bf16.msra.mxu0 %v2896
    %2918 = vmatpush.bf16.msra.mxu0 %v2895
    %2919 = vmatmul.bf16.gmra.mxu0 %v1478
    %v2920 = vpop.f32.mrf.mxu0
    %v2921 = vadd.f32 0.0, %v2920
    %v2922 = vpop.f32.mrf.mxu0
    %2923 = vdwg.mxu0
    %v2940 = vunpack.c.l.b16 %v1759
    %v2941 = vunpack.c.l.b16 %v1760
    %v2942 = vunpack.c.l.b16 %v1761
    %v2943 = vunpack.c.l.b16 %v1762
    %v2944 = vunpack.c.l.b16 %v1763
    %v2945 = vunpack.c.l.b16 %v1764
    %v2946 = vunpack.c.l.b16 %v1765
    %v2947 = vunpack.c.l.b16 %v1766
    %v2948 = vunpack.c.l.b16 %v1767
    %v2949 = vunpack.c.l.b16 %v1768
    %v2950 = vunpack.c.l.b16 %v1769
    %v2951 = vunpack.c.l.b16 %v1770
    %v2952 = vunpack.c.l.b16 %v1771
    %v2953 = vunpack.c.l.b16 %v1772
    %v2954 = vunpack.c.l.b16 %v1773
    %v2955 = vunpack.c.l.b16 %v1774
    %v2956 = vpack.c.b16 %v2941, %v2940
    %v2957 = vpack.c.b16 %v2943, %v2942
    %v2958 = vpack.c.b16 %v2945, %v2944
    %v2959 = vpack.c.b16 %v2947, %v2946
    %v2960 = vpack.c.b16 %v2949, %v2948
    %v2961 = vpack.c.b16 %v2951, %v2950
    %v2962 = vpack.c.b16 %v2953, %v2952
    %v2963 = vpack.c.b16 %v2955, %v2954
    %2972 = vmatpush.bf16.msra.mxu0 %v2963
    %2973 = vmatpush.bf16.msra.mxu0 %v2962
    %2974 = vmatpush.bf16.msra.mxu0 %v2961
    %2975 = vmatpush.bf16.msra.mxu0 %v2960
    %2976 = vmatpush.bf16.msra.mxu0 %v2959
    %2977 = vmatpush.bf16.msra.mxu0 %v2958
    %2978 = vmatpush.bf16.msra.mxu0 %v2957
    %2979 = vmatpush.bf16.msra.mxu0 %v2956
    %2980 = vmatmul.bf16.gmra.mxu0 %v1479
    %v2981 = vpop.f32.mrf.mxu0
    %v2982 = vadd.f32 0.0, %v2981
    %v2983 = vpop.f32.mrf.mxu0
    %2984 = vdwg.mxu0
    %v3001 = vunpack.c.l.b16 %v1775
    %v3002 = vunpack.c.l.b16 %v1776
    %v3003 = vunpack.c.l.b16 %v1777
    %v3004 = vunpack.c.l.b16 %v1778
    %v3005 = vunpack.c.l.b16 %v1779
    %v3006 = vunpack.c.l.b16 %v1780
    %v3007 = vunpack.c.l.b16 %v1781
    %v3008 = vunpack.c.l.b16 %v1782
    %v3009 = vunpack.c.l.b16 %v1783
    %v3010 = vunpack.c.l.b16 %v1784
    %v3011 = vunpack.c.l.b16 %v1785
    %v3012 = vunpack.c.l.b16 %v1786
    %v3013 = vunpack.c.l.b16 %v1787
    %v3014 = vunpack.c.l.b16 %v1788
    %v3015 = vunpack.c.l.b16 %v1789
    %v3016 = vunpack.c.l.b16 %v1790
    %v3017 = vpack.c.b16 %v3002, %v3001
    %v3018 = vpack.c.b16 %v3004, %v3003
    %v3019 = vpack.c.b16 %v3006, %v3005
    %v3020 = vpack.c.b16 %v3008, %v3007
    %v3021 = vpack.c.b16 %v3010, %v3009
    %v3022 = vpack.c.b16 %v3012, %v3011
    %v3023 = vpack.c.b16 %v3014, %v3013
    %v3024 = vpack.c.b16 %v3016, %v3015
    %3033 = vmatpush.bf16.msra.mxu0 %v3024
    %3034 = vmatpush.bf16.msra.mxu0 %v3023
    %3035 = vmatpush.bf16.msra.mxu0 %v3022
    %3036 = vmatpush.bf16.msra.mxu0 %v3021
    %3037 = vmatpush.bf16.msra.mxu0 %v3020
    %3038 = vmatpush.bf16.msra.mxu0 %v3019
    %3039 = vmatpush.bf16.msra.mxu0 %v3018
    %3040 = vmatpush.bf16.msra.mxu0 %v3017
    %3041 = vmatmul.bf16.gmra.mxu0 %v1480
    %v3042 = vpop.f32.mrf.mxu0
    %v3043 = vadd.f32 0.0, %v3042
    %v3044 = vpop.f32.mrf.mxu0
    %3045 = vdwg.mxu0
    %v3062 = vunpack.c.l.b16 %v1791
    %v3063 = vunpack.c.l.b16 %v1792
    %v3064 = vunpack.c.l.b16 %v1793
    %v3065 = vunpack.c.l.b16 %v1794
    %v3066 = vunpack.c.l.b16 %v1795
    %v3067 = vunpack.c.l.b16 %v1796
    %v3068 = vunpack.c.l.b16 %v1797
    %v3069 = vunpack.c.l.b16 %v1798
    %v3070 = vunpack.c.l.b16 %v1799
    %v3071 = vunpack.c.l.b16 %v1800
    %v3072 = vunpack.c.l.b16 %v1801
    %v3073 = vunpack.c.l.b16 %v1802
    %v3074 = vunpack.c.l.b16 %v1803
    %v3075 = vunpack.c.l.b16 %v1804
    %v3076 = vunpack.c.l.b16 %v1805
    %v3077 = vunpack.c.l.b16 %v1806
    %v3078 = vpack.c.b16 %v3063, %v3062
    %v3079 = vpack.c.b16 %v3065, %v3064
    %v3080 = vpack.c.b16 %v3067, %v3066
    %v3081 = vpack.c.b16 %v3069, %v3068
    %v3082 = vpack.c.b16 %v3071, %v3070
    %v3083 = vpack.c.b16 %v3073, %v3072
    %v3084 = vpack.c.b16 %v3075, %v3074
    %v3085 = vpack.c.b16 %v3077, %v3076
    %3094 = vmatpush.bf16.msra.mxu0 %v3085
    %3095 = vmatpush.bf16.msra.mxu0 %v3084
    %3096 = vmatpush.bf16.msra.mxu0 %v3083
    %3097 = vmatpush.bf16.msra.mxu0 %v3082
    %3098 = vmatpush.bf16.msra.mxu0 %v3081
    %3099 = vmatpush.bf16.msra.mxu0 %v3080
    %3100 = vmatpush.bf16.msra.mxu0 %v3079
    %3101 = vmatpush.bf16.msra.mxu0 %v3078
    %3102 = vmatmul.bf16.gmra.mxu0 %v1481
    %v3103 = vpop.f32.mrf.mxu0
    %v3104 = vadd.f32 0.0, %v3103
    %v3105 = vpop.f32.mrf.mxu0
    %3106 = vdwg.mxu0
    %v3123 = vunpack.c.l.b16 %v1807
    %v3124 = vunpack.c.l.b16 %v1808
    %v3125 = vunpack.c.l.b16 %v1809
    %v3126 = vunpack.c.l.b16 %v1810
    %v3127 = vunpack.c.l.b16 %v1811
    %v3128 = vunpack.c.l.b16 %v1812
    %v3129 = vunpack.c.l.b16 %v1813
    %v3130 = vunpack.c.l.b16 %v1814
    %v3131 = vunpack.c.l.b16 %v1815
    %v3132 = vunpack.c.l.b16 %v1816
    %v3133 = vunpack.c.l.b16 %v1817
    %v3134 = vunpack.c.l.b16 %v1818
    %v3135 = vunpack.c.l.b16 %v1819
    %v3136 = vunpack.c.l.b16 %v1820
    %v3137 = vunpack.c.l.b16 %v1821
    %v3138 = vunpack.c.l.b16 %v1822
    %v3139 = vpack.c.b16 %v3124, %v3123
    %v3140 = vpack.c.b16 %v3126, %v3125
    %v3141 = vpack.c.b16 %v3128, %v3127
    %v3142 = vpack.c.b16 %v3130, %v3129
    %v3143 = vpack.c.b16 %v3132, %v3131
    %v3144 = vpack.c.b16 %v3134, %v3133
    %v3145 = vpack.c.b16 %v3136, %v3135
    %v3146 = vpack.c.b16 %v3138, %v3137
    %3155 = vmatpush.bf16.msra.mxu0 %v3146
    %3156 = vmatpush.bf16.msra.mxu0 %v3145
    %3157 = vmatpush.bf16.msra.mxu0 %v3144
    %3158 = vmatpush.bf16.msra.mxu0 %v3143
    %3159 = vmatpush.bf16.msra.mxu0 %v3142
    %3160 = vmatpush.bf16.msra.mxu0 %v3141
    %3161 = vmatpush.bf16.msra.mxu0 %v3140
    %3162 = vmatpush.bf16.msra.mxu0 %v3139
    %3163 = vmatmul.bf16.gmra.mxu0 %v1482
    %v3164 = vpop.f32.mrf.mxu0
    %v3165 = vadd.f32 0.0, %v3164
    %v3166 = vpop.f32.mrf.mxu0
    %3167 = vdwg.mxu0
    %v3184 = vunpack.c.l.b16 %v1823
    %v3185 = vunpack.c.l.b16 %v1824
    %v3186 = vunpack.c.l.b16 %v1825
    %v3187 = vunpack.c.l.b16 %v1826
    %v3188 = vunpack.c.l.b16 %v1827
    %v3189 = vunpack.c.l.b16 %v1828
    %v3190 = vunpack.c.l.b16 %v1829
    %v3191 = vunpack.c.l.b16 %v1830
    %v3192 = vunpack.c.l.b16 %v1831
    %v3193 = vunpack.c.l.b16 %v1832
    %v3194 = vunpack.c.l.b16 %v1833
    %v3195 = vunpack.c.l.b16 %v1834
    %v3196 = vunpack.c.l.b16 %v1835
    %v3197 = vunpack.c.l.b16 %v1836
    %v3198 = vunpack.c.l.b16 %v1837
    %v3199 = vunpack.c.l.b16 %v1838
    %v3200 = vpack.c.b16 %v3185, %v3184
    %v3201 = vpack.c.b16 %v3187, %v3186
    %v3202 = vpack.c.b16 %v3189, %v3188
    %v3203 = vpack.c.b16 %v3191, %v3190
    %v3204 = vpack.c.b16 %v3193, %v3192
    %v3205 = vpack.c.b16 %v3195, %v3194
    %v3206 = vpack.c.b16 %v3197, %v3196
    %v3207 = vpack.c.b16 %v3199, %v3198
    %3216 = vmatpush.bf16.msra.mxu0 %v3207
    %3217 = vmatpush.bf16.msra.mxu0 %v3206
    %3218 = vmatpush.bf16.msra.mxu0 %v3205
    %3219 = vmatpush.bf16.msra.mxu0 %v3204
    %3220 = vmatpush.bf16.msra.mxu0 %v3203
    %3221 = vmatpush.bf16.msra.mxu0 %v3202
    %3222 = vmatpush.bf16.msra.mxu0 %v3201
    %3223 = vmatpush.bf16.msra.mxu0 %v3200
    %3224 = vmatmul.bf16.gmra.mxu0 %v1483
    %v3225 = vpop.f32.mrf.mxu0
    %v3226 = vadd.f32 0.0, %v3225
    %v3227 = vpop.f32.mrf.mxu0
    %3228 = vdwg.mxu0
    %v3245 = vunpack.c.l.b16 %v1839
    %v3246 = vunpack.c.l.b16 %v1840
    %v3247 = vunpack.c.l.b16 %v1841
    %v3248 = vunpack.c.l.b16 %v1842
    %v3249 = vunpack.c.l.b16 %v1843
    %v3250 = vunpack.c.l.b16 %v1844
    %v3251 = vunpack.c.l.b16 %v1845
    %v3252 = vunpack.c.l.b16 %v1846
    %v3253 = vunpack.c.l.b16 %v1847
    %v3254 = vunpack.c.l.b16 %v1848
    %v3255 = vunpack.c.l.b16 %v1849
    %v3256 = vunpack.c.l.b16 %v1850
    %v3257 = vunpack.c.l.b16 %v1851
    %v3258 = vunpack.c.l.b16 %v1852
    %v3259 = vunpack.c.l.b16 %v1853
    %v3260 = vunpack.c.l.b16 %v1854
    %v3261 = vpack.c.b16 %v3246, %v3245
    %v3262 = vpack.c.b16 %v3248, %v3247
    %v3263 = vpack.c.b16 %v3250, %v3249
    %v3264 = vpack.c.b16 %v3252, %v3251
    %v3265 = vpack.c.b16 %v3254, %v3253
    %v3266 = vpack.c.b16 %v3256, %v3255
    %v3267 = vpack.c.b16 %v3258, %v3257
    %v3268 = vpack.c.b16 %v3260, %v3259
    %3277 = vmatpush.bf16.msra.mxu0 %v3268
    %3278 = vmatpush.bf16.msra.mxu0 %v3267
    %3279 = vmatpush.bf16.msra.mxu0 %v3266
    %3280 = vmatpush.bf16.msra.mxu0 %v3265
    %3281 = vmatpush.bf16.msra.mxu0 %v3264
    %3282 = vmatpush.bf16.msra.mxu0 %v3263
    %3283 = vmatpush.bf16.msra.mxu0 %v3262
    %3284 = vmatpush.bf16.msra.mxu0 %v3261
    %3285 = vmatmul.bf16.gmra.mxu0 %v1484
    %v3286 = vpop.f32.mrf.mxu0
    %v3287 = vadd.f32 0.0, %v3286
    %v3288 = vpop.f32.mrf.mxu0
    %3289 = vdwg.mxu0
    %v3306 = vunpack.c.l.b16 %v1855
    %v3307 = vunpack.c.l.b16 %v1856
    %v3308 = vunpack.c.l.b16 %v1857
    %v3309 = vunpack.c.l.b16 %v1858
    %v3310 = vunpack.c.l.b16 %v1859
    %v3311 = vunpack.c.l.b16 %v1860
    %v3312 = vunpack.c.l.b16 %v1861
    %v3313 = vunpack.c.l.b16 %v1862
    %v3314 = vunpack.c.l.b16 %v1863
    %v3315 = vunpack.c.l.b16 %v1864
    %v3316 = vunpack.c.l.b16 %v1865
    %v3317 = vunpack.c.l.b16 %v1866
    %v3318 = vunpack.c.l.b16 %v1867
    %v3319 = vunpack.c.l.b16 %v1868
    %v3320 = vunpack.c.l.b16 %v1869
    %v3321 = vunpack.c.l.b16 %v1870
    %v3322 = vpack.c.b16 %v3307, %v3306
    %v3323 = vpack.c.b16 %v3309, %v3308
    %v3324 = vpack.c.b16 %v3311, %v3310
    %v3325 = vpack.c.b16 %v3313, %v3312
    %v3326 = vpack.c.b16 %v3315, %v3314
    %v3327 = vpack.c.b16 %v3317, %v3316
    %v3328 = vpack.c.b16 %v3319, %v3318
    %v3329 = vpack.c.b16 %v3321, %v3320
    %3338 = vmatpush.bf16.msra.mxu0 %v3329
    %3339 = vmatpush.bf16.msra.mxu0 %v3328
    %3340 = vmatpush.bf16.msra.mxu0 %v3327
    %3341 = vmatpush.bf16.msra.mxu0 %v3326
    %3342 = vmatpush.bf16.msra.mxu0 %v3325
    %3343 = vmatpush.bf16.msra.mxu0 %v3324
    %3344 = vmatpush.bf16.msra.mxu0 %v3323
    %3345 = vmatpush.bf16.msra.mxu0 %v3322
    %3346 = vmatmul.bf16.gmra.mxu0 %v1485
    %v3347 = vpop.f32.mrf.mxu0
    %v3348 = vadd.f32 0.0, %v3347
    %v3349 = vpop.f32.mrf.mxu0
    %3350 = vdwg.mxu0
    %v3367 = vunpack.c.l.b16 %v1871
    %v3368 = vunpack.c.l.b16 %v1872
    %v3369 = vunpack.c.l.b16 %v1873
    %v3370 = vunpack.c.l.b16 %v1874
    %v3371 = vunpack.c.l.b16 %v1875
    %v3372 = vunpack.c.l.b16 %v1876
    %v3373 = vunpack.c.l.b16 %v1877
    %v3374 = vunpack.c.l.b16 %v1878
    %v3375 = vunpack.c.l.b16 %v1879
    %v3376 = vunpack.c.l.b16 %v1880
    %v3377 = vunpack.c.l.b16 %v1881
    %v3378 = vunpack.c.l.b16 %v1882
    %v3379 = vunpack.c.l.b16 %v1883
    %v3380 = vunpack.c.l.b16 %v1884
    %v3381 = vunpack.c.l.b16 %v1885
    %v3382 = vunpack.c.l.b16 %v1886
    %v3383 = vpack.c.b16 %v3368, %v3367
    %v3384 = vpack.c.b16 %v3370, %v3369
    %v3385 = vpack.c.b16 %v3372, %v3371
    %v3386 = vpack.c.b16 %v3374, %v3373
    %v3387 = vpack.c.b16 %v3376, %v3375
    %v3388 = vpack.c.b16 %v3378, %v3377
    %v3389 = vpack.c.b16 %v3380, %v3379
    %v3390 = vpack.c.b16 %v3382, %v3381
    %3399 = vmatpush.bf16.msra.mxu0 %v3390
    %3400 = vmatpush.bf16.msra.mxu0 %v3389
    %3401 = vmatpush.bf16.msra.mxu0 %v3388
    %3402 = vmatpush.bf16.msra.mxu0 %v3387
    %3403 = vmatpush.bf16.msra.mxu0 %v3386
    %3404 = vmatpush.bf16.msra.mxu0 %v3385
    %3405 = vmatpush.bf16.msra.mxu0 %v3384
    %3406 = vmatpush.bf16.msra.mxu0 %v3383
    %3407 = vmatmul.bf16.gmra.mxu0 %v1486
    %v3408 = vpop.f32.mrf.mxu0
    %v3409 = vadd.f32 0.0, %v3408
    %v3410 = vpop.f32.mrf.mxu0
    %3411 = vdwg.mxu0
    %v3412 = vadd.f32 %v1945, %v2006
    %v3413 = vadd.f32 %v3412, %v2067
    %v3414 = vadd.f32 %v3413, %v2128
    %v3415 = vadd.f32 %v3414, %v2189
    %v3416 = vadd.f32 %v3415, %v2250
    %v3417 = vadd.f32 %v3416, %v2311
    %v3418 = vadd.f32 %v3417, %v2372
    %v3419 = vadd.f32 %v3418, %v2433
    %v3420 = vadd.f32 %v3419, %v2494
    %v3421 = vadd.f32 %v3420, %v2555
    %v3422 = vadd.f32 %v3421, %v2616
    %v3423 = vadd.f32 %v3422, %v2677
    %v3424 = vadd.f32 %v3423, %v2738
    %v3425 = vadd.f32 %v3424, %v2799
    %v3426 = vadd.f32 %v3425, %v2860
    %v3427 = vadd.f32 %v3426, %v2921
    %v3428 = vadd.f32 %v3427, %v2982
    %v3429 = vadd.f32 %v3428, %v3043
    %v3430 = vadd.f32 %v3429, %v3104
    %v3431 = vadd.f32 %v3430, %v3165
    %v3432 = vadd.f32 %v3431, %v3226
    %v3433 = vadd.f32 %v3432, %v3287
    %v3434 = vadd.f32 %v3433, %v3348
    %v3435 = vadd.f32 %v3434, %v3409
    %v3436 = vld [vmem:[%s4] sm:$0x1]
    %v3438 = vperm.slane %v3436, 0
    %v3440 = vadd.f32 %v3435, %v3438
    %v3441 = vmax.f32 %v3440, 0.0
    %v3442 = vpack.c.bf16 %v3441, %v3441
    %v3443 = vld [vmem:[%s5] sm:$0xf]
    %v3444 = vld [vmem:[%s5 + $0x4] sm:$0xf]
    %v3445 = vld [vmem:[%s5 + $0x8] sm:$0xf]
    %v3446 = vld [vmem:[%s5 + $0xc] sm:$0xf]
    %v3447 = vld [vmem:[%s5 + $0x10] sm:$0xf]
    %v3448 = vld [vmem:[%s5 + $0x14] sm:$0xf]
    %v3449 = vld [vmem:[%s5 + $0x18] sm:$0xf]
    %v3450 = vld [vmem:[%s5 + $0x1c] sm:$0xf]
    %v3451 = vld [vmem:[%s5 + $0x20] sm:$0xf]
    %v3452 = vld [vmem:[%s5 + $0x24] sm:$0xf]
    %v3453 = vld [vmem:[%s5 + $0x28] sm:$0xf]
    %v3454 = vld [vmem:[%s5 + $0x2c] sm:$0xf]
    %v3455 = vld [vmem:[%s5 + $0x30] sm:$0xf]
    %v3456 = vld [vmem:[%s5 + $0x34] sm:$0xf]
    %v3457 = vld [vmem:[%s5 + $0x38] sm:$0xf]
    %v3458 = vld [vmem:[%s5 + $0x3c] sm:$0xf]
    %v3459 = vld [vmem:[%s6] sm:$0x1]
    %v3461 = vperm.slane %v3459, 0
    %v3479 = vunpack.c.l.b16 %v3443
    %v3480 = vunpack.c.l.b16 %v3444
    %v3481 = vunpack.c.l.b16 %v3445
    %v3482 = vunpack.c.l.b16 %v3446
    %v3483 = vunpack.c.l.b16 %v3447
    %v3484 = vunpack.c.l.b16 %v3448
    %v3485 = vunpack.c.l.b16 %v3449
    %v3486 = vunpack.c.l.b16 %v3450
    %v3487 = vunpack.c.l.b16 %v3451
    %v3488 = vunpack.c.l.b16 %v3452
    %v3489 = vunpack.c.l.b16 %v3453
    %v3490 = vunpack.c.l.b16 %v3454
    %v3491 = vunpack.c.l.b16 %v3455
    %v3492 = vunpack.c.l.b16 %v3456
    %v3493 = vunpack.c.l.b16 %v3457
    %v3494 = vunpack.c.l.b16 %v3458
    %v3495 = vpack.c.b16 %v3480, %v3479
    %v3496 = vpack.c.b16 %v3482, %v3481
    %v3497 = vpack.c.b16 %v3484, %v3483
    %v3498 = vpack.c.b16 %v3486, %v3485
    %v3499 = vpack.c.b16 %v3488, %v3487
    %v3500 = vpack.c.b16 %v3490, %v3489
    %v3501 = vpack.c.b16 %v3492, %v3491
    %v3502 = vpack.c.b16 %v3494, %v3493
    %3511 = vmatpush.bf16.msra.mxu0 %v3502
    %3512 = vmatpush.bf16.msra.mxu0 %v3501
    %3513 = vmatpush.bf16.msra.mxu0 %v3500
    %3514 = vmatpush.bf16.msra.mxu0 %v3499
    %3515 = vmatpush.bf16.msra.mxu0 %v3498
    %3516 = vmatpush.bf16.msra.mxu0 %v3497
    %3517 = vmatpush.bf16.msra.mxu0 %v3496
    %3518 = vmatpush.bf16.msra.mxu0 %v3495
    %3519 = vmatmul.bf16.gmra.mxu0 %v3442
    %v3520 = vpop.f32.mrf.mxu0
    %v3521 = vadd.f32 %v3461, %v3520
    %v3522 = vpop.f32.mrf.mxu0
    %3523 = vdwg.mxu0
    %v3524 = vmax.f32 %v3521, 0.0
    %v3525 = vpack.c.bf16 %v3524, %v3524
    %v3526 = vld [vmem:[%s7] sm:$0xf]
    %v3527 = vld [vmem:[%s7 + $0x4] sm:$0xf]
    %v3528 = vld [vmem:[%s7 + $0x8] sm:$0xf]
    %v3529 = vld [vmem:[%s7 + $0xc] sm:$0xf]
    %v3530 = vld [vmem:[%s7 + $0x10] sm:$0xf]
    %v3531 = vld [vmem:[%s7 + $0x14] sm:$0xf]
    %v3532 = vld [vmem:[%s7 + $0x18] sm:$0xf]
    %v3533 = vld [vmem:[%s7 + $0x1c] sm:$0xf]
    %v3534 = vld [vmem:[%s7 + $0x20] sm:$0xf]
    %v3535 = vld [vmem:[%s7 + $0x24] sm:$0xf]
    %v3536 = vld [vmem:[%s7 + $0x28] sm:$0xf]
    %v3537 = vld [vmem:[%s7 + $0x2c] sm:$0xf]
    %v3538 = vld [vmem:[%s7 + $0x30] sm:$0xf]
    %v3539 = vld [vmem:[%s7 + $0x34] sm:$0xf]
    %v3540 = vld [vmem:[%s7 + $0x38] sm:$0xf]
    %v3541 = vld [vmem:[%s7 + $0x3c] sm:$0xf]
    %v3542 = vld [vmem:[%s8] sm:$0x1]
    %v3544 = vperm.slane %v3542, 0
    %v3562 = vunpack.c.l.b16 %v3526
    %v3563 = vunpack.c.l.b16 %v3527
    %v3564 = vunpack.c.l.b16 %v3528
    %v3565 = vunpack.c.l.b16 %v3529
    %v3566 = vunpack.c.l.b16 %v3530
    %v3567 = vunpack.c.l.b16 %v3531
    %v3568 = vunpack.c.l.b16 %v3532
    %v3569 = vunpack.c.l.b16 %v3533
    %v3570 = vunpack.c.l.b16 %v3534
    %v3571 = vunpack.c.l.b16 %v3535
    %v3572 = vunpack.c.l.b16 %v3536
    %v3573 = vunpack.c.l.b16 %v3537
    %v3574 = vunpack.c.l.b16 %v3538
    %v3575 = vunpack.c.l.b16 %v3539
    %v3576 = vunpack.c.l.b16 %v3540
    %v3577 = vunpack.c.l.b16 %v3541
    %v3578 = vpack.c.b16 %v3563, %v3562
    %v3579 = vpack.c.b16 %v3565, %v3564
    %v3580 = vpack.c.b16 %v3567, %v3566
    %v3581 = vpack.c.b16 %v3569, %v3568
    %v3582 = vpack.c.b16 %v3571, %v3570
    %v3583 = vpack.c.b16 %v3573, %v3572
    %v3584 = vpack.c.b16 %v3575, %v3574
    %v3585 = vpack.c.b16 %v3577, %v3576
    %3594 = vmatpush.bf16.msra.mxu0 %v3585
    %3595 = vmatpush.bf16.msra.mxu0 %v3584
    %3596 = vmatpush.bf16.msra.mxu0 %v3583
    %3597 = vmatpush.bf16.msra.mxu0 %v3582
    %3598 = vmatpush.bf16.msra.mxu0 %v3581
    %3599 = vmatpush.bf16.msra.mxu0 %v3580
    %3600 = vmatpush.bf16.msra.mxu0 %v3579
    %3601 = vmatpush.bf16.msra.mxu0 %v3578
    %3602 = vmatmul.bf16.gmra.mxu0 %v3525
    %v3603 = vpop.f32.mrf.mxu0
    %v3604 = vadd.f32 %v3544, %v3603
    %v3605 = vpop.f32.mrf.mxu0
    %3606 = vdwg.mxu0
    %v3607 = vmax.f32 %v3604, 0.0
    %3608 = vst [vmem:[#allocation2] sm:$0xff] %v3607
    // Predicated region
    $region38: #{cifarnet_forward.3} parent=1 // pred_check
      _
    $region39: #{cifarnet_forward.3} parent=1 // pred_check_branch
      %3610 = sbr.rel (0) target = $region41
    $region40: #{cifarnet_forward.3} parent=1 // pred_region
      %3612 = vsyncadd [#allocation3], 0
      %s3614 = sshll.u32 [#allocation2], 4
      %s3615 = int_to_ptr.vmem [resolvable:$true] %s3614
      %s3616 = sshll.u32 %s9, 4
      %s3617 = int_to_ptr.hbm [resolvable:$true] %s3616
      %3619 = dma.vmem_to_hbm [thread:$0]  %s3615, 128, %s3617, [#allocation3]
    $region41: #{cifarnet_forward.3} parent=1 // pred_fallthru
      _
    // Predicated region
    $region42: #{cifarnet_forward.3} parent=1 // pred_check
      _
    $region43: #{cifarnet_forward.3} parent=1 // pred_check_branch
      %3621 = sbr.rel (0) target = $region45
    $region44: #{cifarnet_forward.3} parent=1 // pred_region
      %3623 = dma.done [#allocation3], 128
    $region45: #{cifarnet_forward.3} parent=1 // pred_fallthru
      _
    %3624 = vsyncpa [#allocation3], 1

</llo_original>
